<compile_context>
chip_gen: v7x
topology: tpu7x:2x2x1
jax: 0.10.0
libtpu: 0.0.40
codegen_flags: <defaults>
</compile_context>

<pallas_src>
import jax
import jax.numpy as jnp
from jax import lax
from jax.experimental import pallas as pl
from jax.experimental.pallas import tpu as pltpu

_NEG = -1e30      # masks padded logit lanes out of log_softmax


# ----------------------------------------------------------------------------
# Fused kernel: conv1+pool -> conv2 -> flatten -> fc1+ReLU -> fc2 -> log_softmax
# ----------------------------------------------------------------------------
def _fused_kernel(p_ref, w1_ref, b1_ref, w2_ref, b2_ref,
                  fw1_ref, fb1_ref, fw2_ref, fb2_ref,
                  o_ref, y2_ref, flat_ref):
    tb = o_ref.shape[0]          # batch tile
    r2 = tb * 160                # conv2 GEMM rows: (b, oh=10, padded ow=16)

    # ---- conv1 (1->10, 5x5) with the 2x2 max-pool fused: ONE dot, K=128 -----
    # rows = (b, pooled_h=12, padded pooled_w=24), cols = 4 pool-parities x 128
    acc1 = jnp.dot(p_ref[...], w1_ref[...], preferred_element_type=jnp.float32)
    acc1 = acc1 + b1_ref[...]                                    # (tb*288, 512)
    pooled = jnp.maximum(jnp.maximum(acc1[:, 0:128], acc1[:, 128:256]),
                         jnp.maximum(acc1[:, 256:384], acc1[:, 384:512]))
    pooled = pooled.reshape(tb, 12, 24, 128)                     # f32, 8-aligned

    # ---- conv2 (10->20, 3x3): in-VMEM im2col (lane concat of 9 shifted bf16
    # views) -> ONE dot with K = 9*128 = 1152, f32 accumulation on the MXU.
    taps = [pooled[:, i:i + 10, j:j + 16, :].astype(jnp.bfloat16)
            for i in range(3) for j in range(3)]
    lhs2 = jnp.concatenate(taps, axis=-1).reshape(r2, 1152)      # (tb*160, 1152)
    acc2 = jnp.dot(lhs2, w2_ref[...], preferred_element_type=jnp.float32)
    acc2 = acc2 + b2_ref[...]
    y2_ref[...] = acc2.reshape(tb, 10, 16, 128)
    # (dead `X = F.relu(x)` of the reference model is intentionally omitted)

    # ---- flatten to the (oh, ow, c_pad32) order baked into fc1's weight -----
    # 25 lane-aligned 128-wide stores (4 positions x 32 channels each).
    for g in range(25):
        pieces = []
        for t in range(4):
            pos = 4 * g + t
            pieces.append(y2_ref[:, pos // 10, pos % 10, 0:32])  # (tb, 32)
        flat_ref[:, g * 128:(g + 1) * 128] = jnp.concatenate(pieces, axis=-1)

    # ---- fc1 (3200->512) + ReLU + fc2 (512->128) + log_softmax --------------
    flat = flat_ref[...].astype(jnp.bfloat16)
    h = jnp.dot(flat, fw1_ref[...], preferred_element_type=jnp.float32)
    h = jnp.maximum(h + fb1_ref[...], 0.0)
    z = jnp.dot(h.astype(jnp.bfloat16), fw2_ref[...],
                preferred_element_type=jnp.float32) + fb2_ref[...]
    m = jnp.max(z, axis=-1, keepdims=True)       # padded logit lanes are -1e30
    s = z - m
    lse = jnp.log(jnp.sum(jnp.exp(s), axis=-1, keepdims=True))
    o_ref[:, 0, :] = s - lse


def fused_forward(P, kp, B_pad, tb):
    nb = B_pad // tb
    return pl.pallas_call(
        _fused_kernel,
        out_shape=jax.ShapeDtypeStruct((B_pad, 1, 128), jnp.float32),
        grid_spec=pltpu.PrefetchScalarGridSpec(
            num_scalar_prefetch=0,
            grid=(nb,),
            in_specs=[
                pl.BlockSpec((tb * 288, 128), lambda i: (i, 0)),   # conv1 patches
                pl.BlockSpec((128, 512), lambda i: (0, 0)),        # w1p
                pl.BlockSpec((1, 512), lambda i: (0, 0)),          # b1p
                pl.BlockSpec((1152, 128), lambda i: (0, 0)),       # w2p
                pl.BlockSpec((1, 128), lambda i: (0, 0)),          # b2p
                pl.BlockSpec((3200, 512), lambda i: (0, 0)),       # fc1_w
                pl.BlockSpec((1, 512), lambda i: (0, 0)),          # fc1_b
                pl.BlockSpec((512, 128), lambda i: (0, 0)),        # fc2_w
                pl.BlockSpec((1, 128), lambda i: (0, 0)),          # fc2_b
            ],
            out_specs=pl.BlockSpec((tb, 1, 128), lambda i: (i, 0, 0)),
            scratch_shapes=[
                pltpu.VMEM((tb, 10, 16, 128), jnp.float32),        # conv2 output
                pltpu.VMEM((tb, 3200), jnp.float32),               # flat fc1 input
            ],
        ),
        compiler_params=pltpu.CompilerParams(
            dimension_semantics=("parallel",),
            vmem_limit_bytes=40 * 1024 * 1024,
        ),
    )(P, kp["w1p"], kp["b1p"], kp["w2p"], kp["b2p"],
      kp["fc1_w"], kp["fc1_b"], kp["fc2_w"], kp["fc2_b"])


# ----------------------------------------------------------------------------
# Parameters: torch-layout init + one-time repack into kernel layouts.
# ----------------------------------------------------------------------------
def init_params(key):
    """PyTorch-layout parameters (same shapes as the nn.Module)."""
    ks = jax.random.split(key, 8)

    def u(k, shape, fan_in):
        bound = 1.0 / jnp.sqrt(fan_in)
        return jax.random.uniform(k, shape, jnp.float32, -bound, bound)

    return {
        "conv1_w": u(ks[0], (10, 1, 5, 5), 25),
        "conv1_b": u(ks[1], (10,), 25),
        "conv2_w": u(ks[2], (20, 10, 3, 3), 90),
        "conv2_b": u(ks[3], (20,), 90),
        "fc1_w": u(ks[4], (500, 2000), 2000),     # torch Linear: (out, in)
        "fc1_b": u(ks[5], (500,), 2000),
        "fc2_w": u(ks[6], (10, 500), 500),
        "fc2_b": u(ks[7], (10,), 500),
    }


def prepare_params(p):
    """One-time repack: folded / permuted / lane-padded bf16 kernel weights."""
    # conv1 -> (K=128 [36 real taps (a,b,qh,qw)], N=512 [4 pool-parities x 128c])
    # W1fold[(a,b,qh,qw), (r,c)] = w1[c, 2a+qh-rh, 2b+qw-rw] (valid else 0),
    # where r = 2*rh + rw is the pool parity that the lane-block max reduces.
    w1_hw = p["conv1_w"][:, 0]                               # (c, i, j)
    W = jnp.zeros((6, 6, 4, 10), jnp.float32)
    for rh in range(2):
        for rw in range(2):
            W = W.at[rh:rh + 5, rw:rw + 5, 2 * rh + rw, :].set(
                jnp.transpose(w1_hw, (1, 2, 0)))
    W = W.reshape(3, 2, 3, 2, 4, 10)                         # (a, qh, b, qw, r, c)
    W = jnp.transpose(W, (0, 2, 1, 3, 4, 5)).reshape(36, 4, 10)
    w1p = jnp.zeros((128, 4, 128), jnp.float32).at[:36, :, :10].set(W)
    w1p = w1p.reshape(128, 512).astype(jnp.bfloat16)
    b1p = jnp.tile(jnp.pad(p["conv1_b"], (0, 118)), 4).reshape(1, 512)

    # conv2 -> single-dot layout: (K = (i,j,ci_pad128) = 1152, N = cout_pad128)
    w2t = jnp.transpose(p["conv2_w"], (2, 3, 1, 0))          # (i, j, ci, co)
    w2p = jnp.zeros((3, 3, 128, 128), jnp.float32).at[:, :, :10, :20].set(w2t)
    w2p = w2p.reshape(1152, 128).astype(jnp.bfloat16)
    b2p = jnp.pad(p["conv2_b"], (0, 108)).reshape(1, 128)

    # fc1: rows reordered to the kernel's flatten order (oh, ow, c_pad32);
    # torch's NCHW flatten index is c*100 + oh*10 + ow.  Outputs padded to 512.
    fw1 = p["fc1_w"].reshape(500, 20, 10, 10)                # (out, c, oh, ow)
    fw1 = jnp.transpose(fw1, (2, 3, 1, 0))                   # (oh, ow, c, out)
    fw1 = jnp.pad(fw1, ((0, 0), (0, 0), (0, 12), (0, 12)))   # c 20->32, out->512
    fw1 = fw1.reshape(3200, 512).astype(jnp.bfloat16)
    fb1 = jnp.pad(p["fc1_b"], (0, 12)).reshape(1, 512)

    # fc2: (in, out) with rows padded 500->512 (zeros) and cols 10->128; the
    # padded bias lanes are -1e30 so log_softmax ignores them.
    fw2 = jnp.pad(p["fc2_w"].T, ((0, 12), (0, 118))).astype(jnp.bfloat16)
    fb2 = jnp.pad(p["fc2_b"], (0, 118), constant_values=_NEG).reshape(1, 128)

    return {"w1p": w1p, "b1p": b1p, "w2p": w2p, "b2p": b2p,
            "fc1_w": fw1, "fc1_b": fb1, "fc2_w": fw2, "fc2_b": fb2}


# ----------------------------------------------------------------------------
# Forward
# ----------------------------------------------------------------------------
@jax.jit
def forward(kp, x_nchw):
    B, C, H, Wd = x_nchw.shape
    assert (C, H, Wd) == (1, 28, 28)
    tb = max(1, min(8, (B + 1) // 2))      # >=2 grid steps when B>=2 (v7x cores)
    nb = -(-B // tb)
    B_pad = nb * tb

    # Space-to-depth parity split + 3x3 parity-tap im2col (tiny XLA plumbing,
    # ~74 KB/img bf16): P[b, ph, pwp, (a*3+bb)*4 + q] = xp[b, ph+a, pwp+bb, q].
    xp = x_nchw.reshape(B, 14, 2, 14, 2).transpose(0, 1, 3, 2, 4)
    xp = xp.reshape(B, 14, 14, 4)
    xp = jnp.pad(xp, ((0, B_pad - B), (0, 0), (0, 12), (0, 0)))   # (B_pad,14,26,4)
    taps = [xp[:, a:a + 12, b:b + 24, :] for a in range(3) for b in range(3)]
    P = jnp.concatenate(taps, axis=-1)                            # (B_pad,12,24,36)
    P = jnp.pad(P, ((0, 0), (0, 0), (0, 0), (0, 92)))             # K 36 -> 128
    P = P.reshape(B_pad * 288, 128).astype(jnp.bfloat16)

    out = fused_forward(P, kp, B_pad, tb)
    return out[:B, 0, :10]


# Pure-JAX reference (exact torch semantics, f32) for a correctness check.
def reference_forward(p, x):
    dn = ("NCHW", "OIHW", "NCHW")
    y = lax.conv_general_dilated(x, p["conv1_w"], (1, 1), "VALID",
                                 dimension_numbers=dn)
    y = y + p["conv1_b"][None, :, None, None]
    y = lax.reduce_window(y, -jnp.inf, lax.max, (1, 1, 2, 2), (1, 1, 2, 2),
                          "VALID")
    y = lax.conv_general_dilated(y, p["conv2_w"], (1, 1), "VALID",
                                 dimension_numbers=dn)
    y = y + p["conv2_b"][None, :, None, None]
    flat = y.reshape(x.shape[0], -1)                 # NCHW flatten, like .view
    h = jnp.maximum(flat @ p["fc1_w"].T + p["fc1_b"], 0.0)
    z = h @ p["fc2_w"].T + p["fc2_b"]
    return jax.nn.log_softmax(z, axis=-1)


if __name__ == "__main__":
    key = jax.random.PRNGKey(0)
    pkey, xkey = jax.random.split(key)
    params = init_params(pkey)
    kparams = prepare_params(params)        # one-time repack (NOT per forward)
    x = jax.random.normal(xkey, (2, 1, 28, 28), dtype=jnp.float32)

    out = jax.block_until_ready(forward(kparams, x))

    assert out.shape == (2, 10)
    # rows of log_softmax must exp-sum to 1
    assert jnp.allclose(jnp.sum(jnp.exp(out), axis=1), 1.0, atol=1e-3)
    # match the f32 reference (whole pipeline runs bf16 on the MXU -> loose tol)
    ref = jax.block_until_ready(reference_forward(params, x))
    assert jnp.allclose(out, ref, atol=7.5e-2, rtol=7.5e-2), (
        "max abs diff %g" % float(jnp.max(jnp.abs(out - ref))))

    print("KERNEL_OK")
</pallas_src>

<mosaic_0001>
module attributes {stable_mosaic.version = 11 : i64} {
  func.func @_fused_kernel(%arg0: i32, %arg1: memref<288x128xbf16, #tpu.memory_space<vmem>>, %arg2: memref<128x512xbf16, #tpu.memory_space<vmem>>, %arg3: memref<1x512xf32, #tpu.memory_space<vmem>>, %arg4: memref<1152x128xbf16, #tpu.memory_space<vmem>>, %arg5: memref<1x128xf32, #tpu.memory_space<vmem>>, %arg6: memref<3200x512xbf16, #tpu.memory_space<vmem>>, %arg7: memref<1x512xf32, #tpu.memory_space<vmem>>, %arg8: memref<512x128xbf16, #tpu.memory_space<vmem>>, %arg9: memref<1x128xf32, #tpu.memory_space<vmem>>, %arg10: memref<1x1x128xf32, #tpu.memory_space<vmem>>, %arg11: memref<1x10x16x128xf32, #tpu.memory_space<vmem>>, %arg12: memref<1x3200xf32, #tpu.memory_space<vmem>>) attributes {dimension_semantics = [#tpu.dimension_semantics<parallel>], iteration_bounds = array<i64: 2>, scalar_prefetch = 0 : i64, scratch_operands = 2 : i64, tpu.core_type = #tpu.core_type<tc>, window_params = [{transform_indices = @transform_0, window_bounds = array<i64: 288, 128>}, {pipeline_mode = #tpu.pipeline_mode<synchronous>, transform_indices = @transform_1, window_bounds = array<i64: 128, 512>}, {pipeline_mode = #tpu.pipeline_mode<synchronous>, transform_indices = @transform_2, window_bounds = array<i64: 1, 512>}, {pipeline_mode = #tpu.pipeline_mode<synchronous>, transform_indices = @transform_3, window_bounds = array<i64: 1152, 128>}, {pipeline_mode = #tpu.pipeline_mode<synchronous>, transform_indices = @transform_4, window_bounds = array<i64: 1, 128>}, {pipeline_mode = #tpu.pipeline_mode<synchronous>, transform_indices = @transform_5, window_bounds = array<i64: 3200, 512>}, {pipeline_mode = #tpu.pipeline_mode<synchronous>, transform_indices = @transform_6, window_bounds = array<i64: 1, 512>}, {pipeline_mode = #tpu.pipeline_mode<synchronous>, transform_indices = @transform_7, window_bounds = array<i64: 512, 128>}, {pipeline_mode = #tpu.pipeline_mode<synchronous>, transform_indices = @transform_8, window_bounds = array<i64: 1, 128>}, {transform_indices = @transform_9, window_bounds = array<i64: 1, 1, 128>}]} {
    %c0 = arith.constant 0 : index
    %c0_0 = arith.constant 0 : index
    %0 = vector.load %arg1[%c0, %c0_0] : memref<288x128xbf16, #tpu.memory_space<vmem>>, vector<288x128xbf16>
    %c0_1 = arith.constant 0 : index
    %c0_2 = arith.constant 0 : index
    %1 = vector.load %arg2[%c0_1, %c0_2] : memref<128x512xbf16, #tpu.memory_space<vmem>>, vector<128x512xbf16>
    %cst = arith.constant dense<0.000000e+00> : vector<288x512xf32>
    %2 = tpu.matmul %0, %1, %cst {dimension_numbers = #tpu.dot_dimension_numbers<[1], [0], [0], [1], [0, 0, 1, 1], [], []>} : vector<288x128xbf16>, vector<128x512xbf16>, vector<288x512xf32> -> vector<288x512xf32>
    %c0_3 = arith.constant 0 : index
    %c0_4 = arith.constant 0 : index
    %3 = vector.load %arg3[%c0_3, %c0_4] : memref<1x512xf32, #tpu.memory_space<vmem>>, vector<1x512xf32>
    %4 = vector.broadcast %3 : vector<1x512xf32> to vector<288x512xf32>
    %5 = arith.addf %2, %4 : vector<288x512xf32>
    %6 = vector.extract_strided_slice %5 {offsets = [0, 0], sizes = [288, 128], strides = [1, 1]} : vector<288x512xf32> to vector<288x128xf32>
    %7 = vector.extract_strided_slice %5 {offsets = [0, 128], sizes = [288, 128], strides = [1, 1]} : vector<288x512xf32> to vector<288x128xf32>
    %8 = arith.maximumf %6, %7 : vector<288x128xf32>
    %9 = vector.extract_strided_slice %5 {offsets = [0, 256], sizes = [288, 128], strides = [1, 1]} : vector<288x512xf32> to vector<288x128xf32>
    %10 = vector.extract_strided_slice %5 {offsets = [0, 384], sizes = [288, 128], strides = [1, 1]} : vector<288x512xf32> to vector<288x128xf32>
    %11 = arith.maximumf %9, %10 : vector<288x128xf32>
    %12 = arith.maximumf %8, %11 : vector<288x128xf32>
    %13 = vector.shape_cast %12 : vector<288x128xf32> to vector<1x12x24x128xf32>
    %14 = vector.extract_strided_slice %13 {offsets = [0, 0, 0, 0], sizes = [1, 10, 16, 128], strides = [1, 1, 1, 1]} : vector<1x12x24x128xf32> to vector<1x10x16x128xf32>
    %15 = arith.truncf %14 : vector<1x10x16x128xf32> to vector<1x10x16x128xbf16>
    %16 = vector.extract_strided_slice %13 {offsets = [0, 0, 1, 0], sizes = [1, 10, 16, 128], strides = [1, 1, 1, 1]} : vector<1x12x24x128xf32> to vector<1x10x16x128xf32>
    %17 = arith.truncf %16 : vector<1x10x16x128xf32> to vector<1x10x16x128xbf16>
    %18 = vector.extract_strided_slice %13 {offsets = [0, 0, 2, 0], sizes = [1, 10, 16, 128], strides = [1, 1, 1, 1]} : vector<1x12x24x128xf32> to vector<1x10x16x128xf32>
    %19 = arith.truncf %18 : vector<1x10x16x128xf32> to vector<1x10x16x128xbf16>
    %20 = vector.extract_strided_slice %13 {offsets = [0, 1, 0, 0], sizes = [1, 10, 16, 128], strides = [1, 1, 1, 1]} : vector<1x12x24x128xf32> to vector<1x10x16x128xf32>
    %21 = arith.truncf %20 : vector<1x10x16x128xf32> to vector<1x10x16x128xbf16>
    %22 = vector.extract_strided_slice %13 {offsets = [0, 1, 1, 0], sizes = [1, 10, 16, 128], strides = [1, 1, 1, 1]} : vector<1x12x24x128xf32> to vector<1x10x16x128xf32>
    %23 = arith.truncf %22 : vector<1x10x16x128xf32> to vector<1x10x16x128xbf16>
    %24 = vector.extract_strided_slice %13 {offsets = [0, 1, 2, 0], sizes = [1, 10, 16, 128], strides = [1, 1, 1, 1]} : vector<1x12x24x128xf32> to vector<1x10x16x128xf32>
    %25 = arith.truncf %24 : vector<1x10x16x128xf32> to vector<1x10x16x128xbf16>
    %26 = vector.extract_strided_slice %13 {offsets = [0, 2, 0, 0], sizes = [1, 10, 16, 128], strides = [1, 1, 1, 1]} : vector<1x12x24x128xf32> to vector<1x10x16x128xf32>
    %27 = arith.truncf %26 : vector<1x10x16x128xf32> to vector<1x10x16x128xbf16>
    %28 = vector.extract_strided_slice %13 {offsets = [0, 2, 1, 0], sizes = [1, 10, 16, 128], strides = [1, 1, 1, 1]} : vector<1x12x24x128xf32> to vector<1x10x16x128xf32>
    %29 = arith.truncf %28 : vector<1x10x16x128xf32> to vector<1x10x16x128xbf16>
    %30 = vector.extract_strided_slice %13 {offsets = [0, 2, 2, 0], sizes = [1, 10, 16, 128], strides = [1, 1, 1, 1]} : vector<1x12x24x128xf32> to vector<1x10x16x128xf32>
    %31 = arith.truncf %30 : vector<1x10x16x128xf32> to vector<1x10x16x128xbf16>
    %32 = tpu.concatenate %15, %17, %19, %21, %23, %25, %27, %29, %31 in 3 : vector<1x10x16x128xbf16>, vector<1x10x16x128xbf16>, vector<1x10x16x128xbf16>, vector<1x10x16x128xbf16>, vector<1x10x16x128xbf16>, vector<1x10x16x128xbf16>, vector<1x10x16x128xbf16>, vector<1x10x16x128xbf16>, vector<1x10x16x128xbf16> -> vector<1x10x16x1152xbf16>
    %33 = vector.shape_cast %32 : vector<1x10x16x1152xbf16> to vector<160x1152xbf16>
    %c0_5 = arith.constant 0 : index
    %c0_6 = arith.constant 0 : index
    %34 = vector.load %arg4[%c0_5, %c0_6] : memref<1152x128xbf16, #tpu.memory_space<vmem>>, vector<1152x128xbf16>
    %cst_7 = arith.constant dense<0.000000e+00> : vector<160x128xf32>
    %35 = tpu.matmul %33, %34, %cst_7 {dimension_numbers = #tpu.dot_dimension_numbers<[1], [0], [0], [1], [0, 0, 1, 1], [], []>} : vector<160x1152xbf16>, vector<1152x128xbf16>, vector<160x128xf32> -> vector<160x128xf32>
    %c0_8 = arith.constant 0 : index
    %c0_9 = arith.constant 0 : index
    %36 = vector.load %arg5[%c0_8, %c0_9] : memref<1x128xf32, #tpu.memory_space<vmem>>, vector<1x128xf32>
    %37 = vector.broadcast %36 : vector<1x128xf32> to vector<160x128xf32>
    %38 = arith.addf %35, %37 : vector<160x128xf32>
    %39 = vector.shape_cast %38 : vector<160x128xf32> to vector<1x10x16x128xf32>
    %c0_10 = arith.constant 0 : index
    %c0_11 = arith.constant 0 : index
    %c0_12 = arith.constant 0 : index
    %c0_13 = arith.constant 0 : index
    %40 = vector.load %arg11[%c0_10, %c0_11, %c0_12, %c0_13] : memref<1x10x16x128xf32, #tpu.memory_space<vmem>>, vector<1x10x16x128xf32>
    tpu.vector_store %arg11[%c0_10, %c0_11, %c0_12, %c0_13], %39 {strides = array<i32>} : memref<1x10x16x128xf32, #tpu.memory_space<vmem>>, vector<1x10x16x128xf32>,
    %c0_14 = arith.constant 0 : index
    %c0_15 = arith.constant 0 : index
    %c0_16 = arith.constant 0 : index
    %c0_17 = arith.constant 0 : index
    %41 = vector.load %arg11[%c0_14, %c0_15, %c0_16, %c0_17] : memref<1x10x16x128xf32, #tpu.memory_space<vmem>>, vector<1x1x1x32xf32>
    %42 = vector.shape_cast %41 : vector<1x1x1x32xf32> to vector<1x32xf32>
    %c0_18 = arith.constant 0 : index
    %c0_19 = arith.constant 0 : index
    %c1 = arith.constant 1 : index
    %c0_20 = arith.constant 0 : index
    %43 = vector.load %arg11[%c0_18, %c0_19, %c1, %c0_20] : memref<1x10x16x128xf32, #tpu.memory_space<vmem>>, vector<1x1x1x32xf32>
    %44 = vector.shape_cast %43 : vector<1x1x1x32xf32> to vector<1x32xf32>
    %c0_21 = arith.constant 0 : index
    %c0_22 = arith.constant 0 : index
    %c2 = arith.constant 2 : index
    %c0_23 = arith.constant 0 : index
    %45 = vector.load %arg11[%c0_21, %c0_22, %c2, %c0_23] : memref<1x10x16x128xf32, #tpu.memory_space<vmem>>, vector<1x1x1x32xf32>
    %46 = vector.shape_cast %45 : vector<1x1x1x32xf32> to vector<1x32xf32>
    %c0_24 = arith.constant 0 : index
    %c0_25 = arith.constant 0 : index
    %c3 = arith.constant 3 : index
    %c0_26 = arith.constant 0 : index
    %47 = vector.load %arg11[%c0_24, %c0_25, %c3, %c0_26] : memref<1x10x16x128xf32, #tpu.memory_space<vmem>>, vector<1x1x1x32xf32>
    %48 = vector.shape_cast %47 : vector<1x1x1x32xf32> to vector<1x32xf32>
    %49 = tpu.concatenate %42, %44, %46, %48 in 1 : vector<1x32xf32>, vector<1x32xf32>, vector<1x32xf32>, vector<1x32xf32> -> vector<1x128xf32>
    %c0_27 = arith.constant 0 : index
    %c0_28 = arith.constant 0 : index
    %50 = vector.load %arg12[%c0_27, %c0_28] : memref<1x3200xf32, #tpu.memory_space<vmem>>, vector<1x128xf32>
    tpu.vector_store %arg12[%c0_27, %c0_28], %49 {strides = array<i32>} : memref<1x3200xf32, #tpu.memory_space<vmem>>, vector<1x128xf32>,
    %c0_29 = arith.constant 0 : index
    %c0_30 = arith.constant 0 : index
    %c4 = arith.constant 4 : index
    %c0_31 = arith.constant 0 : index
    %51 = vector.load %arg11[%c0_29, %c0_30, %c4, %c0_31] : memref<1x10x16x128xf32, #tpu.memory_space<vmem>>, vector<1x1x1x32xf32>
    %52 = vector.shape_cast %51 : vector<1x1x1x32xf32> to vector<1x32xf32>
    %c0_32 = arith.constant 0 : index
    %c0_33 = arith.constant 0 : index
    %c5 = arith.constant 5 : index
    %c0_34 = arith.constant 0 : index
    %53 = vector.load %arg11[%c0_32, %c0_33, %c5, %c0_34] : memref<1x10x16x128xf32, #tpu.memory_space<vmem>>, vector<1x1x1x32xf32>
    %54 = vector.shape_cast %53 : vector<1x1x1x32xf32> to vector<1x32xf32>
    %c0_35 = arith.constant 0 : index
    %c0_36 = arith.constant 0 : index
    %c6 = arith.constant 6 : index
    %c0_37 = arith.constant 0 : index
    %55 = vector.load %arg11[%c0_35, %c0_36, %c6, %c0_37] : memref<1x10x16x128xf32, #tpu.memory_space<vmem>>, vector<1x1x1x32xf32>
    %56 = vector.shape_cast %55 : vector<1x1x1x32xf32> to vector<1x32xf32>
    %c0_38 = arith.constant 0 : index
    %c0_39 = arith.constant 0 : index
    %c7 = arith.constant 7 : index
    %c0_40 = arith.constant 0 : index
    %57 = vector.load %arg11[%c0_38, %c0_39, %c7, %c0_40] : memref<1x10x16x128xf32, #tpu.memory_space<vmem>>, vector<1x1x1x32xf32>
    %58 = vector.shape_cast %57 : vector<1x1x1x32xf32> to vector<1x32xf32>
    %59 = tpu.concatenate %52, %54, %56, %58 in 1 : vector<1x32xf32>, vector<1x32xf32>, vector<1x32xf32>, vector<1x32xf32> -> vector<1x128xf32>
    %c0_41 = arith.constant 0 : index
    %c128 = arith.constant 128 : index
    %60 = vector.load %arg12[%c0_41, %c128] : memref<1x3200xf32, #tpu.memory_space<vmem>>, vector<1x128xf32>
    tpu.vector_store %arg12[%c0_41, %c128], %59 {strides = array<i32>} : memref<1x3200xf32, #tpu.memory_space<vmem>>, vector<1x128xf32>,
    %c0_42 = arith.constant 0 : index
    %c0_43 = arith.constant 0 : index
    %c8 = arith.constant 8 : index
    %c0_44 = arith.constant 0 : index
    %61 = vector.load %arg11[%c0_42, %c0_43, %c8, %c0_44] : memref<1x10x16x128xf32, #tpu.memory_space<vmem>>, vector<1x1x1x32xf32>
    %62 = vector.shape_cast %61 : vector<1x1x1x32xf32> to vector<1x32xf32>
    %c0_45 = arith.constant 0 : index
    %c0_46 = arith.constant 0 : index
    %c9 = arith.constant 9 : index
    %c0_47 = arith.constant 0 : index
    %63 = vector.load %arg11[%c0_45, %c0_46, %c9, %c0_47] : memref<1x10x16x128xf32, #tpu.memory_space<vmem>>, vector<1x1x1x32xf32>
    %64 = vector.shape_cast %63 : vector<1x1x1x32xf32> to vector<1x32xf32>
    %c0_48 = arith.constant 0 : index
    %c1_49 = arith.constant 1 : index
    %c0_50 = arith.constant 0 : index
    %c0_51 = arith.constant 0 : index
    %65 = vector.load %arg11[%c0_48, %c1_49, %c0_50, %c0_51] : memref<1x10x16x128xf32, #tpu.memory_space<vmem>>, vector<1x1x1x32xf32>
    %66 = vector.shape_cast %65 : vector<1x1x1x32xf32> to vector<1x32xf32>
    %c0_52 = arith.constant 0 : index
    %c1_53 = arith.constant 1 : index
    %c1_54 = arith.constant 1 : index
    %c0_55 = arith.constant 0 : index
    %67 = vector.load %arg11[%c0_52, %c1_53, %c1_54, %c0_55] : memref<1x10x16x128xf32, #tpu.memory_space<vmem>>, vector<1x1x1x32xf32>
    %68 = vector.shape_cast %67 : vector<1x1x1x32xf32> to vector<1x32xf32>
    %69 = tpu.concatenate %62, %64, %66, %68 in 1 : vector<1x32xf32>, vector<1x32xf32>, vector<1x32xf32>, vector<1x32xf32> -> vector<1x128xf32>
    %c0_56 = arith.constant 0 : index
    %c256 = arith.constant 256 : index
    %70 = vector.load %arg12[%c0_56, %c256] : memref<1x3200xf32, #tpu.memory_space<vmem>>, vector<1x128xf32>
    tpu.vector_store %arg12[%c0_56, %c256], %69 {strides = array<i32>} : memref<1x3200xf32, #tpu.memory_space<vmem>>, vector<1x128xf32>,
    %c0_57 = arith.constant 0 : index
    %c1_58 = arith.constant 1 : index
    %c2_59 = arith.constant 2 : index
    %c0_60 = arith.constant 0 : index
    %71 = vector.load %arg11[%c0_57, %c1_58, %c2_59, %c0_60] : memref<1x10x16x128xf32, #tpu.memory_space<vmem>>, vector<1x1x1x32xf32>
    %72 = vector.shape_cast %71 : vector<1x1x1x32xf32> to vector<1x32xf32>
    %c0_61 = arith.constant 0 : index
    %c1_62 = arith.constant 1 : index
    %c3_63 = arith.constant 3 : index
    %c0_64 = arith.constant 0 : index
    %73 = vector.load %arg11[%c0_61, %c1_62, %c3_63, %c0_64] : memref<1x10x16x128xf32, #tpu.memory_space<vmem>>, vector<1x1x1x32xf32>
    %74 = vector.shape_cast %73 : vector<1x1x1x32xf32> to vector<1x32xf32>
    %c0_65 = arith.constant 0 : index
    %c1_66 = arith.constant 1 : index
    %c4_67 = arith.constant 4 : index
    %c0_68 = arith.constant 0 : index
    %75 = vector.load %arg11[%c0_65, %c1_66, %c4_67, %c0_68] : memref<1x10x16x128xf32, #tpu.memory_space<vmem>>, vector<1x1x1x32xf32>
    %76 = vector.shape_cast %75 : vector<1x1x1x32xf32> to vector<1x32xf32>
    %c0_69 = arith.constant 0 : index
    %c1_70 = arith.constant 1 : index
    %c5_71 = arith.constant 5 : index
    %c0_72 = arith.constant 0 : index
    %77 = vector.load %arg11[%c0_69, %c1_70, %c5_71, %c0_72] : memref<1x10x16x128xf32, #tpu.memory_space<vmem>>, vector<1x1x1x32xf32>
    %78 = vector.shape_cast %77 : vector<1x1x1x32xf32> to vector<1x32xf32>
    %79 = tpu.concatenate %72, %74, %76, %78 in 1 : vector<1x32xf32>, vector<1x32xf32>, vector<1x32xf32>, vector<1x32xf32> -> vector<1x128xf32>
    %c0_73 = arith.constant 0 : index
    %c384 = arith.constant 384 : index
    %80 = vector.load %arg12[%c0_73, %c384] : memref<1x3200xf32, #tpu.memory_space<vmem>>, vector<1x128xf32>
    tpu.vector_store %arg12[%c0_73, %c384], %79 {strides = array<i32>} : memref<1x3200xf32, #tpu.memory_space<vmem>>, vector<1x128xf32>,
    %c0_74 = arith.constant 0 : index
    %c1_75 = arith.constant 1 : index
    %c6_76 = arith.constant 6 : index
    %c0_77 = arith.constant 0 : index
    %81 = vector.load %arg11[%c0_74, %c1_75, %c6_76, %c0_77] : memref<1x10x16x128xf32, #tpu.memory_space<vmem>>, vector<1x1x1x32xf32>
    %82 = vector.shape_cast %81 : vector<1x1x1x32xf32> to vector<1x32xf32>
    %c0_78 = arith.constant 0 : index
    %c1_79 = arith.constant 1 : index
    %c7_80 = arith.constant 7 : index
    %c0_81 = arith.constant 0 : index
    %83 = vector.load %arg11[%c0_78, %c1_79, %c7_80, %c0_81] : memref<1x10x16x128xf32, #tpu.memory_space<vmem>>, vector<1x1x1x32xf32>
    %84 = vector.shape_cast %83 : vector<1x1x1x32xf32> to vector<1x32xf32>
    %c0_82 = arith.constant 0 : index
    %c1_83 = arith.constant 1 : index
    %c8_84 = arith.constant 8 : index
    %c0_85 = arith.constant 0 : index
    %85 = vector.load %arg11[%c0_82, %c1_83, %c8_84, %c0_85] : memref<1x10x16x128xf32, #tpu.memory_space<vmem>>, vector<1x1x1x32xf32>
    %86 = vector.shape_cast %85 : vector<1x1x1x32xf32> to vector<1x32xf32>
    %c0_86 = arith.constant 0 : index
    %c1_87 = arith.constant 1 : index
    %c9_88 = arith.constant 9 : index
    %c0_89 = arith.constant 0 : index
    %87 = vector.load %arg11[%c0_86, %c1_87, %c9_88, %c0_89] : memref<1x10x16x128xf32, #tpu.memory_space<vmem>>, vector<1x1x1x32xf32>
    %88 = vector.shape_cast %87 : vector<1x1x1x32xf32> to vector<1x32xf32>
    %89 = tpu.concatenate %82, %84, %86, %88 in 1 : vector<1x32xf32>, vector<1x32xf32>, vector<1x32xf32>, vector<1x32xf32> -> vector<1x128xf32>
    %c0_90 = arith.constant 0 : index
    %c512 = arith.constant 512 : index
    %90 = vector.load %arg12[%c0_90, %c512] : memref<1x3200xf32, #tpu.memory_space<vmem>>, vector<1x128xf32>
    tpu.vector_store %arg12[%c0_90, %c512], %89 {strides = array<i32>} : memref<1x3200xf32, #tpu.memory_space<vmem>>, vector<1x128xf32>,
    %c0_91 = arith.constant 0 : index
    %c2_92 = arith.constant 2 : index
    %c0_93 = arith.constant 0 : index
    %c0_94 = arith.constant 0 : index
    %91 = vector.load %arg11[%c0_91, %c2_92, %c0_93, %c0_94] : memref<1x10x16x128xf32, #tpu.memory_space<vmem>>, vector<1x1x1x32xf32>
    %92 = vector.shape_cast %91 : vector<1x1x1x32xf32> to vector<1x32xf32>
    %c0_95 = arith.constant 0 : index
    %c2_96 = arith.constant 2 : index
    %c1_97 = arith.constant 1 : index
    %c0_98 = arith.constant 0 : index
    %93 = vector.load %arg11[%c0_95, %c2_96, %c1_97, %c0_98] : memref<1x10x16x128xf32, #tpu.memory_space<vmem>>, vector<1x1x1x32xf32>
    %94 = vector.shape_cast %93 : vector<1x1x1x32xf32> to vector<1x32xf32>
    %c0_99 = arith.constant 0 : index
    %c2_100 = arith.constant 2 : index
    %c2_101 = arith.constant 2 : index
    %c0_102 = arith.constant 0 : index
    %95 = vector.load %arg11[%c0_99, %c2_100, %c2_101, %c0_102] : memref<1x10x16x128xf32, #tpu.memory_space<vmem>>, vector<1x1x1x32xf32>
    %96 = vector.shape_cast %95 : vector<1x1x1x32xf32> to vector<1x32xf32>
    %c0_103 = arith.constant 0 : index
    %c2_104 = arith.constant 2 : index
    %c3_105 = arith.constant 3 : index
    %c0_106 = arith.constant 0 : index
    %97 = vector.load %arg11[%c0_103, %c2_104, %c3_105, %c0_106] : memref<1x10x16x128xf32, #tpu.memory_space<vmem>>, vector<1x1x1x32xf32>
    %98 = vector.shape_cast %97 : vector<1x1x1x32xf32> to vector<1x32xf32>
    %99 = tpu.concatenate %92, %94, %96, %98 in 1 : vector<1x32xf32>, vector<1x32xf32>, vector<1x32xf32>, vector<1x32xf32> -> vector<1x128xf32>
    %c0_107 = arith.constant 0 : index
    %c640 = arith.constant 640 : index
    %100 = vector.load %arg12[%c0_107, %c640] : memref<1x3200xf32, #tpu.memory_space<vmem>>, vector<1x128xf32>
    tpu.vector_store %arg12[%c0_107, %c640], %99 {strides = array<i32>} : memref<1x3200xf32, #tpu.memory_space<vmem>>, vector<1x128xf32>,
    %c0_108 = arith.constant 0 : index
    %c2_109 = arith.constant 2 : index
    %c4_110 = arith.constant 4 : index
    %c0_111 = arith.constant 0 : index
    %101 = vector.load %arg11[%c0_108, %c2_109, %c4_110, %c0_111] : memref<1x10x16x128xf32, #tpu.memory_space<vmem>>, vector<1x1x1x32xf32>
    %102 = vector.shape_cast %101 : vector<1x1x1x32xf32> to vector<1x32xf32>
    %c0_112 = arith.constant 0 : index
    %c2_113 = arith.constant 2 : index
    %c5_114 = arith.constant 5 : index
    %c0_115 = arith.constant 0 : index
    %103 = vector.load %arg11[%c0_112, %c2_113, %c5_114, %c0_115] : memref<1x10x16x128xf32, #tpu.memory_space<vmem>>, vector<1x1x1x32xf32>
    %104 = vector.shape_cast %103 : vector<1x1x1x32xf32> to vector<1x32xf32>
    %c0_116 = arith.constant 0 : index
    %c2_117 = arith.constant 2 : index
    %c6_118 = arith.constant 6 : index
    %c0_119 = arith.constant 0 : index
    %105 = vector.load %arg11[%c0_116, %c2_117, %c6_118, %c0_119] : memref<1x10x16x128xf32, #tpu.memory_space<vmem>>, vector<1x1x1x32xf32>
    %106 = vector.shape_cast %105 : vector<1x1x1x32xf32> to vector<1x32xf32>
    %c0_120 = arith.constant 0 : index
    %c2_121 = arith.constant 2 : index
    %c7_122 = arith.constant 7 : index
    %c0_123 = arith.constant 0 : index
    %107 = vector.load %arg11[%c0_120, %c2_121, %c7_122, %c0_123] : memref<1x10x16x128xf32, #tpu.memory_space<vmem>>, vector<1x1x1x32xf32>
    %108 = vector.shape_cast %107 : vector<1x1x1x32xf32> to vector<1x32xf32>
    %109 = tpu.concatenate %102, %104, %106, %108 in 1 : vector<1x32xf32>, vector<1x32xf32>, vector<1x32xf32>, vector<1x32xf32> -> vector<1x128xf32>
    %c0_124 = arith.constant 0 : index
    %c768 = arith.constant 768 : index
    %110 = vector.load %arg12[%c0_124, %c768] : memref<1x3200xf32, #tpu.memory_space<vmem>>, vector<1x128xf32>
    tpu.vector_store %arg12[%c0_124, %c768], %109 {strides = array<i32>} : memref<1x3200xf32, #tpu.memory_space<vmem>>, vector<1x128xf32>,
    %c0_125 = arith.constant 0 : index
    %c2_126 = arith.constant 2 : index
    %c8_127 = arith.constant 8 : index
    %c0_128 = arith.constant 0 : index
    %111 = vector.load %arg11[%c0_125, %c2_126, %c8_127, %c0_128] : memref<1x10x16x128xf32, #tpu.memory_space<vmem>>, vector<1x1x1x32xf32>
    %112 = vector.shape_cast %111 : vector<1x1x1x32xf32> to vector<1x32xf32>
    %c0_129 = arith.constant 0 : index
    %c2_130 = arith.constant 2 : index
    %c9_131 = arith.constant 9 : index
    %c0_132 = arith.constant 0 : index
    %113 = vector.load %arg11[%c0_129, %c2_130, %c9_131, %c0_132] : memref<1x10x16x128xf32, #tpu.memory_space<vmem>>, vector<1x1x1x32xf32>
    %114 = vector.shape_cast %113 : vector<1x1x1x32xf32> to vector<1x32xf32>
    %c0_133 = arith.constant 0 : index
    %c3_134 = arith.constant 3 : index
    %c0_135 = arith.constant 0 : index
    %c0_136 = arith.constant 0 : index
    %115 = vector.load %arg11[%c0_133, %c3_134, %c0_135, %c0_136] : memref<1x10x16x128xf32, #tpu.memory_space<vmem>>, vector<1x1x1x32xf32>
    %116 = vector.shape_cast %115 : vector<1x1x1x32xf32> to vector<1x32xf32>
    %c0_137 = arith.constant 0 : index
    %c3_138 = arith.constant 3 : index
    %c1_139 = arith.constant 1 : index
    %c0_140 = arith.constant 0 : index
    %117 = vector.load %arg11[%c0_137, %c3_138, %c1_139, %c0_140] : memref<1x10x16x128xf32, #tpu.memory_space<vmem>>, vector<1x1x1x32xf32>
    %118 = vector.shape_cast %117 : vector<1x1x1x32xf32> to vector<1x32xf32>
    %119 = tpu.concatenate %112, %114, %116, %118 in 1 : vector<1x32xf32>, vector<1x32xf32>, vector<1x32xf32>, vector<1x32xf32> -> vector<1x128xf32>
    %c0_141 = arith.constant 0 : index
    %c896 = arith.constant 896 : index
    %120 = vector.load %arg12[%c0_141, %c896] : memref<1x3200xf32, #tpu.memory_space<vmem>>, vector<1x128xf32>
    tpu.vector_store %arg12[%c0_141, %c896], %119 {strides = array<i32>} : memref<1x3200xf32, #tpu.memory_space<vmem>>, vector<1x128xf32>,
    %c0_142 = arith.constant 0 : index
    %c3_143 = arith.constant 3 : index
    %c2_144 = arith.constant 2 : index
    %c0_145 = arith.constant 0 : index
    %121 = vector.load %arg11[%c0_142, %c3_143, %c2_144, %c0_145] : memref<1x10x16x128xf32, #tpu.memory_space<vmem>>, vector<1x1x1x32xf32>
    %122 = vector.shape_cast %121 : vector<1x1x1x32xf32> to vector<1x32xf32>
    %c0_146 = arith.constant 0 : index
    %c3_147 = arith.constant 3 : index
    %c3_148 = arith.constant 3 : index
    %c0_149 = arith.constant 0 : index
    %123 = vector.load %arg11[%c0_146, %c3_147, %c3_148, %c0_149] : memref<1x10x16x128xf32, #tpu.memory_space<vmem>>, vector<1x1x1x32xf32>
    %124 = vector.shape_cast %123 : vector<1x1x1x32xf32> to vector<1x32xf32>
    %c0_150 = arith.constant 0 : index
    %c3_151 = arith.constant 3 : index
    %c4_152 = arith.constant 4 : index
    %c0_153 = arith.constant 0 : index
    %125 = vector.load %arg11[%c0_150, %c3_151, %c4_152, %c0_153] : memref<1x10x16x128xf32, #tpu.memory_space<vmem>>, vector<1x1x1x32xf32>
    %126 = vector.shape_cast %125 : vector<1x1x1x32xf32> to vector<1x32xf32>
    %c0_154 = arith.constant 0 : index
    %c3_155 = arith.constant 3 : index
    %c5_156 = arith.constant 5 : index
    %c0_157 = arith.constant 0 : index
    %127 = vector.load %arg11[%c0_154, %c3_155, %c5_156, %c0_157] : memref<1x10x16x128xf32, #tpu.memory_space<vmem>>, vector<1x1x1x32xf32>
    %128 = vector.shape_cast %127 : vector<1x1x1x32xf32> to vector<1x32xf32>
    %129 = tpu.concatenate %122, %124, %126, %128 in 1 : vector<1x32xf32>, vector<1x32xf32>, vector<1x32xf32>, vector<1x32xf32> -> vector<1x128xf32>
    %c0_158 = arith.constant 0 : index
    %c1024 = arith.constant 1024 : index
    %130 = vector.load %arg12[%c0_158, %c1024] : memref<1x3200xf32, #tpu.memory_space<vmem>>, vector<1x128xf32>
    tpu.vector_store %arg12[%c0_158, %c1024], %129 {strides = array<i32>} : memref<1x3200xf32, #tpu.memory_space<vmem>>, vector<1x128xf32>,
    %c0_159 = arith.constant 0 : index
    %c3_160 = arith.constant 3 : index
    %c6_161 = arith.constant 6 : index
    %c0_162 = arith.constant 0 : index
    %131 = vector.load %arg11[%c0_159, %c3_160, %c6_161, %c0_162] : memref<1x10x16x128xf32, #tpu.memory_space<vmem>>, vector<1x1x1x32xf32>
    %132 = vector.shape_cast %131 : vector<1x1x1x32xf32> to vector<1x32xf32>
    %c0_163 = arith.constant 0 : index
    %c3_164 = arith.constant 3 : index
    %c7_165 = arith.constant 7 : index
    %c0_166 = arith.constant 0 : index
    %133 = vector.load %arg11[%c0_163, %c3_164, %c7_165, %c0_166] : memref<1x10x16x128xf32, #tpu.memory_space<vmem>>, vector<1x1x1x32xf32>
    %134 = vector.shape_cast %133 : vector<1x1x1x32xf32> to vector<1x32xf32>
    %c0_167 = arith.constant 0 : index
    %c3_168 = arith.constant 3 : index
    %c8_169 = arith.constant 8 : index
    %c0_170 = arith.constant 0 : index
    %135 = vector.load %arg11[%c0_167, %c3_168, %c8_169, %c0_170] : memref<1x10x16x128xf32, #tpu.memory_space<vmem>>, vector<1x1x1x32xf32>
    %136 = vector.shape_cast %135 : vector<1x1x1x32xf32> to vector<1x32xf32>
    %c0_171 = arith.constant 0 : index
    %c3_172 = arith.constant 3 : index
    %c9_173 = arith.constant 9 : index
    %c0_174 = arith.constant 0 : index
    %137 = vector.load %arg11[%c0_171, %c3_172, %c9_173, %c0_174] : memref<1x10x16x128xf32, #tpu.memory_space<vmem>>, vector<1x1x1x32xf32>
    %138 = vector.shape_cast %137 : vector<1x1x1x32xf32> to vector<1x32xf32>
    %139 = tpu.concatenate %132, %134, %136, %138 in 1 : vector<1x32xf32>, vector<1x32xf32>, vector<1x32xf32>, vector<1x32xf32> -> vector<1x128xf32>
    %c0_175 = arith.constant 0 : index
    %c1152 = arith.constant 1152 : index
    %140 = vector.load %arg12[%c0_175, %c1152] : memref<1x3200xf32, #tpu.memory_space<vmem>>, vector<1x128xf32>
    tpu.vector_store %arg12[%c0_175, %c1152], %139 {strides = array<i32>} : memref<1x3200xf32, #tpu.memory_space<vmem>>, vector<1x128xf32>,
    %c0_176 = arith.constant 0 : index
    %c4_177 = arith.constant 4 : index
    %c0_178 = arith.constant 0 : index
    %c0_179 = arith.constant 0 : index
    %141 = vector.load %arg11[%c0_176, %c4_177, %c0_178, %c0_179] : memref<1x10x16x128xf32, #tpu.memory_space<vmem>>, vector<1x1x1x32xf32>
    %142 = vector.shape_cast %141 : vector<1x1x1x32xf32> to vector<1x32xf32>
    %c0_180 = arith.constant 0 : index
    %c4_181 = arith.constant 4 : index
    %c1_182 = arith.constant 1 : index
    %c0_183 = arith.constant 0 : index
    %143 = vector.load %arg11[%c0_180, %c4_181, %c1_182, %c0_183] : memref<1x10x16x128xf32, #tpu.memory_space<vmem>>, vector<1x1x1x32xf32>
    %144 = vector.shape_cast %143 : vector<1x1x1x32xf32> to vector<1x32xf32>
    %c0_184 = arith.constant 0 : index
    %c4_185 = arith.constant 4 : index
    %c2_186 = arith.constant 2 : index
    %c0_187 = arith.constant 0 : index
    %145 = vector.load %arg11[%c0_184, %c4_185, %c2_186, %c0_187] : memref<1x10x16x128xf32, #tpu.memory_space<vmem>>, vector<1x1x1x32xf32>
    %146 = vector.shape_cast %145 : vector<1x1x1x32xf32> to vector<1x32xf32>
    %c0_188 = arith.constant 0 : index
    %c4_189 = arith.constant 4 : index
    %c3_190 = arith.constant 3 : index
    %c0_191 = arith.constant 0 : index
    %147 = vector.load %arg11[%c0_188, %c4_189, %c3_190, %c0_191] : memref<1x10x16x128xf32, #tpu.memory_space<vmem>>, vector<1x1x1x32xf32>
    %148 = vector.shape_cast %147 : vector<1x1x1x32xf32> to vector<1x32xf32>
    %149 = tpu.concatenate %142, %144, %146, %148 in 1 : vector<1x32xf32>, vector<1x32xf32>, vector<1x32xf32>, vector<1x32xf32> -> vector<1x128xf32>
    %c0_192 = arith.constant 0 : index
    %c1280 = arith.constant 1280 : index
    %150 = vector.load %arg12[%c0_192, %c1280] : memref<1x3200xf32, #tpu.memory_space<vmem>>, vector<1x128xf32>
    tpu.vector_store %arg12[%c0_192, %c1280], %149 {strides = array<i32>} : memref<1x3200xf32, #tpu.memory_space<vmem>>, vector<1x128xf32>,
    %c0_193 = arith.constant 0 : index
    %c4_194 = arith.constant 4 : index
    %c4_195 = arith.constant 4 : index
    %c0_196 = arith.constant 0 : index
    %151 = vector.load %arg11[%c0_193, %c4_194, %c4_195, %c0_196] : memref<1x10x16x128xf32, #tpu.memory_space<vmem>>, vector<1x1x1x32xf32>
    %152 = vector.shape_cast %151 : vector<1x1x1x32xf32> to vector<1x32xf32>
    %c0_197 = arith.constant 0 : index
    %c4_198 = arith.constant 4 : index
    %c5_199 = arith.constant 5 : index
    %c0_200 = arith.constant 0 : index
    %153 = vector.load %arg11[%c0_197, %c4_198, %c5_199, %c0_200] : memref<1x10x16x128xf32, #tpu.memory_space<vmem>>, vector<1x1x1x32xf32>
    %154 = vector.shape_cast %153 : vector<1x1x1x32xf32> to vector<1x32xf32>
    %c0_201 = arith.constant 0 : index
    %c4_202 = arith.constant 4 : index
    %c6_203 = arith.constant 6 : index
    %c0_204 = arith.constant 0 : index
    %155 = vector.load %arg11[%c0_201, %c4_202, %c6_203, %c0_204] : memref<1x10x16x128xf32, #tpu.memory_space<vmem>>, vector<1x1x1x32xf32>
    %156 = vector.shape_cast %155 : vector<1x1x1x32xf32> to vector<1x32xf32>
    %c0_205 = arith.constant 0 : index
    %c4_206 = arith.constant 4 : index
    %c7_207 = arith.constant 7 : index
    %c0_208 = arith.constant 0 : index
    %157 = vector.load %arg11[%c0_205, %c4_206, %c7_207, %c0_208] : memref<1x10x16x128xf32, #tpu.memory_space<vmem>>, vector<1x1x1x32xf32>
    %158 = vector.shape_cast %157 : vector<1x1x1x32xf32> to vector<1x32xf32>
    %159 = tpu.concatenate %152, %154, %156, %158 in 1 : vector<1x32xf32>, vector<1x32xf32>, vector<1x32xf32>, vector<1x32xf32> -> vector<1x128xf32>
    %c0_209 = arith.constant 0 : index
    %c1408 = arith.constant 1408 : index
    %160 = vector.load %arg12[%c0_209, %c1408] : memref<1x3200xf32, #tpu.memory_space<vmem>>, vector<1x128xf32>
    tpu.vector_store %arg12[%c0_209, %c1408], %159 {strides = array<i32>} : memref<1x3200xf32, #tpu.memory_space<vmem>>, vector<1x128xf32>,
    %c0_210 = arith.constant 0 : index
    %c4_211 = arith.constant 4 : index
    %c8_212 = arith.constant 8 : index
    %c0_213 = arith.constant 0 : index
    %161 = vector.load %arg11[%c0_210, %c4_211, %c8_212, %c0_213] : memref<1x10x16x128xf32, #tpu.memory_space<vmem>>, vector<1x1x1x32xf32>
    %162 = vector.shape_cast %161 : vector<1x1x1x32xf32> to vector<1x32xf32>
    %c0_214 = arith.constant 0 : index
    %c4_215 = arith.constant 4 : index
    %c9_216 = arith.constant 9 : index
    %c0_217 = arith.constant 0 : index
    %163 = vector.load %arg11[%c0_214, %c4_215, %c9_216, %c0_217] : memref<1x10x16x128xf32, #tpu.memory_space<vmem>>, vector<1x1x1x32xf32>
    %164 = vector.shape_cast %163 : vector<1x1x1x32xf32> to vector<1x32xf32>
    %c0_218 = arith.constant 0 : index
    %c5_219 = arith.constant 5 : index
    %c0_220 = arith.constant 0 : index
    %c0_221 = arith.constant 0 : index
    %165 = vector.load %arg11[%c0_218, %c5_219, %c0_220, %c0_221] : memref<1x10x16x128xf32, #tpu.memory_space<vmem>>, vector<1x1x1x32xf32>
    %166 = vector.shape_cast %165 : vector<1x1x1x32xf32> to vector<1x32xf32>
    %c0_222 = arith.constant 0 : index
    %c5_223 = arith.constant 5 : index
    %c1_224 = arith.constant 1 : index
    %c0_225 = arith.constant 0 : index
    %167 = vector.load %arg11[%c0_222, %c5_223, %c1_224, %c0_225] : memref<1x10x16x128xf32, #tpu.memory_space<vmem>>, vector<1x1x1x32xf32>
    %168 = vector.shape_cast %167 : vector<1x1x1x32xf32> to vector<1x32xf32>
    %169 = tpu.concatenate %162, %164, %166, %168 in 1 : vector<1x32xf32>, vector<1x32xf32>, vector<1x32xf32>, vector<1x32xf32> -> vector<1x128xf32>
    %c0_226 = arith.constant 0 : index
    %c1536 = arith.constant 1536 : index
    %170 = vector.load %arg12[%c0_226, %c1536] : memref<1x3200xf32, #tpu.memory_space<vmem>>, vector<1x128xf32>
    tpu.vector_store %arg12[%c0_226, %c1536], %169 {strides = array<i32>} : memref<1x3200xf32, #tpu.memory_space<vmem>>, vector<1x128xf32>,
    %c0_227 = arith.constant 0 : index
    %c5_228 = arith.constant 5 : index
    %c2_229 = arith.constant 2 : index
    %c0_230 = arith.constant 0 : index
    %171 = vector.load %arg11[%c0_227, %c5_228, %c2_229, %c0_230] : memref<1x10x16x128xf32, #tpu.memory_space<vmem>>, vector<1x1x1x32xf32>
    %172 = vector.shape_cast %171 : vector<1x1x1x32xf32> to vector<1x32xf32>
    %c0_231 = arith.constant 0 : index
    %c5_232 = arith.constant 5 : index
    %c3_233 = arith.constant 3 : index
    %c0_234 = arith.constant 0 : index
    %173 = vector.load %arg11[%c0_231, %c5_232, %c3_233, %c0_234] : memref<1x10x16x128xf32, #tpu.memory_space<vmem>>, vector<1x1x1x32xf32>
    %174 = vector.shape_cast %173 : vector<1x1x1x32xf32> to vector<1x32xf32>
    %c0_235 = arith.constant 0 : index
    %c5_236 = arith.constant 5 : index
    %c4_237 = arith.constant 4 : index
    %c0_238 = arith.constant 0 : index
    %175 = vector.load %arg11[%c0_235, %c5_236, %c4_237, %c0_238] : memref<1x10x16x128xf32, #tpu.memory_space<vmem>>, vector<1x1x1x32xf32>
    %176 = vector.shape_cast %175 : vector<1x1x1x32xf32> to vector<1x32xf32>
    %c0_239 = arith.constant 0 : index
    %c5_240 = arith.constant 5 : index
    %c5_241 = arith.constant 5 : index
    %c0_242 = arith.constant 0 : index
    %177 = vector.load %arg11[%c0_239, %c5_240, %c5_241, %c0_242] : memref<1x10x16x128xf32, #tpu.memory_space<vmem>>, vector<1x1x1x32xf32>
    %178 = vector.shape_cast %177 : vector<1x1x1x32xf32> to vector<1x32xf32>
    %179 = tpu.concatenate %172, %174, %176, %178 in 1 : vector<1x32xf32>, vector<1x32xf32>, vector<1x32xf32>, vector<1x32xf32> -> vector<1x128xf32>
    %c0_243 = arith.constant 0 : index
    %c1664 = arith.constant 1664 : index
    %180 = vector.load %arg12[%c0_243, %c1664] : memref<1x3200xf32, #tpu.memory_space<vmem>>, vector<1x128xf32>
    tpu.vector_store %arg12[%c0_243, %c1664], %179 {strides = array<i32>} : memref<1x3200xf32, #tpu.memory_space<vmem>>, vector<1x128xf32>,
    %c0_244 = arith.constant 0 : index
    %c5_245 = arith.constant 5 : index
    %c6_246 = arith.constant 6 : index
    %c0_247 = arith.constant 0 : index
    %181 = vector.load %arg11[%c0_244, %c5_245, %c6_246, %c0_247] : memref<1x10x16x128xf32, #tpu.memory_space<vmem>>, vector<1x1x1x32xf32>
    %182 = vector.shape_cast %181 : vector<1x1x1x32xf32> to vector<1x32xf32>
    %c0_248 = arith.constant 0 : index
    %c5_249 = arith.constant 5 : index
    %c7_250 = arith.constant 7 : index
    %c0_251 = arith.constant 0 : index
    %183 = vector.load %arg11[%c0_248, %c5_249, %c7_250, %c0_251] : memref<1x10x16x128xf32, #tpu.memory_space<vmem>>, vector<1x1x1x32xf32>
    %184 = vector.shape_cast %183 : vector<1x1x1x32xf32> to vector<1x32xf32>
    %c0_252 = arith.constant 0 : index
    %c5_253 = arith.constant 5 : index
    %c8_254 = arith.constant 8 : index
    %c0_255 = arith.constant 0 : index
    %185 = vector.load %arg11[%c0_252, %c5_253, %c8_254, %c0_255] : memref<1x10x16x128xf32, #tpu.memory_space<vmem>>, vector<1x1x1x32xf32>
    %186 = vector.shape_cast %185 : vector<1x1x1x32xf32> to vector<1x32xf32>
    %c0_256 = arith.constant 0 : index
    %c5_257 = arith.constant 5 : index
    %c9_258 = arith.constant 9 : index
    %c0_259 = arith.constant 0 : index
    %187 = vector.load %arg11[%c0_256, %c5_257, %c9_258, %c0_259] : memref<1x10x16x128xf32, #tpu.memory_space<vmem>>, vector<1x1x1x32xf32>
    %188 = vector.shape_cast %187 : vector<1x1x1x32xf32> to vector<1x32xf32>
    %189 = tpu.concatenate %182, %184, %186, %188 in 1 : vector<1x32xf32>, vector<1x32xf32>, vector<1x32xf32>, vector<1x32xf32> -> vector<1x128xf32>
    %c0_260 = arith.constant 0 : index
    %c1792 = arith.constant 1792 : index
    %190 = vector.load %arg12[%c0_260, %c1792] : memref<1x3200xf32, #tpu.memory_space<vmem>>, vector<1x128xf32>
    tpu.vector_store %arg12[%c0_260, %c1792], %189 {strides = array<i32>} : memref<1x3200xf32, #tpu.memory_space<vmem>>, vector<1x128xf32>,
    %c0_261 = arith.constant 0 : index
    %c6_262 = arith.constant 6 : index
    %c0_263 = arith.constant 0 : index
    %c0_264 = arith.constant 0 : index
    %191 = vector.load %arg11[%c0_261, %c6_262, %c0_263, %c0_264] : memref<1x10x16x128xf32, #tpu.memory_space<vmem>>, vector<1x1x1x32xf32>
    %192 = vector.shape_cast %191 : vector<1x1x1x32xf32> to vector<1x32xf32>
    %c0_265 = arith.constant 0 : index
    %c6_266 = arith.constant 6 : index
    %c1_267 = arith.constant 1 : index
    %c0_268 = arith.constant 0 : index
    %193 = vector.load %arg11[%c0_265, %c6_266, %c1_267, %c0_268] : memref<1x10x16x128xf32, #tpu.memory_space<vmem>>, vector<1x1x1x32xf32>
    %194 = vector.shape_cast %193 : vector<1x1x1x32xf32> to vector<1x32xf32>
    %c0_269 = arith.constant 0 : index
    %c6_270 = arith.constant 6 : index
    %c2_271 = arith.constant 2 : index
    %c0_272 = arith.constant 0 : index
    %195 = vector.load %arg11[%c0_269, %c6_270, %c2_271, %c0_272] : memref<1x10x16x128xf32, #tpu.memory_space<vmem>>, vector<1x1x1x32xf32>
    %196 = vector.shape_cast %195 : vector<1x1x1x32xf32> to vector<1x32xf32>
    %c0_273 = arith.constant 0 : index
    %c6_274 = arith.constant 6 : index
    %c3_275 = arith.constant 3 : index
    %c0_276 = arith.constant 0 : index
    %197 = vector.load %arg11[%c0_273, %c6_274, %c3_275, %c0_276] : memref<1x10x16x128xf32, #tpu.memory_space<vmem>>, vector<1x1x1x32xf32>
    %198 = vector.shape_cast %197 : vector<1x1x1x32xf32> to vector<1x32xf32>
    %199 = tpu.concatenate %192, %194, %196, %198 in 1 : vector<1x32xf32>, vector<1x32xf32>, vector<1x32xf32>, vector<1x32xf32> -> vector<1x128xf32>
    %c0_277 = arith.constant 0 : index
    %c1920 = arith.constant 1920 : index
    %200 = vector.load %arg12[%c0_277, %c1920] : memref<1x3200xf32, #tpu.memory_space<vmem>>, vector<1x128xf32>
    tpu.vector_store %arg12[%c0_277, %c1920], %199 {strides = array<i32>} : memref<1x3200xf32, #tpu.memory_space<vmem>>, vector<1x128xf32>,
    %c0_278 = arith.constant 0 : index
    %c6_279 = arith.constant 6 : index
    %c4_280 = arith.constant 4 : index
    %c0_281 = arith.constant 0 : index
    %201 = vector.load %arg11[%c0_278, %c6_279, %c4_280, %c0_281] : memref<1x10x16x128xf32, #tpu.memory_space<vmem>>, vector<1x1x1x32xf32>
    %202 = vector.shape_cast %201 : vector<1x1x1x32xf32> to vector<1x32xf32>
    %c0_282 = arith.constant 0 : index
    %c6_283 = arith.constant 6 : index
    %c5_284 = arith.constant 5 : index
    %c0_285 = arith.constant 0 : index
    %203 = vector.load %arg11[%c0_282, %c6_283, %c5_284, %c0_285] : memref<1x10x16x128xf32, #tpu.memory_space<vmem>>, vector<1x1x1x32xf32>
    %204 = vector.shape_cast %203 : vector<1x1x1x32xf32> to vector<1x32xf32>
    %c0_286 = arith.constant 0 : index
    %c6_287 = arith.constant 6 : index
    %c6_288 = arith.constant 6 : index
    %c0_289 = arith.constant 0 : index
    %205 = vector.load %arg11[%c0_286, %c6_287, %c6_288, %c0_289] : memref<1x10x16x128xf32, #tpu.memory_space<vmem>>, vector<1x1x1x32xf32>
    %206 = vector.shape_cast %205 : vector<1x1x1x32xf32> to vector<1x32xf32>
    %c0_290 = arith.constant 0 : index
    %c6_291 = arith.constant 6 : index
    %c7_292 = arith.constant 7 : index
    %c0_293 = arith.constant 0 : index
    %207 = vector.load %arg11[%c0_290, %c6_291, %c7_292, %c0_293] : memref<1x10x16x128xf32, #tpu.memory_space<vmem>>, vector<1x1x1x32xf32>
    %208 = vector.shape_cast %207 : vector<1x1x1x32xf32> to vector<1x32xf32>
    %209 = tpu.concatenate %202, %204, %206, %208 in 1 : vector<1x32xf32>, vector<1x32xf32>, vector<1x32xf32>, vector<1x32xf32> -> vector<1x128xf32>
    %c0_294 = arith.constant 0 : index
    %c2048 = arith.constant 2048 : index
    %210 = vector.load %arg12[%c0_294, %c2048] : memref<1x3200xf32, #tpu.memory_space<vmem>>, vector<1x128xf32>
    tpu.vector_store %arg12[%c0_294, %c2048], %209 {strides = array<i32>} : memref<1x3200xf32, #tpu.memory_space<vmem>>, vector<1x128xf32>,
    %c0_295 = arith.constant 0 : index
    %c6_296 = arith.constant 6 : index
    %c8_297 = arith.constant 8 : index
    %c0_298 = arith.constant 0 : index
    %211 = vector.load %arg11[%c0_295, %c6_296, %c8_297, %c0_298] : memref<1x10x16x128xf32, #tpu.memory_space<vmem>>, vector<1x1x1x32xf32>
    %212 = vector.shape_cast %211 : vector<1x1x1x32xf32> to vector<1x32xf32>
    %c0_299 = arith.constant 0 : index
    %c6_300 = arith.constant 6 : index
    %c9_301 = arith.constant 9 : index
    %c0_302 = arith.constant 0 : index
    %213 = vector.load %arg11[%c0_299, %c6_300, %c9_301, %c0_302] : memref<1x10x16x128xf32, #tpu.memory_space<vmem>>, vector<1x1x1x32xf32>
    %214 = vector.shape_cast %213 : vector<1x1x1x32xf32> to vector<1x32xf32>
    %c0_303 = arith.constant 0 : index
    %c7_304 = arith.constant 7 : index
    %c0_305 = arith.constant 0 : index
    %c0_306 = arith.constant 0 : index
    %215 = vector.load %arg11[%c0_303, %c7_304, %c0_305, %c0_306] : memref<1x10x16x128xf32, #tpu.memory_space<vmem>>, vector<1x1x1x32xf32>
    %216 = vector.shape_cast %215 : vector<1x1x1x32xf32> to vector<1x32xf32>
    %c0_307 = arith.constant 0 : index
    %c7_308 = arith.constant 7 : index
    %c1_309 = arith.constant 1 : index
    %c0_310 = arith.constant 0 : index
    %217 = vector.load %arg11[%c0_307, %c7_308, %c1_309, %c0_310] : memref<1x10x16x128xf32, #tpu.memory_space<vmem>>, vector<1x1x1x32xf32>
    %218 = vector.shape_cast %217 : vector<1x1x1x32xf32> to vector<1x32xf32>
    %219 = tpu.concatenate %212, %214, %216, %218 in 1 : vector<1x32xf32>, vector<1x32xf32>, vector<1x32xf32>, vector<1x32xf32> -> vector<1x128xf32>
    %c0_311 = arith.constant 0 : index
    %c2176 = arith.constant 2176 : index
    %220 = vector.load %arg12[%c0_311, %c2176] : memref<1x3200xf32, #tpu.memory_space<vmem>>, vector<1x128xf32>
    tpu.vector_store %arg12[%c0_311, %c2176], %219 {strides = array<i32>} : memref<1x3200xf32, #tpu.memory_space<vmem>>, vector<1x128xf32>,
    %c0_312 = arith.constant 0 : index
    %c7_313 = arith.constant 7 : index
    %c2_314 = arith.constant 2 : index
    %c0_315 = arith.constant 0 : index
    %221 = vector.load %arg11[%c0_312, %c7_313, %c2_314, %c0_315] : memref<1x10x16x128xf32, #tpu.memory_space<vmem>>, vector<1x1x1x32xf32>
    %222 = vector.shape_cast %221 : vector<1x1x1x32xf32> to vector<1x32xf32>
    %c0_316 = arith.constant 0 : index
    %c7_317 = arith.constant 7 : index
    %c3_318 = arith.constant 3 : index
    %c0_319 = arith.constant 0 : index
    %223 = vector.load %arg11[%c0_316, %c7_317, %c3_318, %c0_319] : memref<1x10x16x128xf32, #tpu.memory_space<vmem>>, vector<1x1x1x32xf32>
    %224 = vector.shape_cast %223 : vector<1x1x1x32xf32> to vector<1x32xf32>
    %c0_320 = arith.constant 0 : index
    %c7_321 = arith.constant 7 : index
    %c4_322 = arith.constant 4 : index
    %c0_323 = arith.constant 0 : index
    %225 = vector.load %arg11[%c0_320, %c7_321, %c4_322, %c0_323] : memref<1x10x16x128xf32, #tpu.memory_space<vmem>>, vector<1x1x1x32xf32>
    %226 = vector.shape_cast %225 : vector<1x1x1x32xf32> to vector<1x32xf32>
    %c0_324 = arith.constant 0 : index
    %c7_325 = arith.constant 7 : index
    %c5_326 = arith.constant 5 : index
    %c0_327 = arith.constant 0 : index
    %227 = vector.load %arg11[%c0_324, %c7_325, %c5_326, %c0_327] : memref<1x10x16x128xf32, #tpu.memory_space<vmem>>, vector<1x1x1x32xf32>
    %228 = vector.shape_cast %227 : vector<1x1x1x32xf32> to vector<1x32xf32>
    %229 = tpu.concatenate %222, %224, %226, %228 in 1 : vector<1x32xf32>, vector<1x32xf32>, vector<1x32xf32>, vector<1x32xf32> -> vector<1x128xf32>
    %c0_328 = arith.constant 0 : index
    %c2304 = arith.constant 2304 : index
    %230 = vector.load %arg12[%c0_328, %c2304] : memref<1x3200xf32, #tpu.memory_space<vmem>>, vector<1x128xf32>
    tpu.vector_store %arg12[%c0_328, %c2304], %229 {strides = array<i32>} : memref<1x3200xf32, #tpu.memory_space<vmem>>, vector<1x128xf32>,
    %c0_329 = arith.constant 0 : index
    %c7_330 = arith.constant 7 : index
    %c6_331 = arith.constant 6 : index
    %c0_332 = arith.constant 0 : index
    %231 = vector.load %arg11[%c0_329, %c7_330, %c6_331, %c0_332] : memref<1x10x16x128xf32, #tpu.memory_space<vmem>>, vector<1x1x1x32xf32>
    %232 = vector.shape_cast %231 : vector<1x1x1x32xf32> to vector<1x32xf32>
    %c0_333 = arith.constant 0 : index
    %c7_334 = arith.constant 7 : index
    %c7_335 = arith.constant 7 : index
    %c0_336 = arith.constant 0 : index
    %233 = vector.load %arg11[%c0_333, %c7_334, %c7_335, %c0_336] : memref<1x10x16x128xf32, #tpu.memory_space<vmem>>, vector<1x1x1x32xf32>
    %234 = vector.shape_cast %233 : vector<1x1x1x32xf32> to vector<1x32xf32>
    %c0_337 = arith.constant 0 : index
    %c7_338 = arith.constant 7 : index
    %c8_339 = arith.constant 8 : index
    %c0_340 = arith.constant 0 : index
    %235 = vector.load %arg11[%c0_337, %c7_338, %c8_339, %c0_340] : memref<1x10x16x128xf32, #tpu.memory_space<vmem>>, vector<1x1x1x32xf32>
    %236 = vector.shape_cast %235 : vector<1x1x1x32xf32> to vector<1x32xf32>
    %c0_341 = arith.constant 0 : index
    %c7_342 = arith.constant 7 : index
    %c9_343 = arith.constant 9 : index
    %c0_344 = arith.constant 0 : index
    %237 = vector.load %arg11[%c0_341, %c7_342, %c9_343, %c0_344] : memref<1x10x16x128xf32, #tpu.memory_space<vmem>>, vector<1x1x1x32xf32>
    %238 = vector.shape_cast %237 : vector<1x1x1x32xf32> to vector<1x32xf32>
    %239 = tpu.concatenate %232, %234, %236, %238 in 1 : vector<1x32xf32>, vector<1x32xf32>, vector<1x32xf32>, vector<1x32xf32> -> vector<1x128xf32>
    %c0_345 = arith.constant 0 : index
    %c2432 = arith.constant 2432 : index
    %240 = vector.load %arg12[%c0_345, %c2432] : memref<1x3200xf32, #tpu.memory_space<vmem>>, vector<1x128xf32>
    tpu.vector_store %arg12[%c0_345, %c2432], %239 {strides = array<i32>} : memref<1x3200xf32, #tpu.memory_space<vmem>>, vector<1x128xf32>,
    %c0_346 = arith.constant 0 : index
    %c8_347 = arith.constant 8 : index
    %c0_348 = arith.constant 0 : index
    %c0_349 = arith.constant 0 : index
    %241 = vector.load %arg11[%c0_346, %c8_347, %c0_348, %c0_349] : memref<1x10x16x128xf32, #tpu.memory_space<vmem>>, vector<1x1x1x32xf32>
    %242 = vector.shape_cast %241 : vector<1x1x1x32xf32> to vector<1x32xf32>
    %c0_350 = arith.constant 0 : index
    %c8_351 = arith.constant 8 : index
    %c1_352 = arith.constant 1 : index
    %c0_353 = arith.constant 0 : index
    %243 = vector.load %arg11[%c0_350, %c8_351, %c1_352, %c0_353] : memref<1x10x16x128xf32, #tpu.memory_space<vmem>>, vector<1x1x1x32xf32>
    %244 = vector.shape_cast %243 : vector<1x1x1x32xf32> to vector<1x32xf32>
    %c0_354 = arith.constant 0 : index
    %c8_355 = arith.constant 8 : index
    %c2_356 = arith.constant 2 : index
    %c0_357 = arith.constant 0 : index
    %245 = vector.load %arg11[%c0_354, %c8_355, %c2_356, %c0_357] : memref<1x10x16x128xf32, #tpu.memory_space<vmem>>, vector<1x1x1x32xf32>
    %246 = vector.shape_cast %245 : vector<1x1x1x32xf32> to vector<1x32xf32>
    %c0_358 = arith.constant 0 : index
    %c8_359 = arith.constant 8 : index
    %c3_360 = arith.constant 3 : index
    %c0_361 = arith.constant 0 : index
    %247 = vector.load %arg11[%c0_358, %c8_359, %c3_360, %c0_361] : memref<1x10x16x128xf32, #tpu.memory_space<vmem>>, vector<1x1x1x32xf32>
    %248 = vector.shape_cast %247 : vector<1x1x1x32xf32> to vector<1x32xf32>
    %249 = tpu.concatenate %242, %244, %246, %248 in 1 : vector<1x32xf32>, vector<1x32xf32>, vector<1x32xf32>, vector<1x32xf32> -> vector<1x128xf32>
    %c0_362 = arith.constant 0 : index
    %c2560 = arith.constant 2560 : index
    %250 = vector.load %arg12[%c0_362, %c2560] : memref<1x3200xf32, #tpu.memory_space<vmem>>, vector<1x128xf32>
    tpu.vector_store %arg12[%c0_362, %c2560], %249 {strides = array<i32>} : memref<1x3200xf32, #tpu.memory_space<vmem>>, vector<1x128xf32>,
    %c0_363 = arith.constant 0 : index
    %c8_364 = arith.constant 8 : index
    %c4_365 = arith.constant 4 : index
    %c0_366 = arith.constant 0 : index
    %251 = vector.load %arg11[%c0_363, %c8_364, %c4_365, %c0_366] : memref<1x10x16x128xf32, #tpu.memory_space<vmem>>, vector<1x1x1x32xf32>
    %252 = vector.shape_cast %251 : vector<1x1x1x32xf32> to vector<1x32xf32>
    %c0_367 = arith.constant 0 : index
    %c8_368 = arith.constant 8 : index
    %c5_369 = arith.constant 5 : index
    %c0_370 = arith.constant 0 : index
    %253 = vector.load %arg11[%c0_367, %c8_368, %c5_369, %c0_370] : memref<1x10x16x128xf32, #tpu.memory_space<vmem>>, vector<1x1x1x32xf32>
    %254 = vector.shape_cast %253 : vector<1x1x1x32xf32> to vector<1x32xf32>
    %c0_371 = arith.constant 0 : index
    %c8_372 = arith.constant 8 : index
    %c6_373 = arith.constant 6 : index
    %c0_374 = arith.constant 0 : index
    %255 = vector.load %arg11[%c0_371, %c8_372, %c6_373, %c0_374] : memref<1x10x16x128xf32, #tpu.memory_space<vmem>>, vector<1x1x1x32xf32>
    %256 = vector.shape_cast %255 : vector<1x1x1x32xf32> to vector<1x32xf32>
    %c0_375 = arith.constant 0 : index
    %c8_376 = arith.constant 8 : index
    %c7_377 = arith.constant 7 : index
    %c0_378 = arith.constant 0 : index
    %257 = vector.load %arg11[%c0_375, %c8_376, %c7_377, %c0_378] : memref<1x10x16x128xf32, #tpu.memory_space<vmem>>, vector<1x1x1x32xf32>
    %258 = vector.shape_cast %257 : vector<1x1x1x32xf32> to vector<1x32xf32>
    %259 = tpu.concatenate %252, %254, %256, %258 in 1 : vector<1x32xf32>, vector<1x32xf32>, vector<1x32xf32>, vector<1x32xf32> -> vector<1x128xf32>
    %c0_379 = arith.constant 0 : index
    %c2688 = arith.constant 2688 : index
    %260 = vector.load %arg12[%c0_379, %c2688] : memref<1x3200xf32, #tpu.memory_space<vmem>>, vector<1x128xf32>
    tpu.vector_store %arg12[%c0_379, %c2688], %259 {strides = array<i32>} : memref<1x3200xf32, #tpu.memory_space<vmem>>, vector<1x128xf32>,
    %c0_380 = arith.constant 0 : index
    %c8_381 = arith.constant 8 : index
    %c8_382 = arith.constant 8 : index
    %c0_383 = arith.constant 0 : index
    %261 = vector.load %arg11[%c0_380, %c8_381, %c8_382, %c0_383] : memref<1x10x16x128xf32, #tpu.memory_space<vmem>>, vector<1x1x1x32xf32>
    %262 = vector.shape_cast %261 : vector<1x1x1x32xf32> to vector<1x32xf32>
    %c0_384 = arith.constant 0 : index
    %c8_385 = arith.constant 8 : index
    %c9_386 = arith.constant 9 : index
    %c0_387 = arith.constant 0 : index
    %263 = vector.load %arg11[%c0_384, %c8_385, %c9_386, %c0_387] : memref<1x10x16x128xf32, #tpu.memory_space<vmem>>, vector<1x1x1x32xf32>
    %264 = vector.shape_cast %263 : vector<1x1x1x32xf32> to vector<1x32xf32>
    %c0_388 = arith.constant 0 : index
    %c9_389 = arith.constant 9 : index
    %c0_390 = arith.constant 0 : index
    %c0_391 = arith.constant 0 : index
    %265 = vector.load %arg11[%c0_388, %c9_389, %c0_390, %c0_391] : memref<1x10x16x128xf32, #tpu.memory_space<vmem>>, vector<1x1x1x32xf32>
    %266 = vector.shape_cast %265 : vector<1x1x1x32xf32> to vector<1x32xf32>
    %c0_392 = arith.constant 0 : index
    %c9_393 = arith.constant 9 : index
    %c1_394 = arith.constant 1 : index
    %c0_395 = arith.constant 0 : index
    %267 = vector.load %arg11[%c0_392, %c9_393, %c1_394, %c0_395] : memref<1x10x16x128xf32, #tpu.memory_space<vmem>>, vector<1x1x1x32xf32>
    %268 = vector.shape_cast %267 : vector<1x1x1x32xf32> to vector<1x32xf32>
    %269 = tpu.concatenate %262, %264, %266, %268 in 1 : vector<1x32xf32>, vector<1x32xf32>, vector<1x32xf32>, vector<1x32xf32> -> vector<1x128xf32>
    %c0_396 = arith.constant 0 : index
    %c2816 = arith.constant 2816 : index
    %270 = vector.load %arg12[%c0_396, %c2816] : memref<1x3200xf32, #tpu.memory_space<vmem>>, vector<1x128xf32>
    tpu.vector_store %arg12[%c0_396, %c2816], %269 {strides = array<i32>} : memref<1x3200xf32, #tpu.memory_space<vmem>>, vector<1x128xf32>,
    %c0_397 = arith.constant 0 : index
    %c9_398 = arith.constant 9 : index
    %c2_399 = arith.constant 2 : index
    %c0_400 = arith.constant 0 : index
    %271 = vector.load %arg11[%c0_397, %c9_398, %c2_399, %c0_400] : memref<1x10x16x128xf32, #tpu.memory_space<vmem>>, vector<1x1x1x32xf32>
    %272 = vector.shape_cast %271 : vector<1x1x1x32xf32> to vector<1x32xf32>
    %c0_401 = arith.constant 0 : index
    %c9_402 = arith.constant 9 : index
    %c3_403 = arith.constant 3 : index
    %c0_404 = arith.constant 0 : index
    %273 = vector.load %arg11[%c0_401, %c9_402, %c3_403, %c0_404] : memref<1x10x16x128xf32, #tpu.memory_space<vmem>>, vector<1x1x1x32xf32>
    %274 = vector.shape_cast %273 : vector<1x1x1x32xf32> to vector<1x32xf32>
    %c0_405 = arith.constant 0 : index
    %c9_406 = arith.constant 9 : index
    %c4_407 = arith.constant 4 : index
    %c0_408 = arith.constant 0 : index
    %275 = vector.load %arg11[%c0_405, %c9_406, %c4_407, %c0_408] : memref<1x10x16x128xf32, #tpu.memory_space<vmem>>, vector<1x1x1x32xf32>
    %276 = vector.shape_cast %275 : vector<1x1x1x32xf32> to vector<1x32xf32>
    %c0_409 = arith.constant 0 : index
    %c9_410 = arith.constant 9 : index
    %c5_411 = arith.constant 5 : index
    %c0_412 = arith.constant 0 : index
    %277 = vector.load %arg11[%c0_409, %c9_410, %c5_411, %c0_412] : memref<1x10x16x128xf32, #tpu.memory_space<vmem>>, vector<1x1x1x32xf32>
    %278 = vector.shape_cast %277 : vector<1x1x1x32xf32> to vector<1x32xf32>
    %279 = tpu.concatenate %272, %274, %276, %278 in 1 : vector<1x32xf32>, vector<1x32xf32>, vector<1x32xf32>, vector<1x32xf32> -> vector<1x128xf32>
    %c0_413 = arith.constant 0 : index
    %c2944 = arith.constant 2944 : index
    %280 = vector.load %arg12[%c0_413, %c2944] : memref<1x3200xf32, #tpu.memory_space<vmem>>, vector<1x128xf32>
    tpu.vector_store %arg12[%c0_413, %c2944], %279 {strides = array<i32>} : memref<1x3200xf32, #tpu.memory_space<vmem>>, vector<1x128xf32>,
    %c0_414 = arith.constant 0 : index
    %c9_415 = arith.constant 9 : index
    %c6_416 = arith.constant 6 : index
    %c0_417 = arith.constant 0 : index
    %281 = vector.load %arg11[%c0_414, %c9_415, %c6_416, %c0_417] : memref<1x10x16x128xf32, #tpu.memory_space<vmem>>, vector<1x1x1x32xf32>
    %282 = vector.shape_cast %281 : vector<1x1x1x32xf32> to vector<1x32xf32>
    %c0_418 = arith.constant 0 : index
    %c9_419 = arith.constant 9 : index
    %c7_420 = arith.constant 7 : index
    %c0_421 = arith.constant 0 : index
    %283 = vector.load %arg11[%c0_418, %c9_419, %c7_420, %c0_421] : memref<1x10x16x128xf32, #tpu.memory_space<vmem>>, vector<1x1x1x32xf32>
    %284 = vector.shape_cast %283 : vector<1x1x1x32xf32> to vector<1x32xf32>
    %c0_422 = arith.constant 0 : index
    %c9_423 = arith.constant 9 : index
    %c8_424 = arith.constant 8 : index
    %c0_425 = arith.constant 0 : index
    %285 = vector.load %arg11[%c0_422, %c9_423, %c8_424, %c0_425] : memref<1x10x16x128xf32, #tpu.memory_space<vmem>>, vector<1x1x1x32xf32>
    %286 = vector.shape_cast %285 : vector<1x1x1x32xf32> to vector<1x32xf32>
    %c0_426 = arith.constant 0 : index
    %c9_427 = arith.constant 9 : index
    %c9_428 = arith.constant 9 : index
    %c0_429 = arith.constant 0 : index
    %287 = vector.load %arg11[%c0_426, %c9_427, %c9_428, %c0_429] : memref<1x10x16x128xf32, #tpu.memory_space<vmem>>, vector<1x1x1x32xf32>
    %288 = vector.shape_cast %287 : vector<1x1x1x32xf32> to vector<1x32xf32>
    %289 = tpu.concatenate %282, %284, %286, %288 in 1 : vector<1x32xf32>, vector<1x32xf32>, vector<1x32xf32>, vector<1x32xf32> -> vector<1x128xf32>
    %c0_430 = arith.constant 0 : index
    %c3072 = arith.constant 3072 : index
    %290 = vector.load %arg12[%c0_430, %c3072] : memref<1x3200xf32, #tpu.memory_space<vmem>>, vector<1x128xf32>
    tpu.vector_store %arg12[%c0_430, %c3072], %289 {strides = array<i32>} : memref<1x3200xf32, #tpu.memory_space<vmem>>, vector<1x128xf32>,
    %c0_431 = arith.constant 0 : index
    %c0_432 = arith.constant 0 : index
    %291 = vector.load %arg12[%c0_431, %c0_432] : memref<1x3200xf32, #tpu.memory_space<vmem>>, vector<1x3200xf32>
    %292 = arith.truncf %291 : vector<1x3200xf32> to vector<1x3200xbf16>
    %c0_433 = arith.constant 0 : index
    %c0_434 = arith.constant 0 : index
    %293 = vector.load %arg6[%c0_433, %c0_434] : memref<3200x512xbf16, #tpu.memory_space<vmem>>, vector<3200x512xbf16>
    %cst_435 = arith.constant dense<0.000000e+00> : vector<1x512xf32>
    %294 = tpu.matmul %292, %293, %cst_435 {dimension_numbers = #tpu.dot_dimension_numbers<[1], [0], [0], [1], [0, 0, 1, 1], [], []>} : vector<1x3200xbf16>, vector<3200x512xbf16>, vector<1x512xf32> -> vector<1x512xf32>
    %c0_436 = arith.constant 0 : index
    %c0_437 = arith.constant 0 : index
    %295 = vector.load %arg7[%c0_436, %c0_437] : memref<1x512xf32, #tpu.memory_space<vmem>>, vector<1x512xf32>
    %296 = arith.addf %294, %295 : vector<1x512xf32>
    %cst_438 = arith.constant 0.000000e+00 : f32
    %297 = vector.broadcast %cst_438 : f32 to vector<1x512xf32>
    %298 = arith.maximumf %296, %297 : vector<1x512xf32>
    %299 = arith.truncf %298 : vector<1x512xf32> to vector<1x512xbf16>
    %c0_439 = arith.constant 0 : index
    %c0_440 = arith.constant 0 : index
    %300 = vector.load %arg8[%c0_439, %c0_440] : memref<512x128xbf16, #tpu.memory_space<vmem>>, vector<512x128xbf16>
    %cst_441 = arith.constant dense<0.000000e+00> : vector<1x128xf32>
    %301 = tpu.matmul %299, %300, %cst_441 {dimension_numbers = #tpu.dot_dimension_numbers<[1], [0], [0], [1], [0, 0, 1, 1], [], []>} : vector<1x512xbf16>, vector<512x128xbf16>, vector<1x128xf32> -> vector<1x128xf32>
    %c0_442 = arith.constant 0 : index
    %c0_443 = arith.constant 0 : index
    %302 = vector.load %arg9[%c0_442, %c0_443] : memref<1x128xf32, #tpu.memory_space<vmem>>, vector<1x128xf32>
    %303 = arith.addf %301, %302 : vector<1x128xf32>
    %cst_444 = arith.constant dense<0xFF800000> : vector<1xf32>
    %304 = vector.multi_reduction <maximumf>, %303, %cst_444 [1] : vector<1x128xf32> to vector<1xf32>
    %305 = vector.shape_cast %304 : vector<1xf32> to vector<1x1xf32>
    %306 = vector.broadcast %305 : vector<1x1xf32> to vector<1x128xf32>
    %307 = arith.subf %303, %306 : vector<1x128xf32>
    %308 = math.exp %307 : vector<1x128xf32>
    %cst_445 = arith.constant dense<0.000000e+00> : vector<1xf32>
    %309 = vector.multi_reduction <add>, %308, %cst_445 [1] : vector<1x128xf32> to vector<1xf32>
    %310 = vector.shape_cast %309 : vector<1xf32> to vector<1x1xf32>
    %311 = math.log %310 : vector<1x1xf32>
    %312 = vector.broadcast %311 : vector<1x1xf32> to vector<1x128xf32>
    %313 = arith.subf %307, %312 : vector<1x128xf32>
    %c0_446 = arith.constant 0 : index
    %c0_447 = arith.constant 0 : index
    %c0_448 = arith.constant 0 : index
    %314 = vector.load %arg10[%c0_446, %c0_447, %c0_448] : memref<1x1x128xf32, #tpu.memory_space<vmem>>, vector<1x1x128xf32>
    %315 = vector.shape_cast %314 : vector<1x1x128xf32> to vector<1x128xf32>
    %316 = vector.shape_cast %313 : vector<1x128xf32> to vector<1x1x128xf32>
    tpu.vector_store %arg10[%c0_446, %c0_447, %c0_448], %316 {strides = array<i32>} : memref<1x1x128xf32, #tpu.memory_space<vmem>>, vector<1x1x128xf32>,
    return
  }
  func.func @transform_0(%arg0: i32) -> (i32, i32) {
    %c0_i32 = arith.constant 0 : i32
    %c0_i32_0 = arith.constant 0 : i32
    return %arg0, %c0_i32 : i32, i32
  }
  func.func @transform_1(%arg0: i32) -> (i32, i32) {
    %c0_i32 = arith.constant 0 : i32
    %c0_i32_0 = arith.constant 0 : i32
    %c0_i32_1 = arith.constant 0 : i32
    return %c0_i32, %c0_i32_0 : i32, i32
  }
  func.func @transform_2(%arg0: i32) -> (i32, i32) {
    %c0_i32 = arith.constant 0 : i32
    %c0_i32_0 = arith.constant 0 : i32
    %c0_i32_1 = arith.constant 0 : i32
    return %c0_i32, %c0_i32_0 : i32, i32
  }
  func.func @transform_3(%arg0: i32) -> (i32, i32) {
    %c0_i32 = arith.constant 0 : i32
    %c0_i32_0 = arith.constant 0 : i32
    %c0_i32_1 = arith.constant 0 : i32
    return %c0_i32, %c0_i32_0 : i32, i32
  }
  func.func @transform_4(%arg0: i32) -> (i32, i32) {
    %c0_i32 = arith.constant 0 : i32
    %c0_i32_0 = arith.constant 0 : i32
    %c0_i32_1 = arith.constant 0 : i32
    return %c0_i32, %c0_i32_0 : i32, i32
  }
  func.func @transform_5(%arg0: i32) -> (i32, i32) {
    %c0_i32 = arith.constant 0 : i32
    %c0_i32_0 = arith.constant 0 : i32
    %c0_i32_1 = arith.constant 0 : i32
    return %c0_i32, %c0_i32_0 : i32, i32
  }
  func.func @transform_6(%arg0: i32) -> (i32, i32) {
    %c0_i32 = arith.constant 0 : i32
    %c0_i32_0 = arith.constant 0 : i32
    %c0_i32_1 = arith.constant 0 : i32
    return %c0_i32, %c0_i32_0 : i32, i32
  }
  func.func @transform_7(%arg0: i32) -> (i32, i32) {
    %c0_i32 = arith.constant 0 : i32
    %c0_i32_0 = arith.constant 0 : i32
    %c0_i32_1 = arith.constant 0 : i32
    return %c0_i32, %c0_i32_0 : i32, i32
  }
  func.func @transform_8(%arg0: i32) -> (i32, i32) {
    %c0_i32 = arith.constant 0 : i32
    %c0_i32_0 = arith.constant 0 : i32
    %c0_i32_1 = arith.constant 0 : i32
    return %c0_i32, %c0_i32_0 : i32, i32
  }
  func.func @transform_9(%arg0: i32) -> (i32, i32, i32) {
    %c0_i32 = arith.constant 0 : i32
    %c0_i32_0 = arith.constant 0 : i32
    %c0_i32_1 = arith.constant 0 : i32
    return %arg0, %c0_i32, %c0_i32_0 : i32, i32, i32
  }
}

</mosaic_0001>

<llo_original>
// kernel: forward.1
$region0: #{forward.1}
  #allocation0 [shape = 'u32[]', space=smem, size = 0x4, offset = 0x4, fixed_abs, tag = 'smem constant byte address 0x4 - core index']
  #allocation1 [shape = 'u32[144,128]{1,0:T(1,128)}', space=vmem, size = 0x12000, scoped, tag = 'internal scratch']
  #allocation2 [shape = 'f32[1,10,16,128]{3,2,1,0:T(8,128)}', space=vmem, size = 0x14000, scoped, tag = 'scratch operand']
  #allocation3 [shape = 'f32[1,3200]{1,0:T(1,128)}', space=vmem, size = 0x3200, scoped, tag = 'scratch operand']
  %s0 = inlined_call_operand.vmem [shape: bf16[576,128], index: 0, kind: input, shape index: {}]
  %s1 = inlined_call_operand.hbm [shape: bf16[128,512], index: 1, kind: input, shape index: {}]
  %s2 = inlined_call_operand.hbm [shape: f32[1,512], index: 2, kind: input, shape index: {}]
  %s3 = inlined_call_operand.hbm [shape: bf16[1152,128], index: 3, kind: input, shape index: {}]
  %s4 = inlined_call_operand.hbm [shape: f32[1,128], index: 4, kind: input, shape index: {}]
  %s5 = inlined_call_operand.hbm [shape: bf16[3200,512], index: 5, kind: input, shape index: {}]
  %s6 = inlined_call_operand.hbm [shape: f32[1,512], index: 6, kind: input, shape index: {}]
  %s7 = inlined_call_operand.hbm [shape: bf16[512,128], index: 7, kind: input, shape index: {}]
  %s8 = inlined_call_operand.hbm [shape: f32[1,128], index: 8, kind: input, shape index: {}]
  %s9 = inlined_call_operand.hbm [shape: f32[2,1,128], index: 9, kind: output, shape index: {}]
  %s10 = sld [smem:[#allocation0]]
  $region101: #{forward.1} parent=0
    _
  %s12 = ssub.s32 1, %s10
  %s13 = scalar_select 0, %s12, %s10
  $region1: #{forward.1} parent=0
    #allocation4 [shape = 'u8[131072]{0}', space=vmem, size = 0x20000, scoped, tag = 'input window, operand 1, single buffered']
    #allocation5 [shape = 's32[2]{0}', space=sflag, size = 0x8, scoped, tag = 'scoped memory for forward.1']
    #allocation6 [shape = 's32[2]{0}', space=sflag, size = 0x8, scoped, tag = 'scoped memory for forward.1']
    #allocation7 [shape = 'u8[2048]{0}', space=vmem, size = 0x800, scoped, tag = 'input window, operand 2, single buffered']
    #allocation8 [shape = 's32[1]{0}', space=sflag, size = 0x4, scoped, tag = 'scoped memory for forward.1']
    #allocation9 [shape = 'u8[294912]{0}', space=vmem, size = 0x48000, scoped, tag = 'input window, operand 3, single buffered']
    #allocation10 [shape = 'u8[512]{0}', space=vmem, size = 0x400, scoped, tag = 'input window, operand 4, single buffered']
    #allocation11 [shape = 's32[1]{0}', space=sflag, size = 0x4, scoped, tag = 'scoped memory for forward.1']
    #allocation12 [shape = 'u8[3276800]{0}', space=vmem, size = 0x320000, scoped, tag = 'input window, operand 5, single buffered']
    #allocation13 [shape = 'u8[2048]{0}', space=vmem, size = 0x800, scoped, tag = 'input window, operand 6, single buffered']
    #allocation14 [shape = 's32[1]{0}', space=sflag, size = 0x4, scoped, tag = 'scoped memory for forward.1']
    #allocation15 [shape = 'u8[131072]{0}', space=vmem, size = 0x20000, scoped, tag = 'input window, operand 7, single buffered']
    #allocation16 [shape = 'u8[512]{0}', space=vmem, size = 0x400, scoped, tag = 'input window, operand 8, single buffered']
    #allocation17 [shape = 's32[1]{0}', space=sflag, size = 0x4, scoped, tag = 'scoped memory for forward.1']
    #allocation18 [shape = 'u8[1024]{0}', space=vmem, size = 0x400, scoped, tag = 'output window, operand 0']
    %14 = vsyncpa [#allocation5], 0
    %15 = vsyncpa [#allocation8], 0
    %16 = vsyncpa [#allocation11], 0
    %17 = vsyncpa [#allocation14], 0
    %18 = vsyncpa [#allocation17], 0
    %19 = vsyncpa [#allocation6], 0
    %s20 = scalar_lea.sflag [#allocation6], 1
    %21 = vsyncpa %s20, 0
    loop: start=0, step=1, limit=4
    $region2: #{forward.1} parent=1 // loop_pre_header
      _
    $region3: #{forward.1} parent=1 // loop_header
      %s23 = sphi 0, %s27
      %p24 = scmp.ge.s32.totalorder %s23, 4
      %s33 = sphi 0, %s35
      %s36 = sphi 0, %s33
      %s37 = sphi 0, %s36
      %s53 = sphi 0, %s37
      %s57 = sphi 0, %s57
      %s59 = sphi 0, %s57
      %s60 = sphi 0, %s59
      %s74 = sphi 0, %s60
      %s78 = sphi 0, %s78
      %s80 = sphi 0, %s78
      %s81 = sphi 0, %s80
      %s95 = sphi 0, %s81
      %s99 = sphi 0, %s99
      %s101 = sphi 0, %s99
      %s102 = sphi 0, %s101
      %s116 = sphi 0, %s102
      %s120 = sphi 0, %s120
      %s122 = sphi 0, %s120
      %s123 = sphi 0, %s122
      %s137 = sphi 0, %s123
      %s141 = sphi 0, %s141
      %s143 = sphi 0, %s141
      %s144 = sphi 0, %s143
      %s158 = sphi 0, %s144
      %s162 = sphi 0, %s162
      %s164 = sphi 0, %s162
      %s165 = sphi 0, %s164
      %s179 = sphi 0, %s165
      %s183 = sphi 0, %s183
      %s185 = sphi 0, %s183
      %s186 = sphi 0, %s185
      %s200 = sphi 0, %s186
      %s204 = sphi 0, %s204
      %s206 = sphi 0, %s204
      %s207 = sphi 0, %s206
      %s221 = sphi 0, %s207
      %s227 = sphi 0, %s229
      %s230 = sphi 0, %s227
      %s231 = sphi 0, %s230
      %s247 = sphi 0, %s231
    $region4: #{forward.1} parent=1 // loop_header_branch
      %26 = sbr.rel (%p24) target = $region8
    $region5: #{forward.1} parent=1 // loop_body
      %s28 = ssub.s32 %s23, 1
      %s29 = ssub.s32 %s23, 2
      %s30 = sadd.s32 %s23, 1
      %s31 = ssub.s32 %s23, %s30
      %p32 = scmp.eq.s32.totalorder %s31, 0
      %s34 = sadd.s32 %s33, 1
      %s35 = scalar_select %p32, %s33, %s34
      %p38 = pneg %p32
      %p39 = scmp.eq.s32.totalorder %s23, 1
      %p40 = por %p38, %p39
      %p41 = scmp.ne.s32.totalorder %s33, %s36
      %p42 = scmp.eq.s32.totalorder %s23, 0
      %p43 = por %p41, %p42
      %p44 = scmp.ne.s32.totalorder %s33, %s36
      %p45 = scmp.eq.s32.totalorder %s28, 1
      %p46 = por %p44, %p45
      %p47 = scmp.ne.s32.totalorder %s36, %s37
      %p48 = scmp.eq.s32.totalorder %s28, 0
      %p49 = por %p47, %p48
      %p50 = scmp.ne.s32.totalorder %s36, %s37
      %p51 = scmp.eq.s32.totalorder %s29, 1
      %p52 = por %p50, %p51
      %p54 = scmp.ne.s32.totalorder %s37, %s53
      %p55 = scmp.eq.s32.totalorder %s29, 0
      %p56 = por %p54, %p55
      %s58 = sadd.s32 %s57, 1
      %p61 = scmp.eq.s32.totalorder %s23, 1
      %p62 = scmp.ne.s32.totalorder %s57, %s59
      %p63 = scmp.eq.s32.totalorder %s23, 0
      %p64 = por %p62, %p63
      %p65 = scmp.ne.s32.totalorder %s57, %s59
      %p66 = scmp.eq.s32.totalorder %s28, 1
      %p67 = por %p65, %p66
      %p68 = scmp.ne.s32.totalorder %s59, %s60
      %p69 = scmp.eq.s32.totalorder %s28, 0
      %p70 = por %p68, %p69
      %p71 = scmp.ne.s32.totalorder %s59, %s60
      %p72 = scmp.eq.s32.totalorder %s29, 1
      %p73 = por %p71, %p72
      %p75 = scmp.ne.s32.totalorder %s60, %s74
      %p76 = scmp.eq.s32.totalorder %s29, 0
      %p77 = por %p75, %p76
      %s79 = sadd.s32 %s78, 1
      %p82 = scmp.eq.s32.totalorder %s23, 1
      %p83 = scmp.ne.s32.totalorder %s78, %s80
      %p84 = scmp.eq.s32.totalorder %s23, 0
      %p85 = por %p83, %p84
      %p86 = scmp.ne.s32.totalorder %s78, %s80
      %p87 = scmp.eq.s32.totalorder %s28, 1
      %p88 = por %p86, %p87
      %p89 = scmp.ne.s32.totalorder %s80, %s81
      %p90 = scmp.eq.s32.totalorder %s28, 0
      %p91 = por %p89, %p90
      %p92 = scmp.ne.s32.totalorder %s80, %s81
      %p93 = scmp.eq.s32.totalorder %s29, 1
      %p94 = por %p92, %p93
      %p96 = scmp.ne.s32.totalorder %s81, %s95
      %p97 = scmp.eq.s32.totalorder %s29, 0
      %p98 = por %p96, %p97
      %s100 = sadd.s32 %s99, 1
      %p103 = scmp.eq.s32.totalorder %s23, 1
      %p104 = scmp.ne.s32.totalorder %s99, %s101
      %p105 = scmp.eq.s32.totalorder %s23, 0
      %p106 = por %p104, %p105
      %p107 = scmp.ne.s32.totalorder %s99, %s101
      %p108 = scmp.eq.s32.totalorder %s28, 1
      %p109 = por %p107, %p108
      %p110 = scmp.ne.s32.totalorder %s101, %s102
      %p111 = scmp.eq.s32.totalorder %s28, 0
      %p112 = por %p110, %p111
      %p113 = scmp.ne.s32.totalorder %s101, %s102
      %p114 = scmp.eq.s32.totalorder %s29, 1
      %p115 = por %p113, %p114
      %p117 = scmp.ne.s32.totalorder %s102, %s116
      %p118 = scmp.eq.s32.totalorder %s29, 0
      %p119 = por %p117, %p118
      %s121 = sadd.s32 %s120, 1
      %p124 = scmp.eq.s32.totalorder %s23, 1
      %p125 = scmp.ne.s32.totalorder %s120, %s122
      %p126 = scmp.eq.s32.totalorder %s23, 0
      %p127 = por %p125, %p126
      %p128 = scmp.ne.s32.totalorder %s120, %s122
      %p129 = scmp.eq.s32.totalorder %s28, 1
      %p130 = por %p128, %p129
      %p131 = scmp.ne.s32.totalorder %s122, %s123
      %p132 = scmp.eq.s32.totalorder %s28, 0
      %p133 = por %p131, %p132
      %p134 = scmp.ne.s32.totalorder %s122, %s123
      %p135 = scmp.eq.s32.totalorder %s29, 1
      %p136 = por %p134, %p135
      %p138 = scmp.ne.s32.totalorder %s123, %s137
      %p139 = scmp.eq.s32.totalorder %s29, 0
      %p140 = por %p138, %p139
      %s142 = sadd.s32 %s141, 1
      %p145 = scmp.eq.s32.totalorder %s23, 1
      %p146 = scmp.ne.s32.totalorder %s141, %s143
      %p147 = scmp.eq.s32.totalorder %s23, 0
      %p148 = por %p146, %p147
      %p149 = scmp.ne.s32.totalorder %s141, %s143
      %p150 = scmp.eq.s32.totalorder %s28, 1
      %p151 = por %p149, %p150
      %p152 = scmp.ne.s32.totalorder %s143, %s144
      %p153 = scmp.eq.s32.totalorder %s28, 0
      %p154 = por %p152, %p153
      %p155 = scmp.ne.s32.totalorder %s143, %s144
      %p156 = scmp.eq.s32.totalorder %s29, 1
      %p157 = por %p155, %p156
      %p159 = scmp.ne.s32.totalorder %s144, %s158
      %p160 = scmp.eq.s32.totalorder %s29, 0
      %p161 = por %p159, %p160
      %s163 = sadd.s32 %s162, 1
      %p166 = scmp.eq.s32.totalorder %s23, 1
      %p167 = scmp.ne.s32.totalorder %s162, %s164
      %p168 = scmp.eq.s32.totalorder %s23, 0
      %p169 = por %p167, %p168
      %p170 = scmp.ne.s32.totalorder %s162, %s164
      %p171 = scmp.eq.s32.totalorder %s28, 1
      %p172 = por %p170, %p171
      %p173 = scmp.ne.s32.totalorder %s164, %s165
      %p174 = scmp.eq.s32.totalorder %s28, 0
      %p175 = por %p173, %p174
      %p176 = scmp.ne.s32.totalorder %s164, %s165
      %p177 = scmp.eq.s32.totalorder %s29, 1
      %p178 = por %p176, %p177
      %p180 = scmp.ne.s32.totalorder %s165, %s179
      %p181 = scmp.eq.s32.totalorder %s29, 0
      %p182 = por %p180, %p181
      %s184 = sadd.s32 %s183, 1
      %p187 = scmp.eq.s32.totalorder %s23, 1
      %p188 = scmp.ne.s32.totalorder %s183, %s185
      %p189 = scmp.eq.s32.totalorder %s23, 0
      %p190 = por %p188, %p189
      %p191 = scmp.ne.s32.totalorder %s183, %s185
      %p192 = scmp.eq.s32.totalorder %s28, 1
      %p193 = por %p191, %p192
      %p194 = scmp.ne.s32.totalorder %s185, %s186
      %p195 = scmp.eq.s32.totalorder %s28, 0
      %p196 = por %p194, %p195
      %p197 = scmp.ne.s32.totalorder %s185, %s186
      %p198 = scmp.eq.s32.totalorder %s29, 1
      %p199 = por %p197, %p198
      %p201 = scmp.ne.s32.totalorder %s186, %s200
      %p202 = scmp.eq.s32.totalorder %s29, 0
      %p203 = por %p201, %p202
      %s205 = sadd.s32 %s204, 1
      %p208 = scmp.eq.s32.totalorder %s23, 1
      %p209 = scmp.ne.s32.totalorder %s204, %s206
      %p210 = scmp.eq.s32.totalorder %s23, 0
      %p211 = por %p209, %p210
      %p212 = scmp.ne.s32.totalorder %s204, %s206
      %p213 = scmp.eq.s32.totalorder %s28, 1
      %p214 = por %p212, %p213
      %p215 = scmp.ne.s32.totalorder %s206, %s207
      %p216 = scmp.eq.s32.totalorder %s28, 0
      %p217 = por %p215, %p216
      %p218 = scmp.ne.s32.totalorder %s206, %s207
      %p219 = scmp.eq.s32.totalorder %s29, 1
      %p220 = por %p218, %p219
      %p222 = scmp.ne.s32.totalorder %s207, %s221
      %p223 = scmp.eq.s32.totalorder %s29, 0
      %p224 = por %p222, %p223
      %s225 = ssub.s32 %s23, %s30
      %p226 = scmp.eq.s32.totalorder %s225, 0
      %s228 = sadd.s32 %s227, 1
      %s229 = scalar_select %p226, %s227, %s228
      %p232 = pneg %p226
      %p233 = scmp.eq.s32.totalorder %s23, 1
      %p234 = por %p232, %p233
      %p235 = scmp.ne.s32.totalorder %s227, %s230
      %p236 = scmp.eq.s32.totalorder %s23, 0
      %p237 = por %p235, %p236
      %p238 = scmp.ne.s32.totalorder %s227, %s230
      %p239 = scmp.eq.s32.totalorder %s28, 1
      %p240 = por %p238, %p239
      %p241 = scmp.ne.s32.totalorder %s230, %s231
      %p242 = scmp.eq.s32.totalorder %s28, 0
      %p243 = por %p241, %p242
      %p244 = scmp.ne.s32.totalorder %s230, %s231
      %p245 = scmp.eq.s32.totalorder %s29, 1
      %p246 = por %p244, %p245
      %p248 = scmp.ne.s32.totalorder %s231, %s247
      %p249 = scmp.eq.s32.totalorder %s29, 0
      %p250 = por %p248, %p249
      %p251 = scmp.le.s32.totalorder 1, %s23
      %p252 = scmp.lt.s32.totalorder %s23, 3
      %p253 = pnand %p251, %p252
      %p254 = pneg %p253
      // Predicated region
      $region9: #{forward.1} parent=5 // pred_check
        _
      $region10: #{forward.1} parent=5 // pred_check_branch
        %256 = sbr.rel (%p253) target = $region12
      $region11: #{forward.1} parent=5 // pred_region
        %s257 = ssub.s32 %s23, 1
        // Predicated region
        $region13: #{forward.1} parent=11 // pred_check
          %p258 = pneg %p70
        $region14: #{forward.1} parent=11 // pred_check_branch
          %260 = sbr.rel (%p258) target = $region16
        $region15: #{forward.1} parent=11 // pred_region
          %s262 = ssub.s32 4096, 4096
          %263 = vsyncadd [#allocation5], %s262
          %s264 = sshll.u32 [#allocation4], 4
          %s265 = int_to_ptr.vmem [resolvable:$true] %s264
          %270 = dma.hbm_to_vmem [thread:$0]  %s1, 4096, %s265, [#allocation5], 256, 256, 16
        $region16: #{forward.1} parent=11 // pred_fallthru
          _
        // Predicated region
        $region17: #{forward.1} parent=11 // pred_check
          %p271 = pneg %p91
        $region18: #{forward.1} parent=11 // pred_check_branch
          %273 = sbr.rel (%p271) target = $region20
        $region19: #{forward.1} parent=11 // pred_region
          %s275 = ssub.s32 64, 64
          %276 = vsyncadd [#allocation8], %s275
          %s278 = sshll.u32 [#allocation7], 4
          %s279 = int_to_ptr.vmem [resolvable:$true] %s278
          %281 = dma.hbm_to_vmem [thread:$0]  %s2, 64, %s279, [#allocation8]
        $region20: #{forward.1} parent=11 // pred_fallthru
          _
        // Predicated region
        $region21: #{forward.1} parent=11 // pred_check
          %p282 = pneg %p112
        $region22: #{forward.1} parent=11 // pred_check_branch
          %284 = sbr.rel (%p282) target = $region24
        $region23: #{forward.1} parent=11 // pred_region
          %s286 = ssub.s32 9216, 9216
          %287 = vsyncadd [#allocation8], %s286
          %s288 = sshll.u32 [#allocation9], 4
          %s289 = int_to_ptr.vmem [resolvable:$true] %s288
          %294 = dma.hbm_to_vmem [thread:$0]  %s3, 9216, %s289, [#allocation8], 64, 64, 4
        $region24: #{forward.1} parent=11 // pred_fallthru
          _
        // Predicated region
        $region25: #{forward.1} parent=11 // pred_check
          %p295 = pneg %p133
        $region26: #{forward.1} parent=11 // pred_check_branch
          %297 = sbr.rel (%p295) target = $region28
        $region27: #{forward.1} parent=11 // pred_region
          %s299 = ssub.s32 16, 16
          %300 = vsyncadd [#allocation11], %s299
          %s302 = sshll.u32 [#allocation10], 4
          %s303 = int_to_ptr.vmem [resolvable:$true] %s302
          %305 = dma.hbm_to_vmem [thread:$0]  %s4, 16, %s303, [#allocation11]
        $region28: #{forward.1} parent=11 // pred_fallthru
          _
        // Predicated region
        $region29: #{forward.1} parent=11 // pred_check
          %p306 = pneg %p154
        $region30: #{forward.1} parent=11 // pred_check_branch
          %308 = sbr.rel (%p306) target = $region32
        $region31: #{forward.1} parent=11 // pred_region
          %s310 = ssub.s32 102400, 102400
          %311 = vsyncadd [#allocation11], %s310
          %s312 = sshll.u32 [#allocation12], 4
          %s313 = int_to_ptr.vmem [resolvable:$true] %s312
          %318 = dma.hbm_to_vmem [thread:$0]  %s5, 102400, %s313, [#allocation11], 256, 256, 16
        $region32: #{forward.1} parent=11 // pred_fallthru
          _
        // Predicated region
        $region33: #{forward.1} parent=11 // pred_check
          %p319 = pneg %p175
        $region34: #{forward.1} parent=11 // pred_check_branch
          %321 = sbr.rel (%p319) target = $region36
        $region35: #{forward.1} parent=11 // pred_region
          %s323 = ssub.s32 64, 64
          %324 = vsyncadd [#allocation14], %s323
          %s326 = sshll.u32 [#allocation13], 4
          %s327 = int_to_ptr.vmem [resolvable:$true] %s326
          %329 = dma.hbm_to_vmem [thread:$0]  %s6, 64, %s327, [#allocation14]
        $region36: #{forward.1} parent=11 // pred_fallthru
          _
        // Predicated region
        $region37: #{forward.1} parent=11 // pred_check
          %p330 = pneg %p196
        $region38: #{forward.1} parent=11 // pred_check_branch
          %332 = sbr.rel (%p330) target = $region40
        $region39: #{forward.1} parent=11 // pred_region
          %s334 = ssub.s32 4096, 4096
          %335 = vsyncadd [#allocation14], %s334
          %s336 = sshll.u32 [#allocation15], 4
          %s337 = int_to_ptr.vmem [resolvable:$true] %s336
          %342 = dma.hbm_to_vmem [thread:$0]  %s7, 4096, %s337, [#allocation14], 64, 64, 4
        $region40: #{forward.1} parent=11 // pred_fallthru
          _
        // Predicated region
        $region41: #{forward.1} parent=11 // pred_check
          %p343 = pneg %p217
        $region42: #{forward.1} parent=11 // pred_check_branch
          %345 = sbr.rel (%p343) target = $region44
        $region43: #{forward.1} parent=11 // pred_region
          %s347 = ssub.s32 16, 16
          %348 = vsyncadd [#allocation17], %s347
          %s350 = sshll.u32 [#allocation16], 4
          %s351 = int_to_ptr.vmem [resolvable:$true] %s350
          %353 = dma.hbm_to_vmem [thread:$0]  %s8, 16, %s351, [#allocation17]
        $region44: #{forward.1} parent=11 // pred_fallthru
          _
      $region12: #{forward.1} parent=5 // pred_fallthru
        _
      %p354 = scmp.lt.s32.totalorder %s23, 2
      // Predicated region
      $region45: #{forward.1} parent=5 // pred_check
        %p355 = pneg %p354
      $region46: #{forward.1} parent=5 // pred_check_branch
        %357 = sbr.rel (%p355) target = $region48
      $region47: #{forward.1} parent=5 // pred_region
        // Predicated region
        $region49: #{forward.1} parent=47 // pred_check
          %p358 = pneg %p43
        $region50: #{forward.1} parent=47 // pred_check_branch
          %360 = sbr.rel (%p358) target = $region52
        $region51: #{forward.1} parent=47 // pred_region
          %s361 = smul.u32 36, %s23
          %p362 = scmp.lt.s32.totalorder %s361, 71
          %s363 = scalar_select %p362, %s361, 71
          %s364 = smul.addr %s363, 4
          %s365 = scalar_lea.vmem %s0, %s364
          %s366 = smul.u32 36, %s23
        $region52: #{forward.1} parent=47 // pred_fallthru
          _
      $region48: #{forward.1} parent=5 // pred_fallthru
        _
      %p367 = scmp.le.s32.totalorder 1, %s23
      %p368 = scmp.lt.s32.totalorder %s23, 3
      %p369 = pnand %p367, %p368
      %p370 = pneg %p369
      // Predicated region
      $region53: #{forward.1} parent=5 // pred_check
        _
      $region54: #{forward.1} parent=5 // pred_check_branch
        %372 = sbr.rel (%p369) target = $region56
      $region55: #{forward.1} parent=5 // pred_region
        %s373 = ssub.s32 %s23, 1
        // Predicated region
        $region57: #{forward.1} parent=55 // pred_check
          %p374 = pneg %p70
        $region58: #{forward.1} parent=55 // pred_check_branch
          %376 = sbr.rel (%p374) target = $region60
        $region59: #{forward.1} parent=55 // pred_region
          %377 = dma.done [#allocation5], 4096
        $region60: #{forward.1} parent=55 // pred_fallthru
          _
        // Predicated region
        $region61: #{forward.1} parent=55 // pred_check
          %p378 = pneg %p91
        $region62: #{forward.1} parent=55 // pred_check_branch
          %380 = sbr.rel (%p378) target = $region64
        $region63: #{forward.1} parent=55 // pred_region
          %381 = dma.done [#allocation8], 64
        $region64: #{forward.1} parent=55 // pred_fallthru
          _
        // Predicated region
        $region65: #{forward.1} parent=55 // pred_check
          %p382 = pneg %p112
        $region66: #{forward.1} parent=55 // pred_check_branch
          %384 = sbr.rel (%p382) target = $region68
        $region67: #{forward.1} parent=55 // pred_region
          %385 = dma.done [#allocation8], 9216
        $region68: #{forward.1} parent=55 // pred_fallthru
          _
        // Predicated region
        $region69: #{forward.1} parent=55 // pred_check
          %p386 = pneg %p133
        $region70: #{forward.1} parent=55 // pred_check_branch
          %388 = sbr.rel (%p386) target = $region72
        $region71: #{forward.1} parent=55 // pred_region
          %389 = dma.done [#allocation11], 16
        $region72: #{forward.1} parent=55 // pred_fallthru
          _
        // Predicated region
        $region73: #{forward.1} parent=55 // pred_check
          %p390 = pneg %p154
        $region74: #{forward.1} parent=55 // pred_check_branch
          %392 = sbr.rel (%p390) target = $region76
        $region75: #{forward.1} parent=55 // pred_region
          %393 = dma.done [#allocation11], 102400
        $region76: #{forward.1} parent=55 // pred_fallthru
          _
        // Predicated region
        $region77: #{forward.1} parent=55 // pred_check
          %p394 = pneg %p175
        $region78: #{forward.1} parent=55 // pred_check_branch
          %396 = sbr.rel (%p394) target = $region80
        $region79: #{forward.1} parent=55 // pred_region
          %397 = dma.done [#allocation14], 64
        $region80: #{forward.1} parent=55 // pred_fallthru
          _
        // Predicated region
        $region81: #{forward.1} parent=55 // pred_check
          %p398 = pneg %p196
        $region82: #{forward.1} parent=55 // pred_check_branch
          %400 = sbr.rel (%p398) target = $region84
        $region83: #{forward.1} parent=55 // pred_region
          %401 = dma.done [#allocation14], 4096
        $region84: #{forward.1} parent=55 // pred_fallthru
          _
        // Predicated region
        $region85: #{forward.1} parent=55 // pred_check
          %p402 = pneg %p217
        $region86: #{forward.1} parent=55 // pred_check_branch
          %404 = sbr.rel (%p402) target = $region88
        $region87: #{forward.1} parent=55 // pred_region
          %405 = dma.done [#allocation17], 16
        $region88: #{forward.1} parent=55 // pred_fallthru
          _
        %s406 = smul.u32 36, %s28
        %p407 = scmp.lt.s32.totalorder %s406, 71
        %s408 = scalar_select %p407, %s406, 71
        %s409 = smul.addr %s408, 4
        %s410 = scalar_lea.vmem %s0, %s409
        %p411 = pneg %p49
        %p412 = pneg %p46
        %p413 = pneg %p70
        %p414 = pneg %p67
        %p415 = pneg %p91
        %p416 = pneg %p88
        %p417 = pneg %p112
        %p418 = pneg %p109
        %p419 = pneg %p133
        %p420 = pneg %p130
        %p421 = pneg %p154
        %p422 = pneg %p151
        %p423 = pneg %p175
        %p424 = pneg %p172
        %p425 = pneg %p196
        %p426 = pneg %p193
        %p427 = pneg %p217
        %p428 = pneg %p214
        %p429 = pneg %p243
        %p430 = pneg %p240
        %s431 = sand.u32 %s230, 1
        %s432 = scalar_lea.sflag [#allocation6], %s431
        %s433 = sand.u32 %s230, 1
        %s434 = scalar_lea.vmem [#allocation18], %s433
        %s435 = smul.u32 36, %s28
        %p436 = scmp.lt.s32.totalorder %s435, 71
        %s437 = scalar_select %p436, %s435, 71
        %s438 = smul.addr %s437, 4
        %s439 = scalar_lea.vmem %s0, %s438
        %s440 = smul.u32 36, %s28
        %v442 = vld [vmem:[%s439] sm:$0xf]
        %v443 = vld [vmem:[%s439 + $0x4] sm:$0xf]
        %v444 = vld [vmem:[%s439 + $0x8] sm:$0xf]
        %v445 = vld [vmem:[%s439 + $0xc] sm:$0xf]
        %v446 = vld [vmem:[%s439 + $0x10] sm:$0xf]
        %v447 = vld [vmem:[%s439 + $0x14] sm:$0xf]
        %v448 = vld [vmem:[%s439 + $0x18] sm:$0xf]
        %v449 = vld [vmem:[%s439 + $0x1c] sm:$0xf]
        %v450 = vld [vmem:[%s439 + $0x20] sm:$0xf]
        %v451 = vld [vmem:[%s439 + $0x24] sm:$0xf]
        %v452 = vld [vmem:[%s439 + $0x28] sm:$0xf]
        %v453 = vld [vmem:[%s439 + $0x2c] sm:$0xf]
        %v454 = vld [vmem:[%s439 + $0x30] sm:$0xf]
        %v455 = vld [vmem:[%s439 + $0x34] sm:$0xf]
        %v456 = vld [vmem:[%s439 + $0x38] sm:$0xf]
        %v457 = vld [vmem:[%s439 + $0x3c] sm:$0xf]
        %v458 = vld [vmem:[%s439 + $0x40] sm:$0xf]
        %v459 = vld [vmem:[%s439 + $0x44] sm:$0xf]
        %v460 = vld [vmem:[%s439 + $0x48] sm:$0xf]
        %v461 = vld [vmem:[%s439 + $0x4c] sm:$0xf]
        %v462 = vld [vmem:[%s439 + $0x50] sm:$0xf]
        %v463 = vld [vmem:[%s439 + $0x54] sm:$0xf]
        %v464 = vld [vmem:[%s439 + $0x58] sm:$0xf]
        %v465 = vld [vmem:[%s439 + $0x5c] sm:$0xf]
        %v466 = vld [vmem:[%s439 + $0x60] sm:$0xf]
        %v467 = vld [vmem:[%s439 + $0x64] sm:$0xf]
        %v468 = vld [vmem:[%s439 + $0x68] sm:$0xf]
        %v469 = vld [vmem:[%s439 + $0x6c] sm:$0xf]
        %v470 = vld [vmem:[%s439 + $0x70] sm:$0xf]
        %v471 = vld [vmem:[%s439 + $0x74] sm:$0xf]
        %v472 = vld [vmem:[%s439 + $0x78] sm:$0xf]
        %v473 = vld [vmem:[%s439 + $0x7c] sm:$0xf]
        %v474 = vld [vmem:[%s439 + $0x80] sm:$0xf]
        %v475 = vld [vmem:[%s439 + $0x84] sm:$0xf]
        %v476 = vld [vmem:[%s439 + $0x88] sm:$0xf]
        %v477 = vld [vmem:[%s439 + $0x8c] sm:$0xf]
        %v478 = vld [vmem:[#allocation4] sm:$0xff]
        %v479 = vld [vmem:[#allocation4 + $0x8] sm:$0xff]
        %v480 = vld [vmem:[#allocation4 + $0x10] sm:$0xff]
        %v481 = vld [vmem:[#allocation4 + $0x18] sm:$0xff]
        %v482 = vld [vmem:[#allocation4 + $0x20] sm:$0xff]
        %v483 = vld [vmem:[#allocation4 + $0x28] sm:$0xff]
        %v484 = vld [vmem:[#allocation4 + $0x30] sm:$0xff]
        %v485 = vld [vmem:[#allocation4 + $0x38] sm:$0xff]
        %v486 = vld [vmem:[#allocation4 + $0x40] sm:$0xff]
        %v487 = vld [vmem:[#allocation4 + $0x48] sm:$0xff]
        %v488 = vld [vmem:[#allocation4 + $0x50] sm:$0xff]
        %v489 = vld [vmem:[#allocation4 + $0x58] sm:$0xff]
        %v490 = vld [vmem:[#allocation4 + $0x60] sm:$0xff]
        %v491 = vld [vmem:[#allocation4 + $0x68] sm:$0xff]
        %v492 = vld [vmem:[#allocation4 + $0x70] sm:$0xff]
        %v493 = vld [vmem:[#allocation4 + $0x78] sm:$0xff]
        %v494 = vld [vmem:[#allocation4 + $0x80] sm:$0xff]
        %v495 = vld [vmem:[#allocation4 + $0x88] sm:$0xff]
        %v496 = vld [vmem:[#allocation4 + $0x90] sm:$0xff]
        %v497 = vld [vmem:[#allocation4 + $0x98] sm:$0xff]
        %v498 = vld [vmem:[#allocation4 + $0xa0] sm:$0xff]
        %v499 = vld [vmem:[#allocation4 + $0xa8] sm:$0xff]
        %v500 = vld [vmem:[#allocation4 + $0xb0] sm:$0xff]
        %v501 = vld [vmem:[#allocation4 + $0xb8] sm:$0xff]
        %v502 = vld [vmem:[#allocation4 + $0xc0] sm:$0xff]
        %v503 = vld [vmem:[#allocation4 + $0xc8] sm:$0xff]
        %v504 = vld [vmem:[#allocation4 + $0xd0] sm:$0xff]
        %v505 = vld [vmem:[#allocation4 + $0xd8] sm:$0xff]
        %v506 = vld [vmem:[#allocation4 + $0xe0] sm:$0xff]
        %v507 = vld [vmem:[#allocation4 + $0xe8] sm:$0xff]
        %v508 = vld [vmem:[#allocation4 + $0xf0] sm:$0xff]
        %v509 = vld [vmem:[#allocation4 + $0xf8] sm:$0xff]
        %v510 = vld [vmem:[#allocation7] sm:$0xf]
        %v512 = vlaneseq
        %v513 = vshrl.u32 %v512, 7
        %v514 = vsub.s32 0, %v513
        %v515 = vrot.slane %v510, %v514
        %v516 = vlaneseq
        %v517 = vshrl.u32 %v516, 7
        %v518 = vsub.s32 1, %v517
        %v519 = vrot.slane %v510, %v518
        %v520 = vlaneseq
        %v521 = vshrl.u32 %v520, 7
        %v522 = vsub.s32 2, %v521
        %v523 = vrot.slane %v510, %v522
        %v524 = vlaneseq
        %v525 = vshrl.u32 %v524, 7
        %v526 = vsub.s32 3, %v525
        %v527 = vrot.slane %v510, %v526
        %v568 = vunpack.c.l.b16 %v442
        %v569 = vunpack.c.l.b16 %v443
        %v570 = vunpack.c.l.b16 %v444
        %v571 = vunpack.c.l.b16 %v445
        %v572 = vunpack.c.l.b16 %v446
        %v573 = vunpack.c.l.b16 %v447
        %v574 = vunpack.c.l.b16 %v448
        %v575 = vunpack.c.l.b16 %v449
        %v576 = vunpack.c.l.b16 %v450
        %v577 = vunpack.c.l.b16 %v451
        %v578 = vunpack.c.l.b16 %v452
        %v579 = vunpack.c.l.b16 %v453
        %v580 = vunpack.c.l.b16 %v454
        %v581 = vunpack.c.l.b16 %v455
        %v582 = vunpack.c.l.b16 %v456
        %v583 = vunpack.c.l.b16 %v457
        %v584 = vunpack.c.l.b16 %v458
        %v585 = vunpack.c.l.b16 %v459
        %v586 = vunpack.c.l.b16 %v460
        %v587 = vunpack.c.l.b16 %v461
        %v588 = vunpack.c.l.b16 %v462
        %v589 = vunpack.c.l.b16 %v463
        %v590 = vunpack.c.l.b16 %v464
        %v591 = vunpack.c.l.b16 %v465
        %v592 = vunpack.c.l.b16 %v466
        %v593 = vunpack.c.l.b16 %v467
        %v594 = vunpack.c.l.b16 %v468
        %v595 = vunpack.c.l.b16 %v469
        %v596 = vunpack.c.l.b16 %v470
        %v597 = vunpack.c.l.b16 %v471
        %v598 = vunpack.c.l.b16 %v472
        %v599 = vunpack.c.l.b16 %v473
        %v600 = vunpack.c.l.b16 %v474
        %v601 = vunpack.c.l.b16 %v475
        %v602 = vunpack.c.l.b16 %v476
        %v603 = vunpack.c.l.b16 %v477
        %v604 = vpack.c.b16 %v569, %v568
        %v605 = vpack.c.b16 %v571, %v570
        %v606 = vpack.c.b16 %v573, %v572
        %v607 = vpack.c.b16 %v575, %v574
        %v608 = vpack.c.b16 %v577, %v576
        %v609 = vpack.c.b16 %v579, %v578
        %v610 = vpack.c.b16 %v581, %v580
        %v611 = vpack.c.b16 %v583, %v582
        %v612 = vpack.c.b16 %v585, %v584
        %v613 = vpack.c.b16 %v587, %v586
        %v614 = vpack.c.b16 %v589, %v588
        %v615 = vpack.c.b16 %v591, %v590
        %v616 = vpack.c.b16 %v593, %v592
        %v617 = vpack.c.b16 %v595, %v594
        %v618 = vpack.c.b16 %v597, %v596
        %v619 = vpack.c.b16 %v599, %v598
        %v620 = vpack.c.b16 %v601, %v600
        %v621 = vpack.c.b16 %v603, %v602
        %v672 = vunpack.c.l.b16 %v478
        %v673 = vunpack.c.h.b16 %v478
        %v674 = vunpack.c.l.b16 %v479
        %v675 = vunpack.c.h.b16 %v479
        %v676 = vunpack.c.l.b16 %v480
        %v677 = vunpack.c.h.b16 %v480
        %v678 = vunpack.c.l.b16 %v481
        %v679 = vunpack.c.h.b16 %v481
        %v680 = vunpack.c.l.b16 %v482
        %v681 = vunpack.c.h.b16 %v482
        %v682 = vunpack.c.l.b16 %v483
        %v683 = vunpack.c.h.b16 %v483
        %v684 = vunpack.c.l.b16 %v484
        %v685 = vunpack.c.h.b16 %v484
        %v686 = vunpack.c.l.b16 %v485
        %v687 = vunpack.c.h.b16 %v485
        %v688 = vunpack.c.l.b16 %v486
        %v689 = vunpack.c.h.b16 %v486
        %v690 = vunpack.c.l.b16 %v487
        %v691 = vunpack.c.h.b16 %v487
        %v692 = vunpack.c.l.b16 %v488
        %v693 = vunpack.c.h.b16 %v488
        %v694 = vunpack.c.l.b16 %v489
        %v695 = vunpack.c.h.b16 %v489
        %v696 = vunpack.c.l.b16 %v490
        %v697 = vunpack.c.h.b16 %v490
        %v698 = vunpack.c.l.b16 %v491
        %v699 = vunpack.c.h.b16 %v491
        %v700 = vunpack.c.l.b16 %v492
        %v701 = vunpack.c.h.b16 %v492
        %v702 = vunpack.c.l.b16 %v493
        %v703 = vunpack.c.h.b16 %v493
        %v704 = vunpack.c.l.b16 %v494
        %v705 = vunpack.c.h.b16 %v494
        %v706 = vunpack.c.l.b16 %v495
        %v707 = vunpack.c.h.b16 %v495
        %v708 = vunpack.c.l.b16 %v496
        %v709 = vunpack.c.h.b16 %v496
        %v710 = vunpack.c.l.b16 %v497
        %v711 = vunpack.c.h.b16 %v497
        %v712 = vunpack.c.l.b16 %v498
        %v713 = vunpack.c.h.b16 %v498
        %v714 = vunpack.c.l.b16 %v499
        %v715 = vunpack.c.h.b16 %v499
        %v716 = vunpack.c.l.b16 %v500
        %v717 = vunpack.c.h.b16 %v500
        %v718 = vunpack.c.l.b16 %v501
        %v719 = vunpack.c.h.b16 %v501
        %v720 = vunpack.c.l.b16 %v502
        %v721 = vunpack.c.h.b16 %v502
        %v722 = vunpack.c.l.b16 %v503
        %v723 = vunpack.c.h.b16 %v503
        %v724 = vunpack.c.l.b16 %v504
        %v725 = vunpack.c.h.b16 %v504
        %v726 = vunpack.c.l.b16 %v505
        %v727 = vunpack.c.h.b16 %v505
        %v728 = vunpack.c.l.b16 %v506
        %v729 = vunpack.c.h.b16 %v506
        %v730 = vunpack.c.l.b16 %v507
        %v731 = vunpack.c.h.b16 %v507
        %v732 = vunpack.c.l.b16 %v508
        %v733 = vunpack.c.h.b16 %v508
        %v734 = vunpack.c.l.b16 %v509
        %v735 = vunpack.c.h.b16 %v509
        %v736 = vpack.c.b16 %v676, %v672
        %v737 = vpack.c.b16 %v677, %v673
        %v738 = vpack.c.b16 %v678, %v674
        %v739 = vpack.c.b16 %v679, %v675
        %v740 = vpack.c.b16 %v684, %v680
        %v741 = vpack.c.b16 %v685, %v681
        %v742 = vpack.c.b16 %v686, %v682
        %v743 = vpack.c.b16 %v687, %v683
        %v744 = vpack.c.b16 %v692, %v688
        %v745 = vpack.c.b16 %v693, %v689
        %v746 = vpack.c.b16 %v694, %v690
        %v747 = vpack.c.b16 %v695, %v691
        %v748 = vpack.c.b16 %v700, %v696
        %v749 = vpack.c.b16 %v701, %v697
        %v750 = vpack.c.b16 %v702, %v698
        %v751 = vpack.c.b16 %v703, %v699
        %v752 = vpack.c.b16 %v708, %v704
        %v753 = vpack.c.b16 %v709, %v705
        %v754 = vpack.c.b16 %v710, %v706
        %v755 = vpack.c.b16 %v711, %v707
        %v756 = vpack.c.b16 %v716, %v712
        %v757 = vpack.c.b16 %v717, %v713
        %v758 = vpack.c.b16 %v718, %v714
        %v759 = vpack.c.b16 %v719, %v715
        %v760 = vpack.c.b16 %v724, %v720
        %v761 = vpack.c.b16 %v725, %v721
        %v762 = vpack.c.b16 %v726, %v722
        %v763 = vpack.c.b16 %v727, %v723
        %v764 = vpack.c.b16 %v732, %v728
        %v765 = vpack.c.b16 %v733, %v729
        %v766 = vpack.c.b16 %v734, %v730
        %v767 = vpack.c.b16 %v735, %v731
        %800 = vmatprep.subr.bf16.mxu0 %v737
        %801 = vmatpush1.bf16.msra.mxu0 %v736
        %802 = vmatprep.subr.bf16.mxu0 %v741
        %803 = vmatpush1.bf16.msra.mxu0 %v740
        %804 = vmatprep.subr.bf16.mxu0 %v745
        %805 = vmatpush1.bf16.msra.mxu0 %v744
        %806 = vmatprep.subr.bf16.mxu0 %v749
        %807 = vmatpush1.bf16.msra.mxu0 %v748
        %808 = vmatprep.subr.bf16.mxu0 %v753
        %809 = vmatpush1.bf16.msra.mxu0 %v752
        %810 = vmatprep.subr.bf16.mxu0 %v757
        %811 = vmatpush1.bf16.msra.mxu0 %v756
        %812 = vmatprep.subr.bf16.mxu0 %v761
        %813 = vmatpush1.bf16.msra.mxu0 %v760
        %814 = vmatprep.subr.bf16.mxu0 %v765
        %815 = vmatpush1.bf16.msra.mxu0 %v764
        %816 = vmatprep.subr.bf16.mxu0 0
        %817 = vmatpush1.bf16.msra.mxu0 0
        %818 = vmatprep.subr.bf16.mxu0 0
        %819 = vmatpush1.bf16.msra.mxu0 0
        %820 = vmatprep.subr.bf16.mxu0 0
        %821 = vmatpush1.bf16.msra.mxu0 0
        %822 = vmatprep.subr.bf16.mxu0 0
        %823 = vmatpush1.bf16.msra.mxu0 0
        %824 = vmatprep.subr.bf16.mxu0 0
        %825 = vmatpush1.bf16.msra.mxu0 0
        %826 = vmatprep.subr.bf16.mxu0 0
        %827 = vmatpush1.bf16.msra.mxu0 0
        %828 = vmatprep.subr.bf16.mxu0 0
        %829 = vmatpush1.bf16.msra.mxu0 0
        %830 = vmatprep.subr.bf16.mxu0 0
        %831 = vmatpush1.bf16.msra.mxu0 0
        %832 = vmatprep.mubr.bf16.mxu0 0
        %833 = vmatmul.mubr.bf16.gmra.mrb[0].mxu0 %v604
        %v834 = vpop.f32.mrb[0].mxu0
        %v835 = vadd.f32 %v515, %v834
        %v836 = vpop.f32.mrb[0].mxu0
        %v837 = vadd.f32 %v519, %v836
        %v838 = vpop.f32.mrb[0].mxu0
        %v839 = vadd.f32 %v515, %v838
        %v840 = vpop.f32.mrb[0].mxu0
        %v841 = vadd.f32 %v519, %v840
        %842 = vmatprep.mubr.bf16.mxu0 0
        %843 = vmatmul.mubr.bf16.gmra.mrb[0].mxu0 %v605
        %v844 = vpop.f32.mrb[0].mxu0
        %v845 = vadd.f32 %v515, %v844
        %v846 = vpop.f32.mrb[0].mxu0
        %v847 = vadd.f32 %v519, %v846
        %v848 = vpop.f32.mrb[0].mxu0
        %v849 = vadd.f32 %v515, %v848
        %v850 = vpop.f32.mrb[0].mxu0
        %v851 = vadd.f32 %v519, %v850
        %852 = vmatprep.mubr.bf16.mxu0 0
        %853 = vmatmul.mubr.bf16.gmra.mrb[0].mxu0 %v606
        %v854 = vpop.f32.mrb[0].mxu0
        %v855 = vadd.f32 %v515, %v854
        %v856 = vpop.f32.mrb[0].mxu0
        %v857 = vadd.f32 %v519, %v856
        %v858 = vpop.f32.mrb[0].mxu0
        %v859 = vadd.f32 %v515, %v858
        %v860 = vpop.f32.mrb[0].mxu0
        %v861 = vadd.f32 %v519, %v860
        %862 = vmatprep.mubr.bf16.mxu0 0
        %863 = vmatmul.mubr.bf16.gmra.mrb[0].mxu0 %v607
        %v864 = vpop.f32.mrb[0].mxu0
        %v865 = vadd.f32 %v515, %v864
        %v866 = vpop.f32.mrb[0].mxu0
        %v867 = vadd.f32 %v519, %v866
        %v868 = vpop.f32.mrb[0].mxu0
        %v869 = vadd.f32 %v515, %v868
        %v870 = vpop.f32.mrb[0].mxu0
        %v871 = vadd.f32 %v519, %v870
        %872 = vmatprep.mubr.bf16.mxu0 0
        %873 = vmatmul.mubr.bf16.gmra.mrb[0].mxu0 %v608
        %v874 = vpop.f32.mrb[0].mxu0
        %v875 = vadd.f32 %v515, %v874
        %v876 = vpop.f32.mrb[0].mxu0
        %v877 = vadd.f32 %v519, %v876
        %v878 = vpop.f32.mrb[0].mxu0
        %v879 = vadd.f32 %v515, %v878
        %v880 = vpop.f32.mrb[0].mxu0
        %v881 = vadd.f32 %v519, %v880
        %882 = vmatprep.mubr.bf16.mxu0 0
        %883 = vmatmul.mubr.bf16.gmra.mrb[0].mxu0 %v609
        %v884 = vpop.f32.mrb[0].mxu0
        %v885 = vadd.f32 %v515, %v884
        %v886 = vpop.f32.mrb[0].mxu0
        %v887 = vadd.f32 %v519, %v886
        %v888 = vpop.f32.mrb[0].mxu0
        %v889 = vadd.f32 %v515, %v888
        %v890 = vpop.f32.mrb[0].mxu0
        %v891 = vadd.f32 %v519, %v890
        %892 = vmatprep.mubr.bf16.mxu0 0
        %893 = vmatmul.mubr.bf16.gmra.mrb[0].mxu0 %v610
        %v894 = vpop.f32.mrb[0].mxu0
        %v895 = vadd.f32 %v515, %v894
        %v896 = vpop.f32.mrb[0].mxu0
        %v897 = vadd.f32 %v519, %v896
        %v898 = vpop.f32.mrb[0].mxu0
        %v899 = vadd.f32 %v515, %v898
        %v900 = vpop.f32.mrb[0].mxu0
        %v901 = vadd.f32 %v519, %v900
        %902 = vmatprep.mubr.bf16.mxu0 0
        %903 = vmatmul.mubr.bf16.gmra.mrb[0].mxu0 %v611
        %v904 = vpop.f32.mrb[0].mxu0
        %v905 = vadd.f32 %v515, %v904
        %v906 = vpop.f32.mrb[0].mxu0
        %v907 = vadd.f32 %v519, %v906
        %v908 = vpop.f32.mrb[0].mxu0
        %v909 = vadd.f32 %v515, %v908
        %v910 = vpop.f32.mrb[0].mxu0
        %v911 = vadd.f32 %v519, %v910
        %912 = vmatprep.mubr.bf16.mxu0 0
        %913 = vmatmul.mubr.bf16.gmra.mrb[0].mxu0 %v612
        %v914 = vpop.f32.mrb[0].mxu0
        %v915 = vadd.f32 %v515, %v914
        %v916 = vpop.f32.mrb[0].mxu0
        %v917 = vadd.f32 %v519, %v916
        %v918 = vpop.f32.mrb[0].mxu0
        %v919 = vadd.f32 %v515, %v918
        %v920 = vpop.f32.mrb[0].mxu0
        %v921 = vadd.f32 %v519, %v920
        %922 = vmatprep.mubr.bf16.mxu0 0
        %923 = vmatmul.mubr.bf16.gmra.mrb[0].mxu0 %v613
        %v924 = vpop.f32.mrb[0].mxu0
        %v925 = vadd.f32 %v515, %v924
        %v926 = vpop.f32.mrb[0].mxu0
        %v927 = vadd.f32 %v519, %v926
        %v928 = vpop.f32.mrb[0].mxu0
        %v929 = vadd.f32 %v515, %v928
        %v930 = vpop.f32.mrb[0].mxu0
        %v931 = vadd.f32 %v519, %v930
        %932 = vmatprep.mubr.bf16.mxu0 0
        %933 = vmatmul.mubr.bf16.gmra.mrb[0].mxu0 %v614
        %v934 = vpop.f32.mrb[0].mxu0
        %v935 = vadd.f32 %v515, %v934
        %v936 = vpop.f32.mrb[0].mxu0
        %v937 = vadd.f32 %v519, %v936
        %v938 = vpop.f32.mrb[0].mxu0
        %v939 = vadd.f32 %v515, %v938
        %v940 = vpop.f32.mrb[0].mxu0
        %v941 = vadd.f32 %v519, %v940
        %942 = vmatprep.mubr.bf16.mxu0 0
        %943 = vmatmul.mubr.bf16.gmra.mrb[0].mxu0 %v615
        %v944 = vpop.f32.mrb[0].mxu0
        %v945 = vadd.f32 %v515, %v944
        %v946 = vpop.f32.mrb[0].mxu0
        %v947 = vadd.f32 %v519, %v946
        %v948 = vpop.f32.mrb[0].mxu0
        %v949 = vadd.f32 %v515, %v948
        %v950 = vpop.f32.mrb[0].mxu0
        %v951 = vadd.f32 %v519, %v950
        %952 = vmatprep.mubr.bf16.mxu0 0
        %953 = vmatmul.mubr.bf16.gmra.mrb[0].mxu0 %v616
        %v954 = vpop.f32.mrb[0].mxu0
        %v955 = vadd.f32 %v515, %v954
        %v956 = vpop.f32.mrb[0].mxu0
        %v957 = vadd.f32 %v519, %v956
        %v958 = vpop.f32.mrb[0].mxu0
        %v959 = vadd.f32 %v515, %v958
        %v960 = vpop.f32.mrb[0].mxu0
        %v961 = vadd.f32 %v519, %v960
        %962 = vmatprep.mubr.bf16.mxu0 0
        %963 = vmatmul.mubr.bf16.gmra.mrb[0].mxu0 %v617
        %v964 = vpop.f32.mrb[0].mxu0
        %v965 = vadd.f32 %v515, %v964
        %v966 = vpop.f32.mrb[0].mxu0
        %v967 = vadd.f32 %v519, %v966
        %v968 = vpop.f32.mrb[0].mxu0
        %v969 = vadd.f32 %v515, %v968
        %v970 = vpop.f32.mrb[0].mxu0
        %v971 = vadd.f32 %v519, %v970
        %972 = vmatprep.mubr.bf16.mxu0 0
        %973 = vmatmul.mubr.bf16.gmra.mrb[0].mxu0 %v618
        %v974 = vpop.f32.mrb[0].mxu0
        %v975 = vadd.f32 %v515, %v974
        %v976 = vpop.f32.mrb[0].mxu0
        %v977 = vadd.f32 %v519, %v976
        %v978 = vpop.f32.mrb[0].mxu0
        %v979 = vadd.f32 %v515, %v978
        %v980 = vpop.f32.mrb[0].mxu0
        %v981 = vadd.f32 %v519, %v980
        %982 = vmatprep.mubr.bf16.mxu0 0
        %983 = vmatmul.mubr.bf16.gmra.mrb[0].mxu0 %v619
        %v984 = vpop.f32.mrb[0].mxu0
        %v985 = vadd.f32 %v515, %v984
        %v986 = vpop.f32.mrb[0].mxu0
        %v987 = vadd.f32 %v519, %v986
        %v988 = vpop.f32.mrb[0].mxu0
        %v989 = vadd.f32 %v515, %v988
        %v990 = vpop.f32.mrb[0].mxu0
        %v991 = vadd.f32 %v519, %v990
        %992 = vmatprep.mubr.bf16.mxu0 0
        %993 = vmatmul.mubr.bf16.gmra.mrb[0].mxu0 %v620
        %v994 = vpop.f32.mrb[0].mxu0
        %v995 = vadd.f32 %v515, %v994
        %v996 = vpop.f32.mrb[0].mxu0
        %v997 = vadd.f32 %v519, %v996
        %v998 = vpop.f32.mrb[0].mxu0
        %v999 = vadd.f32 %v515, %v998
        %v1000 = vpop.f32.mrb[0].mxu0
        %v1001 = vadd.f32 %v519, %v1000
        %1002 = vmatprep.mubr.bf16.mxu0 0
        %1003 = vmatmul.mubr.bf16.gmra.mrb[0].mxu0 %v621
        %v1004 = vpop.f32.mrb[0].mxu0
        %v1005 = vadd.f32 %v515, %v1004
        %v1006 = vpop.f32.mrb[0].mxu0
        %v1007 = vadd.f32 %v519, %v1006
        %v1008 = vpop.f32.mrb[0].mxu0
        %v1009 = vadd.f32 %v515, %v1008
        %v1010 = vpop.f32.mrb[0].mxu0
        %v1011 = vadd.f32 %v519, %v1010
        %1012 = vdwg.mxu0
        %1013 = vmatprep.subr.bf16.mxu0 %v739
        %1014 = vmatpush1.bf16.msra.mxu0 %v738
        %1015 = vmatprep.subr.bf16.mxu0 %v743
        %1016 = vmatpush1.bf16.msra.mxu0 %v742
        %1017 = vmatprep.subr.bf16.mxu0 %v747
        %1018 = vmatpush1.bf16.msra.mxu0 %v746
        %1019 = vmatprep.subr.bf16.mxu0 %v751
        %1020 = vmatpush1.bf16.msra.mxu0 %v750
        %1021 = vmatprep.subr.bf16.mxu0 %v755
        %1022 = vmatpush1.bf16.msra.mxu0 %v754
        %1023 = vmatprep.subr.bf16.mxu0 %v759
        %1024 = vmatpush1.bf16.msra.mxu0 %v758
        %1025 = vmatprep.subr.bf16.mxu0 %v763
        %1026 = vmatpush1.bf16.msra.mxu0 %v762
        %1027 = vmatprep.subr.bf16.mxu0 %v767
        %1028 = vmatpush1.bf16.msra.mxu0 %v766
        %1029 = vmatprep.subr.bf16.mxu0 0
        %1030 = vmatpush1.bf16.msra.mxu0 0
        %1031 = vmatprep.subr.bf16.mxu0 0
        %1032 = vmatpush1.bf16.msra.mxu0 0
        %1033 = vmatprep.subr.bf16.mxu0 0
        %1034 = vmatpush1.bf16.msra.mxu0 0
        %1035 = vmatprep.subr.bf16.mxu0 0
        %1036 = vmatpush1.bf16.msra.mxu0 0
        %1037 = vmatprep.subr.bf16.mxu0 0
        %1038 = vmatpush1.bf16.msra.mxu0 0
        %1039 = vmatprep.subr.bf16.mxu0 0
        %1040 = vmatpush1.bf16.msra.mxu0 0
        %1041 = vmatprep.subr.bf16.mxu0 0
        %1042 = vmatpush1.bf16.msra.mxu0 0
        %1043 = vmatprep.subr.bf16.mxu0 0
        %1044 = vmatpush1.bf16.msra.mxu0 0
        %1045 = vmatprep.mubr.bf16.mxu0 0
        %1046 = vmatmul.mubr.bf16.gmra.mrb[0].mxu0 %v604
        %v1047 = vpop.f32.mrb[0].mxu0
        %v1048 = vadd.f32 %v523, %v1047
        %v1049 = vpop.f32.mrb[0].mxu0
        %v1050 = vadd.f32 %v527, %v1049
        %v1051 = vpop.f32.mrb[0].mxu0
        %v1052 = vadd.f32 %v523, %v1051
        %v1053 = vpop.f32.mrb[0].mxu0
        %v1054 = vadd.f32 %v527, %v1053
        %1055 = vmatprep.mubr.bf16.mxu0 0
        %1056 = vmatmul.mubr.bf16.gmra.mrb[0].mxu0 %v605
        %v1057 = vpop.f32.mrb[0].mxu0
        %v1058 = vadd.f32 %v523, %v1057
        %v1059 = vpop.f32.mrb[0].mxu0
        %v1060 = vadd.f32 %v527, %v1059
        %v1061 = vpop.f32.mrb[0].mxu0
        %v1062 = vadd.f32 %v523, %v1061
        %v1063 = vpop.f32.mrb[0].mxu0
        %v1064 = vadd.f32 %v527, %v1063
        %1065 = vmatprep.mubr.bf16.mxu0 0
        %1066 = vmatmul.mubr.bf16.gmra.mrb[0].mxu0 %v606
        %v1067 = vpop.f32.mrb[0].mxu0
        %v1068 = vadd.f32 %v523, %v1067
        %v1069 = vpop.f32.mrb[0].mxu0
        %v1070 = vadd.f32 %v527, %v1069
        %v1071 = vpop.f32.mrb[0].mxu0
        %v1072 = vadd.f32 %v523, %v1071
        %v1073 = vpop.f32.mrb[0].mxu0
        %v1074 = vadd.f32 %v527, %v1073
        %1075 = vmatprep.mubr.bf16.mxu0 0
        %1076 = vmatmul.mubr.bf16.gmra.mrb[0].mxu0 %v607
        %v1077 = vpop.f32.mrb[0].mxu0
        %v1078 = vadd.f32 %v523, %v1077
        %v1079 = vpop.f32.mrb[0].mxu0
        %v1080 = vadd.f32 %v527, %v1079
        %v1081 = vpop.f32.mrb[0].mxu0
        %v1082 = vadd.f32 %v523, %v1081
        %v1083 = vpop.f32.mrb[0].mxu0
        %v1084 = vadd.f32 %v527, %v1083
        %1085 = vmatprep.mubr.bf16.mxu0 0
        %1086 = vmatmul.mubr.bf16.gmra.mrb[0].mxu0 %v608
        %v1087 = vpop.f32.mrb[0].mxu0
        %v1088 = vadd.f32 %v523, %v1087
        %v1089 = vpop.f32.mrb[0].mxu0
        %v1090 = vadd.f32 %v527, %v1089
        %v1091 = vpop.f32.mrb[0].mxu0
        %v1092 = vadd.f32 %v523, %v1091
        %v1093 = vpop.f32.mrb[0].mxu0
        %v1094 = vadd.f32 %v527, %v1093
        %1095 = vmatprep.mubr.bf16.mxu0 0
        %1096 = vmatmul.mubr.bf16.gmra.mrb[0].mxu0 %v609
        %v1097 = vpop.f32.mrb[0].mxu0
        %v1098 = vadd.f32 %v523, %v1097
        %v1099 = vpop.f32.mrb[0].mxu0
        %v1100 = vadd.f32 %v527, %v1099
        %v1101 = vpop.f32.mrb[0].mxu0
        %v1102 = vadd.f32 %v523, %v1101
        %v1103 = vpop.f32.mrb[0].mxu0
        %v1104 = vadd.f32 %v527, %v1103
        %1105 = vmatprep.mubr.bf16.mxu0 0
        %1106 = vmatmul.mubr.bf16.gmra.mrb[0].mxu0 %v610
        %v1107 = vpop.f32.mrb[0].mxu0
        %v1108 = vadd.f32 %v523, %v1107
        %v1109 = vpop.f32.mrb[0].mxu0
        %v1110 = vadd.f32 %v527, %v1109
        %v1111 = vpop.f32.mrb[0].mxu0
        %v1112 = vadd.f32 %v523, %v1111
        %v1113 = vpop.f32.mrb[0].mxu0
        %v1114 = vadd.f32 %v527, %v1113
        %1115 = vmatprep.mubr.bf16.mxu0 0
        %1116 = vmatmul.mubr.bf16.gmra.mrb[0].mxu0 %v611
        %v1117 = vpop.f32.mrb[0].mxu0
        %v1118 = vadd.f32 %v523, %v1117
        %v1119 = vpop.f32.mrb[0].mxu0
        %v1120 = vadd.f32 %v527, %v1119
        %v1121 = vpop.f32.mrb[0].mxu0
        %v1122 = vadd.f32 %v523, %v1121
        %v1123 = vpop.f32.mrb[0].mxu0
        %v1124 = vadd.f32 %v527, %v1123
        %1125 = vmatprep.mubr.bf16.mxu0 0
        %1126 = vmatmul.mubr.bf16.gmra.mrb[0].mxu0 %v612
        %v1127 = vpop.f32.mrb[0].mxu0
        %v1128 = vadd.f32 %v523, %v1127
        %v1129 = vpop.f32.mrb[0].mxu0
        %v1130 = vadd.f32 %v527, %v1129
        %v1131 = vpop.f32.mrb[0].mxu0
        %v1132 = vadd.f32 %v523, %v1131
        %v1133 = vpop.f32.mrb[0].mxu0
        %v1134 = vadd.f32 %v527, %v1133
        %1135 = vmatprep.mubr.bf16.mxu0 0
        %1136 = vmatmul.mubr.bf16.gmra.mrb[0].mxu0 %v613
        %v1137 = vpop.f32.mrb[0].mxu0
        %v1138 = vadd.f32 %v523, %v1137
        %v1139 = vpop.f32.mrb[0].mxu0
        %v1140 = vadd.f32 %v527, %v1139
        %v1141 = vpop.f32.mrb[0].mxu0
        %v1142 = vadd.f32 %v523, %v1141
        %v1143 = vpop.f32.mrb[0].mxu0
        %v1144 = vadd.f32 %v527, %v1143
        %1145 = vmatprep.mubr.bf16.mxu0 0
        %1146 = vmatmul.mubr.bf16.gmra.mrb[0].mxu0 %v614
        %v1147 = vpop.f32.mrb[0].mxu0
        %v1148 = vadd.f32 %v523, %v1147
        %v1149 = vpop.f32.mrb[0].mxu0
        %v1150 = vadd.f32 %v527, %v1149
        %v1151 = vpop.f32.mrb[0].mxu0
        %v1152 = vadd.f32 %v523, %v1151
        %v1153 = vpop.f32.mrb[0].mxu0
        %v1154 = vadd.f32 %v527, %v1153
        %1155 = vmatprep.mubr.bf16.mxu0 0
        %1156 = vmatmul.mubr.bf16.gmra.mrb[0].mxu0 %v615
        %v1157 = vpop.f32.mrb[0].mxu0
        %v1158 = vadd.f32 %v523, %v1157
        %v1159 = vpop.f32.mrb[0].mxu0
        %v1160 = vadd.f32 %v527, %v1159
        %v1161 = vpop.f32.mrb[0].mxu0
        %v1162 = vadd.f32 %v523, %v1161
        %v1163 = vpop.f32.mrb[0].mxu0
        %v1164 = vadd.f32 %v527, %v1163
        %1165 = vmatprep.mubr.bf16.mxu0 0
        %1166 = vmatmul.mubr.bf16.gmra.mrb[0].mxu0 %v616
        %v1167 = vpop.f32.mrb[0].mxu0
        %v1168 = vadd.f32 %v523, %v1167
        %v1169 = vpop.f32.mrb[0].mxu0
        %v1170 = vadd.f32 %v527, %v1169
        %v1171 = vpop.f32.mrb[0].mxu0
        %v1172 = vadd.f32 %v523, %v1171
        %v1173 = vpop.f32.mrb[0].mxu0
        %v1174 = vadd.f32 %v527, %v1173
        %1175 = vmatprep.mubr.bf16.mxu0 0
        %1176 = vmatmul.mubr.bf16.gmra.mrb[0].mxu0 %v617
        %v1177 = vpop.f32.mrb[0].mxu0
        %v1178 = vadd.f32 %v523, %v1177
        %v1179 = vpop.f32.mrb[0].mxu0
        %v1180 = vadd.f32 %v527, %v1179
        %v1181 = vpop.f32.mrb[0].mxu0
        %v1182 = vadd.f32 %v523, %v1181
        %v1183 = vpop.f32.mrb[0].mxu0
        %v1184 = vadd.f32 %v527, %v1183
        %1185 = vmatprep.mubr.bf16.mxu0 0
        %1186 = vmatmul.mubr.bf16.gmra.mrb[0].mxu0 %v618
        %v1187 = vpop.f32.mrb[0].mxu0
        %v1188 = vadd.f32 %v523, %v1187
        %v1189 = vpop.f32.mrb[0].mxu0
        %v1190 = vadd.f32 %v527, %v1189
        %v1191 = vpop.f32.mrb[0].mxu0
        %v1192 = vadd.f32 %v523, %v1191
        %v1193 = vpop.f32.mrb[0].mxu0
        %v1194 = vadd.f32 %v527, %v1193
        %1195 = vmatprep.mubr.bf16.mxu0 0
        %1196 = vmatmul.mubr.bf16.gmra.mrb[0].mxu0 %v619
        %v1197 = vpop.f32.mrb[0].mxu0
        %v1198 = vadd.f32 %v523, %v1197
        %v1199 = vpop.f32.mrb[0].mxu0
        %v1200 = vadd.f32 %v527, %v1199
        %v1201 = vpop.f32.mrb[0].mxu0
        %v1202 = vadd.f32 %v523, %v1201
        %v1203 = vpop.f32.mrb[0].mxu0
        %v1204 = vadd.f32 %v527, %v1203
        %1205 = vmatprep.mubr.bf16.mxu0 0
        %1206 = vmatmul.mubr.bf16.gmra.mrb[0].mxu0 %v620
        %v1207 = vpop.f32.mrb[0].mxu0
        %v1208 = vadd.f32 %v523, %v1207
        %v1209 = vpop.f32.mrb[0].mxu0
        %v1210 = vadd.f32 %v527, %v1209
        %v1211 = vpop.f32.mrb[0].mxu0
        %v1212 = vadd.f32 %v523, %v1211
        %v1213 = vpop.f32.mrb[0].mxu0
        %v1214 = vadd.f32 %v527, %v1213
        %1215 = vmatprep.mubr.bf16.mxu0 0
        %1216 = vmatmul.mubr.bf16.gmra.mrb[0].mxu0 %v621
        %v1217 = vpop.f32.mrb[0].mxu0
        %v1218 = vadd.f32 %v523, %v1217
        %v1219 = vpop.f32.mrb[0].mxu0
        %v1220 = vadd.f32 %v527, %v1219
        %v1221 = vpop.f32.mrb[0].mxu0
        %v1222 = vadd.f32 %v523, %v1221
        %v1223 = vpop.f32.mrb[0].mxu0
        %v1224 = vadd.f32 %v527, %v1223
        %1225 = vdwg.mxu0
        %v1226 = vmax.f32 %v835, %v837
        %v1227 = vmax.f32 %v839, %v841
        %v1228 = vmax.f32 %v845, %v847
        %v1229 = vmax.f32 %v849, %v851
        %v1230 = vmax.f32 %v855, %v857
        %v1231 = vmax.f32 %v859, %v861
        %v1232 = vmax.f32 %v865, %v867
        %v1233 = vmax.f32 %v869, %v871
        %v1234 = vmax.f32 %v875, %v877
        %v1235 = vmax.f32 %v879, %v881
        %v1236 = vmax.f32 %v885, %v887
        %v1237 = vmax.f32 %v889, %v891
        %v1238 = vmax.f32 %v895, %v897
        %v1239 = vmax.f32 %v899, %v901
        %v1240 = vmax.f32 %v905, %v907
        %v1241 = vmax.f32 %v909, %v911
        %v1242 = vmax.f32 %v915, %v917
        %v1243 = vmax.f32 %v919, %v921
        %v1244 = vmax.f32 %v925, %v927
        %v1245 = vmax.f32 %v929, %v931
        %v1246 = vmax.f32 %v935, %v937
        %v1247 = vmax.f32 %v939, %v941
        %v1248 = vmax.f32 %v945, %v947
        %v1249 = vmax.f32 %v949, %v951
        %v1250 = vmax.f32 %v955, %v957
        %v1251 = vmax.f32 %v959, %v961
        %v1252 = vmax.f32 %v965, %v967
        %v1253 = vmax.f32 %v969, %v971
        %v1254 = vmax.f32 %v975, %v977
        %v1255 = vmax.f32 %v979, %v981
        %v1256 = vmax.f32 %v985, %v987
        %v1257 = vmax.f32 %v989, %v991
        %v1258 = vmax.f32 %v995, %v997
        %v1259 = vmax.f32 %v999, %v1001
        %v1260 = vmax.f32 %v1005, %v1007
        %v1261 = vmax.f32 %v1009, %v1011
        %v1262 = vmax.f32 %v1048, %v1050
        %v1263 = vmax.f32 %v1052, %v1054
        %v1264 = vmax.f32 %v1058, %v1060
        %v1265 = vmax.f32 %v1062, %v1064
        %v1266 = vmax.f32 %v1068, %v1070
        %v1267 = vmax.f32 %v1072, %v1074
        %v1268 = vmax.f32 %v1078, %v1080
        %v1269 = vmax.f32 %v1082, %v1084
        %v1270 = vmax.f32 %v1088, %v1090
        %v1271 = vmax.f32 %v1092, %v1094
        %v1272 = vmax.f32 %v1098, %v1100
        %v1273 = vmax.f32 %v1102, %v1104
        %v1274 = vmax.f32 %v1108, %v1110
        %v1275 = vmax.f32 %v1112, %v1114
        %v1276 = vmax.f32 %v1118, %v1120
        %v1277 = vmax.f32 %v1122, %v1124
        %v1278 = vmax.f32 %v1128, %v1130
        %v1279 = vmax.f32 %v1132, %v1134
        %v1280 = vmax.f32 %v1138, %v1140
        %v1281 = vmax.f32 %v1142, %v1144
        %v1282 = vmax.f32 %v1148, %v1150
        %v1283 = vmax.f32 %v1152, %v1154
        %v1284 = vmax.f32 %v1158, %v1160
        %v1285 = vmax.f32 %v1162, %v1164
        %v1286 = vmax.f32 %v1168, %v1170
        %v1287 = vmax.f32 %v1172, %v1174
        %v1288 = vmax.f32 %v1178, %v1180
        %v1289 = vmax.f32 %v1182, %v1184
        %v1290 = vmax.f32 %v1188, %v1190
        %v1291 = vmax.f32 %v1192, %v1194
        %v1292 = vmax.f32 %v1198, %v1200
        %v1293 = vmax.f32 %v1202, %v1204
        %v1294 = vmax.f32 %v1208, %v1210
        %v1295 = vmax.f32 %v1212, %v1214
        %v1296 = vmax.f32 %v1218, %v1220
        %v1297 = vmax.f32 %v1222, %v1224
        %v1298 = vmax.f32 %v1226, %v1262
        %v1299 = vmax.f32 %v1227, %v1263
        %v1300 = vmax.f32 %v1228, %v1264
        %v1301 = vmax.f32 %v1229, %v1265
        %v1302 = vmax.f32 %v1230, %v1266
        %v1303 = vmax.f32 %v1231, %v1267
        %v1304 = vmax.f32 %v1232, %v1268
        %v1305 = vmax.f32 %v1233, %v1269
        %v1306 = vmax.f32 %v1234, %v1270
        %v1307 = vmax.f32 %v1235, %v1271
        %v1308 = vmax.f32 %v1236, %v1272
        %v1309 = vmax.f32 %v1237, %v1273
        %v1310 = vmax.f32 %v1238, %v1274
        %v1311 = vmax.f32 %v1239, %v1275
        %v1312 = vmax.f32 %v1240, %v1276
        %v1313 = vmax.f32 %v1241, %v1277
        %v1314 = vmax.f32 %v1242, %v1278
        %v1315 = vmax.f32 %v1243, %v1279
        %v1316 = vmax.f32 %v1244, %v1280
        %v1317 = vmax.f32 %v1245, %v1281
        %v1318 = vmax.f32 %v1246, %v1282
        %v1319 = vmax.f32 %v1247, %v1283
        %v1320 = vmax.f32 %v1248, %v1284
        %v1321 = vmax.f32 %v1249, %v1285
        %v1322 = vmax.f32 %v1250, %v1286
        %v1323 = vmax.f32 %v1251, %v1287
        %v1324 = vmax.f32 %v1252, %v1288
        %v1325 = vmax.f32 %v1253, %v1289
        %v1326 = vmax.f32 %v1254, %v1290
        %v1327 = vmax.f32 %v1255, %v1291
        %v1328 = vmax.f32 %v1256, %v1292
        %v1329 = vmax.f32 %v1257, %v1293
        %v1330 = vmax.f32 %v1258, %v1294
        %v1331 = vmax.f32 %v1259, %v1295
        %v1332 = vmax.f32 %v1260, %v1296
        %v1333 = vmax.f32 %v1261, %v1297
        %v1334 = vpack.c.bf16 %v1299, %v1298
        %v1335 = vpack.c.bf16 %v1302, %v1301
        %v1336 = vpack.c.bf16 %v1305, %v1304
        %v1337 = vpack.c.bf16 %v1308, %v1307
        %v1338 = vpack.c.bf16 %v1311, %v1310
        %v1339 = vpack.c.bf16 %v1314, %v1313
        %v1340 = vpack.c.bf16 %v1317, %v1316
        %v1341 = vpack.c.bf16 %v1320, %v1319
        %v1342 = vpack.c.bf16 %v1323, %v1322
        %v1343 = vpack.c.bf16 %v1326, %v1325
        %v1344 = vpack.c.bf16 %v1300, %v1300
        %v1345 = vpack.c.bf16 %v1303, %v1303
        %v1346 = vpack.c.bf16 %v1306, %v1306
        %v1347 = vpack.c.bf16 %v1309, %v1309
        %v1348 = vpack.c.bf16 %v1312, %v1312
        %v1349 = vpack.c.bf16 %v1315, %v1315
        %v1350 = vpack.c.bf16 %v1318, %v1318
        %v1351 = vpack.c.bf16 %v1321, %v1321
        %v1352 = vpack.c.bf16 %v1324, %v1324
        %v1353 = vpack.c.bf16 %v1327, %v1327
        %v1354 = vpack.c.bf16 %v1329, %v1328
        %v1355 = vpack.c.bf16 %v1330, %v1330
        %v1356 = vpack.c.bf16 %v1332, %v1331
        %v1357 = vpack.c.bf16 %v1333, %v1333
        %vm1358 = vsmask.f32 7424
        %v1360 = vshrl.u32 %v1334, 16
        %v1362 = vshll.u32 %v1334, 16
        %v1364 = vrot.slane %v1362, 1
        %v1365 = vor.u32 %v1360, %v1364
        %v1367 = vshll.u32 %v1344, 16
        %v1369 = vrot.slane %v1367, 1
        %v1370 = vsel %vm1358, %v1365, %v1369
        %v1372 = vshrl.u32 %v1335, 16
        %v1374 = vshll.u32 %v1335, 16
        %v1376 = vrot.slane %v1374, 1
        %v1377 = vor.u32 %v1372, %v1376
        %v1379 = vshll.u32 %v1345, 16
        %v1381 = vrot.slane %v1379, 1
        %v1382 = vsel %vm1358, %v1377, %v1381
        %v1384 = vshrl.u32 %v1336, 16
        %v1386 = vshll.u32 %v1336, 16
        %v1388 = vrot.slane %v1386, 1
        %v1389 = vor.u32 %v1384, %v1388
        %v1391 = vshll.u32 %v1346, 16
        %v1393 = vrot.slane %v1391, 1
        %v1394 = vsel %vm1358, %v1389, %v1393
        %v1396 = vshrl.u32 %v1337, 16
        %v1398 = vshll.u32 %v1337, 16
        %v1400 = vrot.slane %v1398, 1
        %v1401 = vor.u32 %v1396, %v1400
        %v1403 = vshll.u32 %v1347, 16
        %v1405 = vrot.slane %v1403, 1
        %v1406 = vsel %vm1358, %v1401, %v1405
        %v1408 = vshrl.u32 %v1338, 16
        %v1410 = vshll.u32 %v1338, 16
        %v1412 = vrot.slane %v1410, 1
        %v1413 = vor.u32 %v1408, %v1412
        %v1415 = vshll.u32 %v1348, 16
        %v1417 = vrot.slane %v1415, 1
        %v1418 = vsel %vm1358, %v1413, %v1417
        %v1420 = vshrl.u32 %v1339, 16
        %v1422 = vshll.u32 %v1339, 16
        %v1424 = vrot.slane %v1422, 1
        %v1425 = vor.u32 %v1420, %v1424
        %v1427 = vshll.u32 %v1349, 16
        %v1429 = vrot.slane %v1427, 1
        %v1430 = vsel %vm1358, %v1425, %v1429
        %v1432 = vshrl.u32 %v1340, 16
        %v1434 = vshll.u32 %v1340, 16
        %v1436 = vrot.slane %v1434, 1
        %v1437 = vor.u32 %v1432, %v1436
        %v1439 = vshll.u32 %v1350, 16
        %v1441 = vrot.slane %v1439, 1
        %v1442 = vsel %vm1358, %v1437, %v1441
        %v1444 = vshrl.u32 %v1341, 16
        %v1446 = vshll.u32 %v1341, 16
        %v1448 = vrot.slane %v1446, 1
        %v1449 = vor.u32 %v1444, %v1448
        %v1451 = vshll.u32 %v1351, 16
        %v1453 = vrot.slane %v1451, 1
        %v1454 = vsel %vm1358, %v1449, %v1453
        %v1456 = vshrl.u32 %v1342, 16
        %v1458 = vshll.u32 %v1342, 16
        %v1460 = vrot.slane %v1458, 1
        %v1461 = vor.u32 %v1456, %v1460
        %v1463 = vshll.u32 %v1352, 16
        %v1465 = vrot.slane %v1463, 1
        %v1466 = vsel %vm1358, %v1461, %v1465
        %v1468 = vshrl.u32 %v1343, 16
        %v1470 = vshll.u32 %v1343, 16
        %v1472 = vrot.slane %v1470, 1
        %v1473 = vor.u32 %v1468, %v1472
        %v1475 = vshll.u32 %v1353, 16
        %v1477 = vrot.slane %v1475, 1
        %v1478 = vsel %vm1358, %v1473, %v1477
        %vm1509 = vcmask 1046528
        %v1510 = vrot.slane %v1334, 1
        %v1511 = vrot.slane %v1344, 1
        %v1512 = vsel %vm1509, %v1510, %v1511
        %v1513 = vrot.slane %v1335, 1
        %v1514 = vrot.slane %v1345, 1
        %v1515 = vsel %vm1509, %v1513, %v1514
        %v1516 = vrot.slane %v1336, 1
        %v1517 = vrot.slane %v1346, 1
        %v1518 = vsel %vm1509, %v1516, %v1517
        %v1519 = vrot.slane %v1337, 1
        %v1520 = vrot.slane %v1347, 1
        %v1521 = vsel %vm1509, %v1519, %v1520
        %v1522 = vrot.slane %v1338, 1
        %v1523 = vrot.slane %v1348, 1
        %v1524 = vsel %vm1509, %v1522, %v1523
        %v1525 = vrot.slane %v1339, 1
        %v1526 = vrot.slane %v1349, 1
        %v1527 = vsel %vm1509, %v1525, %v1526
        %v1528 = vrot.slane %v1340, 1
        %v1529 = vrot.slane %v1350, 1
        %v1530 = vsel %vm1509, %v1528, %v1529
        %v1531 = vrot.slane %v1341, 1
        %v1532 = vrot.slane %v1351, 1
        %v1533 = vsel %vm1509, %v1531, %v1532
        %v1534 = vrot.slane %v1342, 1
        %v1535 = vrot.slane %v1352, 1
        %v1536 = vsel %vm1509, %v1534, %v1535
        %v1537 = vrot.slane %v1343, 1
        %v1538 = vrot.slane %v1353, 1
        %v1539 = vsel %vm1509, %v1537, %v1538
        %v1551 = vshrl.u32 %v1354, 16
        %v1553 = vshll.u32 %v1354, 16
        %v1555 = vrot.slane %v1553, 1
        %v1556 = vor.u32 %v1551, %v1555
        %v1558 = vshll.u32 %v1355, 16
        %v1560 = vrot.slane %v1558, 1
        %v1561 = vsel %vm1358, %v1556, %v1560
        %v1565 = vrot.slane %v1354, 1
        %v1566 = vrot.slane %v1355, 1
        %v1567 = vsel %vm1509, %v1565, %v1566
        %v1570 = vshrl.u32 %v1356, 16
        %v1572 = vshll.u32 %v1356, 16
        %v1574 = vrot.slane %v1572, 1
        %v1575 = vor.u32 %v1570, %v1574
        %v1577 = vshll.u32 %v1357, 16
        %v1579 = vrot.slane %v1577, 1
        %v1580 = vsel %vm1358, %v1575, %v1579
        %v1584 = vrot.slane %v1356, 1
        %v1585 = vrot.slane %v1357, 1
        %v1586 = vsel %vm1509, %v1584, %v1585
        %v1588 = vld [vmem:[#allocation9] sm:$0xf]
        %v1589 = vld [vmem:[#allocation9 + $0x4] sm:$0xf]
        %v1590 = vld [vmem:[#allocation9 + $0x8] sm:$0xf]
        %v1591 = vld [vmem:[#allocation9 + $0xc] sm:$0xf]
        %v1592 = vld [vmem:[#allocation9 + $0x10] sm:$0xf]
        %v1593 = vld [vmem:[#allocation9 + $0x14] sm:$0xf]
        %v1594 = vld [vmem:[#allocation9 + $0x18] sm:$0xf]
        %v1595 = vld [vmem:[#allocation9 + $0x1c] sm:$0xf]
        %v1596 = vld [vmem:[#allocation9 + $0x20] sm:$0xf]
        %v1597 = vld [vmem:[#allocation9 + $0x24] sm:$0xf]
        %v1598 = vld [vmem:[#allocation9 + $0x28] sm:$0xf]
        %v1599 = vld [vmem:[#allocation9 + $0x2c] sm:$0xf]
        %v1600 = vld [vmem:[#allocation9 + $0x30] sm:$0xf]
        %v1601 = vld [vmem:[#allocation9 + $0x34] sm:$0xf]
        %v1602 = vld [vmem:[#allocation9 + $0x38] sm:$0xf]
        %v1603 = vld [vmem:[#allocation9 + $0x3c] sm:$0xf]
        %v1604 = vld [vmem:[#allocation9 + $0x40] sm:$0xf]
        %v1605 = vld [vmem:[#allocation9 + $0x44] sm:$0xf]
        %v1606 = vld [vmem:[#allocation9 + $0x48] sm:$0xf]
        %v1607 = vld [vmem:[#allocation9 + $0x4c] sm:$0xf]
        %v1608 = vld [vmem:[#allocation9 + $0x50] sm:$0xf]
        %v1609 = vld [vmem:[#allocation9 + $0x54] sm:$0xf]
        %v1610 = vld [vmem:[#allocation9 + $0x58] sm:$0xf]
        %v1611 = vld [vmem:[#allocation9 + $0x5c] sm:$0xf]
        %v1612 = vld [vmem:[#allocation9 + $0x60] sm:$0xf]
        %v1613 = vld [vmem:[#allocation9 + $0x64] sm:$0xf]
        %v1614 = vld [vmem:[#allocation9 + $0x68] sm:$0xf]
        %v1615 = vld [vmem:[#allocation9 + $0x6c] sm:$0xf]
        %v1616 = vld [vmem:[#allocation9 + $0x70] sm:$0xf]
        %v1617 = vld [vmem:[#allocation9 + $0x74] sm:$0xf]
        %v1618 = vld [vmem:[#allocation9 + $0x78] sm:$0xf]
        %v1619 = vld [vmem:[#allocation9 + $0x7c] sm:$0xf]
        %v1620 = vld [vmem:[#allocation9 + $0x80] sm:$0xf]
        %v1621 = vld [vmem:[#allocation9 + $0x84] sm:$0xf]
        %v1622 = vld [vmem:[#allocation9 + $0x88] sm:$0xf]
        %v1623 = vld [vmem:[#allocation9 + $0x8c] sm:$0xf]
        %v1624 = vld [vmem:[#allocation9 + $0x90] sm:$0xf]
        %v1625 = vld [vmem:[#allocation9 + $0x94] sm:$0xf]
        %v1626 = vld [vmem:[#allocation9 + $0x98] sm:$0xf]
        %v1627 = vld [vmem:[#allocation9 + $0x9c] sm:$0xf]
        %v1628 = vld [vmem:[#allocation9 + $0xa0] sm:$0xf]
        %v1629 = vld [vmem:[#allocation9 + $0xa4] sm:$0xf]
        %v1630 = vld [vmem:[#allocation9 + $0xa8] sm:$0xf]
        %v1631 = vld [vmem:[#allocation9 + $0xac] sm:$0xf]
        %v1632 = vld [vmem:[#allocation9 + $0xb0] sm:$0xf]
        %v1633 = vld [vmem:[#allocation9 + $0xb4] sm:$0xf]
        %v1634 = vld [vmem:[#allocation9 + $0xb8] sm:$0xf]
        %v1635 = vld [vmem:[#allocation9 + $0xbc] sm:$0xf]
        %v1636 = vld [vmem:[#allocation9 + $0xc0] sm:$0xf]
        %v1637 = vld [vmem:[#allocation9 + $0xc4] sm:$0xf]
        %v1638 = vld [vmem:[#allocation9 + $0xc8] sm:$0xf]
        %v1639 = vld [vmem:[#allocation9 + $0xcc] sm:$0xf]
        %v1640 = vld [vmem:[#allocation9 + $0xd0] sm:$0xf]
        %v1641 = vld [vmem:[#allocation9 + $0xd4] sm:$0xf]
        %v1642 = vld [vmem:[#allocation9 + $0xd8] sm:$0xf]
        %v1643 = vld [vmem:[#allocation9 + $0xdc] sm:$0xf]
        %v1644 = vld [vmem:[#allocation9 + $0xe0] sm:$0xf]
        %v1645 = vld [vmem:[#allocation9 + $0xe4] sm:$0xf]
        %v1646 = vld [vmem:[#allocation9 + $0xe8] sm:$0xf]
        %v1647 = vld [vmem:[#allocation9 + $0xec] sm:$0xf]
        %v1648 = vld [vmem:[#allocation9 + $0xf0] sm:$0xf]
        %v1649 = vld [vmem:[#allocation9 + $0xf4] sm:$0xf]
        %v1650 = vld [vmem:[#allocation9 + $0xf8] sm:$0xf]
        %v1651 = vld [vmem:[#allocation9 + $0xfc] sm:$0xf]
        %v1652 = vld [vmem:[#allocation9 + $0x100] sm:$0xf]
        %v1653 = vld [vmem:[#allocation9 + $0x104] sm:$0xf]
        %v1654 = vld [vmem:[#allocation9 + $0x108] sm:$0xf]
        %v1655 = vld [vmem:[#allocation9 + $0x10c] sm:$0xf]
        %v1656 = vld [vmem:[#allocation9 + $0x110] sm:$0xf]
        %v1657 = vld [vmem:[#allocation9 + $0x114] sm:$0xf]
        %v1658 = vld [vmem:[#allocation9 + $0x118] sm:$0xf]
        %v1659 = vld [vmem:[#allocation9 + $0x11c] sm:$0xf]
        %v1660 = vld [vmem:[#allocation9 + $0x120] sm:$0xf]
        %v1661 = vld [vmem:[#allocation9 + $0x124] sm:$0xf]
        %v1662 = vld [vmem:[#allocation9 + $0x128] sm:$0xf]
        %v1663 = vld [vmem:[#allocation9 + $0x12c] sm:$0xf]
        %v1664 = vld [vmem:[#allocation9 + $0x130] sm:$0xf]
        %v1665 = vld [vmem:[#allocation9 + $0x134] sm:$0xf]
        %v1666 = vld [vmem:[#allocation9 + $0x138] sm:$0xf]
        %v1667 = vld [vmem:[#allocation9 + $0x13c] sm:$0xf]
        %v1668 = vld [vmem:[#allocation9 + $0x140] sm:$0xf]
        %v1669 = vld [vmem:[#allocation9 + $0x144] sm:$0xf]
        %v1670 = vld [vmem:[#allocation9 + $0x148] sm:$0xf]
        %v1671 = vld [vmem:[#allocation9 + $0x14c] sm:$0xf]
        %v1672 = vld [vmem:[#allocation9 + $0x150] sm:$0xf]
        %v1673 = vld [vmem:[#allocation9 + $0x154] sm:$0xf]
        %v1674 = vld [vmem:[#allocation9 + $0x158] sm:$0xf]
        %v1675 = vld [vmem:[#allocation9 + $0x15c] sm:$0xf]
        %v1676 = vld [vmem:[#allocation9 + $0x160] sm:$0xf]
        %v1677 = vld [vmem:[#allocation9 + $0x164] sm:$0xf]
        %v1678 = vld [vmem:[#allocation9 + $0x168] sm:$0xf]
        %v1679 = vld [vmem:[#allocation9 + $0x16c] sm:$0xf]
        %v1680 = vld [vmem:[#allocation9 + $0x170] sm:$0xf]
        %v1681 = vld [vmem:[#allocation9 + $0x174] sm:$0xf]
        %v1682 = vld [vmem:[#allocation9 + $0x178] sm:$0xf]
        %v1683 = vld [vmem:[#allocation9 + $0x17c] sm:$0xf]
        %v1684 = vld [vmem:[#allocation9 + $0x180] sm:$0xf]
        %v1685 = vld [vmem:[#allocation9 + $0x184] sm:$0xf]
        %v1686 = vld [vmem:[#allocation9 + $0x188] sm:$0xf]
        %v1687 = vld [vmem:[#allocation9 + $0x18c] sm:$0xf]
        %v1688 = vld [vmem:[#allocation9 + $0x190] sm:$0xf]
        %v1689 = vld [vmem:[#allocation9 + $0x194] sm:$0xf]
        %v1690 = vld [vmem:[#allocation9 + $0x198] sm:$0xf]
        %v1691 = vld [vmem:[#allocation9 + $0x19c] sm:$0xf]
        %v1692 = vld [vmem:[#allocation9 + $0x1a0] sm:$0xf]
        %v1693 = vld [vmem:[#allocation9 + $0x1a4] sm:$0xf]
        %v1694 = vld [vmem:[#allocation9 + $0x1a8] sm:$0xf]
        %v1695 = vld [vmem:[#allocation9 + $0x1ac] sm:$0xf]
        %v1696 = vld [vmem:[#allocation9 + $0x1b0] sm:$0xf]
        %v1697 = vld [vmem:[#allocation9 + $0x1b4] sm:$0xf]
        %v1698 = vld [vmem:[#allocation9 + $0x1b8] sm:$0xf]
        %v1699 = vld [vmem:[#allocation9 + $0x1bc] sm:$0xf]
        %v1700 = vld [vmem:[#allocation9 + $0x1c0] sm:$0xf]
        %v1701 = vld [vmem:[#allocation9 + $0x1c4] sm:$0xf]
        %v1702 = vld [vmem:[#allocation9 + $0x1c8] sm:$0xf]
        %v1703 = vld [vmem:[#allocation9 + $0x1cc] sm:$0xf]
        %v1704 = vld [vmem:[#allocation9 + $0x1d0] sm:$0xf]
        %v1705 = vld [vmem:[#allocation9 + $0x1d4] sm:$0xf]
        %v1706 = vld [vmem:[#allocation9 + $0x1d8] sm:$0xf]
        %v1707 = vld [vmem:[#allocation9 + $0x1dc] sm:$0xf]
        %v1708 = vld [vmem:[#allocation9 + $0x1e0] sm:$0xf]
        %v1709 = vld [vmem:[#allocation9 + $0x1e4] sm:$0xf]
        %v1710 = vld [vmem:[#allocation9 + $0x1e8] sm:$0xf]
        %v1711 = vld [vmem:[#allocation9 + $0x1ec] sm:$0xf]
        %v1712 = vld [vmem:[#allocation9 + $0x1f0] sm:$0xf]
        %v1713 = vld [vmem:[#allocation9 + $0x1f4] sm:$0xf]
        %v1714 = vld [vmem:[#allocation9 + $0x1f8] sm:$0xf]
        %v1715 = vld [vmem:[#allocation9 + $0x1fc] sm:$0xf]
        %v1716 = vld [vmem:[#allocation9 + $0x200] sm:$0xf]
        %v1717 = vld [vmem:[#allocation9 + $0x204] sm:$0xf]
        %v1718 = vld [vmem:[#allocation9 + $0x208] sm:$0xf]
        %v1719 = vld [vmem:[#allocation9 + $0x20c] sm:$0xf]
        %v1720 = vld [vmem:[#allocation9 + $0x210] sm:$0xf]
        %v1721 = vld [vmem:[#allocation9 + $0x214] sm:$0xf]
        %v1722 = vld [vmem:[#allocation9 + $0x218] sm:$0xf]
        %v1723 = vld [vmem:[#allocation9 + $0x21c] sm:$0xf]
        %v1724 = vld [vmem:[#allocation9 + $0x220] sm:$0xf]
        %v1725 = vld [vmem:[#allocation9 + $0x224] sm:$0xf]
        %v1726 = vld [vmem:[#allocation9 + $0x228] sm:$0xf]
        %v1727 = vld [vmem:[#allocation9 + $0x22c] sm:$0xf]
        %v1728 = vld [vmem:[#allocation9 + $0x230] sm:$0xf]
        %v1729 = vld [vmem:[#allocation9 + $0x234] sm:$0xf]
        %v1730 = vld [vmem:[#allocation9 + $0x238] sm:$0xf]
        %v1731 = vld [vmem:[#allocation9 + $0x23c] sm:$0xf]
        %v1732 = vld [vmem:[#allocation10] sm:$0x1]
        %v1734 = vlaneseq
        %v1735 = vshrl.u32 %v1734, 7
        %v1736 = vsub.s32 0, %v1735
        %v1737 = vrot.slane %v1732, %v1736
        %v1883 = vunpack.c.l.b16 %v1588
        %v1884 = vunpack.c.l.b16 %v1589
        %v1885 = vunpack.c.l.b16 %v1590
        %v1886 = vunpack.c.l.b16 %v1591
        %v1887 = vunpack.c.l.b16 %v1592
        %v1888 = vunpack.c.l.b16 %v1593
        %v1889 = vunpack.c.l.b16 %v1594
        %v1890 = vunpack.c.l.b16 %v1595
        %v1891 = vunpack.c.l.b16 %v1596
        %v1892 = vunpack.c.l.b16 %v1597
        %v1893 = vunpack.c.l.b16 %v1598
        %v1894 = vunpack.c.l.b16 %v1599
        %v1895 = vunpack.c.l.b16 %v1600
        %v1896 = vunpack.c.l.b16 %v1601
        %v1897 = vunpack.c.l.b16 %v1602
        %v1898 = vunpack.c.l.b16 %v1603
        %v1899 = vunpack.c.l.b16 %v1604
        %v1900 = vunpack.c.l.b16 %v1605
        %v1901 = vunpack.c.l.b16 %v1606
        %v1902 = vunpack.c.l.b16 %v1607
        %v1903 = vunpack.c.l.b16 %v1608
        %v1904 = vunpack.c.l.b16 %v1609
        %v1905 = vunpack.c.l.b16 %v1610
        %v1906 = vunpack.c.l.b16 %v1611
        %v1907 = vunpack.c.l.b16 %v1612
        %v1908 = vunpack.c.l.b16 %v1613
        %v1909 = vunpack.c.l.b16 %v1614
        %v1910 = vunpack.c.l.b16 %v1615
        %v1911 = vunpack.c.l.b16 %v1616
        %v1912 = vunpack.c.l.b16 %v1617
        %v1913 = vunpack.c.l.b16 %v1618
        %v1914 = vunpack.c.l.b16 %v1619
        %v1915 = vunpack.c.l.b16 %v1620
        %v1916 = vunpack.c.l.b16 %v1621
        %v1917 = vunpack.c.l.b16 %v1622
        %v1918 = vunpack.c.l.b16 %v1623
        %v1919 = vunpack.c.l.b16 %v1624
        %v1920 = vunpack.c.l.b16 %v1625
        %v1921 = vunpack.c.l.b16 %v1626
        %v1922 = vunpack.c.l.b16 %v1627
        %v1923 = vunpack.c.l.b16 %v1628
        %v1924 = vunpack.c.l.b16 %v1629
        %v1925 = vunpack.c.l.b16 %v1630
        %v1926 = vunpack.c.l.b16 %v1631
        %v1927 = vunpack.c.l.b16 %v1632
        %v1928 = vunpack.c.l.b16 %v1633
        %v1929 = vunpack.c.l.b16 %v1634
        %v1930 = vunpack.c.l.b16 %v1635
        %v1931 = vunpack.c.l.b16 %v1636
        %v1932 = vunpack.c.l.b16 %v1637
        %v1933 = vunpack.c.l.b16 %v1638
        %v1934 = vunpack.c.l.b16 %v1639
        %v1935 = vunpack.c.l.b16 %v1640
        %v1936 = vunpack.c.l.b16 %v1641
        %v1937 = vunpack.c.l.b16 %v1642
        %v1938 = vunpack.c.l.b16 %v1643
        %v1939 = vunpack.c.l.b16 %v1644
        %v1940 = vunpack.c.l.b16 %v1645
        %v1941 = vunpack.c.l.b16 %v1646
        %v1942 = vunpack.c.l.b16 %v1647
        %v1943 = vunpack.c.l.b16 %v1648
        %v1944 = vunpack.c.l.b16 %v1649
        %v1945 = vunpack.c.l.b16 %v1650
        %v1946 = vunpack.c.l.b16 %v1651
        %v1947 = vunpack.c.l.b16 %v1652
        %v1948 = vunpack.c.l.b16 %v1653
        %v1949 = vunpack.c.l.b16 %v1654
        %v1950 = vunpack.c.l.b16 %v1655
        %v1951 = vunpack.c.l.b16 %v1656
        %v1952 = vunpack.c.l.b16 %v1657
        %v1953 = vunpack.c.l.b16 %v1658
        %v1954 = vunpack.c.l.b16 %v1659
        %v1955 = vunpack.c.l.b16 %v1660
        %v1956 = vunpack.c.l.b16 %v1661
        %v1957 = vunpack.c.l.b16 %v1662
        %v1958 = vunpack.c.l.b16 %v1663
        %v1959 = vunpack.c.l.b16 %v1664
        %v1960 = vunpack.c.l.b16 %v1665
        %v1961 = vunpack.c.l.b16 %v1666
        %v1962 = vunpack.c.l.b16 %v1667
        %v1963 = vunpack.c.l.b16 %v1668
        %v1964 = vunpack.c.l.b16 %v1669
        %v1965 = vunpack.c.l.b16 %v1670
        %v1966 = vunpack.c.l.b16 %v1671
        %v1967 = vunpack.c.l.b16 %v1672
        %v1968 = vunpack.c.l.b16 %v1673
        %v1969 = vunpack.c.l.b16 %v1674
        %v1970 = vunpack.c.l.b16 %v1675
        %v1971 = vunpack.c.l.b16 %v1676
        %v1972 = vunpack.c.l.b16 %v1677
        %v1973 = vunpack.c.l.b16 %v1678
        %v1974 = vunpack.c.l.b16 %v1679
        %v1975 = vunpack.c.l.b16 %v1680
        %v1976 = vunpack.c.l.b16 %v1681
        %v1977 = vunpack.c.l.b16 %v1682
        %v1978 = vunpack.c.l.b16 %v1683
        %v1979 = vunpack.c.l.b16 %v1684
        %v1980 = vunpack.c.l.b16 %v1685
        %v1981 = vunpack.c.l.b16 %v1686
        %v1982 = vunpack.c.l.b16 %v1687
        %v1983 = vunpack.c.l.b16 %v1688
        %v1984 = vunpack.c.l.b16 %v1689
        %v1985 = vunpack.c.l.b16 %v1690
        %v1986 = vunpack.c.l.b16 %v1691
        %v1987 = vunpack.c.l.b16 %v1692
        %v1988 = vunpack.c.l.b16 %v1693
        %v1989 = vunpack.c.l.b16 %v1694
        %v1990 = vunpack.c.l.b16 %v1695
        %v1991 = vunpack.c.l.b16 %v1696
        %v1992 = vunpack.c.l.b16 %v1697
        %v1993 = vunpack.c.l.b16 %v1698
        %v1994 = vunpack.c.l.b16 %v1699
        %v1995 = vunpack.c.l.b16 %v1700
        %v1996 = vunpack.c.l.b16 %v1701
        %v1997 = vunpack.c.l.b16 %v1702
        %v1998 = vunpack.c.l.b16 %v1703
        %v1999 = vunpack.c.l.b16 %v1704
        %v2000 = vunpack.c.l.b16 %v1705
        %v2001 = vunpack.c.l.b16 %v1706
        %v2002 = vunpack.c.l.b16 %v1707
        %v2003 = vunpack.c.l.b16 %v1708
        %v2004 = vunpack.c.l.b16 %v1709
        %v2005 = vunpack.c.l.b16 %v1710
        %v2006 = vunpack.c.l.b16 %v1711
        %v2007 = vunpack.c.l.b16 %v1712
        %v2008 = vunpack.c.l.b16 %v1713
        %v2009 = vunpack.c.l.b16 %v1714
        %v2010 = vunpack.c.l.b16 %v1715
        %v2011 = vunpack.c.l.b16 %v1716
        %v2012 = vunpack.c.l.b16 %v1717
        %v2013 = vunpack.c.l.b16 %v1718
        %v2014 = vunpack.c.l.b16 %v1719
        %v2015 = vunpack.c.l.b16 %v1720
        %v2016 = vunpack.c.l.b16 %v1721
        %v2017 = vunpack.c.l.b16 %v1722
        %v2018 = vunpack.c.l.b16 %v1723
        %v2019 = vunpack.c.l.b16 %v1724
        %v2020 = vunpack.c.l.b16 %v1725
        %v2021 = vunpack.c.l.b16 %v1726
        %v2022 = vunpack.c.l.b16 %v1727
        %v2023 = vunpack.c.l.b16 %v1728
        %v2024 = vunpack.c.l.b16 %v1729
        %v2025 = vunpack.c.l.b16 %v1730
        %v2026 = vunpack.c.l.b16 %v1731
        %v2027 = vpack.c.b16 %v1884, %v1883
        %v2028 = vpack.c.b16 %v1886, %v1885
        %v2029 = vpack.c.b16 %v1888, %v1887
        %v2030 = vpack.c.b16 %v1890, %v1889
        %v2031 = vpack.c.b16 %v1892, %v1891
        %v2032 = vpack.c.b16 %v1894, %v1893
        %v2033 = vpack.c.b16 %v1896, %v1895
        %v2034 = vpack.c.b16 %v1898, %v1897
        %v2035 = vpack.c.b16 %v1900, %v1899
        %v2036 = vpack.c.b16 %v1902, %v1901
        %v2037 = vpack.c.b16 %v1904, %v1903
        %v2038 = vpack.c.b16 %v1906, %v1905
        %v2039 = vpack.c.b16 %v1908, %v1907
        %v2040 = vpack.c.b16 %v1910, %v1909
        %v2041 = vpack.c.b16 %v1912, %v1911
        %v2042 = vpack.c.b16 %v1914, %v1913
        %v2043 = vpack.c.b16 %v1916, %v1915
        %v2044 = vpack.c.b16 %v1918, %v1917
        %v2045 = vpack.c.b16 %v1920, %v1919
        %v2046 = vpack.c.b16 %v1922, %v1921
        %v2047 = vpack.c.b16 %v1924, %v1923
        %v2048 = vpack.c.b16 %v1926, %v1925
        %v2049 = vpack.c.b16 %v1928, %v1927
        %v2050 = vpack.c.b16 %v1930, %v1929
        %v2051 = vpack.c.b16 %v1932, %v1931
        %v2052 = vpack.c.b16 %v1934, %v1933
        %v2053 = vpack.c.b16 %v1936, %v1935
        %v2054 = vpack.c.b16 %v1938, %v1937
        %v2055 = vpack.c.b16 %v1940, %v1939
        %v2056 = vpack.c.b16 %v1942, %v1941
        %v2057 = vpack.c.b16 %v1944, %v1943
        %v2058 = vpack.c.b16 %v1946, %v1945
        %v2059 = vpack.c.b16 %v1948, %v1947
        %v2060 = vpack.c.b16 %v1950, %v1949
        %v2061 = vpack.c.b16 %v1952, %v1951
        %v2062 = vpack.c.b16 %v1954, %v1953
        %v2063 = vpack.c.b16 %v1956, %v1955
        %v2064 = vpack.c.b16 %v1958, %v1957
        %v2065 = vpack.c.b16 %v1960, %v1959
        %v2066 = vpack.c.b16 %v1962, %v1961
        %v2067 = vpack.c.b16 %v1964, %v1963
        %v2068 = vpack.c.b16 %v1966, %v1965
        %v2069 = vpack.c.b16 %v1968, %v1967
        %v2070 = vpack.c.b16 %v1970, %v1969
        %v2071 = vpack.c.b16 %v1972, %v1971
        %v2072 = vpack.c.b16 %v1974, %v1973
        %v2073 = vpack.c.b16 %v1976, %v1975
        %v2074 = vpack.c.b16 %v1978, %v1977
        %v2075 = vpack.c.b16 %v1980, %v1979
        %v2076 = vpack.c.b16 %v1982, %v1981
        %v2077 = vpack.c.b16 %v1984, %v1983
        %v2078 = vpack.c.b16 %v1986, %v1985
        %v2079 = vpack.c.b16 %v1988, %v1987
        %v2080 = vpack.c.b16 %v1990, %v1989
        %v2081 = vpack.c.b16 %v1992, %v1991
        %v2082 = vpack.c.b16 %v1994, %v1993
        %v2083 = vpack.c.b16 %v1996, %v1995
        %v2084 = vpack.c.b16 %v1998, %v1997
        %v2085 = vpack.c.b16 %v2000, %v1999
        %v2086 = vpack.c.b16 %v2002, %v2001
        %v2087 = vpack.c.b16 %v2004, %v2003
        %v2088 = vpack.c.b16 %v2006, %v2005
        %v2089 = vpack.c.b16 %v2008, %v2007
        %v2090 = vpack.c.b16 %v2010, %v2009
        %v2091 = vpack.c.b16 %v2012, %v2011
        %v2092 = vpack.c.b16 %v2014, %v2013
        %v2093 = vpack.c.b16 %v2016, %v2015
        %v2094 = vpack.c.b16 %v2018, %v2017
        %v2095 = vpack.c.b16 %v2020, %v2019
        %v2096 = vpack.c.b16 %v2022, %v2021
        %v2097 = vpack.c.b16 %v2024, %v2023
        %v2098 = vpack.c.b16 %v2026, %v2025
        %2171 = vmatprep.subr.bf16.mxu0 0
        %2172 = vmatpush1.bf16.msra.mxu0 %v2027
        %2173 = vmatprep.subr.bf16.mxu0 0
        %2174 = vmatpush1.bf16.msra.mxu0 %v2028
        %2175 = vmatprep.subr.bf16.mxu0 0
        %2176 = vmatpush1.bf16.msra.mxu0 %v2029
        %2177 = vmatprep.subr.bf16.mxu0 0
        %2178 = vmatpush1.bf16.msra.mxu0 %v2030
        %2179 = vmatprep.subr.bf16.mxu0 0
        %2180 = vmatpush1.bf16.msra.mxu0 %v2031
        %2181 = vmatprep.subr.bf16.mxu0 0
        %2182 = vmatpush1.bf16.msra.mxu0 %v2032
        %2183 = vmatprep.subr.bf16.mxu0 0
        %2184 = vmatpush1.bf16.msra.mxu0 %v2033
        %2185 = vmatprep.subr.bf16.mxu0 0
        %2186 = vmatpush1.bf16.msra.mxu0 %v2034
        %2187 = vmatprep.subr.bf16.mxu0 0
        %2188 = vmatpush1.bf16.msra.mxu0 %v2035
        %2189 = vmatprep.subr.bf16.mxu0 0
        %2190 = vmatpush1.bf16.msra.mxu0 %v2036
        %2191 = vmatprep.subr.bf16.mxu0 0
        %2192 = vmatpush1.bf16.msra.mxu0 %v2037
        %2193 = vmatprep.subr.bf16.mxu0 0
        %2194 = vmatpush1.bf16.msra.mxu0 %v2038
        %2195 = vmatprep.subr.bf16.mxu0 0
        %2196 = vmatpush1.bf16.msra.mxu0 %v2039
        %2197 = vmatprep.subr.bf16.mxu0 0
        %2198 = vmatpush1.bf16.msra.mxu0 %v2040
        %2199 = vmatprep.subr.bf16.mxu0 0
        %2200 = vmatpush1.bf16.msra.mxu0 %v2041
        %2201 = vmatprep.subr.bf16.mxu0 0
        %2202 = vmatpush1.bf16.msra.mxu0 %v2042
        %2203 = vmatprep.mubr.bf16.mxu0 %v1370
        %2204 = vmatmul.mubr.bf16.gmra.mrb[0].mxu0 %v1334
        %v2205 = vpop.f32.mrb[0].mxu0
        %v2206 = vadd.f32 %v1737, %v2205
        %v2207 = vpop.f32.mrb[0].mxu0
        %v2208 = vpop.f32.mrb[0].mxu0
        %v2209 = vadd.f32 %v1737, %v2208
        %v2210 = vpop.f32.mrb[0].mxu0
        %2211 = vmatprep.mubr.bf16.mxu0 %v1382
        %2212 = vmatmul.mubr.bf16.gmra.mrb[0].mxu0 %v1335
        %v2213 = vpop.f32.mrb[0].mxu0
        %v2214 = vadd.f32 %v1737, %v2213
        %v2215 = vpop.f32.mrb[0].mxu0
        %v2216 = vpop.f32.mrb[0].mxu0
        %v2217 = vadd.f32 %v1737, %v2216
        %v2218 = vpop.f32.mrb[0].mxu0
        %2219 = vmatprep.mubr.bf16.mxu0 %v1394
        %2220 = vmatmul.mubr.bf16.gmra.mrb[0].mxu0 %v1336
        %v2221 = vpop.f32.mrb[0].mxu0
        %v2222 = vadd.f32 %v1737, %v2221
        %v2223 = vpop.f32.mrb[0].mxu0
        %v2224 = vpop.f32.mrb[0].mxu0
        %v2225 = vadd.f32 %v1737, %v2224
        %v2226 = vpop.f32.mrb[0].mxu0
        %2227 = vmatprep.mubr.bf16.mxu0 %v1406
        %2228 = vmatmul.mubr.bf16.gmra.mrb[0].mxu0 %v1337
        %v2229 = vpop.f32.mrb[0].mxu0
        %v2230 = vadd.f32 %v1737, %v2229
        %v2231 = vpop.f32.mrb[0].mxu0
        %v2232 = vpop.f32.mrb[0].mxu0
        %v2233 = vadd.f32 %v1737, %v2232
        %v2234 = vpop.f32.mrb[0].mxu0
        %2235 = vmatprep.mubr.bf16.mxu0 %v1418
        %2236 = vmatmul.mubr.bf16.gmra.mrb[0].mxu0 %v1338
        %v2237 = vpop.f32.mrb[0].mxu0
        %v2238 = vadd.f32 %v1737, %v2237
        %v2239 = vpop.f32.mrb[0].mxu0
        %v2240 = vpop.f32.mrb[0].mxu0
        %v2241 = vadd.f32 %v1737, %v2240
        %v2242 = vpop.f32.mrb[0].mxu0
        %2243 = vmatprep.mubr.bf16.mxu0 %v1430
        %2244 = vmatmul.mubr.bf16.gmra.mrb[0].mxu0 %v1339
        %v2245 = vpop.f32.mrb[0].mxu0
        %v2246 = vadd.f32 %v1737, %v2245
        %v2247 = vpop.f32.mrb[0].mxu0
        %v2248 = vpop.f32.mrb[0].mxu0
        %v2249 = vadd.f32 %v1737, %v2248
        %v2250 = vpop.f32.mrb[0].mxu0
        %2251 = vmatprep.mubr.bf16.mxu0 %v1442
        %2252 = vmatmul.mubr.bf16.gmra.mrb[0].mxu0 %v1340
        %v2253 = vpop.f32.mrb[0].mxu0
        %v2254 = vadd.f32 %v1737, %v2253
        %v2255 = vpop.f32.mrb[0].mxu0
        %v2256 = vpop.f32.mrb[0].mxu0
        %v2257 = vadd.f32 %v1737, %v2256
        %v2258 = vpop.f32.mrb[0].mxu0
        %2259 = vmatprep.mubr.bf16.mxu0 %v1454
        %2260 = vmatmul.mubr.bf16.gmra.mrb[0].mxu0 %v1341
        %v2261 = vpop.f32.mrb[0].mxu0
        %v2262 = vadd.f32 %v1737, %v2261
        %v2263 = vpop.f32.mrb[0].mxu0
        %v2264 = vpop.f32.mrb[0].mxu0
        %v2265 = vadd.f32 %v1737, %v2264
        %v2266 = vpop.f32.mrb[0].mxu0
        %2267 = vmatprep.mubr.bf16.mxu0 %v1466
        %2268 = vmatmul.mubr.bf16.gmra.mrb[0].mxu0 %v1342
        %v2269 = vpop.f32.mrb[0].mxu0
        %v2270 = vadd.f32 %v1737, %v2269
        %v2271 = vpop.f32.mrb[0].mxu0
        %v2272 = vpop.f32.mrb[0].mxu0
        %v2273 = vadd.f32 %v1737, %v2272
        %v2274 = vpop.f32.mrb[0].mxu0
        %2275 = vmatprep.mubr.bf16.mxu0 %v1478
        %2276 = vmatmul.mubr.bf16.gmra.mrb[0].mxu0 %v1343
        %v2277 = vpop.f32.mrb[0].mxu0
        %v2278 = vadd.f32 %v1737, %v2277
        %v2279 = vpop.f32.mrb[0].mxu0
        %v2280 = vpop.f32.mrb[0].mxu0
        %v2281 = vadd.f32 %v1737, %v2280
        %v2282 = vpop.f32.mrb[0].mxu0
        %2283 = vdwg.mxu0
        %2284 = vmatprep.subr.bf16.mxu0 0
        %2285 = vmatpush1.bf16.msra.mxu0 %v2043
        %2286 = vmatprep.subr.bf16.mxu0 0
        %2287 = vmatpush1.bf16.msra.mxu0 %v2044
        %2288 = vmatprep.subr.bf16.mxu0 0
        %2289 = vmatpush1.bf16.msra.mxu0 %v2045
        %2290 = vmatprep.subr.bf16.mxu0 0
        %2291 = vmatpush1.bf16.msra.mxu0 %v2046
        %2292 = vmatprep.subr.bf16.mxu0 0
        %2293 = vmatpush1.bf16.msra.mxu0 %v2047
        %2294 = vmatprep.subr.bf16.mxu0 0
        %2295 = vmatpush1.bf16.msra.mxu0 %v2048
        %2296 = vmatprep.subr.bf16.mxu0 0
        %2297 = vmatpush1.bf16.msra.mxu0 %v2049
        %2298 = vmatprep.subr.bf16.mxu0 0
        %2299 = vmatpush1.bf16.msra.mxu0 %v2050
        %2300 = vmatprep.subr.bf16.mxu0 0
        %2301 = vmatpush1.bf16.msra.mxu0 %v2051
        %2302 = vmatprep.subr.bf16.mxu0 0
        %2303 = vmatpush1.bf16.msra.mxu0 %v2052
        %2304 = vmatprep.subr.bf16.mxu0 0
        %2305 = vmatpush1.bf16.msra.mxu0 %v2053
        %2306 = vmatprep.subr.bf16.mxu0 0
        %2307 = vmatpush1.bf16.msra.mxu0 %v2054
        %2308 = vmatprep.subr.bf16.mxu0 0
        %2309 = vmatpush1.bf16.msra.mxu0 %v2055
        %2310 = vmatprep.subr.bf16.mxu0 0
        %2311 = vmatpush1.bf16.msra.mxu0 %v2056
        %2312 = vmatprep.subr.bf16.mxu0 0
        %2313 = vmatpush1.bf16.msra.mxu0 %v2057
        %2314 = vmatprep.subr.bf16.mxu0 0
        %2315 = vmatpush1.bf16.msra.mxu0 %v2058
        %2316 = vmatprep.mubr.bf16.mxu0 %v1335
        %2317 = vmatmul.mubr.bf16.gmra.mrb[0].mxu0 %v1512
        %v2318 = vpop.f32.mrb[0].mxu0
        %v2319 = vadd.f32 %v2206, %v2318
        %v2320 = vpop.f32.mrb[0].mxu0
        %v2321 = vpop.f32.mrb[0].mxu0
        %v2322 = vadd.f32 %v2209, %v2321
        %v2323 = vpop.f32.mrb[0].mxu0
        %2324 = vmatprep.mubr.bf16.mxu0 %v1336
        %2325 = vmatmul.mubr.bf16.gmra.mrb[0].mxu0 %v1515
        %v2326 = vpop.f32.mrb[0].mxu0
        %v2327 = vadd.f32 %v2214, %v2326
        %v2328 = vpop.f32.mrb[0].mxu0
        %v2329 = vpop.f32.mrb[0].mxu0
        %v2330 = vadd.f32 %v2217, %v2329
        %v2331 = vpop.f32.mrb[0].mxu0
        %2332 = vmatprep.mubr.bf16.mxu0 %v1337
        %2333 = vmatmul.mubr.bf16.gmra.mrb[0].mxu0 %v1518
        %v2334 = vpop.f32.mrb[0].mxu0
        %v2335 = vadd.f32 %v2222, %v2334
        %v2336 = vpop.f32.mrb[0].mxu0
        %v2337 = vpop.f32.mrb[0].mxu0
        %v2338 = vadd.f32 %v2225, %v2337
        %v2339 = vpop.f32.mrb[0].mxu0
        %2340 = vmatprep.mubr.bf16.mxu0 %v1338
        %2341 = vmatmul.mubr.bf16.gmra.mrb[0].mxu0 %v1521
        %v2342 = vpop.f32.mrb[0].mxu0
        %v2343 = vadd.f32 %v2230, %v2342
        %v2344 = vpop.f32.mrb[0].mxu0
        %v2345 = vpop.f32.mrb[0].mxu0
        %v2346 = vadd.f32 %v2233, %v2345
        %v2347 = vpop.f32.mrb[0].mxu0
        %2348 = vmatprep.mubr.bf16.mxu0 %v1339
        %2349 = vmatmul.mubr.bf16.gmra.mrb[0].mxu0 %v1524
        %v2350 = vpop.f32.mrb[0].mxu0
        %v2351 = vadd.f32 %v2238, %v2350
        %v2352 = vpop.f32.mrb[0].mxu0
        %v2353 = vpop.f32.mrb[0].mxu0
        %v2354 = vadd.f32 %v2241, %v2353
        %v2355 = vpop.f32.mrb[0].mxu0
        %2356 = vmatprep.mubr.bf16.mxu0 %v1340
        %2357 = vmatmul.mubr.bf16.gmra.mrb[0].mxu0 %v1527
        %v2358 = vpop.f32.mrb[0].mxu0
        %v2359 = vadd.f32 %v2246, %v2358
        %v2360 = vpop.f32.mrb[0].mxu0
        %v2361 = vpop.f32.mrb[0].mxu0
        %v2362 = vadd.f32 %v2249, %v2361
        %v2363 = vpop.f32.mrb[0].mxu0
        %2364 = vmatprep.mubr.bf16.mxu0 %v1341
        %2365 = vmatmul.mubr.bf16.gmra.mrb[0].mxu0 %v1530
        %v2366 = vpop.f32.mrb[0].mxu0
        %v2367 = vadd.f32 %v2254, %v2366
        %v2368 = vpop.f32.mrb[0].mxu0
        %v2369 = vpop.f32.mrb[0].mxu0
        %v2370 = vadd.f32 %v2257, %v2369
        %v2371 = vpop.f32.mrb[0].mxu0
        %2372 = vmatprep.mubr.bf16.mxu0 %v1342
        %2373 = vmatmul.mubr.bf16.gmra.mrb[0].mxu0 %v1533
        %v2374 = vpop.f32.mrb[0].mxu0
        %v2375 = vadd.f32 %v2262, %v2374
        %v2376 = vpop.f32.mrb[0].mxu0
        %v2377 = vpop.f32.mrb[0].mxu0
        %v2378 = vadd.f32 %v2265, %v2377
        %v2379 = vpop.f32.mrb[0].mxu0
        %2380 = vmatprep.mubr.bf16.mxu0 %v1343
        %2381 = vmatmul.mubr.bf16.gmra.mrb[0].mxu0 %v1536
        %v2382 = vpop.f32.mrb[0].mxu0
        %v2383 = vadd.f32 %v2270, %v2382
        %v2384 = vpop.f32.mrb[0].mxu0
        %v2385 = vpop.f32.mrb[0].mxu0
        %v2386 = vadd.f32 %v2273, %v2385
        %v2387 = vpop.f32.mrb[0].mxu0
        %2388 = vmatprep.mubr.bf16.mxu0 %v1354
        %2389 = vmatmul.mubr.bf16.gmra.mrb[0].mxu0 %v1539
        %v2390 = vpop.f32.mrb[0].mxu0
        %v2391 = vadd.f32 %v2278, %v2390
        %v2392 = vpop.f32.mrb[0].mxu0
        %v2393 = vpop.f32.mrb[0].mxu0
        %v2394 = vadd.f32 %v2281, %v2393
        %v2395 = vpop.f32.mrb[0].mxu0
        %2396 = vdwg.mxu0
        %2397 = vmatprep.subr.bf16.mxu0 0
        %2398 = vmatpush1.bf16.msra.mxu0 %v2059
        %2399 = vmatprep.subr.bf16.mxu0 0
        %2400 = vmatpush1.bf16.msra.mxu0 %v2060
        %2401 = vmatprep.subr.bf16.mxu0 0
        %2402 = vmatpush1.bf16.msra.mxu0 %v2061
        %2403 = vmatprep.subr.bf16.mxu0 0
        %2404 = vmatpush1.bf16.msra.mxu0 %v2062
        %2405 = vmatprep.subr.bf16.mxu0 0
        %2406 = vmatpush1.bf16.msra.mxu0 %v2063
        %2407 = vmatprep.subr.bf16.mxu0 0
        %2408 = vmatpush1.bf16.msra.mxu0 %v2064
        %2409 = vmatprep.subr.bf16.mxu0 0
        %2410 = vmatpush1.bf16.msra.mxu0 %v2065
        %2411 = vmatprep.subr.bf16.mxu0 0
        %2412 = vmatpush1.bf16.msra.mxu0 %v2066
        %2413 = vmatprep.subr.bf16.mxu0 0
        %2414 = vmatpush1.bf16.msra.mxu0 %v2067
        %2415 = vmatprep.subr.bf16.mxu0 0
        %2416 = vmatpush1.bf16.msra.mxu0 %v2068
        %2417 = vmatprep.subr.bf16.mxu0 0
        %2418 = vmatpush1.bf16.msra.mxu0 %v2069
        %2419 = vmatprep.subr.bf16.mxu0 0
        %2420 = vmatpush1.bf16.msra.mxu0 %v2070
        %2421 = vmatprep.subr.bf16.mxu0 0
        %2422 = vmatpush1.bf16.msra.mxu0 %v2071
        %2423 = vmatprep.subr.bf16.mxu0 0
        %2424 = vmatpush1.bf16.msra.mxu0 %v2072
        %2425 = vmatprep.subr.bf16.mxu0 0
        %2426 = vmatpush1.bf16.msra.mxu0 %v2073
        %2427 = vmatprep.subr.bf16.mxu0 0
        %2428 = vmatpush1.bf16.msra.mxu0 %v2074
        %2429 = vmatprep.mubr.bf16.mxu0 %v1515
        %2430 = vmatmul.mubr.bf16.gmra.mrb[0].mxu0 %v1382
        %v2431 = vpop.f32.mrb[0].mxu0
        %v2432 = vadd.f32 %v2319, %v2431
        %v2433 = vpop.f32.mrb[0].mxu0
        %v2434 = vpop.f32.mrb[0].mxu0
        %v2435 = vadd.f32 %v2322, %v2434
        %v2436 = vpop.f32.mrb[0].mxu0
        %2437 = vmatprep.mubr.bf16.mxu0 %v1518
        %2438 = vmatmul.mubr.bf16.gmra.mrb[0].mxu0 %v1394
        %v2439 = vpop.f32.mrb[0].mxu0
        %v2440 = vadd.f32 %v2327, %v2439
        %v2441 = vpop.f32.mrb[0].mxu0
        %v2442 = vpop.f32.mrb[0].mxu0
        %v2443 = vadd.f32 %v2330, %v2442
        %v2444 = vpop.f32.mrb[0].mxu0
        %2445 = vmatprep.mubr.bf16.mxu0 %v1521
        %2446 = vmatmul.mubr.bf16.gmra.mrb[0].mxu0 %v1406
        %v2447 = vpop.f32.mrb[0].mxu0
        %v2448 = vadd.f32 %v2335, %v2447
        %v2449 = vpop.f32.mrb[0].mxu0
        %v2450 = vpop.f32.mrb[0].mxu0
        %v2451 = vadd.f32 %v2338, %v2450
        %v2452 = vpop.f32.mrb[0].mxu0
        %2453 = vmatprep.mubr.bf16.mxu0 %v1524
        %2454 = vmatmul.mubr.bf16.gmra.mrb[0].mxu0 %v1418
        %v2455 = vpop.f32.mrb[0].mxu0
        %v2456 = vadd.f32 %v2343, %v2455
        %v2457 = vpop.f32.mrb[0].mxu0
        %v2458 = vpop.f32.mrb[0].mxu0
        %v2459 = vadd.f32 %v2346, %v2458
        %v2460 = vpop.f32.mrb[0].mxu0
        %2461 = vmatprep.mubr.bf16.mxu0 %v1527
        %2462 = vmatmul.mubr.bf16.gmra.mrb[0].mxu0 %v1430
        %v2463 = vpop.f32.mrb[0].mxu0
        %v2464 = vadd.f32 %v2351, %v2463
        %v2465 = vpop.f32.mrb[0].mxu0
        %v2466 = vpop.f32.mrb[0].mxu0
        %v2467 = vadd.f32 %v2354, %v2466
        %v2468 = vpop.f32.mrb[0].mxu0
        %2469 = vmatprep.mubr.bf16.mxu0 %v1530
        %2470 = vmatmul.mubr.bf16.gmra.mrb[0].mxu0 %v1442
        %v2471 = vpop.f32.mrb[0].mxu0
        %v2472 = vadd.f32 %v2359, %v2471
        %v2473 = vpop.f32.mrb[0].mxu0
        %v2474 = vpop.f32.mrb[0].mxu0
        %v2475 = vadd.f32 %v2362, %v2474
        %v2476 = vpop.f32.mrb[0].mxu0
        %2477 = vmatprep.mubr.bf16.mxu0 %v1533
        %2478 = vmatmul.mubr.bf16.gmra.mrb[0].mxu0 %v1454
        %v2479 = vpop.f32.mrb[0].mxu0
        %v2480 = vadd.f32 %v2367, %v2479
        %v2481 = vpop.f32.mrb[0].mxu0
        %v2482 = vpop.f32.mrb[0].mxu0
        %v2483 = vadd.f32 %v2370, %v2482
        %v2484 = vpop.f32.mrb[0].mxu0
        %2485 = vmatprep.mubr.bf16.mxu0 %v1536
        %2486 = vmatmul.mubr.bf16.gmra.mrb[0].mxu0 %v1466
        %v2487 = vpop.f32.mrb[0].mxu0
        %v2488 = vadd.f32 %v2375, %v2487
        %v2489 = vpop.f32.mrb[0].mxu0
        %v2490 = vpop.f32.mrb[0].mxu0
        %v2491 = vadd.f32 %v2378, %v2490
        %v2492 = vpop.f32.mrb[0].mxu0
        %2493 = vmatprep.mubr.bf16.mxu0 %v1539
        %2494 = vmatmul.mubr.bf16.gmra.mrb[0].mxu0 %v1478
        %v2495 = vpop.f32.mrb[0].mxu0
        %v2496 = vadd.f32 %v2383, %v2495
        %v2497 = vpop.f32.mrb[0].mxu0
        %v2498 = vpop.f32.mrb[0].mxu0
        %v2499 = vadd.f32 %v2386, %v2498
        %v2500 = vpop.f32.mrb[0].mxu0
        %2501 = vmatprep.mubr.bf16.mxu0 %v1567
        %2502 = vmatmul.mubr.bf16.gmra.mrb[0].mxu0 %v1561
        %v2503 = vpop.f32.mrb[0].mxu0
        %v2504 = vadd.f32 %v2391, %v2503
        %v2505 = vpop.f32.mrb[0].mxu0
        %v2506 = vpop.f32.mrb[0].mxu0
        %v2507 = vadd.f32 %v2394, %v2506
        %v2508 = vpop.f32.mrb[0].mxu0
        %2509 = vdwg.mxu0
        %2510 = vmatprep.subr.bf16.mxu0 0
        %2511 = vmatpush1.bf16.msra.mxu0 %v2075
        %2512 = vmatprep.subr.bf16.mxu0 0
        %2513 = vmatpush1.bf16.msra.mxu0 %v2076
        %2514 = vmatprep.subr.bf16.mxu0 0
        %2515 = vmatpush1.bf16.msra.mxu0 %v2077
        %2516 = vmatprep.subr.bf16.mxu0 0
        %2517 = vmatpush1.bf16.msra.mxu0 %v2078
        %2518 = vmatprep.subr.bf16.mxu0 0
        %2519 = vmatpush1.bf16.msra.mxu0 %v2079
        %2520 = vmatprep.subr.bf16.mxu0 0
        %2521 = vmatpush1.bf16.msra.mxu0 %v2080
        %2522 = vmatprep.subr.bf16.mxu0 0
        %2523 = vmatpush1.bf16.msra.mxu0 %v2081
        %2524 = vmatprep.subr.bf16.mxu0 0
        %2525 = vmatpush1.bf16.msra.mxu0 %v2082
        %2526 = vmatprep.subr.bf16.mxu0 0
        %2527 = vmatpush1.bf16.msra.mxu0 %v2083
        %2528 = vmatprep.subr.bf16.mxu0 0
        %2529 = vmatpush1.bf16.msra.mxu0 %v2084
        %2530 = vmatprep.subr.bf16.mxu0 0
        %2531 = vmatpush1.bf16.msra.mxu0 %v2085
        %2532 = vmatprep.subr.bf16.mxu0 0
        %2533 = vmatpush1.bf16.msra.mxu0 %v2086
        %2534 = vmatprep.subr.bf16.mxu0 0
        %2535 = vmatpush1.bf16.msra.mxu0 %v2087
        %2536 = vmatprep.subr.bf16.mxu0 0
        %2537 = vmatpush1.bf16.msra.mxu0 %v2088
        %2538 = vmatprep.subr.bf16.mxu0 0
        %2539 = vmatpush1.bf16.msra.mxu0 %v2089
        %2540 = vmatprep.subr.bf16.mxu0 0
        %2541 = vmatpush1.bf16.msra.mxu0 %v2090
        %2542 = vmatprep.mubr.bf16.mxu0 %v1394
        %2543 = vmatmul.mubr.bf16.gmra.mrb[0].mxu0 %v1336
        %v2544 = vpop.f32.mrb[0].mxu0
        %v2545 = vadd.f32 %v2432, %v2544
        %v2546 = vpop.f32.mrb[0].mxu0
        %v2547 = vpop.f32.mrb[0].mxu0
        %v2548 = vadd.f32 %v2435, %v2547
        %v2549 = vpop.f32.mrb[0].mxu0
        %2550 = vmatprep.mubr.bf16.mxu0 %v1406
        %2551 = vmatmul.mubr.bf16.gmra.mrb[0].mxu0 %v1337
        %v2552 = vpop.f32.mrb[0].mxu0
        %v2553 = vadd.f32 %v2440, %v2552
        %v2554 = vpop.f32.mrb[0].mxu0
        %v2555 = vpop.f32.mrb[0].mxu0
        %v2556 = vadd.f32 %v2443, %v2555
        %v2557 = vpop.f32.mrb[0].mxu0
        %2558 = vmatprep.mubr.bf16.mxu0 %v1418
        %2559 = vmatmul.mubr.bf16.gmra.mrb[0].mxu0 %v1338
        %v2560 = vpop.f32.mrb[0].mxu0
        %v2561 = vadd.f32 %v2448, %v2560
        %v2562 = vpop.f32.mrb[0].mxu0
        %v2563 = vpop.f32.mrb[0].mxu0
        %v2564 = vadd.f32 %v2451, %v2563
        %v2565 = vpop.f32.mrb[0].mxu0
        %2566 = vmatprep.mubr.bf16.mxu0 %v1430
        %2567 = vmatmul.mubr.bf16.gmra.mrb[0].mxu0 %v1339
        %v2568 = vpop.f32.mrb[0].mxu0
        %v2569 = vadd.f32 %v2456, %v2568
        %v2570 = vpop.f32.mrb[0].mxu0
        %v2571 = vpop.f32.mrb[0].mxu0
        %v2572 = vadd.f32 %v2459, %v2571
        %v2573 = vpop.f32.mrb[0].mxu0
        %2574 = vmatprep.mubr.bf16.mxu0 %v1442
        %2575 = vmatmul.mubr.bf16.gmra.mrb[0].mxu0 %v1340
        %v2576 = vpop.f32.mrb[0].mxu0
        %v2577 = vadd.f32 %v2464, %v2576
        %v2578 = vpop.f32.mrb[0].mxu0
        %v2579 = vpop.f32.mrb[0].mxu0
        %v2580 = vadd.f32 %v2467, %v2579
        %v2581 = vpop.f32.mrb[0].mxu0
        %2582 = vmatprep.mubr.bf16.mxu0 %v1454
        %2583 = vmatmul.mubr.bf16.gmra.mrb[0].mxu0 %v1341
        %v2584 = vpop.f32.mrb[0].mxu0
        %v2585 = vadd.f32 %v2472, %v2584
        %v2586 = vpop.f32.mrb[0].mxu0
        %v2587 = vpop.f32.mrb[0].mxu0
        %v2588 = vadd.f32 %v2475, %v2587
        %v2589 = vpop.f32.mrb[0].mxu0
        %2590 = vmatprep.mubr.bf16.mxu0 %v1466
        %2591 = vmatmul.mubr.bf16.gmra.mrb[0].mxu0 %v1342
        %v2592 = vpop.f32.mrb[0].mxu0
        %v2593 = vadd.f32 %v2480, %v2592
        %v2594 = vpop.f32.mrb[0].mxu0
        %v2595 = vpop.f32.mrb[0].mxu0
        %v2596 = vadd.f32 %v2483, %v2595
        %v2597 = vpop.f32.mrb[0].mxu0
        %2598 = vmatprep.mubr.bf16.mxu0 %v1478
        %2599 = vmatmul.mubr.bf16.gmra.mrb[0].mxu0 %v1343
        %v2600 = vpop.f32.mrb[0].mxu0
        %v2601 = vadd.f32 %v2488, %v2600
        %v2602 = vpop.f32.mrb[0].mxu0
        %v2603 = vpop.f32.mrb[0].mxu0
        %v2604 = vadd.f32 %v2491, %v2603
        %v2605 = vpop.f32.mrb[0].mxu0
        %2606 = vmatprep.mubr.bf16.mxu0 %v1561
        %2607 = vmatmul.mubr.bf16.gmra.mrb[0].mxu0 %v1354
        %v2608 = vpop.f32.mrb[0].mxu0
        %v2609 = vadd.f32 %v2496, %v2608
        %v2610 = vpop.f32.mrb[0].mxu0
        %v2611 = vpop.f32.mrb[0].mxu0
        %v2612 = vadd.f32 %v2499, %v2611
        %v2613 = vpop.f32.mrb[0].mxu0
        %2614 = vmatprep.mubr.bf16.mxu0 %v1580
        %2615 = vmatmul.mubr.bf16.gmra.mrb[0].mxu0 %v1356
        %v2616 = vpop.f32.mrb[0].mxu0
        %v2617 = vadd.f32 %v2504, %v2616
        %v2618 = vpop.f32.mrb[0].mxu0
        %v2619 = vpop.f32.mrb[0].mxu0
        %v2620 = vadd.f32 %v2507, %v2619
        %v2621 = vpop.f32.mrb[0].mxu0
        %2622 = vdwg.mxu0
        %2623 = vmatprep.subr.bf16.mxu0 0
        %2624 = vmatpush1.bf16.msra.mxu0 %v2091
        %2625 = vmatprep.subr.bf16.mxu0 0
        %2626 = vmatpush1.bf16.msra.mxu0 %v2092
        %2627 = vmatprep.subr.bf16.mxu0 0
        %2628 = vmatpush1.bf16.msra.mxu0 %v2093
        %2629 = vmatprep.subr.bf16.mxu0 0
        %2630 = vmatpush1.bf16.msra.mxu0 %v2094
        %2631 = vmatprep.subr.bf16.mxu0 0
        %2632 = vmatpush1.bf16.msra.mxu0 %v2095
        %2633 = vmatprep.subr.bf16.mxu0 0
        %2634 = vmatpush1.bf16.msra.mxu0 %v2096
        %2635 = vmatprep.subr.bf16.mxu0 0
        %2636 = vmatpush1.bf16.msra.mxu0 %v2097
        %2637 = vmatprep.subr.bf16.mxu0 0
        %2638 = vmatpush1.bf16.msra.mxu0 %v2098
        %2639 = vmatprep.subr.bf16.mxu0 0
        %2640 = vmatpush1.bf16.msra.mxu0 0
        %2641 = vmatprep.subr.bf16.mxu0 0
        %2642 = vmatpush1.bf16.msra.mxu0 0
        %2643 = vmatprep.subr.bf16.mxu0 0
        %2644 = vmatpush1.bf16.msra.mxu0 0
        %2645 = vmatprep.subr.bf16.mxu0 0
        %2646 = vmatpush1.bf16.msra.mxu0 0
        %2647 = vmatprep.subr.bf16.mxu0 0
        %2648 = vmatpush1.bf16.msra.mxu0 0
        %2649 = vmatprep.subr.bf16.mxu0 0
        %2650 = vmatpush1.bf16.msra.mxu0 0
        %2651 = vmatprep.subr.bf16.mxu0 0
        %2652 = vmatpush1.bf16.msra.mxu0 0
        %2653 = vmatprep.subr.bf16.mxu0 0
        %2654 = vmatpush1.bf16.msra.mxu0 0
        %2655 = vmatprep.mubr.bf16.mxu0 0
        %2656 = vmatmul.mubr.bf16.gmra.mrb[0].mxu0 %v1518
        %v2657 = vpop.f32.mrb[0].mxu0
        %v2658 = vadd.f32 %v2545, %v2657
        %v2659 = vpop.f32.mrb[0].mxu0
        %v2660 = vpop.f32.mrb[0].mxu0
        %v2661 = vadd.f32 %v2548, %v2660
        %v2662 = vpop.f32.mrb[0].mxu0
        %2663 = vmatprep.mubr.bf16.mxu0 0
        %2664 = vmatmul.mubr.bf16.gmra.mrb[0].mxu0 %v1521
        %v2665 = vpop.f32.mrb[0].mxu0
        %v2666 = vadd.f32 %v2553, %v2665
        %v2667 = vpop.f32.mrb[0].mxu0
        %v2668 = vpop.f32.mrb[0].mxu0
        %v2669 = vadd.f32 %v2556, %v2668
        %v2670 = vpop.f32.mrb[0].mxu0
        %2671 = vmatprep.mubr.bf16.mxu0 0
        %2672 = vmatmul.mubr.bf16.gmra.mrb[0].mxu0 %v1524
        %v2673 = vpop.f32.mrb[0].mxu0
        %v2674 = vadd.f32 %v2561, %v2673
        %v2675 = vpop.f32.mrb[0].mxu0
        %v2676 = vpop.f32.mrb[0].mxu0
        %v2677 = vadd.f32 %v2564, %v2676
        %v2678 = vpop.f32.mrb[0].mxu0
        %2679 = vmatprep.mubr.bf16.mxu0 0
        %2680 = vmatmul.mubr.bf16.gmra.mrb[0].mxu0 %v1527
        %v2681 = vpop.f32.mrb[0].mxu0
        %v2682 = vadd.f32 %v2569, %v2681
        %v2683 = vpop.f32.mrb[0].mxu0
        %v2684 = vpop.f32.mrb[0].mxu0
        %v2685 = vadd.f32 %v2572, %v2684
        %v2686 = vpop.f32.mrb[0].mxu0
        %2687 = vmatprep.mubr.bf16.mxu0 0
        %2688 = vmatmul.mubr.bf16.gmra.mrb[0].mxu0 %v1530
        %v2689 = vpop.f32.mrb[0].mxu0
        %v2690 = vadd.f32 %v2577, %v2689
        %v2691 = vpop.f32.mrb[0].mxu0
        %v2692 = vpop.f32.mrb[0].mxu0
        %v2693 = vadd.f32 %v2580, %v2692
        %v2694 = vpop.f32.mrb[0].mxu0
        %2695 = vmatprep.mubr.bf16.mxu0 0
        %2696 = vmatmul.mubr.bf16.gmra.mrb[0].mxu0 %v1533
        %v2697 = vpop.f32.mrb[0].mxu0
        %v2698 = vadd.f32 %v2585, %v2697
        %v2699 = vpop.f32.mrb[0].mxu0
        %v2700 = vpop.f32.mrb[0].mxu0
        %v2701 = vadd.f32 %v2588, %v2700
        %v2702 = vpop.f32.mrb[0].mxu0
        %2703 = vmatprep.mubr.bf16.mxu0 0
        %2704 = vmatmul.mubr.bf16.gmra.mrb[0].mxu0 %v1536
        %v2705 = vpop.f32.mrb[0].mxu0
        %v2706 = vadd.f32 %v2593, %v2705
        %v2707 = vpop.f32.mrb[0].mxu0
        %v2708 = vpop.f32.mrb[0].mxu0
        %v2709 = vadd.f32 %v2596, %v2708
        %v2710 = vpop.f32.mrb[0].mxu0
        %2711 = vmatprep.mubr.bf16.mxu0 0
        %2712 = vmatmul.mubr.bf16.gmra.mrb[0].mxu0 %v1539
        %v2713 = vpop.f32.mrb[0].mxu0
        %v2714 = vadd.f32 %v2601, %v2713
        %v2715 = vpop.f32.mrb[0].mxu0
        %v2716 = vpop.f32.mrb[0].mxu0
        %v2717 = vadd.f32 %v2604, %v2716
        %v2718 = vpop.f32.mrb[0].mxu0
        %2719 = vmatprep.mubr.bf16.mxu0 0
        %2720 = vmatmul.mubr.bf16.gmra.mrb[0].mxu0 %v1567
        %v2721 = vpop.f32.mrb[0].mxu0
        %v2722 = vadd.f32 %v2609, %v2721
        %v2723 = vpop.f32.mrb[0].mxu0
        %v2724 = vpop.f32.mrb[0].mxu0
        %v2725 = vadd.f32 %v2612, %v2724
        %v2726 = vpop.f32.mrb[0].mxu0
        %2727 = vmatprep.mubr.bf16.mxu0 0
        %2728 = vmatmul.mubr.bf16.gmra.mrb[0].mxu0 %v1586
        %v2729 = vpop.f32.mrb[0].mxu0
        %v2730 = vadd.f32 %v2617, %v2729
        %v2731 = vpop.f32.mrb[0].mxu0
        %v2732 = vpop.f32.mrb[0].mxu0
        %v2733 = vadd.f32 %v2620, %v2732
        %v2734 = vpop.f32.mrb[0].mxu0
        %2735 = vdwg.mxu0
        %2736 = vst [vmem:[#allocation2] sm:$0xff] %v2658
        %2737 = vst [vmem:[#allocation2 + $0x8] sm:$0xff] %v2661
        %2738 = vst [vmem:[#allocation2 + $0x10] sm:$0xff] %v2666
        %2739 = vst [vmem:[#allocation2 + $0x18] sm:$0xff] %v2669
        %2740 = vst [vmem:[#allocation2 + $0x20] sm:$0xff] %v2674
        %2741 = vst [vmem:[#allocation2 + $0x28] sm:$0xff] %v2677
        %2742 = vst [vmem:[#allocation2 + $0x30] sm:$0xff] %v2682
        %2743 = vst [vmem:[#allocation2 + $0x38] sm:$0xff] %v2685
        %2744 = vst [vmem:[#allocation2 + $0x40] sm:$0xff] %v2690
        %2745 = vst [vmem:[#allocation2 + $0x48] sm:$0xff] %v2693
        %2746 = vst [vmem:[#allocation2 + $0x50] sm:$0xff] %v2698
        %2747 = vst [vmem:[#allocation2 + $0x58] sm:$0xff] %v2701
        %2748 = vst [vmem:[#allocation2 + $0x60] sm:$0xff] %v2706
        %2749 = vst [vmem:[#allocation2 + $0x68] sm:$0xff] %v2709
        %2750 = vst [vmem:[#allocation2 + $0x70] sm:$0xff] %v2714
        %2751 = vst [vmem:[#allocation2 + $0x78] sm:$0xff] %v2717
        %2752 = vst [vmem:[#allocation2 + $0x80] sm:$0xff] %v2722
        %2753 = vst [vmem:[#allocation2 + $0x88] sm:$0xff] %v2725
        %2754 = vst [vmem:[#allocation2 + $0x90] sm:$0xff] %v2730
        %2755 = vst [vmem:[#allocation2 + $0x98] sm:$0xff] %v2733
        %v2756 = vld [vmem:[#allocation2] sm:$0x1]
        %v2757 = vld [vmem:[#allocation2 + $0x1] sm:$0x1]
        %v2758 = vld [vmem:[#allocation2 + $0x2] sm:$0x1]
        %v2759 = vld [vmem:[#allocation2 + $0x3] sm:$0x1]
        %2761 = vrot.lane.b32.xlu0 %v2757, 32
        %v2762 = vpop.permute.xlu0 %2761
        %2765 = vrot.lane.b32.xlu0 %v2758, 64
        %v2766 = vpop.permute.xlu0 %2765
        %2769 = vrot.lane.b32.xlu0 %v2759, 96
        %v2770 = vpop.permute.xlu0 %2769
        %vm2772 = vcmask 261120
        %v2773 = vsel %vm2772, %v2756, %v2762
        %vm2774 = vcmask 523264
        %v2775 = vsel %vm2774, %v2773, %v2766
        %vm2776 = vcmask 785408
        %v2777 = vsel %vm2776, %v2775, %v2770
        %v2778 = vlaneseq
        %vm2779 = vcmp.ge.s32.totalorder %v2778, 0
        %vm2780 = vcmp.lt.s32.totalorder %v2778, 128
        %vm2781 = vmand %vm2779, %vm2780
        %2782 = vst.msk [vmem:[#allocation3] sm:$0x1] %vm2781, %v2777
        %v2783 = vld [vmem:[#allocation2 + $0x4] sm:$0x1]
        %v2784 = vld [vmem:[#allocation2 + $0x5] sm:$0x1]
        %v2785 = vld [vmem:[#allocation2 + $0x6] sm:$0x1]
        %v2786 = vld [vmem:[#allocation2 + $0x7] sm:$0x1]
        %2788 = vrot.lane.b32.xlu0 %v2784, 32
        %v2789 = vpop.permute.xlu0 %2788
        %2792 = vrot.lane.b32.xlu0 %v2785, 64
        %v2793 = vpop.permute.xlu0 %2792
        %2796 = vrot.lane.b32.xlu0 %v2786, 96
        %v2797 = vpop.permute.xlu0 %2796
        %v2799 = vsel %vm2772, %v2783, %v2789
        %v2800 = vsel %vm2774, %v2799, %v2793
        %v2801 = vsel %vm2776, %v2800, %v2797
        %2802 = vst.msk [vmem:[#allocation3 + $0x1] sm:$0x1] %vm2781, %v2801
        %v2803 = vld [vmem:[#allocation2 + $0x8] sm:$0x1]
        %v2804 = vld [vmem:[#allocation2 + $0x9] sm:$0x1]
        %s2805 = scalar_lea.vmem [#allocation2], 16
        %v2806 = vld [vmem:[%s2805] sm:$0x1]
        %v2807 = vld [vmem:[%s2805 + $0x1] sm:$0x1]
        %2809 = vrot.lane.b32.xlu0 %v2804, 32
        %v2810 = vpop.permute.xlu0 %2809
        %2813 = vrot.lane.b32.xlu0 %v2806, 64
        %v2814 = vpop.permute.xlu0 %2813
        %2817 = vrot.lane.b32.xlu0 %v2807, 96
        %v2818 = vpop.permute.xlu0 %2817
        %v2820 = vsel %vm2772, %v2803, %v2810
        %v2821 = vsel %vm2774, %v2820, %v2814
        %v2822 = vsel %vm2776, %v2821, %v2818
        %2823 = vst.msk [vmem:[#allocation3 + $0x2] sm:$0x1] %vm2781, %v2822
        %v2824 = vld [vmem:[%s2805 + $0x2] sm:$0x1]
        %v2825 = vld [vmem:[%s2805 + $0x3] sm:$0x1]
        %v2826 = vld [vmem:[%s2805 + $0x4] sm:$0x1]
        %v2827 = vld [vmem:[%s2805 + $0x5] sm:$0x1]
        %2829 = vrot.lane.b32.xlu0 %v2825, 32
        %v2830 = vpop.permute.xlu0 %2829
        %2833 = vrot.lane.b32.xlu0 %v2826, 64
        %v2834 = vpop.permute.xlu0 %2833
        %2837 = vrot.lane.b32.xlu0 %v2827, 96
        %v2838 = vpop.permute.xlu0 %2837
        %v2840 = vsel %vm2772, %v2824, %v2830
        %v2841 = vsel %vm2774, %v2840, %v2834
        %v2842 = vsel %vm2776, %v2841, %v2838
        %2843 = vst.msk [vmem:[#allocation3 + $0x3] sm:$0x1] %vm2781, %v2842
        %v2844 = vld [vmem:[%s2805 + $0x6] sm:$0x1]
        %v2845 = vld [vmem:[%s2805 + $0x7] sm:$0x1]
        %v2846 = vld [vmem:[%s2805 + $0x8] sm:$0x1]
        %v2847 = vld [vmem:[%s2805 + $0x9] sm:$0x1]
        %2849 = vrot.lane.b32.xlu0 %v2845, 32
        %v2850 = vpop.permute.xlu0 %2849
        %2853 = vrot.lane.b32.xlu0 %v2846, 64
        %v2854 = vpop.permute.xlu0 %2853
        %2857 = vrot.lane.b32.xlu0 %v2847, 96
        %v2858 = vpop.permute.xlu0 %2857
        %v2860 = vsel %vm2772, %v2844, %v2850
        %v2861 = vsel %vm2774, %v2860, %v2854
        %v2862 = vsel %vm2776, %v2861, %v2858
        %2863 = vst.msk [vmem:[#allocation3 + $0x4] sm:$0x1] %vm2781, %v2862
        %s2864 = scalar_lea.vmem [#allocation2], 32
        %v2865 = vld [vmem:[%s2864] sm:$0x1]
        %v2866 = vld [vmem:[%s2864 + $0x1] sm:$0x1]
        %v2867 = vld [vmem:[%s2864 + $0x2] sm:$0x1]
        %v2868 = vld [vmem:[%s2864 + $0x3] sm:$0x1]
        %2870 = vrot.lane.b32.xlu0 %v2866, 32
        %v2871 = vpop.permute.xlu0 %2870
        %2874 = vrot.lane.b32.xlu0 %v2867, 64
        %v2875 = vpop.permute.xlu0 %2874
        %2878 = vrot.lane.b32.xlu0 %v2868, 96
        %v2879 = vpop.permute.xlu0 %2878
        %v2881 = vsel %vm2772, %v2865, %v2871
        %v2882 = vsel %vm2774, %v2881, %v2875
        %v2883 = vsel %vm2776, %v2882, %v2879
        %2884 = vst.msk [vmem:[#allocation3 + $0x5] sm:$0x1] %vm2781, %v2883
        %v2885 = vld [vmem:[%s2864 + $0x4] sm:$0x1]
        %v2886 = vld [vmem:[%s2864 + $0x5] sm:$0x1]
        %v2887 = vld [vmem:[%s2864 + $0x6] sm:$0x1]
        %v2888 = vld [vmem:[%s2864 + $0x7] sm:$0x1]
        %2890 = vrot.lane.b32.xlu0 %v2886, 32
        %v2891 = vpop.permute.xlu0 %2890
        %2894 = vrot.lane.b32.xlu0 %v2887, 64
        %v2895 = vpop.permute.xlu0 %2894
        %2898 = vrot.lane.b32.xlu0 %v2888, 96
        %v2899 = vpop.permute.xlu0 %2898
        %v2901 = vsel %vm2772, %v2885, %v2891
        %v2902 = vsel %vm2774, %v2901, %v2895
        %v2903 = vsel %vm2776, %v2902, %v2899
        %2904 = vst.msk [vmem:[#allocation3 + $0x6] sm:$0x1] %vm2781, %v2903
        %v2905 = vld [vmem:[%s2864 + $0x8] sm:$0x1]
        %v2906 = vld [vmem:[%s2864 + $0x9] sm:$0x1]
        %s2907 = scalar_lea.vmem [#allocation2], 48
        %v2908 = vld [vmem:[%s2907] sm:$0x1]
        %v2909 = vld [vmem:[%s2907 + $0x1] sm:$0x1]
        %2911 = vrot.lane.b32.xlu0 %v2906, 32
        %v2912 = vpop.permute.xlu0 %2911
        %2915 = vrot.lane.b32.xlu0 %v2908, 64
        %v2916 = vpop.permute.xlu0 %2915
        %2919 = vrot.lane.b32.xlu0 %v2909, 96
        %v2920 = vpop.permute.xlu0 %2919
        %v2922 = vsel %vm2772, %v2905, %v2912
        %v2923 = vsel %vm2774, %v2922, %v2916
        %v2924 = vsel %vm2776, %v2923, %v2920
        %2925 = vst.msk [vmem:[#allocation3 + $0x7] sm:$0x1] %vm2781, %v2924
        %v2926 = vld [vmem:[%s2907 + $0x2] sm:$0x1]
        %v2927 = vld [vmem:[%s2907 + $0x3] sm:$0x1]
        %v2928 = vld [vmem:[%s2907 + $0x4] sm:$0x1]
        %v2929 = vld [vmem:[%s2907 + $0x5] sm:$0x1]
        %2931 = vrot.lane.b32.xlu0 %v2927, 32
        %v2932 = vpop.permute.xlu0 %2931
        %2935 = vrot.lane.b32.xlu0 %v2928, 64
        %v2936 = vpop.permute.xlu0 %2935
        %2939 = vrot.lane.b32.xlu0 %v2929, 96
        %v2940 = vpop.permute.xlu0 %2939
        %v2942 = vsel %vm2772, %v2926, %v2932
        %v2943 = vsel %vm2774, %v2942, %v2936
        %v2944 = vsel %vm2776, %v2943, %v2940
        %2945 = vst.msk [vmem:[#allocation3 + $0x8] sm:$0x1] %vm2781, %v2944
        %v2946 = vld [vmem:[%s2907 + $0x6] sm:$0x1]
        %v2947 = vld [vmem:[%s2907 + $0x7] sm:$0x1]
        %v2948 = vld [vmem:[%s2907 + $0x8] sm:$0x1]
        %v2949 = vld [vmem:[%s2907 + $0x9] sm:$0x1]
        %2951 = vrot.lane.b32.xlu0 %v2947, 32
        %v2952 = vpop.permute.xlu0 %2951
        %2955 = vrot.lane.b32.xlu0 %v2948, 64
        %v2956 = vpop.permute.xlu0 %2955
        %2959 = vrot.lane.b32.xlu0 %v2949, 96
        %v2960 = vpop.permute.xlu0 %2959
        %v2962 = vsel %vm2772, %v2946, %v2952
        %v2963 = vsel %vm2774, %v2962, %v2956
        %v2964 = vsel %vm2776, %v2963, %v2960
        %2965 = vst.msk [vmem:[#allocation3 + $0x9] sm:$0x1] %vm2781, %v2964
        %s2966 = scalar_lea.vmem [#allocation2], 64
        %v2967 = vld [vmem:[%s2966] sm:$0x1]
        %v2968 = vld [vmem:[%s2966 + $0x1] sm:$0x1]
        %v2969 = vld [vmem:[%s2966 + $0x2] sm:$0x1]
        %v2970 = vld [vmem:[%s2966 + $0x3] sm:$0x1]
        %2972 = vrot.lane.b32.xlu0 %v2968, 32
        %v2973 = vpop.permute.xlu0 %2972
        %2976 = vrot.lane.b32.xlu0 %v2969, 64
        %v2977 = vpop.permute.xlu0 %2976
        %2980 = vrot.lane.b32.xlu0 %v2970, 96
        %v2981 = vpop.permute.xlu0 %2980
        %v2983 = vsel %vm2772, %v2967, %v2973
        %v2984 = vsel %vm2774, %v2983, %v2977
        %v2985 = vsel %vm2776, %v2984, %v2981
        %2986 = vst.msk [vmem:[#allocation3 + $0xa] sm:$0x1] %vm2781, %v2985
        %v2987 = vld [vmem:[%s2966 + $0x4] sm:$0x1]
        %v2988 = vld [vmem:[%s2966 + $0x5] sm:$0x1]
        %v2989 = vld [vmem:[%s2966 + $0x6] sm:$0x1]
        %v2990 = vld [vmem:[%s2966 + $0x7] sm:$0x1]
        %2992 = vrot.lane.b32.xlu0 %v2988, 32
        %v2993 = vpop.permute.xlu0 %2992
        %2996 = vrot.lane.b32.xlu0 %v2989, 64
        %v2997 = vpop.permute.xlu0 %2996
        %3000 = vrot.lane.b32.xlu0 %v2990, 96
        %v3001 = vpop.permute.xlu0 %3000
        %v3003 = vsel %vm2772, %v2987, %v2993
        %v3004 = vsel %vm2774, %v3003, %v2997
        %v3005 = vsel %vm2776, %v3004, %v3001
        %3006 = vst.msk [vmem:[#allocation3 + $0xb] sm:$0x1] %vm2781, %v3005
        %v3007 = vld [vmem:[%s2966 + $0x8] sm:$0x1]
        %v3008 = vld [vmem:[%s2966 + $0x9] sm:$0x1]
        %s3009 = scalar_lea.vmem [#allocation2], 80
        %v3010 = vld [vmem:[%s3009] sm:$0x1]
        %v3011 = vld [vmem:[%s3009 + $0x1] sm:$0x1]
        %3013 = vrot.lane.b32.xlu0 %v3008, 32
        %v3014 = vpop.permute.xlu0 %3013
        %3017 = vrot.lane.b32.xlu0 %v3010, 64
        %v3018 = vpop.permute.xlu0 %3017
        %3021 = vrot.lane.b32.xlu0 %v3011, 96
        %v3022 = vpop.permute.xlu0 %3021
        %v3024 = vsel %vm2772, %v3007, %v3014
        %v3025 = vsel %vm2774, %v3024, %v3018
        %v3026 = vsel %vm2776, %v3025, %v3022
        %3027 = vst.msk [vmem:[#allocation3 + $0xc] sm:$0x1] %vm2781, %v3026
        %v3028 = vld [vmem:[%s3009 + $0x2] sm:$0x1]
        %v3029 = vld [vmem:[%s3009 + $0x3] sm:$0x1]
        %v3030 = vld [vmem:[%s3009 + $0x4] sm:$0x1]
        %v3031 = vld [vmem:[%s3009 + $0x5] sm:$0x1]
        %3033 = vrot.lane.b32.xlu0 %v3029, 32
        %v3034 = vpop.permute.xlu0 %3033
        %3037 = vrot.lane.b32.xlu0 %v3030, 64
        %v3038 = vpop.permute.xlu0 %3037
        %3041 = vrot.lane.b32.xlu0 %v3031, 96
        %v3042 = vpop.permute.xlu0 %3041
        %v3044 = vsel %vm2772, %v3028, %v3034
        %v3045 = vsel %vm2774, %v3044, %v3038
        %v3046 = vsel %vm2776, %v3045, %v3042
        %3047 = vst.msk [vmem:[#allocation3 + $0xd] sm:$0x1] %vm2781, %v3046
        %v3048 = vld [vmem:[%s3009 + $0x6] sm:$0x1]
        %v3049 = vld [vmem:[%s3009 + $0x7] sm:$0x1]
        %v3050 = vld [vmem:[%s3009 + $0x8] sm:$0x1]
        %v3051 = vld [vmem:[%s3009 + $0x9] sm:$0x1]
        %3053 = vrot.lane.b32.xlu0 %v3049, 32
        %v3054 = vpop.permute.xlu0 %3053
        %3057 = vrot.lane.b32.xlu0 %v3050, 64
        %v3058 = vpop.permute.xlu0 %3057
        %3061 = vrot.lane.b32.xlu0 %v3051, 96
        %v3062 = vpop.permute.xlu0 %3061
        %v3064 = vsel %vm2772, %v3048, %v3054
        %v3065 = vsel %vm2774, %v3064, %v3058
        %v3066 = vsel %vm2776, %v3065, %v3062
        %3067 = vst.msk [vmem:[#allocation3 + $0xe] sm:$0x1] %vm2781, %v3066
        %s3068 = scalar_lea.vmem [#allocation2], 96
        %v3069 = vld [vmem:[%s3068] sm:$0x1]
        %v3070 = vld [vmem:[%s3068 + $0x1] sm:$0x1]
        %v3071 = vld [vmem:[%s3068 + $0x2] sm:$0x1]
        %v3072 = vld [vmem:[%s3068 + $0x3] sm:$0x1]
        %3074 = vrot.lane.b32.xlu0 %v3070, 32
        %v3075 = vpop.permute.xlu0 %3074
        %3078 = vrot.lane.b32.xlu0 %v3071, 64
        %v3079 = vpop.permute.xlu0 %3078
        %3082 = vrot.lane.b32.xlu0 %v3072, 96
        %v3083 = vpop.permute.xlu0 %3082
        %v3085 = vsel %vm2772, %v3069, %v3075
        %v3086 = vsel %vm2774, %v3085, %v3079
        %v3087 = vsel %vm2776, %v3086, %v3083
        %3088 = vst.msk [vmem:[#allocation3 + $0xf] sm:$0x1] %vm2781, %v3087
        %v3089 = vld [vmem:[%s3068 + $0x4] sm:$0x1]
        %v3090 = vld [vmem:[%s3068 + $0x5] sm:$0x1]
        %v3091 = vld [vmem:[%s3068 + $0x6] sm:$0x1]
        %v3092 = vld [vmem:[%s3068 + $0x7] sm:$0x1]
        %3094 = vrot.lane.b32.xlu0 %v3090, 32
        %v3095 = vpop.permute.xlu0 %3094
        %3098 = vrot.lane.b32.xlu0 %v3091, 64
        %v3099 = vpop.permute.xlu0 %3098
        %3102 = vrot.lane.b32.xlu0 %v3092, 96
        %v3103 = vpop.permute.xlu0 %3102
        %v3105 = vsel %vm2772, %v3089, %v3095
        %v3106 = vsel %vm2774, %v3105, %v3099
        %v3107 = vsel %vm2776, %v3106, %v3103
        %3108 = vst.msk [vmem:[#allocation3 + $0x10] sm:$0x1] %vm2781, %v3107
        %v3109 = vld [vmem:[%s3068 + $0x8] sm:$0x1]
        %v3110 = vld [vmem:[%s3068 + $0x9] sm:$0x1]
        %s3111 = scalar_lea.vmem [#allocation2], 112
        %v3112 = vld [vmem:[%s3111] sm:$0x1]
        %v3113 = vld [vmem:[%s3111 + $0x1] sm:$0x1]
        %3115 = vrot.lane.b32.xlu0 %v3110, 32
        %v3116 = vpop.permute.xlu0 %3115
        %3119 = vrot.lane.b32.xlu0 %v3112, 64
        %v3120 = vpop.permute.xlu0 %3119
        %3123 = vrot.lane.b32.xlu0 %v3113, 96
        %v3124 = vpop.permute.xlu0 %3123
        %v3126 = vsel %vm2772, %v3109, %v3116
        %v3127 = vsel %vm2774, %v3126, %v3120
        %v3128 = vsel %vm2776, %v3127, %v3124
        %3129 = vst.msk [vmem:[#allocation3 + $0x11] sm:$0x1] %vm2781, %v3128
        %v3130 = vld [vmem:[%s3111 + $0x2] sm:$0x1]
        %v3131 = vld [vmem:[%s3111 + $0x3] sm:$0x1]
        %v3132 = vld [vmem:[%s3111 + $0x4] sm:$0x1]
        %v3133 = vld [vmem:[%s3111 + $0x5] sm:$0x1]
        %3135 = vrot.lane.b32.xlu0 %v3131, 32
        %v3136 = vpop.permute.xlu0 %3135
        %3139 = vrot.lane.b32.xlu0 %v3132, 64
        %v3140 = vpop.permute.xlu0 %3139
        %3143 = vrot.lane.b32.xlu0 %v3133, 96
        %v3144 = vpop.permute.xlu0 %3143
        %v3146 = vsel %vm2772, %v3130, %v3136
        %v3147 = vsel %vm2774, %v3146, %v3140
        %v3148 = vsel %vm2776, %v3147, %v3144
        %3149 = vst.msk [vmem:[#allocation3 + $0x12] sm:$0x1] %vm2781, %v3148
        %v3150 = vld [vmem:[%s3111 + $0x6] sm:$0x1]
        %v3151 = vld [vmem:[%s3111 + $0x7] sm:$0x1]
        %v3152 = vld [vmem:[%s3111 + $0x8] sm:$0x1]
        %v3153 = vld [vmem:[%s3111 + $0x9] sm:$0x1]
        %3155 = vrot.lane.b32.xlu0 %v3151, 32
        %v3156 = vpop.permute.xlu0 %3155
        %3159 = vrot.lane.b32.xlu0 %v3152, 64
        %v3160 = vpop.permute.xlu0 %3159
        %3163 = vrot.lane.b32.xlu0 %v3153, 96
        %v3164 = vpop.permute.xlu0 %3163
        %v3166 = vsel %vm2772, %v3150, %v3156
        %v3167 = vsel %vm2774, %v3166, %v3160
        %v3168 = vsel %vm2776, %v3167, %v3164
        %3169 = vst.msk [vmem:[#allocation3 + $0x13] sm:$0x1] %vm2781, %v3168
        %s3170 = scalar_lea.vmem [#allocation2], 128
        %v3171 = vld [vmem:[%s3170] sm:$0x1]
        %v3172 = vld [vmem:[%s3170 + $0x1] sm:$0x1]
        %v3173 = vld [vmem:[%s3170 + $0x2] sm:$0x1]
        %v3174 = vld [vmem:[%s3170 + $0x3] sm:$0x1]
        %3176 = vrot.lane.b32.xlu0 %v3172, 32
        %v3177 = vpop.permute.xlu0 %3176
        %3180 = vrot.lane.b32.xlu0 %v3173, 64
        %v3181 = vpop.permute.xlu0 %3180
        %3184 = vrot.lane.b32.xlu0 %v3174, 96
        %v3185 = vpop.permute.xlu0 %3184
        %v3187 = vsel %vm2772, %v3171, %v3177
        %v3188 = vsel %vm2774, %v3187, %v3181
        %v3189 = vsel %vm2776, %v3188, %v3185
        %3190 = vst.msk [vmem:[#allocation3 + $0x14] sm:$0x1] %vm2781, %v3189
        %v3191 = vld [vmem:[%s3170 + $0x4] sm:$0x1]
        %v3192 = vld [vmem:[%s3170 + $0x5] sm:$0x1]
        %v3193 = vld [vmem:[%s3170 + $0x6] sm:$0x1]
        %v3194 = vld [vmem:[%s3170 + $0x7] sm:$0x1]
        %3196 = vrot.lane.b32.xlu0 %v3192, 32
        %v3197 = vpop.permute.xlu0 %3196
        %3200 = vrot.lane.b32.xlu0 %v3193, 64
        %v3201 = vpop.permute.xlu0 %3200
        %3204 = vrot.lane.b32.xlu0 %v3194, 96
        %v3205 = vpop.permute.xlu0 %3204
        %v3207 = vsel %vm2772, %v3191, %v3197
        %v3208 = vsel %vm2774, %v3207, %v3201
        %v3209 = vsel %vm2776, %v3208, %v3205
        %3210 = vst.msk [vmem:[#allocation3 + $0x15] sm:$0x1] %vm2781, %v3209
        %v3211 = vld [vmem:[%s3170 + $0x8] sm:$0x1]
        %v3212 = vld [vmem:[%s3170 + $0x9] sm:$0x1]
        %s3213 = scalar_lea.vmem [#allocation2], 144
        %v3214 = vld [vmem:[%s3213] sm:$0x1]
        %v3215 = vld [vmem:[%s3213 + $0x1] sm:$0x1]
        %3217 = vrot.lane.b32.xlu0 %v3212, 32
        %v3218 = vpop.permute.xlu0 %3217
        %3221 = vrot.lane.b32.xlu0 %v3214, 64
        %v3222 = vpop.permute.xlu0 %3221
        %3225 = vrot.lane.b32.xlu0 %v3215, 96
        %v3226 = vpop.permute.xlu0 %3225
        %v3228 = vsel %vm2772, %v3211, %v3218
        %v3229 = vsel %vm2774, %v3228, %v3222
        %v3230 = vsel %vm2776, %v3229, %v3226
        %3231 = vst.msk [vmem:[#allocation3 + $0x16] sm:$0x1] %vm2781, %v3230
        %v3232 = vld [vmem:[%s3213 + $0x2] sm:$0x1]
        %v3233 = vld [vmem:[%s3213 + $0x3] sm:$0x1]
        %v3234 = vld [vmem:[%s3213 + $0x4] sm:$0x1]
        %v3235 = vld [vmem:[%s3213 + $0x5] sm:$0x1]
        %3237 = vrot.lane.b32.xlu0 %v3233, 32
        %v3238 = vpop.permute.xlu0 %3237
        %3241 = vrot.lane.b32.xlu0 %v3234, 64
        %v3242 = vpop.permute.xlu0 %3241
        %3245 = vrot.lane.b32.xlu0 %v3235, 96
        %v3246 = vpop.permute.xlu0 %3245
        %v3248 = vsel %vm2772, %v3232, %v3238
        %v3249 = vsel %vm2774, %v3248, %v3242
        %v3250 = vsel %vm2776, %v3249, %v3246
        %3251 = vst.msk [vmem:[#allocation3 + $0x17] sm:$0x1] %vm2781, %v3250
        %v3252 = vld [vmem:[%s3213 + $0x6] sm:$0x1]
        %v3253 = vld [vmem:[%s3213 + $0x7] sm:$0x1]
        %v3254 = vld [vmem:[%s3213 + $0x8] sm:$0x1]
        %v3255 = vld [vmem:[%s3213 + $0x9] sm:$0x1]
        %3257 = vrot.lane.b32.xlu0 %v3253, 32
        %v3258 = vpop.permute.xlu0 %3257
        %3261 = vrot.lane.b32.xlu0 %v3254, 64
        %v3262 = vpop.permute.xlu0 %3261
        %3265 = vrot.lane.b32.xlu0 %v3255, 96
        %v3266 = vpop.permute.xlu0 %3265
        %v3268 = vsel %vm2772, %v3252, %v3258
        %v3269 = vsel %vm2774, %v3268, %v3262
        %v3270 = vsel %vm2776, %v3269, %v3266
        %3271 = vst.msk [vmem:[#allocation3 + $0x18] sm:$0x1] %vm2781, %v3270
        %v3272 = vld [vmem:[#allocation3] sm:$0xff]
        %v3273 = vld [vmem:[#allocation3 + $0x8] sm:$0xff]
        %v3274 = vld [vmem:[#allocation3 + $0x10] sm:$0xff]
        %v3275 = vld [vmem:[#allocation3 + $0x18] sm:$0x1]
        %v3280 = vlaneseq
        %v3281 = vshrl.u32 %v3280, 7
        %v3282 = vsub.s32 0, %v3281
        %v3283 = vrot.slane %v3272, %v3282
        %v3284 = vlaneseq
        %v3285 = vshrl.u32 %v3284, 7
        %v3286 = vsub.s32 1, %v3285
        %v3287 = vrot.slane %v3272, %v3286
        %v3288 = vlaneseq
        %v3289 = vshrl.u32 %v3288, 7
        %v3290 = vsub.s32 2, %v3289
        %v3291 = vrot.slane %v3272, %v3290
        %v3292 = vlaneseq
        %v3293 = vshrl.u32 %v3292, 7
        %v3294 = vsub.s32 3, %v3293
        %v3295 = vrot.slane %v3272, %v3294
        %v3296 = vlaneseq
        %v3297 = vshrl.u32 %v3296, 7
        %v3298 = vsub.s32 4, %v3297
        %v3299 = vrot.slane %v3272, %v3298
        %v3300 = vlaneseq
        %v3301 = vshrl.u32 %v3300, 7
        %v3302 = vsub.s32 5, %v3301
        %v3303 = vrot.slane %v3272, %v3302
        %v3304 = vlaneseq
        %v3305 = vshrl.u32 %v3304, 7
        %v3306 = vsub.s32 6, %v3305
        %v3307 = vrot.slane %v3272, %v3306
        %v3308 = vlaneseq
        %v3309 = vshrl.u32 %v3308, 7
        %v3310 = vsub.s32 7, %v3309
        %v3311 = vrot.slane %v3272, %v3310
        %v3312 = vlaneseq
        %v3313 = vshrl.u32 %v3312, 7
        %v3314 = vsub.s32 0, %v3313
        %v3315 = vrot.slane %v3273, %v3314
        %v3316 = vlaneseq
        %v3317 = vshrl.u32 %v3316, 7
        %v3318 = vsub.s32 1, %v3317
        %v3319 = vrot.slane %v3273, %v3318
        %v3320 = vlaneseq
        %v3321 = vshrl.u32 %v3320, 7
        %v3322 = vsub.s32 2, %v3321
        %v3323 = vrot.slane %v3273, %v3322
        %v3324 = vlaneseq
        %v3325 = vshrl.u32 %v3324, 7
        %v3326 = vsub.s32 3, %v3325
        %v3327 = vrot.slane %v3273, %v3326
        %v3328 = vlaneseq
        %v3329 = vshrl.u32 %v3328, 7
        %v3330 = vsub.s32 4, %v3329
        %v3331 = vrot.slane %v3273, %v3330
        %v3332 = vlaneseq
        %v3333 = vshrl.u32 %v3332, 7
        %v3334 = vsub.s32 5, %v3333
        %v3335 = vrot.slane %v3273, %v3334
        %v3336 = vlaneseq
        %v3337 = vshrl.u32 %v3336, 7
        %v3338 = vsub.s32 6, %v3337
        %v3339 = vrot.slane %v3273, %v3338
        %v3340 = vlaneseq
        %v3341 = vshrl.u32 %v3340, 7
        %v3342 = vsub.s32 7, %v3341
        %v3343 = vrot.slane %v3273, %v3342
        %v3344 = vlaneseq
        %v3345 = vshrl.u32 %v3344, 7
        %v3346 = vsub.s32 0, %v3345
        %v3347 = vrot.slane %v3274, %v3346
        %v3348 = vlaneseq
        %v3349 = vshrl.u32 %v3348, 7
        %v3350 = vsub.s32 1, %v3349
        %v3351 = vrot.slane %v3274, %v3350
        %v3352 = vlaneseq
        %v3353 = vshrl.u32 %v3352, 7
        %v3354 = vsub.s32 2, %v3353
        %v3355 = vrot.slane %v3274, %v3354
        %v3356 = vlaneseq
        %v3357 = vshrl.u32 %v3356, 7
        %v3358 = vsub.s32 3, %v3357
        %v3359 = vrot.slane %v3274, %v3358
        %v3360 = vlaneseq
        %v3361 = vshrl.u32 %v3360, 7
        %v3362 = vsub.s32 4, %v3361
        %v3363 = vrot.slane %v3274, %v3362
        %v3364 = vlaneseq
        %v3365 = vshrl.u32 %v3364, 7
        %v3366 = vsub.s32 5, %v3365
        %v3367 = vrot.slane %v3274, %v3366
        %v3368 = vlaneseq
        %v3369 = vshrl.u32 %v3368, 7
        %v3370 = vsub.s32 6, %v3369
        %v3371 = vrot.slane %v3274, %v3370
        %v3372 = vlaneseq
        %v3373 = vshrl.u32 %v3372, 7
        %v3374 = vsub.s32 7, %v3373
        %v3375 = vrot.slane %v3274, %v3374
        %v3376 = vlaneseq
        %v3377 = vshrl.u32 %v3376, 7
        %v3378 = vsub.s32 0, %v3377
        %v3379 = vrot.slane %v3275, %v3378
        %v3405 = vpack.c.bf16 %v3283, %v3283
        %v3406 = vpack.c.bf16 %v3287, %v3287
        %v3407 = vpack.c.bf16 %v3291, %v3291
        %v3408 = vpack.c.bf16 %v3295, %v3295
        %v3409 = vpack.c.bf16 %v3299, %v3299
        %v3410 = vpack.c.bf16 %v3303, %v3303
        %v3411 = vpack.c.bf16 %v3307, %v3307
        %v3412 = vpack.c.bf16 %v3311, %v3311
        %v3413 = vpack.c.bf16 %v3315, %v3315
        %v3414 = vpack.c.bf16 %v3319, %v3319
        %v3415 = vpack.c.bf16 %v3323, %v3323
        %v3416 = vpack.c.bf16 %v3327, %v3327
        %v3417 = vpack.c.bf16 %v3331, %v3331
        %v3418 = vpack.c.bf16 %v3335, %v3335
        %v3419 = vpack.c.bf16 %v3339, %v3339
        %v3420 = vpack.c.bf16 %v3343, %v3343
        %v3421 = vpack.c.bf16 %v3347, %v3347
        %v3422 = vpack.c.bf16 %v3351, %v3351
        %v3423 = vpack.c.bf16 %v3355, %v3355
        %v3424 = vpack.c.bf16 %v3359, %v3359
        %v3425 = vpack.c.bf16 %v3363, %v3363
        %v3426 = vpack.c.bf16 %v3367, %v3367
        %v3427 = vpack.c.bf16 %v3371, %v3371
        %v3428 = vpack.c.bf16 %v3375, %v3375
        %v3429 = vpack.c.bf16 %v3379, %v3379
        %v3430 = vld [vmem:[#allocation12] sm:$0xff]
        %v3431 = vld [vmem:[#allocation12 + $0x8] sm:$0xff]
        %v3432 = vld [vmem:[#allocation12 + $0x10] sm:$0xff]
        %v3433 = vld [vmem:[#allocation12 + $0x18] sm:$0xff]
        %v3434 = vld [vmem:[#allocation12 + $0x20] sm:$0xff]
        %v3435 = vld [vmem:[#allocation12 + $0x28] sm:$0xff]
        %v3436 = vld [vmem:[#allocation12 + $0x30] sm:$0xff]
        %v3437 = vld [vmem:[#allocation12 + $0x38] sm:$0xff]
        %v3438 = vld [vmem:[#allocation12 + $0x40] sm:$0xff]
        %v3439 = vld [vmem:[#allocation12 + $0x48] sm:$0xff]
        %v3440 = vld [vmem:[#allocation12 + $0x50] sm:$0xff]
        %v3441 = vld [vmem:[#allocation12 + $0x58] sm:$0xff]
        %v3442 = vld [vmem:[#allocation12 + $0x60] sm:$0xff]
        %v3443 = vld [vmem:[#allocation12 + $0x68] sm:$0xff]
        %v3444 = vld [vmem:[#allocation12 + $0x70] sm:$0xff]
        %v3445 = vld [vmem:[#allocation12 + $0x78] sm:$0xff]
        %v3446 = vld [vmem:[#allocation12 + $0x80] sm:$0xff]
        %v3447 = vld [vmem:[#allocation12 + $0x88] sm:$0xff]
        %v3448 = vld [vmem:[#allocation12 + $0x90] sm:$0xff]
        %v3449 = vld [vmem:[#allocation12 + $0x98] sm:$0xff]
        %v3450 = vld [vmem:[#allocation12 + $0xa0] sm:$0xff]
        %v3451 = vld [vmem:[#allocation12 + $0xa8] sm:$0xff]
        %v3452 = vld [vmem:[#allocation12 + $0xb0] sm:$0xff]
        %v3453 = vld [vmem:[#allocation12 + $0xb8] sm:$0xff]
        %v3454 = vld [vmem:[#allocation12 + $0xc0] sm:$0xff]
        %v3455 = vld [vmem:[#allocation12 + $0xc8] sm:$0xff]
        %v3456 = vld [vmem:[#allocation12 + $0xd0] sm:$0xff]
        %v3457 = vld [vmem:[#allocation12 + $0xd8] sm:$0xff]
        %v3458 = vld [vmem:[#allocation12 + $0xe0] sm:$0xff]
        %v3459 = vld [vmem:[#allocation12 + $0xe8] sm:$0xff]
        %v3460 = vld [vmem:[#allocation12 + $0xf0] sm:$0xff]
        %v3461 = vld [vmem:[#allocation12 + $0xf8] sm:$0xff]
        %v3462 = vld [vmem:[#allocation12 + $0x100] sm:$0xff]
        %v3463 = vld [vmem:[#allocation12 + $0x108] sm:$0xff]
        %v3464 = vld [vmem:[#allocation12 + $0x110] sm:$0xff]
        %v3465 = vld [vmem:[#allocation12 + $0x118] sm:$0xff]
        %v3466 = vld [vmem:[#allocation12 + $0x120] sm:$0xff]
        %v3467 = vld [vmem:[#allocation12 + $0x128] sm:$0xff]
        %v3468 = vld [vmem:[#allocation12 + $0x130] sm:$0xff]
        %v3469 = vld [vmem:[#allocation12 + $0x138] sm:$0xff]
        %v3470 = vld [vmem:[#allocation12 + $0x140] sm:$0xff]
        %v3471 = vld [vmem:[#allocation12 + $0x148] sm:$0xff]
        %v3472 = vld [vmem:[#allocation12 + $0x150] sm:$0xff]
        %v3473 = vld [vmem:[#allocation12 + $0x158] sm:$0xff]
        %v3474 = vld [vmem:[#allocation12 + $0x160] sm:$0xff]
        %v3475 = vld [vmem:[#allocation12 + $0x168] sm:$0xff]
        %v3476 = vld [vmem:[#allocation12 + $0x170] sm:$0xff]
        %v3477 = vld [vmem:[#allocation12 + $0x178] sm:$0xff]
        %v3478 = vld [vmem:[#allocation12 + $0x180] sm:$0xff]
        %v3479 = vld [vmem:[#allocation12 + $0x188] sm:$0xff]
        %v3480 = vld [vmem:[#allocation12 + $0x190] sm:$0xff]
        %v3481 = vld [vmem:[#allocation12 + $0x198] sm:$0xff]
        %v3482 = vld [vmem:[#allocation12 + $0x1a0] sm:$0xff]
        %v3483 = vld [vmem:[#allocation12 + $0x1a8] sm:$0xff]
        %v3484 = vld [vmem:[#allocation12 + $0x1b0] sm:$0xff]
        %v3485 = vld [vmem:[#allocation12 + $0x1b8] sm:$0xff]
        %v3486 = vld [vmem:[#allocation12 + $0x1c0] sm:$0xff]
        %v3487 = vld [vmem:[#allocation12 + $0x1c8] sm:$0xff]
        %v3488 = vld [vmem:[#allocation12 + $0x1d0] sm:$0xff]
        %v3489 = vld [vmem:[#allocation12 + $0x1d8] sm:$0xff]
        %v3490 = vld [vmem:[#allocation12 + $0x1e0] sm:$0xff]
        %v3491 = vld [vmem:[#allocation12 + $0x1e8] sm:$0xff]
        %v3492 = vld [vmem:[#allocation12 + $0x1f0] sm:$0xff]
        %v3493 = vld [vmem:[#allocation12 + $0x1f8] sm:$0xff]
        %v3494 = vld [vmem:[#allocation12 + $0x200] sm:$0xff]
        %v3495 = vld [vmem:[#allocation12 + $0x208] sm:$0xff]
        %v3496 = vld [vmem:[#allocation12 + $0x210] sm:$0xff]
        %v3497 = vld [vmem:[#allocation12 + $0x218] sm:$0xff]
        %v3498 = vld [vmem:[#allocation12 + $0x220] sm:$0xff]
        %v3499 = vld [vmem:[#allocation12 + $0x228] sm:$0xff]
        %v3500 = vld [vmem:[#allocation12 + $0x230] sm:$0xff]
        %v3501 = vld [vmem:[#allocation12 + $0x238] sm:$0xff]
        %v3502 = vld [vmem:[#allocation12 + $0x240] sm:$0xff]
        %v3503 = vld [vmem:[#allocation12 + $0x248] sm:$0xff]
        %v3504 = vld [vmem:[#allocation12 + $0x250] sm:$0xff]
        %v3505 = vld [vmem:[#allocation12 + $0x258] sm:$0xff]
        %v3506 = vld [vmem:[#allocation12 + $0x260] sm:$0xff]
        %v3507 = vld [vmem:[#allocation12 + $0x268] sm:$0xff]
        %v3508 = vld [vmem:[#allocation12 + $0x270] sm:$0xff]
        %v3509 = vld [vmem:[#allocation12 + $0x278] sm:$0xff]
        %v3510 = vld [vmem:[#allocation12 + $0x280] sm:$0xff]
        %v3511 = vld [vmem:[#allocation12 + $0x288] sm:$0xff]
        %v3512 = vld [vmem:[#allocation12 + $0x290] sm:$0xff]
        %v3513 = vld [vmem:[#allocation12 + $0x298] sm:$0xff]
        %v3514 = vld [vmem:[#allocation12 + $0x2a0] sm:$0xff]
        %v3515 = vld [vmem:[#allocation12 + $0x2a8] sm:$0xff]
        %v3516 = vld [vmem:[#allocation12 + $0x2b0] sm:$0xff]
        %v3517 = vld [vmem:[#allocation12 + $0x2b8] sm:$0xff]
        %v3518 = vld [vmem:[#allocation12 + $0x2c0] sm:$0xff]
        %v3519 = vld [vmem:[#allocation12 + $0x2c8] sm:$0xff]
        %v3520 = vld [vmem:[#allocation12 + $0x2d0] sm:$0xff]
        %v3521 = vld [vmem:[#allocation12 + $0x2d8] sm:$0xff]
        %v3522 = vld [vmem:[#allocation12 + $0x2e0] sm:$0xff]
        %v3523 = vld [vmem:[#allocation12 + $0x2e8] sm:$0xff]
        %v3524 = vld [vmem:[#allocation12 + $0x2f0] sm:$0xff]
        %v3525 = vld [vmem:[#allocation12 + $0x2f8] sm:$0xff]
        %v3526 = vld [vmem:[#allocation12 + $0x300] sm:$0xff]
        %v3527 = vld [vmem:[#allocation12 + $0x308] sm:$0xff]
        %v3528 = vld [vmem:[#allocation12 + $0x310] sm:$0xff]
        %v3529 = vld [vmem:[#allocation12 + $0x318] sm:$0xff]
        %v3530 = vld [vmem:[#allocation12 + $0x320] sm:$0xff]
        %v3531 = vld [vmem:[#allocation12 + $0x328] sm:$0xff]
        %v3532 = vld [vmem:[#allocation12 + $0x330] sm:$0xff]
        %v3533 = vld [vmem:[#allocation12 + $0x338] sm:$0xff]
        %v3534 = vld [vmem:[#allocation12 + $0x340] sm:$0xff]
        %v3535 = vld [vmem:[#allocation12 + $0x348] sm:$0xff]
        %v3536 = vld [vmem:[#allocation12 + $0x350] sm:$0xff]
        %v3537 = vld [vmem:[#allocation12 + $0x358] sm:$0xff]
        %v3538 = vld [vmem:[#allocation12 + $0x360] sm:$0xff]
        %v3539 = vld [vmem:[#allocation12 + $0x368] sm:$0xff]
        %v3540 = vld [vmem:[#allocation12 + $0x370] sm:$0xff]
        %v3541 = vld [vmem:[#allocation12 + $0x378] sm:$0xff]
        %v3542 = vld [vmem:[#allocation12 + $0x380] sm:$0xff]
        %v3543 = vld [vmem:[#allocation12 + $0x388] sm:$0xff]
        %v3544 = vld [vmem:[#allocation12 + $0x390] sm:$0xff]
        %v3545 = vld [vmem:[#allocation12 + $0x398] sm:$0xff]
        %v3546 = vld [vmem:[#allocation12 + $0x3a0] sm:$0xff]
        %v3547 = vld [vmem:[#allocation12 + $0x3a8] sm:$0xff]
        %v3548 = vld [vmem:[#allocation12 + $0x3b0] sm:$0xff]
        %v3549 = vld [vmem:[#allocation12 + $0x3b8] sm:$0xff]
        %v3550 = vld [vmem:[#allocation12 + $0x3c0] sm:$0xff]
        %v3551 = vld [vmem:[#allocation12 + $0x3c8] sm:$0xff]
        %v3552 = vld [vmem:[#allocation12 + $0x3d0] sm:$0xff]
        %v3553 = vld [vmem:[#allocation12 + $0x3d8] sm:$0xff]
        %v3554 = vld [vmem:[#allocation12 + $0x3e0] sm:$0xff]
        %v3555 = vld [vmem:[#allocation12 + $0x3e8] sm:$0xff]
        %v3556 = vld [vmem:[#allocation12 + $0x3f0] sm:$0xff]
        %v3557 = vld [vmem:[#allocation12 + $0x3f8] sm:$0xff]
        %v3558 = vld [vmem:[#allocation12 + $0x400] sm:$0xff]
        %v3559 = vld [vmem:[#allocation12 + $0x408] sm:$0xff]
        %v3560 = vld [vmem:[#allocation12 + $0x410] sm:$0xff]
        %v3561 = vld [vmem:[#allocation12 + $0x418] sm:$0xff]
        %v3562 = vld [vmem:[#allocation12 + $0x420] sm:$0xff]
        %v3563 = vld [vmem:[#allocation12 + $0x428] sm:$0xff]
        %v3564 = vld [vmem:[#allocation12 + $0x430] sm:$0xff]
        %v3565 = vld [vmem:[#allocation12 + $0x438] sm:$0xff]
        %v3566 = vld [vmem:[#allocation12 + $0x440] sm:$0xff]
        %v3567 = vld [vmem:[#allocation12 + $0x448] sm:$0xff]
        %v3568 = vld [vmem:[#allocation12 + $0x450] sm:$0xff]
        %v3569 = vld [vmem:[#allocation12 + $0x458] sm:$0xff]
        %v3570 = vld [vmem:[#allocation12 + $0x460] sm:$0xff]
        %v3571 = vld [vmem:[#allocation12 + $0x468] sm:$0xff]
        %v3572 = vld [vmem:[#allocation12 + $0x470] sm:$0xff]
        %v3573 = vld [vmem:[#allocation12 + $0x478] sm:$0xff]
        %v3574 = vld [vmem:[#allocation12 + $0x480] sm:$0xff]
        %v3575 = vld [vmem:[#allocation12 + $0x488] sm:$0xff]
        %v3576 = vld [vmem:[#allocation12 + $0x490] sm:$0xff]
        %v3577 = vld [vmem:[#allocation12 + $0x498] sm:$0xff]
        %v3578 = vld [vmem:[#allocation12 + $0x4a0] sm:$0xff]
        %v3579 = vld [vmem:[#allocation12 + $0x4a8] sm:$0xff]
        %v3580 = vld [vmem:[#allocation12 + $0x4b0] sm:$0xff]
        %v3581 = vld [vmem:[#allocation12 + $0x4b8] sm:$0xff]
        %v3582 = vld [vmem:[#allocation12 + $0x4c0] sm:$0xff]
        %v3583 = vld [vmem:[#allocation12 + $0x4c8] sm:$0xff]
        %v3584 = vld [vmem:[#allocation12 + $0x4d0] sm:$0xff]
        %v3585 = vld [vmem:[#allocation12 + $0x4d8] sm:$0xff]
        %v3586 = vld [vmem:[#allocation12 + $0x4e0] sm:$0xff]
        %v3587 = vld [vmem:[#allocation12 + $0x4e8] sm:$0xff]
        %v3588 = vld [vmem:[#allocation12 + $0x4f0] sm:$0xff]
        %v3589 = vld [vmem:[#allocation12 + $0x4f8] sm:$0xff]
        %v3590 = vld [vmem:[#allocation12 + $0x500] sm:$0xff]
        %v3591 = vld [vmem:[#allocation12 + $0x508] sm:$0xff]
        %v3592 = vld [vmem:[#allocation12 + $0x510] sm:$0xff]
        %v3593 = vld [vmem:[#allocation12 + $0x518] sm:$0xff]
        %v3594 = vld [vmem:[#allocation12 + $0x520] sm:$0xff]
        %v3595 = vld [vmem:[#allocation12 + $0x528] sm:$0xff]
        %v3596 = vld [vmem:[#allocation12 + $0x530] sm:$0xff]
        %v3597 = vld [vmem:[#allocation12 + $0x538] sm:$0xff]
        %v3598 = vld [vmem:[#allocation12 + $0x540] sm:$0xff]
        %v3599 = vld [vmem:[#allocation12 + $0x548] sm:$0xff]
        %v3600 = vld [vmem:[#allocation12 + $0x550] sm:$0xff]
        %v3601 = vld [vmem:[#allocation12 + $0x558] sm:$0xff]
        %v3602 = vld [vmem:[#allocation12 + $0x560] sm:$0xff]
        %v3603 = vld [vmem:[#allocation12 + $0x568] sm:$0xff]
        %v3604 = vld [vmem:[#allocation12 + $0x570] sm:$0xff]
        %v3605 = vld [vmem:[#allocation12 + $0x578] sm:$0xff]
        %v3606 = vld [vmem:[#allocation12 + $0x580] sm:$0xff]
        %v3607 = vld [vmem:[#allocation12 + $0x588] sm:$0xff]
        %v3608 = vld [vmem:[#allocation12 + $0x590] sm:$0xff]
        %v3609 = vld [vmem:[#allocation12 + $0x598] sm:$0xff]
        %v3610 = vld [vmem:[#allocation12 + $0x5a0] sm:$0xff]
        %v3611 = vld [vmem:[#allocation12 + $0x5a8] sm:$0xff]
        %v3612 = vld [vmem:[#allocation12 + $0x5b0] sm:$0xff]
        %v3613 = vld [vmem:[#allocation12 + $0x5b8] sm:$0xff]
        %v3614 = vld [vmem:[#allocation12 + $0x5c0] sm:$0xff]
        %v3615 = vld [vmem:[#allocation12 + $0x5c8] sm:$0xff]
        %v3616 = vld [vmem:[#allocation12 + $0x5d0] sm:$0xff]
        %v3617 = vld [vmem:[#allocation12 + $0x5d8] sm:$0xff]
        %v3618 = vld [vmem:[#allocation12 + $0x5e0] sm:$0xff]
        %v3619 = vld [vmem:[#allocation12 + $0x5e8] sm:$0xff]
        %v3620 = vld [vmem:[#allocation12 + $0x5f0] sm:$0xff]
        %v3621 = vld [vmem:[#allocation12 + $0x5f8] sm:$0xff]
        %v3622 = vld [vmem:[#allocation12 + $0x600] sm:$0xff]
        %v3623 = vld [vmem:[#allocation12 + $0x608] sm:$0xff]
        %v3624 = vld [vmem:[#allocation12 + $0x610] sm:$0xff]
        %v3625 = vld [vmem:[#allocation12 + $0x618] sm:$0xff]
        %v3626 = vld [vmem:[#allocation12 + $0x620] sm:$0xff]
        %v3627 = vld [vmem:[#allocation12 + $0x628] sm:$0xff]
        %v3628 = vld [vmem:[#allocation12 + $0x630] sm:$0xff]
        %v3629 = vld [vmem:[#allocation12 + $0x638] sm:$0xff]
        %v3630 = vld [vmem:[#allocation12 + $0x640] sm:$0xff]
        %v3631 = vld [vmem:[#allocation12 + $0x648] sm:$0xff]
        %v3632 = vld [vmem:[#allocation12 + $0x650] sm:$0xff]
        %v3633 = vld [vmem:[#allocation12 + $0x658] sm:$0xff]
        %v3634 = vld [vmem:[#allocation12 + $0x660] sm:$0xff]
        %v3635 = vld [vmem:[#allocation12 + $0x668] sm:$0xff]
        %v3636 = vld [vmem:[#allocation12 + $0x670] sm:$0xff]
        %v3637 = vld [vmem:[#allocation12 + $0x678] sm:$0xff]
        %v3638 = vld [vmem:[#allocation12 + $0x680] sm:$0xff]
        %v3639 = vld [vmem:[#allocation12 + $0x688] sm:$0xff]
        %v3640 = vld [vmem:[#allocation12 + $0x690] sm:$0xff]
        %v3641 = vld [vmem:[#allocation12 + $0x698] sm:$0xff]
        %v3642 = vld [vmem:[#allocation12 + $0x6a0] sm:$0xff]
        %v3643 = vld [vmem:[#allocation12 + $0x6a8] sm:$0xff]
        %v3644 = vld [vmem:[#allocation12 + $0x6b0] sm:$0xff]
        %v3645 = vld [vmem:[#allocation12 + $0x6b8] sm:$0xff]
        %v3646 = vld [vmem:[#allocation12 + $0x6c0] sm:$0xff]
        %v3647 = vld [vmem:[#allocation12 + $0x6c8] sm:$0xff]
        %v3648 = vld [vmem:[#allocation12 + $0x6d0] sm:$0xff]
        %v3649 = vld [vmem:[#allocation12 + $0x6d8] sm:$0xff]
        %v3650 = vld [vmem:[#allocation12 + $0x6e0] sm:$0xff]
        %v3651 = vld [vmem:[#allocation12 + $0x6e8] sm:$0xff]
        %v3652 = vld [vmem:[#allocation12 + $0x6f0] sm:$0xff]
        %v3653 = vld [vmem:[#allocation12 + $0x6f8] sm:$0xff]
        %v3654 = vld [vmem:[#allocation12 + $0x700] sm:$0xff]
        %v3655 = vld [vmem:[#allocation12 + $0x708] sm:$0xff]
        %v3656 = vld [vmem:[#allocation12 + $0x710] sm:$0xff]
        %v3657 = vld [vmem:[#allocation12 + $0x718] sm:$0xff]
        %v3658 = vld [vmem:[#allocation12 + $0x720] sm:$0xff]
        %v3659 = vld [vmem:[#allocation12 + $0x728] sm:$0xff]
        %v3660 = vld [vmem:[#allocation12 + $0x730] sm:$0xff]
        %v3661 = vld [vmem:[#allocation12 + $0x738] sm:$0xff]
        %v3662 = vld [vmem:[#allocation12 + $0x740] sm:$0xff]
        %v3663 = vld [vmem:[#allocation12 + $0x748] sm:$0xff]
        %v3664 = vld [vmem:[#allocation12 + $0x750] sm:$0xff]
        %v3665 = vld [vmem:[#allocation12 + $0x758] sm:$0xff]
        %v3666 = vld [vmem:[#allocation12 + $0x760] sm:$0xff]
        %v3667 = vld [vmem:[#allocation12 + $0x768] sm:$0xff]
        %v3668 = vld [vmem:[#allocation12 + $0x770] sm:$0xff]
        %v3669 = vld [vmem:[#allocation12 + $0x778] sm:$0xff]
        %v3670 = vld [vmem:[#allocation12 + $0x780] sm:$0xff]
        %v3671 = vld [vmem:[#allocation12 + $0x788] sm:$0xff]
        %v3672 = vld [vmem:[#allocation12 + $0x790] sm:$0xff]
        %v3673 = vld [vmem:[#allocation12 + $0x798] sm:$0xff]
        %v3674 = vld [vmem:[#allocation12 + $0x7a0] sm:$0xff]
        %v3675 = vld [vmem:[#allocation12 + $0x7a8] sm:$0xff]
        %v3676 = vld [vmem:[#allocation12 + $0x7b0] sm:$0xff]
        %v3677 = vld [vmem:[#allocation12 + $0x7b8] sm:$0xff]
        %v3678 = vld [vmem:[#allocation12 + $0x7c0] sm:$0xff]
        %v3679 = vld [vmem:[#allocation12 + $0x7c8] sm:$0xff]
        %v3680 = vld [vmem:[#allocation12 + $0x7d0] sm:$0xff]
        %v3681 = vld [vmem:[#allocation12 + $0x7d8] sm:$0xff]
        %v3682 = vld [vmem:[#allocation12 + $0x7e0] sm:$0xff]
        %v3683 = vld [vmem:[#allocation12 + $0x7e8] sm:$0xff]
        %v3684 = vld [vmem:[#allocation12 + $0x7f0] sm:$0xff]
        %v3685 = vld [vmem:[#allocation12 + $0x7f8] sm:$0xff]
        %v3686 = vld [vmem:[#allocation12 + $0x800] sm:$0xff]
        %v3687 = vld [vmem:[#allocation12 + $0x808] sm:$0xff]
        %v3688 = vld [vmem:[#allocation12 + $0x810] sm:$0xff]
        %v3689 = vld [vmem:[#allocation12 + $0x818] sm:$0xff]
        %v3690 = vld [vmem:[#allocation12 + $0x820] sm:$0xff]
        %v3691 = vld [vmem:[#allocation12 + $0x828] sm:$0xff]
        %v3692 = vld [vmem:[#allocation12 + $0x830] sm:$0xff]
        %v3693 = vld [vmem:[#allocation12 + $0x838] sm:$0xff]
        %v3694 = vld [vmem:[#allocation12 + $0x840] sm:$0xff]
        %v3695 = vld [vmem:[#allocation12 + $0x848] sm:$0xff]
        %v3696 = vld [vmem:[#allocation12 + $0x850] sm:$0xff]
        %v3697 = vld [vmem:[#allocation12 + $0x858] sm:$0xff]
        %v3698 = vld [vmem:[#allocation12 + $0x860] sm:$0xff]
        %v3699 = vld [vmem:[#allocation12 + $0x868] sm:$0xff]
        %v3700 = vld [vmem:[#allocation12 + $0x870] sm:$0xff]
        %v3701 = vld [vmem:[#allocation12 + $0x878] sm:$0xff]
        %v3702 = vld [vmem:[#allocation12 + $0x880] sm:$0xff]
        %v3703 = vld [vmem:[#allocation12 + $0x888] sm:$0xff]
        %v3704 = vld [vmem:[#allocation12 + $0x890] sm:$0xff]
        %v3705 = vld [vmem:[#allocation12 + $0x898] sm:$0xff]
        %v3706 = vld [vmem:[#allocation12 + $0x8a0] sm:$0xff]
        %v3707 = vld [vmem:[#allocation12 + $0x8a8] sm:$0xff]
        %v3708 = vld [vmem:[#allocation12 + $0x8b0] sm:$0xff]
        %v3709 = vld [vmem:[#allocation12 + $0x8b8] sm:$0xff]
        %v3710 = vld [vmem:[#allocation12 + $0x8c0] sm:$0xff]
        %v3711 = vld [vmem:[#allocation12 + $0x8c8] sm:$0xff]
        %v3712 = vld [vmem:[#allocation12 + $0x8d0] sm:$0xff]
        %v3713 = vld [vmem:[#allocation12 + $0x8d8] sm:$0xff]
        %v3714 = vld [vmem:[#allocation12 + $0x8e0] sm:$0xff]
        %v3715 = vld [vmem:[#allocation12 + $0x8e8] sm:$0xff]
        %v3716 = vld [vmem:[#allocation12 + $0x8f0] sm:$0xff]
        %v3717 = vld [vmem:[#allocation12 + $0x8f8] sm:$0xff]
        %v3718 = vld [vmem:[#allocation12 + $0x900] sm:$0xff]
        %v3719 = vld [vmem:[#allocation12 + $0x908] sm:$0xff]
        %v3720 = vld [vmem:[#allocation12 + $0x910] sm:$0xff]
        %v3721 = vld [vmem:[#allocation12 + $0x918] sm:$0xff]
        %v3722 = vld [vmem:[#allocation12 + $0x920] sm:$0xff]
        %v3723 = vld [vmem:[#allocation12 + $0x928] sm:$0xff]
        %v3724 = vld [vmem:[#allocation12 + $0x930] sm:$0xff]
        %v3725 = vld [vmem:[#allocation12 + $0x938] sm:$0xff]
        %v3726 = vld [vmem:[#allocation12 + $0x940] sm:$0xff]
        %v3727 = vld [vmem:[#allocation12 + $0x948] sm:$0xff]
        %v3728 = vld [vmem:[#allocation12 + $0x950] sm:$0xff]
        %v3729 = vld [vmem:[#allocation12 + $0x958] sm:$0xff]
        %v3730 = vld [vmem:[#allocation12 + $0x960] sm:$0xff]
        %v3731 = vld [vmem:[#allocation12 + $0x968] sm:$0xff]
        %v3732 = vld [vmem:[#allocation12 + $0x970] sm:$0xff]
        %v3733 = vld [vmem:[#allocation12 + $0x978] sm:$0xff]
        %v3734 = vld [vmem:[#allocation12 + $0x980] sm:$0xff]
        %v3735 = vld [vmem:[#allocation12 + $0x988] sm:$0xff]
        %v3736 = vld [vmem:[#allocation12 + $0x990] sm:$0xff]
        %v3737 = vld [vmem:[#allocation12 + $0x998] sm:$0xff]
        %v3738 = vld [vmem:[#allocation12 + $0x9a0] sm:$0xff]
        %v3739 = vld [vmem:[#allocation12 + $0x9a8] sm:$0xff]
        %v3740 = vld [vmem:[#allocation12 + $0x9b0] sm:$0xff]
        %v3741 = vld [vmem:[#allocation12 + $0x9b8] sm:$0xff]
        %v3742 = vld [vmem:[#allocation12 + $0x9c0] sm:$0xff]
        %v3743 = vld [vmem:[#allocation12 + $0x9c8] sm:$0xff]
        %v3744 = vld [vmem:[#allocation12 + $0x9d0] sm:$0xff]
        %v3745 = vld [vmem:[#allocation12 + $0x9d8] sm:$0xff]
        %v3746 = vld [vmem:[#allocation12 + $0x9e0] sm:$0xff]
        %v3747 = vld [vmem:[#allocation12 + $0x9e8] sm:$0xff]
        %v3748 = vld [vmem:[#allocation12 + $0x9f0] sm:$0xff]
        %v3749 = vld [vmem:[#allocation12 + $0x9f8] sm:$0xff]
        %v3750 = vld [vmem:[#allocation12 + $0xa00] sm:$0xff]
        %v3751 = vld [vmem:[#allocation12 + $0xa08] sm:$0xff]
        %v3752 = vld [vmem:[#allocation12 + $0xa10] sm:$0xff]
        %v3753 = vld [vmem:[#allocation12 + $0xa18] sm:$0xff]
        %v3754 = vld [vmem:[#allocation12 + $0xa20] sm:$0xff]
        %v3755 = vld [vmem:[#allocation12 + $0xa28] sm:$0xff]
        %v3756 = vld [vmem:[#allocation12 + $0xa30] sm:$0xff]
        %v3757 = vld [vmem:[#allocation12 + $0xa38] sm:$0xff]
        %v3758 = vld [vmem:[#allocation12 + $0xa40] sm:$0xff]
        %v3759 = vld [vmem:[#allocation12 + $0xa48] sm:$0xff]
        %v3760 = vld [vmem:[#allocation12 + $0xa50] sm:$0xff]
        %v3761 = vld [vmem:[#allocation12 + $0xa58] sm:$0xff]
        %v3762 = vld [vmem:[#allocation12 + $0xa60] sm:$0xff]
        %v3763 = vld [vmem:[#allocation12 + $0xa68] sm:$0xff]
        %v3764 = vld [vmem:[#allocation12 + $0xa70] sm:$0xff]
        %v3765 = vld [vmem:[#allocation12 + $0xa78] sm:$0xff]
        %v3766 = vld [vmem:[#allocation12 + $0xa80] sm:$0xff]
        %v3767 = vld [vmem:[#allocation12 + $0xa88] sm:$0xff]
        %v3768 = vld [vmem:[#allocation12 + $0xa90] sm:$0xff]
        %v3769 = vld [vmem:[#allocation12 + $0xa98] sm:$0xff]
        %v3770 = vld [vmem:[#allocation12 + $0xaa0] sm:$0xff]
        %v3771 = vld [vmem:[#allocation12 + $0xaa8] sm:$0xff]
        %v3772 = vld [vmem:[#allocation12 + $0xab0] sm:$0xff]
        %v3773 = vld [vmem:[#allocation12 + $0xab8] sm:$0xff]
        %v3774 = vld [vmem:[#allocation12 + $0xac0] sm:$0xff]
        %v3775 = vld [vmem:[#allocation12 + $0xac8] sm:$0xff]
        %v3776 = vld [vmem:[#allocation12 + $0xad0] sm:$0xff]
        %v3777 = vld [vmem:[#allocation12 + $0xad8] sm:$0xff]
        %v3778 = vld [vmem:[#allocation12 + $0xae0] sm:$0xff]
        %v3779 = vld [vmem:[#allocation12 + $0xae8] sm:$0xff]
        %v3780 = vld [vmem:[#allocation12 + $0xaf0] sm:$0xff]
        %v3781 = vld [vmem:[#allocation12 + $0xaf8] sm:$0xff]
        %v3782 = vld [vmem:[#allocation12 + $0xb00] sm:$0xff]
        %v3783 = vld [vmem:[#allocation12 + $0xb08] sm:$0xff]
        %v3784 = vld [vmem:[#allocation12 + $0xb10] sm:$0xff]
        %v3785 = vld [vmem:[#allocation12 + $0xb18] sm:$0xff]
        %v3786 = vld [vmem:[#allocation12 + $0xb20] sm:$0xff]
        %v3787 = vld [vmem:[#allocation12 + $0xb28] sm:$0xff]
        %v3788 = vld [vmem:[#allocation12 + $0xb30] sm:$0xff]
        %v3789 = vld [vmem:[#allocation12 + $0xb38] sm:$0xff]
        %v3790 = vld [vmem:[#allocation12 + $0xb40] sm:$0xff]
        %v3791 = vld [vmem:[#allocation12 + $0xb48] sm:$0xff]
        %v3792 = vld [vmem:[#allocation12 + $0xb50] sm:$0xff]
        %v3793 = vld [vmem:[#allocation12 + $0xb58] sm:$0xff]
        %v3794 = vld [vmem:[#allocation12 + $0xb60] sm:$0xff]
        %v3795 = vld [vmem:[#allocation12 + $0xb68] sm:$0xff]
        %v3796 = vld [vmem:[#allocation12 + $0xb70] sm:$0xff]
        %v3797 = vld [vmem:[#allocation12 + $0xb78] sm:$0xff]
        %v3798 = vld [vmem:[#allocation12 + $0xb80] sm:$0xff]
        %v3799 = vld [vmem:[#allocation12 + $0xb88] sm:$0xff]
        %v3800 = vld [vmem:[#allocation12 + $0xb90] sm:$0xff]
        %v3801 = vld [vmem:[#allocation12 + $0xb98] sm:$0xff]
        %v3802 = vld [vmem:[#allocation12 + $0xba0] sm:$0xff]
        %v3803 = vld [vmem:[#allocation12 + $0xba8] sm:$0xff]
        %v3804 = vld [vmem:[#allocation12 + $0xbb0] sm:$0xff]
        %v3805 = vld [vmem:[#allocation12 + $0xbb8] sm:$0xff]
        %v3806 = vld [vmem:[#allocation12 + $0xbc0] sm:$0xff]
        %v3807 = vld [vmem:[#allocation12 + $0xbc8] sm:$0xff]
        %v3808 = vld [vmem:[#allocation12 + $0xbd0] sm:$0xff]
        %v3809 = vld [vmem:[#allocation12 + $0xbd8] sm:$0xff]
        %v3810 = vld [vmem:[#allocation12 + $0xbe0] sm:$0xff]
        %v3811 = vld [vmem:[#allocation12 + $0xbe8] sm:$0xff]
        %v3812 = vld [vmem:[#allocation12 + $0xbf0] sm:$0xff]
        %v3813 = vld [vmem:[#allocation12 + $0xbf8] sm:$0xff]
        %v3814 = vld [vmem:[#allocation12 + $0xc00] sm:$0xff]
        %v3815 = vld [vmem:[#allocation12 + $0xc08] sm:$0xff]
        %v3816 = vld [vmem:[#allocation12 + $0xc10] sm:$0xff]
        %v3817 = vld [vmem:[#allocation12 + $0xc18] sm:$0xff]
        %v3818 = vld [vmem:[#allocation12 + $0xc20] sm:$0xff]
        %v3819 = vld [vmem:[#allocation12 + $0xc28] sm:$0xff]
        %v3820 = vld [vmem:[#allocation12 + $0xc30] sm:$0xff]
        %v3821 = vld [vmem:[#allocation12 + $0xc38] sm:$0xff]
        %v3822 = vld [vmem:[#allocation12 + $0xc40] sm:$0xff]
        %v3823 = vld [vmem:[#allocation12 + $0xc48] sm:$0xff]
        %v3824 = vld [vmem:[#allocation12 + $0xc50] sm:$0xff]
        %v3825 = vld [vmem:[#allocation12 + $0xc58] sm:$0xff]
        %v3826 = vld [vmem:[#allocation12 + $0xc60] sm:$0xff]
        %v3827 = vld [vmem:[#allocation12 + $0xc68] sm:$0xff]
        %v3828 = vld [vmem:[#allocation12 + $0xc70] sm:$0xff]
        %v3829 = vld [vmem:[#allocation12 + $0xc78] sm:$0xff]
        %v3830 = vld [vmem:[#allocation12 + $0xc80] sm:$0xff]
        %v3831 = vld [vmem:[#allocation12 + $0xc88] sm:$0xff]
        %v3832 = vld [vmem:[#allocation12 + $0xc90] sm:$0xff]
        %v3833 = vld [vmem:[#allocation12 + $0xc98] sm:$0xff]
        %v3834 = vld [vmem:[#allocation12 + $0xca0] sm:$0xff]
        %v3835 = vld [vmem:[#allocation12 + $0xca8] sm:$0xff]
        %v3836 = vld [vmem:[#allocation12 + $0xcb0] sm:$0xff]
        %v3837 = vld [vmem:[#allocation12 + $0xcb8] sm:$0xff]
        %v3838 = vld [vmem:[#allocation12 + $0xcc0] sm:$0xff]
        %v3839 = vld [vmem:[#allocation12 + $0xcc8] sm:$0xff]
        %v3840 = vld [vmem:[#allocation12 + $0xcd0] sm:$0xff]
        %v3841 = vld [vmem:[#allocation12 + $0xcd8] sm:$0xff]
        %v3842 = vld [vmem:[#allocation12 + $0xce0] sm:$0xff]
        %v3843 = vld [vmem:[#allocation12 + $0xce8] sm:$0xff]
        %v3844 = vld [vmem:[#allocation12 + $0xcf0] sm:$0xff]
        %v3845 = vld [vmem:[#allocation12 + $0xcf8] sm:$0xff]
        %v3846 = vld [vmem:[#allocation12 + $0xd00] sm:$0xff]
        %v3847 = vld [vmem:[#allocation12 + $0xd08] sm:$0xff]
        %v3848 = vld [vmem:[#allocation12 + $0xd10] sm:$0xff]
        %v3849 = vld [vmem:[#allocation12 + $0xd18] sm:$0xff]
        %v3850 = vld [vmem:[#allocation12 + $0xd20] sm:$0xff]
        %v3851 = vld [vmem:[#allocation12 + $0xd28] sm:$0xff]
        %v3852 = vld [vmem:[#allocation12 + $0xd30] sm:$0xff]
        %v3853 = vld [vmem:[#allocation12 + $0xd38] sm:$0xff]
        %v3854 = vld [vmem:[#allocation12 + $0xd40] sm:$0xff]
        %v3855 = vld [vmem:[#allocation12 + $0xd48] sm:$0xff]
        %v3856 = vld [vmem:[#allocation12 + $0xd50] sm:$0xff]
        %v3857 = vld [vmem:[#allocation12 + $0xd58] sm:$0xff]
        %v3858 = vld [vmem:[#allocation12 + $0xd60] sm:$0xff]
        %v3859 = vld [vmem:[#allocation12 + $0xd68] sm:$0xff]
        %v3860 = vld [vmem:[#allocation12 + $0xd70] sm:$0xff]
        %v3861 = vld [vmem:[#allocation12 + $0xd78] sm:$0xff]
        %v3862 = vld [vmem:[#allocation12 + $0xd80] sm:$0xff]
        %v3863 = vld [vmem:[#allocation12 + $0xd88] sm:$0xff]
        %v3864 = vld [vmem:[#allocation12 + $0xd90] sm:$0xff]
        %v3865 = vld [vmem:[#allocation12 + $0xd98] sm:$0xff]
        %v3866 = vld [vmem:[#allocation12 + $0xda0] sm:$0xff]
        %v3867 = vld [vmem:[#allocation12 + $0xda8] sm:$0xff]
        %v3868 = vld [vmem:[#allocation12 + $0xdb0] sm:$0xff]
        %v3869 = vld [vmem:[#allocation12 + $0xdb8] sm:$0xff]
        %v3870 = vld [vmem:[#allocation12 + $0xdc0] sm:$0xff]
        %v3871 = vld [vmem:[#allocation12 + $0xdc8] sm:$0xff]
        %v3872 = vld [vmem:[#allocation12 + $0xdd0] sm:$0xff]
        %v3873 = vld [vmem:[#allocation12 + $0xdd8] sm:$0xff]
        %v3874 = vld [vmem:[#allocation12 + $0xde0] sm:$0xff]
        %v3875 = vld [vmem:[#allocation12 + $0xde8] sm:$0xff]
        %v3876 = vld [vmem:[#allocation12 + $0xdf0] sm:$0xff]
        %v3877 = vld [vmem:[#allocation12 + $0xdf8] sm:$0xff]
        %v3878 = vld [vmem:[#allocation12 + $0xe00] sm:$0xff]
        %v3879 = vld [vmem:[#allocation12 + $0xe08] sm:$0xff]
        %v3880 = vld [vmem:[#allocation12 + $0xe10] sm:$0xff]
        %v3881 = vld [vmem:[#allocation12 + $0xe18] sm:$0xff]
        %v3882 = vld [vmem:[#allocation12 + $0xe20] sm:$0xff]
        %v3883 = vld [vmem:[#allocation12 + $0xe28] sm:$0xff]
        %v3884 = vld [vmem:[#allocation12 + $0xe30] sm:$0xff]
        %v3885 = vld [vmem:[#allocation12 + $0xe38] sm:$0xff]
        %v3886 = vld [vmem:[#allocation12 + $0xe40] sm:$0xff]
        %v3887 = vld [vmem:[#allocation12 + $0xe48] sm:$0xff]
        %v3888 = vld [vmem:[#allocation12 + $0xe50] sm:$0xff]
        %v3889 = vld [vmem:[#allocation12 + $0xe58] sm:$0xff]
        %v3890 = vld [vmem:[#allocation12 + $0xe60] sm:$0xff]
        %v3891 = vld [vmem:[#allocation12 + $0xe68] sm:$0xff]
        %v3892 = vld [vmem:[#allocation12 + $0xe70] sm:$0xff]
        %v3893 = vld [vmem:[#allocation12 + $0xe78] sm:$0xff]
        %v3894 = vld [vmem:[#allocation12 + $0xe80] sm:$0xff]
        %v3895 = vld [vmem:[#allocation12 + $0xe88] sm:$0xff]
        %v3896 = vld [vmem:[#allocation12 + $0xe90] sm:$0xff]
        %v3897 = vld [vmem:[#allocation12 + $0xe98] sm:$0xff]
        %v3898 = vld [vmem:[#allocation12 + $0xea0] sm:$0xff]
        %v3899 = vld [vmem:[#allocation12 + $0xea8] sm:$0xff]
        %v3900 = vld [vmem:[#allocation12 + $0xeb0] sm:$0xff]
        %v3901 = vld [vmem:[#allocation12 + $0xeb8] sm:$0xff]
        %v3902 = vld [vmem:[#allocation12 + $0xec0] sm:$0xff]
        %v3903 = vld [vmem:[#allocation12 + $0xec8] sm:$0xff]
        %v3904 = vld [vmem:[#allocation12 + $0xed0] sm:$0xff]
        %v3905 = vld [vmem:[#allocation12 + $0xed8] sm:$0xff]
        %v3906 = vld [vmem:[#allocation12 + $0xee0] sm:$0xff]
        %v3907 = vld [vmem:[#allocation12 + $0xee8] sm:$0xff]
        %v3908 = vld [vmem:[#allocation12 + $0xef0] sm:$0xff]
        %v3909 = vld [vmem:[#allocation12 + $0xef8] sm:$0xff]
        %v3910 = vld [vmem:[#allocation12 + $0xf00] sm:$0xff]
        %v3911 = vld [vmem:[#allocation12 + $0xf08] sm:$0xff]
        %v3912 = vld [vmem:[#allocation12 + $0xf10] sm:$0xff]
        %v3913 = vld [vmem:[#allocation12 + $0xf18] sm:$0xff]
        %v3914 = vld [vmem:[#allocation12 + $0xf20] sm:$0xff]
        %v3915 = vld [vmem:[#allocation12 + $0xf28] sm:$0xff]
        %v3916 = vld [vmem:[#allocation12 + $0xf30] sm:$0xff]
        %v3917 = vld [vmem:[#allocation12 + $0xf38] sm:$0xff]
        %v3918 = vld [vmem:[#allocation12 + $0xf40] sm:$0xff]
        %v3919 = vld [vmem:[#allocation12 + $0xf48] sm:$0xff]
        %v3920 = vld [vmem:[#allocation12 + $0xf50] sm:$0xff]
        %v3921 = vld [vmem:[#allocation12 + $0xf58] sm:$0xff]
        %v3922 = vld [vmem:[#allocation12 + $0xf60] sm:$0xff]
        %v3923 = vld [vmem:[#allocation12 + $0xf68] sm:$0xff]
        %v3924 = vld [vmem:[#allocation12 + $0xf70] sm:$0xff]
        %v3925 = vld [vmem:[#allocation12 + $0xf78] sm:$0xff]
        %v3926 = vld [vmem:[#allocation12 + $0xf80] sm:$0xff]
        %v3927 = vld [vmem:[#allocation12 + $0xf88] sm:$0xff]
        %v3928 = vld [vmem:[#allocation12 + $0xf90] sm:$0xff]
        %v3929 = vld [vmem:[#allocation12 + $0xf98] sm:$0xff]
        %v3930 = vld [vmem:[#allocation12 + $0xfa0] sm:$0xff]
        %v3931 = vld [vmem:[#allocation12 + $0xfa8] sm:$0xff]
        %v3932 = vld [vmem:[#allocation12 + $0xfb0] sm:$0xff]
        %v3933 = vld [vmem:[#allocation12 + $0xfb8] sm:$0xff]
        %v3934 = vld [vmem:[#allocation12 + $0xfc0] sm:$0xff]
        %v3935 = vld [vmem:[#allocation12 + $0xfc8] sm:$0xff]
        %v3936 = vld [vmem:[#allocation12 + $0xfd0] sm:$0xff]
        %v3937 = vld [vmem:[#allocation12 + $0xfd8] sm:$0xff]
        %v3938 = vld [vmem:[#allocation12 + $0xfe0] sm:$0xff]
        %v3939 = vld [vmem:[#allocation12 + $0xfe8] sm:$0xff]
        %v3940 = vld [vmem:[#allocation12 + $0xff0] sm:$0xff]
        %v3941 = vld [vmem:[#allocation12 + $0xff8] sm:$0xff]
        %v3942 = vld [vmem:[#allocation12 + $0x1000] sm:$0xff]
        %v3943 = vld [vmem:[#allocation12 + $0x1008] sm:$0xff]
        %v3944 = vld [vmem:[#allocation12 + $0x1010] sm:$0xff]
        %v3945 = vld [vmem:[#allocation12 + $0x1018] sm:$0xff]
        %v3946 = vld [vmem:[#allocation12 + $0x1020] sm:$0xff]
        %v3947 = vld [vmem:[#allocation12 + $0x1028] sm:$0xff]
        %v3948 = vld [vmem:[#allocation12 + $0x1030] sm:$0xff]
        %v3949 = vld [vmem:[#allocation12 + $0x1038] sm:$0xff]
        %v3950 = vld [vmem:[#allocation12 + $0x1040] sm:$0xff]
        %v3951 = vld [vmem:[#allocation12 + $0x1048] sm:$0xff]
        %v3952 = vld [vmem:[#allocation12 + $0x1050] sm:$0xff]
        %v3953 = vld [vmem:[#allocation12 + $0x1058] sm:$0xff]
        %v3954 = vld [vmem:[#allocation12 + $0x1060] sm:$0xff]
        %v3955 = vld [vmem:[#allocation12 + $0x1068] sm:$0xff]
        %v3956 = vld [vmem:[#allocation12 + $0x1070] sm:$0xff]
        %v3957 = vld [vmem:[#allocation12 + $0x1078] sm:$0xff]
        %v3958 = vld [vmem:[#allocation12 + $0x1080] sm:$0xff]
        %v3959 = vld [vmem:[#allocation12 + $0x1088] sm:$0xff]
        %v3960 = vld [vmem:[#allocation12 + $0x1090] sm:$0xff]
        %v3961 = vld [vmem:[#allocation12 + $0x1098] sm:$0xff]
        %v3962 = vld [vmem:[#allocation12 + $0x10a0] sm:$0xff]
        %v3963 = vld [vmem:[#allocation12 + $0x10a8] sm:$0xff]
        %v3964 = vld [vmem:[#allocation12 + $0x10b0] sm:$0xff]
        %v3965 = vld [vmem:[#allocation12 + $0x10b8] sm:$0xff]
        %v3966 = vld [vmem:[#allocation12 + $0x10c0] sm:$0xff]
        %v3967 = vld [vmem:[#allocation12 + $0x10c8] sm:$0xff]
        %v3968 = vld [vmem:[#allocation12 + $0x10d0] sm:$0xff]
        %v3969 = vld [vmem:[#allocation12 + $0x10d8] sm:$0xff]
        %v3970 = vld [vmem:[#allocation12 + $0x10e0] sm:$0xff]
        %v3971 = vld [vmem:[#allocation12 + $0x10e8] sm:$0xff]
        %v3972 = vld [vmem:[#allocation12 + $0x10f0] sm:$0xff]
        %v3973 = vld [vmem:[#allocation12 + $0x10f8] sm:$0xff]
        %v3974 = vld [vmem:[#allocation12 + $0x1100] sm:$0xff]
        %v3975 = vld [vmem:[#allocation12 + $0x1108] sm:$0xff]
        %v3976 = vld [vmem:[#allocation12 + $0x1110] sm:$0xff]
        %v3977 = vld [vmem:[#allocation12 + $0x1118] sm:$0xff]
        %v3978 = vld [vmem:[#allocation12 + $0x1120] sm:$0xff]
        %v3979 = vld [vmem:[#allocation12 + $0x1128] sm:$0xff]
        %v3980 = vld [vmem:[#allocation12 + $0x1130] sm:$0xff]
        %v3981 = vld [vmem:[#allocation12 + $0x1138] sm:$0xff]
        %v3982 = vld [vmem:[#allocation12 + $0x1140] sm:$0xff]
        %v3983 = vld [vmem:[#allocation12 + $0x1148] sm:$0xff]
        %v3984 = vld [vmem:[#allocation12 + $0x1150] sm:$0xff]
        %v3985 = vld [vmem:[#allocation12 + $0x1158] sm:$0xff]
        %v3986 = vld [vmem:[#allocation12 + $0x1160] sm:$0xff]
        %v3987 = vld [vmem:[#allocation12 + $0x1168] sm:$0xff]
        %v3988 = vld [vmem:[#allocation12 + $0x1170] sm:$0xff]
        %v3989 = vld [vmem:[#allocation12 + $0x1178] sm:$0xff]
        %v3990 = vld [vmem:[#allocation12 + $0x1180] sm:$0xff]
        %v3991 = vld [vmem:[#allocation12 + $0x1188] sm:$0xff]
        %v3992 = vld [vmem:[#allocation12 + $0x1190] sm:$0xff]
        %v3993 = vld [vmem:[#allocation12 + $0x1198] sm:$0xff]
        %v3994 = vld [vmem:[#allocation12 + $0x11a0] sm:$0xff]
        %v3995 = vld [vmem:[#allocation12 + $0x11a8] sm:$0xff]
        %v3996 = vld [vmem:[#allocation12 + $0x11b0] sm:$0xff]
        %v3997 = vld [vmem:[#allocation12 + $0x11b8] sm:$0xff]
        %v3998 = vld [vmem:[#allocation12 + $0x11c0] sm:$0xff]
        %v3999 = vld [vmem:[#allocation12 + $0x11c8] sm:$0xff]
        %v4000 = vld [vmem:[#allocation12 + $0x11d0] sm:$0xff]
        %v4001 = vld [vmem:[#allocation12 + $0x11d8] sm:$0xff]
        %v4002 = vld [vmem:[#allocation12 + $0x11e0] sm:$0xff]
        %v4003 = vld [vmem:[#allocation12 + $0x11e8] sm:$0xff]
        %v4004 = vld [vmem:[#allocation12 + $0x11f0] sm:$0xff]
        %v4005 = vld [vmem:[#allocation12 + $0x11f8] sm:$0xff]
        %v4006 = vld [vmem:[#allocation12 + $0x1200] sm:$0xff]
        %v4007 = vld [vmem:[#allocation12 + $0x1208] sm:$0xff]
        %v4008 = vld [vmem:[#allocation12 + $0x1210] sm:$0xff]
        %v4009 = vld [vmem:[#allocation12 + $0x1218] sm:$0xff]
        %v4010 = vld [vmem:[#allocation12 + $0x1220] sm:$0xff]
        %v4011 = vld [vmem:[#allocation12 + $0x1228] sm:$0xff]
        %v4012 = vld [vmem:[#allocation12 + $0x1230] sm:$0xff]
        %v4013 = vld [vmem:[#allocation12 + $0x1238] sm:$0xff]
        %v4014 = vld [vmem:[#allocation12 + $0x1240] sm:$0xff]
        %v4015 = vld [vmem:[#allocation12 + $0x1248] sm:$0xff]
        %v4016 = vld [vmem:[#allocation12 + $0x1250] sm:$0xff]
        %v4017 = vld [vmem:[#allocation12 + $0x1258] sm:$0xff]
        %v4018 = vld [vmem:[#allocation12 + $0x1260] sm:$0xff]
        %v4019 = vld [vmem:[#allocation12 + $0x1268] sm:$0xff]
        %v4020 = vld [vmem:[#allocation12 + $0x1270] sm:$0xff]
        %v4021 = vld [vmem:[#allocation12 + $0x1278] sm:$0xff]
        %v4022 = vld [vmem:[#allocation12 + $0x1280] sm:$0xff]
        %v4023 = vld [vmem:[#allocation12 + $0x1288] sm:$0xff]
        %v4024 = vld [vmem:[#allocation12 + $0x1290] sm:$0xff]
        %v4025 = vld [vmem:[#allocation12 + $0x1298] sm:$0xff]
        %v4026 = vld [vmem:[#allocation12 + $0x12a0] sm:$0xff]
        %v4027 = vld [vmem:[#allocation12 + $0x12a8] sm:$0xff]
        %v4028 = vld [vmem:[#allocation12 + $0x12b0] sm:$0xff]
        %v4029 = vld [vmem:[#allocation12 + $0x12b8] sm:$0xff]
        %v4030 = vld [vmem:[#allocation12 + $0x12c0] sm:$0xff]
        %v4031 = vld [vmem:[#allocation12 + $0x12c8] sm:$0xff]
        %v4032 = vld [vmem:[#allocation12 + $0x12d0] sm:$0xff]
        %v4033 = vld [vmem:[#allocation12 + $0x12d8] sm:$0xff]
        %v4034 = vld [vmem:[#allocation12 + $0x12e0] sm:$0xff]
        %v4035 = vld [vmem:[#allocation12 + $0x12e8] sm:$0xff]
        %v4036 = vld [vmem:[#allocation12 + $0x12f0] sm:$0xff]
        %v4037 = vld [vmem:[#allocation12 + $0x12f8] sm:$0xff]
        %v4038 = vld [vmem:[#allocation12 + $0x1300] sm:$0xff]
        %v4039 = vld [vmem:[#allocation12 + $0x1308] sm:$0xff]
        %v4040 = vld [vmem:[#allocation12 + $0x1310] sm:$0xff]
        %v4041 = vld [vmem:[#allocation12 + $0x1318] sm:$0xff]
        %v4042 = vld [vmem:[#allocation12 + $0x1320] sm:$0xff]
        %v4043 = vld [vmem:[#allocation12 + $0x1328] sm:$0xff]
        %v4044 = vld [vmem:[#allocation12 + $0x1330] sm:$0xff]
        %v4045 = vld [vmem:[#allocation12 + $0x1338] sm:$0xff]
        %v4046 = vld [vmem:[#allocation12 + $0x1340] sm:$0xff]
        %v4047 = vld [vmem:[#allocation12 + $0x1348] sm:$0xff]
        %v4048 = vld [vmem:[#allocation12 + $0x1350] sm:$0xff]
        %v4049 = vld [vmem:[#allocation12 + $0x1358] sm:$0xff]
        %v4050 = vld [vmem:[#allocation12 + $0x1360] sm:$0xff]
        %v4051 = vld [vmem:[#allocation12 + $0x1368] sm:$0xff]
        %v4052 = vld [vmem:[#allocation12 + $0x1370] sm:$0xff]
        %v4053 = vld [vmem:[#allocation12 + $0x1378] sm:$0xff]
        %v4054 = vld [vmem:[#allocation12 + $0x1380] sm:$0xff]
        %v4055 = vld [vmem:[#allocation12 + $0x1388] sm:$0xff]
        %v4056 = vld [vmem:[#allocation12 + $0x1390] sm:$0xff]
        %v4057 = vld [vmem:[#allocation12 + $0x1398] sm:$0xff]
        %v4058 = vld [vmem:[#allocation12 + $0x13a0] sm:$0xff]
        %v4059 = vld [vmem:[#allocation12 + $0x13a8] sm:$0xff]
        %v4060 = vld [vmem:[#allocation12 + $0x13b0] sm:$0xff]
        %v4061 = vld [vmem:[#allocation12 + $0x13b8] sm:$0xff]
        %v4062 = vld [vmem:[#allocation12 + $0x13c0] sm:$0xff]
        %v4063 = vld [vmem:[#allocation12 + $0x13c8] sm:$0xff]
        %v4064 = vld [vmem:[#allocation12 + $0x13d0] sm:$0xff]
        %v4065 = vld [vmem:[#allocation12 + $0x13d8] sm:$0xff]
        %v4066 = vld [vmem:[#allocation12 + $0x13e0] sm:$0xff]
        %v4067 = vld [vmem:[#allocation12 + $0x13e8] sm:$0xff]
        %v4068 = vld [vmem:[#allocation12 + $0x13f0] sm:$0xff]
        %v4069 = vld [vmem:[#allocation12 + $0x13f8] sm:$0xff]
        %v4070 = vld [vmem:[#allocation12 + $0x1400] sm:$0xff]
        %v4071 = vld [vmem:[#allocation12 + $0x1408] sm:$0xff]
        %v4072 = vld [vmem:[#allocation12 + $0x1410] sm:$0xff]
        %v4073 = vld [vmem:[#allocation12 + $0x1418] sm:$0xff]
        %v4074 = vld [vmem:[#allocation12 + $0x1420] sm:$0xff]
        %v4075 = vld [vmem:[#allocation12 + $0x1428] sm:$0xff]
        %v4076 = vld [vmem:[#allocation12 + $0x1430] sm:$0xff]
        %v4077 = vld [vmem:[#allocation12 + $0x1438] sm:$0xff]
        %v4078 = vld [vmem:[#allocation12 + $0x1440] sm:$0xff]
        %v4079 = vld [vmem:[#allocation12 + $0x1448] sm:$0xff]
        %v4080 = vld [vmem:[#allocation12 + $0x1450] sm:$0xff]
        %v4081 = vld [vmem:[#allocation12 + $0x1458] sm:$0xff]
        %v4082 = vld [vmem:[#allocation12 + $0x1460] sm:$0xff]
        %v4083 = vld [vmem:[#allocation12 + $0x1468] sm:$0xff]
        %v4084 = vld [vmem:[#allocation12 + $0x1470] sm:$0xff]
        %v4085 = vld [vmem:[#allocation12 + $0x1478] sm:$0xff]
        %v4086 = vld [vmem:[#allocation12 + $0x1480] sm:$0xff]
        %v4087 = vld [vmem:[#allocation12 + $0x1488] sm:$0xff]
        %v4088 = vld [vmem:[#allocation12 + $0x1490] sm:$0xff]
        %v4089 = vld [vmem:[#allocation12 + $0x1498] sm:$0xff]
        %v4090 = vld [vmem:[#allocation12 + $0x14a0] sm:$0xff]
        %v4091 = vld [vmem:[#allocation12 + $0x14a8] sm:$0xff]
        %v4092 = vld [vmem:[#allocation12 + $0x14b0] sm:$0xff]
        %v4093 = vld [vmem:[#allocation12 + $0x14b8] sm:$0xff]
        %v4094 = vld [vmem:[#allocation12 + $0x14c0] sm:$0xff]
        %v4095 = vld [vmem:[#allocation12 + $0x14c8] sm:$0xff]
        %v4096 = vld [vmem:[#allocation12 + $0x14d0] sm:$0xff]
        %v4097 = vld [vmem:[#allocation12 + $0x14d8] sm:$0xff]
        %v4098 = vld [vmem:[#allocation12 + $0x14e0] sm:$0xff]
        %v4099 = vld [vmem:[#allocation12 + $0x14e8] sm:$0xff]
        %v4100 = vld [vmem:[#allocation12 + $0x14f0] sm:$0xff]
        %v4101 = vld [vmem:[#allocation12 + $0x14f8] sm:$0xff]
        %v4102 = vld [vmem:[#allocation12 + $0x1500] sm:$0xff]
        %v4103 = vld [vmem:[#allocation12 + $0x1508] sm:$0xff]
        %v4104 = vld [vmem:[#allocation12 + $0x1510] sm:$0xff]
        %v4105 = vld [vmem:[#allocation12 + $0x1518] sm:$0xff]
        %v4106 = vld [vmem:[#allocation12 + $0x1520] sm:$0xff]
        %v4107 = vld [vmem:[#allocation12 + $0x1528] sm:$0xff]
        %v4108 = vld [vmem:[#allocation12 + $0x1530] sm:$0xff]
        %v4109 = vld [vmem:[#allocation12 + $0x1538] sm:$0xff]
        %v4110 = vld [vmem:[#allocation12 + $0x1540] sm:$0xff]
        %v4111 = vld [vmem:[#allocation12 + $0x1548] sm:$0xff]
        %v4112 = vld [vmem:[#allocation12 + $0x1550] sm:$0xff]
        %v4113 = vld [vmem:[#allocation12 + $0x1558] sm:$0xff]
        %v4114 = vld [vmem:[#allocation12 + $0x1560] sm:$0xff]
        %v4115 = vld [vmem:[#allocation12 + $0x1568] sm:$0xff]
        %v4116 = vld [vmem:[#allocation12 + $0x1570] sm:$0xff]
        %v4117 = vld [vmem:[#allocation12 + $0x1578] sm:$0xff]
        %v4118 = vld [vmem:[#allocation12 + $0x1580] sm:$0xff]
        %v4119 = vld [vmem:[#allocation12 + $0x1588] sm:$0xff]
        %v4120 = vld [vmem:[#allocation12 + $0x1590] sm:$0xff]
        %v4121 = vld [vmem:[#allocation12 + $0x1598] sm:$0xff]
        %v4122 = vld [vmem:[#allocation12 + $0x15a0] sm:$0xff]
        %v4123 = vld [vmem:[#allocation12 + $0x15a8] sm:$0xff]
        %v4124 = vld [vmem:[#allocation12 + $0x15b0] sm:$0xff]
        %v4125 = vld [vmem:[#allocation12 + $0x15b8] sm:$0xff]
        %v4126 = vld [vmem:[#allocation12 + $0x15c0] sm:$0xff]
        %v4127 = vld [vmem:[#allocation12 + $0x15c8] sm:$0xff]
        %v4128 = vld [vmem:[#allocation12 + $0x15d0] sm:$0xff]
        %v4129 = vld [vmem:[#allocation12 + $0x15d8] sm:$0xff]
        %v4130 = vld [vmem:[#allocation12 + $0x15e0] sm:$0xff]
        %v4131 = vld [vmem:[#allocation12 + $0x15e8] sm:$0xff]
        %v4132 = vld [vmem:[#allocation12 + $0x15f0] sm:$0xff]
        %v4133 = vld [vmem:[#allocation12 + $0x15f8] sm:$0xff]
        %v4134 = vld [vmem:[#allocation12 + $0x1600] sm:$0xff]
        %v4135 = vld [vmem:[#allocation12 + $0x1608] sm:$0xff]
        %v4136 = vld [vmem:[#allocation12 + $0x1610] sm:$0xff]
        %v4137 = vld [vmem:[#allocation12 + $0x1618] sm:$0xff]
        %v4138 = vld [vmem:[#allocation12 + $0x1620] sm:$0xff]
        %v4139 = vld [vmem:[#allocation12 + $0x1628] sm:$0xff]
        %v4140 = vld [vmem:[#allocation12 + $0x1630] sm:$0xff]
        %v4141 = vld [vmem:[#allocation12 + $0x1638] sm:$0xff]
        %v4142 = vld [vmem:[#allocation12 + $0x1640] sm:$0xff]
        %v4143 = vld [vmem:[#allocation12 + $0x1648] sm:$0xff]
        %v4144 = vld [vmem:[#allocation12 + $0x1650] sm:$0xff]
        %v4145 = vld [vmem:[#allocation12 + $0x1658] sm:$0xff]
        %v4146 = vld [vmem:[#allocation12 + $0x1660] sm:$0xff]
        %v4147 = vld [vmem:[#allocation12 + $0x1668] sm:$0xff]
        %v4148 = vld [vmem:[#allocation12 + $0x1670] sm:$0xff]
        %v4149 = vld [vmem:[#allocation12 + $0x1678] sm:$0xff]
        %v4150 = vld [vmem:[#allocation12 + $0x1680] sm:$0xff]
        %v4151 = vld [vmem:[#allocation12 + $0x1688] sm:$0xff]
        %v4152 = vld [vmem:[#allocation12 + $0x1690] sm:$0xff]
        %v4153 = vld [vmem:[#allocation12 + $0x1698] sm:$0xff]
        %v4154 = vld [vmem:[#allocation12 + $0x16a0] sm:$0xff]
        %v4155 = vld [vmem:[#allocation12 + $0x16a8] sm:$0xff]
        %v4156 = vld [vmem:[#allocation12 + $0x16b0] sm:$0xff]
        %v4157 = vld [vmem:[#allocation12 + $0x16b8] sm:$0xff]
        %v4158 = vld [vmem:[#allocation12 + $0x16c0] sm:$0xff]
        %v4159 = vld [vmem:[#allocation12 + $0x16c8] sm:$0xff]
        %v4160 = vld [vmem:[#allocation12 + $0x16d0] sm:$0xff]
        %v4161 = vld [vmem:[#allocation12 + $0x16d8] sm:$0xff]
        %v4162 = vld [vmem:[#allocation12 + $0x16e0] sm:$0xff]
        %v4163 = vld [vmem:[#allocation12 + $0x16e8] sm:$0xff]
        %v4164 = vld [vmem:[#allocation12 + $0x16f0] sm:$0xff]
        %v4165 = vld [vmem:[#allocation12 + $0x16f8] sm:$0xff]
        %v4166 = vld [vmem:[#allocation12 + $0x1700] sm:$0xff]
        %v4167 = vld [vmem:[#allocation12 + $0x1708] sm:$0xff]
        %v4168 = vld [vmem:[#allocation12 + $0x1710] sm:$0xff]
        %v4169 = vld [vmem:[#allocation12 + $0x1718] sm:$0xff]
        %v4170 = vld [vmem:[#allocation12 + $0x1720] sm:$0xff]
        %v4171 = vld [vmem:[#allocation12 + $0x1728] sm:$0xff]
        %v4172 = vld [vmem:[#allocation12 + $0x1730] sm:$0xff]
        %v4173 = vld [vmem:[#allocation12 + $0x1738] sm:$0xff]
        %v4174 = vld [vmem:[#allocation12 + $0x1740] sm:$0xff]
        %v4175 = vld [vmem:[#allocation12 + $0x1748] sm:$0xff]
        %v4176 = vld [vmem:[#allocation12 + $0x1750] sm:$0xff]
        %v4177 = vld [vmem:[#allocation12 + $0x1758] sm:$0xff]
        %v4178 = vld [vmem:[#allocation12 + $0x1760] sm:$0xff]
        %v4179 = vld [vmem:[#allocation12 + $0x1768] sm:$0xff]
        %v4180 = vld [vmem:[#allocation12 + $0x1770] sm:$0xff]
        %v4181 = vld [vmem:[#allocation12 + $0x1778] sm:$0xff]
        %v4182 = vld [vmem:[#allocation12 + $0x1780] sm:$0xff]
        %v4183 = vld [vmem:[#allocation12 + $0x1788] sm:$0xff]
        %v4184 = vld [vmem:[#allocation12 + $0x1790] sm:$0xff]
        %v4185 = vld [vmem:[#allocation12 + $0x1798] sm:$0xff]
        %v4186 = vld [vmem:[#allocation12 + $0x17a0] sm:$0xff]
        %v4187 = vld [vmem:[#allocation12 + $0x17a8] sm:$0xff]
        %v4188 = vld [vmem:[#allocation12 + $0x17b0] sm:$0xff]
        %v4189 = vld [vmem:[#allocation12 + $0x17b8] sm:$0xff]
        %v4190 = vld [vmem:[#allocation12 + $0x17c0] sm:$0xff]
        %v4191 = vld [vmem:[#allocation12 + $0x17c8] sm:$0xff]
        %v4192 = vld [vmem:[#allocation12 + $0x17d0] sm:$0xff]
        %v4193 = vld [vmem:[#allocation12 + $0x17d8] sm:$0xff]
        %v4194 = vld [vmem:[#allocation12 + $0x17e0] sm:$0xff]
        %v4195 = vld [vmem:[#allocation12 + $0x17e8] sm:$0xff]
        %v4196 = vld [vmem:[#allocation12 + $0x17f0] sm:$0xff]
        %v4197 = vld [vmem:[#allocation12 + $0x17f8] sm:$0xff]
        %v4198 = vld [vmem:[#allocation12 + $0x1800] sm:$0xff]
        %v4199 = vld [vmem:[#allocation12 + $0x1808] sm:$0xff]
        %v4200 = vld [vmem:[#allocation12 + $0x1810] sm:$0xff]
        %v4201 = vld [vmem:[#allocation12 + $0x1818] sm:$0xff]
        %v4202 = vld [vmem:[#allocation12 + $0x1820] sm:$0xff]
        %v4203 = vld [vmem:[#allocation12 + $0x1828] sm:$0xff]
        %v4204 = vld [vmem:[#allocation12 + $0x1830] sm:$0xff]
        %v4205 = vld [vmem:[#allocation12 + $0x1838] sm:$0xff]
        %v4206 = vld [vmem:[#allocation12 + $0x1840] sm:$0xff]
        %v4207 = vld [vmem:[#allocation12 + $0x1848] sm:$0xff]
        %v4208 = vld [vmem:[#allocation12 + $0x1850] sm:$0xff]
        %v4209 = vld [vmem:[#allocation12 + $0x1858] sm:$0xff]
        %v4210 = vld [vmem:[#allocation12 + $0x1860] sm:$0xff]
        %v4211 = vld [vmem:[#allocation12 + $0x1868] sm:$0xff]
        %v4212 = vld [vmem:[#allocation12 + $0x1870] sm:$0xff]
        %v4213 = vld [vmem:[#allocation12 + $0x1878] sm:$0xff]
        %v4214 = vld [vmem:[#allocation12 + $0x1880] sm:$0xff]
        %v4215 = vld [vmem:[#allocation12 + $0x1888] sm:$0xff]
        %v4216 = vld [vmem:[#allocation12 + $0x1890] sm:$0xff]
        %v4217 = vld [vmem:[#allocation12 + $0x1898] sm:$0xff]
        %v4218 = vld [vmem:[#allocation12 + $0x18a0] sm:$0xff]
        %v4219 = vld [vmem:[#allocation12 + $0x18a8] sm:$0xff]
        %v4220 = vld [vmem:[#allocation12 + $0x18b0] sm:$0xff]
        %v4221 = vld [vmem:[#allocation12 + $0x18b8] sm:$0xff]
        %v4222 = vld [vmem:[#allocation12 + $0x18c0] sm:$0xff]
        %v4223 = vld [vmem:[#allocation12 + $0x18c8] sm:$0xff]
        %v4224 = vld [vmem:[#allocation12 + $0x18d0] sm:$0xff]
        %v4225 = vld [vmem:[#allocation12 + $0x18d8] sm:$0xff]
        %v4226 = vld [vmem:[#allocation12 + $0x18e0] sm:$0xff]
        %v4227 = vld [vmem:[#allocation12 + $0x18e8] sm:$0xff]
        %v4228 = vld [vmem:[#allocation12 + $0x18f0] sm:$0xff]
        %v4229 = vld [vmem:[#allocation12 + $0x18f8] sm:$0xff]
        %v4230 = vld [vmem:[#allocation13] sm:$0xf]
        %v5031 = vunpack.c.l.b16 %v3430
        %v5032 = vunpack.c.h.b16 %v3430
        %v5033 = vunpack.c.l.b16 %v3431
        %v5034 = vunpack.c.h.b16 %v3431
        %v5035 = vunpack.c.l.b16 %v3432
        %v5036 = vunpack.c.h.b16 %v3432
        %v5037 = vunpack.c.l.b16 %v3433
        %v5038 = vunpack.c.h.b16 %v3433
        %v5039 = vunpack.c.l.b16 %v3434
        %v5040 = vunpack.c.h.b16 %v3434
        %v5041 = vunpack.c.l.b16 %v3435
        %v5042 = vunpack.c.h.b16 %v3435
        %v5043 = vunpack.c.l.b16 %v3436
        %v5044 = vunpack.c.h.b16 %v3436
        %v5045 = vunpack.c.l.b16 %v3437
        %v5046 = vunpack.c.h.b16 %v3437
        %v5047 = vunpack.c.l.b16 %v3438
        %v5048 = vunpack.c.h.b16 %v3438
        %v5049 = vunpack.c.l.b16 %v3439
        %v5050 = vunpack.c.h.b16 %v3439
        %v5051 = vunpack.c.l.b16 %v3440
        %v5052 = vunpack.c.h.b16 %v3440
        %v5053 = vunpack.c.l.b16 %v3441
        %v5054 = vunpack.c.h.b16 %v3441
        %v5055 = vunpack.c.l.b16 %v3442
        %v5056 = vunpack.c.h.b16 %v3442
        %v5057 = vunpack.c.l.b16 %v3443
        %v5058 = vunpack.c.h.b16 %v3443
        %v5059 = vunpack.c.l.b16 %v3444
        %v5060 = vunpack.c.h.b16 %v3444
        %v5061 = vunpack.c.l.b16 %v3445
        %v5062 = vunpack.c.h.b16 %v3445
        %v5063 = vunpack.c.l.b16 %v3446
        %v5064 = vunpack.c.h.b16 %v3446
        %v5065 = vunpack.c.l.b16 %v3447
        %v5066 = vunpack.c.h.b16 %v3447
        %v5067 = vunpack.c.l.b16 %v3448
        %v5068 = vunpack.c.h.b16 %v3448
        %v5069 = vunpack.c.l.b16 %v3449
        %v5070 = vunpack.c.h.b16 %v3449
        %v5071 = vunpack.c.l.b16 %v3450
        %v5072 = vunpack.c.h.b16 %v3450
        %v5073 = vunpack.c.l.b16 %v3451
        %v5074 = vunpack.c.h.b16 %v3451
        %v5075 = vunpack.c.l.b16 %v3452
        %v5076 = vunpack.c.h.b16 %v3452
        %v5077 = vunpack.c.l.b16 %v3453
        %v5078 = vunpack.c.h.b16 %v3453
        %v5079 = vunpack.c.l.b16 %v3454
        %v5080 = vunpack.c.h.b16 %v3454
        %v5081 = vunpack.c.l.b16 %v3455
        %v5082 = vunpack.c.h.b16 %v3455
        %v5083 = vunpack.c.l.b16 %v3456
        %v5084 = vunpack.c.h.b16 %v3456
        %v5085 = vunpack.c.l.b16 %v3457
        %v5086 = vunpack.c.h.b16 %v3457
        %v5087 = vunpack.c.l.b16 %v3458
        %v5088 = vunpack.c.h.b16 %v3458
        %v5089 = vunpack.c.l.b16 %v3459
        %v5090 = vunpack.c.h.b16 %v3459
        %v5091 = vunpack.c.l.b16 %v3460
        %v5092 = vunpack.c.h.b16 %v3460
        %v5093 = vunpack.c.l.b16 %v3461
        %v5094 = vunpack.c.h.b16 %v3461
        %v5095 = vunpack.c.l.b16 %v3462
        %v5096 = vunpack.c.h.b16 %v3462
        %v5097 = vunpack.c.l.b16 %v3463
        %v5098 = vunpack.c.h.b16 %v3463
        %v5099 = vunpack.c.l.b16 %v3464
        %v5100 = vunpack.c.h.b16 %v3464
        %v5101 = vunpack.c.l.b16 %v3465
        %v5102 = vunpack.c.h.b16 %v3465
        %v5103 = vunpack.c.l.b16 %v3466
        %v5104 = vunpack.c.h.b16 %v3466
        %v5105 = vunpack.c.l.b16 %v3467
        %v5106 = vunpack.c.h.b16 %v3467
        %v5107 = vunpack.c.l.b16 %v3468
        %v5108 = vunpack.c.h.b16 %v3468
        %v5109 = vunpack.c.l.b16 %v3469
        %v5110 = vunpack.c.h.b16 %v3469
        %v5111 = vunpack.c.l.b16 %v3470
        %v5112 = vunpack.c.h.b16 %v3470
        %v5113 = vunpack.c.l.b16 %v3471
        %v5114 = vunpack.c.h.b16 %v3471
        %v5115 = vunpack.c.l.b16 %v3472
        %v5116 = vunpack.c.h.b16 %v3472
        %v5117 = vunpack.c.l.b16 %v3473
        %v5118 = vunpack.c.h.b16 %v3473
        %v5119 = vunpack.c.l.b16 %v3474
        %v5120 = vunpack.c.h.b16 %v3474
        %v5121 = vunpack.c.l.b16 %v3475
        %v5122 = vunpack.c.h.b16 %v3475
        %v5123 = vunpack.c.l.b16 %v3476
        %v5124 = vunpack.c.h.b16 %v3476
        %v5125 = vunpack.c.l.b16 %v3477
        %v5126 = vunpack.c.h.b16 %v3477
        %v5127 = vunpack.c.l.b16 %v3478
        %v5128 = vunpack.c.h.b16 %v3478
        %v5129 = vunpack.c.l.b16 %v3479
        %v5130 = vunpack.c.h.b16 %v3479
        %v5131 = vunpack.c.l.b16 %v3480
        %v5132 = vunpack.c.h.b16 %v3480
        %v5133 = vunpack.c.l.b16 %v3481
        %v5134 = vunpack.c.h.b16 %v3481
        %v5135 = vunpack.c.l.b16 %v3482
        %v5136 = vunpack.c.h.b16 %v3482
        %v5137 = vunpack.c.l.b16 %v3483
        %v5138 = vunpack.c.h.b16 %v3483
        %v5139 = vunpack.c.l.b16 %v3484
        %v5140 = vunpack.c.h.b16 %v3484
        %v5141 = vunpack.c.l.b16 %v3485
        %v5142 = vunpack.c.h.b16 %v3485
        %v5143 = vunpack.c.l.b16 %v3486
        %v5144 = vunpack.c.h.b16 %v3486
        %v5145 = vunpack.c.l.b16 %v3487
        %v5146 = vunpack.c.h.b16 %v3487
        %v5147 = vunpack.c.l.b16 %v3488
        %v5148 = vunpack.c.h.b16 %v3488
        %v5149 = vunpack.c.l.b16 %v3489
        %v5150 = vunpack.c.h.b16 %v3489
        %v5151 = vunpack.c.l.b16 %v3490
        %v5152 = vunpack.c.h.b16 %v3490
        %v5153 = vunpack.c.l.b16 %v3491
        %v5154 = vunpack.c.h.b16 %v3491
        %v5155 = vunpack.c.l.b16 %v3492
        %v5156 = vunpack.c.h.b16 %v3492
        %v5157 = vunpack.c.l.b16 %v3493
        %v5158 = vunpack.c.h.b16 %v3493
        %v5159 = vunpack.c.l.b16 %v3494
        %v5160 = vunpack.c.h.b16 %v3494
        %v5161 = vunpack.c.l.b16 %v3495
        %v5162 = vunpack.c.h.b16 %v3495
        %v5163 = vunpack.c.l.b16 %v3496
        %v5164 = vunpack.c.h.b16 %v3496
        %v5165 = vunpack.c.l.b16 %v3497
        %v5166 = vunpack.c.h.b16 %v3497
        %v5167 = vunpack.c.l.b16 %v3498
        %v5168 = vunpack.c.h.b16 %v3498
        %v5169 = vunpack.c.l.b16 %v3499
        %v5170 = vunpack.c.h.b16 %v3499
        %v5171 = vunpack.c.l.b16 %v3500
        %v5172 = vunpack.c.h.b16 %v3500
        %v5173 = vunpack.c.l.b16 %v3501
        %v5174 = vunpack.c.h.b16 %v3501
        %v5175 = vunpack.c.l.b16 %v3502
        %v5176 = vunpack.c.h.b16 %v3502
        %v5177 = vunpack.c.l.b16 %v3503
        %v5178 = vunpack.c.h.b16 %v3503
        %v5179 = vunpack.c.l.b16 %v3504
        %v5180 = vunpack.c.h.b16 %v3504
        %v5181 = vunpack.c.l.b16 %v3505
        %v5182 = vunpack.c.h.b16 %v3505
        %v5183 = vunpack.c.l.b16 %v3506
        %v5184 = vunpack.c.h.b16 %v3506
        %v5185 = vunpack.c.l.b16 %v3507
        %v5186 = vunpack.c.h.b16 %v3507
        %v5187 = vunpack.c.l.b16 %v3508
        %v5188 = vunpack.c.h.b16 %v3508
        %v5189 = vunpack.c.l.b16 %v3509
        %v5190 = vunpack.c.h.b16 %v3509
        %v5191 = vunpack.c.l.b16 %v3510
        %v5192 = vunpack.c.h.b16 %v3510
        %v5193 = vunpack.c.l.b16 %v3511
        %v5194 = vunpack.c.h.b16 %v3511
        %v5195 = vunpack.c.l.b16 %v3512
        %v5196 = vunpack.c.h.b16 %v3512
        %v5197 = vunpack.c.l.b16 %v3513
        %v5198 = vunpack.c.h.b16 %v3513
        %v5199 = vunpack.c.l.b16 %v3514
        %v5200 = vunpack.c.h.b16 %v3514
        %v5201 = vunpack.c.l.b16 %v3515
        %v5202 = vunpack.c.h.b16 %v3515
        %v5203 = vunpack.c.l.b16 %v3516
        %v5204 = vunpack.c.h.b16 %v3516
        %v5205 = vunpack.c.l.b16 %v3517
        %v5206 = vunpack.c.h.b16 %v3517
        %v5207 = vunpack.c.l.b16 %v3518
        %v5208 = vunpack.c.h.b16 %v3518
        %v5209 = vunpack.c.l.b16 %v3519
        %v5210 = vunpack.c.h.b16 %v3519
        %v5211 = vunpack.c.l.b16 %v3520
        %v5212 = vunpack.c.h.b16 %v3520
        %v5213 = vunpack.c.l.b16 %v3521
        %v5214 = vunpack.c.h.b16 %v3521
        %v5215 = vunpack.c.l.b16 %v3522
        %v5216 = vunpack.c.h.b16 %v3522
        %v5217 = vunpack.c.l.b16 %v3523
        %v5218 = vunpack.c.h.b16 %v3523
        %v5219 = vunpack.c.l.b16 %v3524
        %v5220 = vunpack.c.h.b16 %v3524
        %v5221 = vunpack.c.l.b16 %v3525
        %v5222 = vunpack.c.h.b16 %v3525
        %v5223 = vunpack.c.l.b16 %v3526
        %v5224 = vunpack.c.h.b16 %v3526
        %v5225 = vunpack.c.l.b16 %v3527
        %v5226 = vunpack.c.h.b16 %v3527
        %v5227 = vunpack.c.l.b16 %v3528
        %v5228 = vunpack.c.h.b16 %v3528
        %v5229 = vunpack.c.l.b16 %v3529
        %v5230 = vunpack.c.h.b16 %v3529
        %v5231 = vunpack.c.l.b16 %v3530
        %v5232 = vunpack.c.h.b16 %v3530
        %v5233 = vunpack.c.l.b16 %v3531
        %v5234 = vunpack.c.h.b16 %v3531
        %v5235 = vunpack.c.l.b16 %v3532
        %v5236 = vunpack.c.h.b16 %v3532
        %v5237 = vunpack.c.l.b16 %v3533
        %v5238 = vunpack.c.h.b16 %v3533
        %v5239 = vunpack.c.l.b16 %v3534
        %v5240 = vunpack.c.h.b16 %v3534
        %v5241 = vunpack.c.l.b16 %v3535
        %v5242 = vunpack.c.h.b16 %v3535
        %v5243 = vunpack.c.l.b16 %v3536
        %v5244 = vunpack.c.h.b16 %v3536
        %v5245 = vunpack.c.l.b16 %v3537
        %v5246 = vunpack.c.h.b16 %v3537
        %v5247 = vunpack.c.l.b16 %v3538
        %v5248 = vunpack.c.h.b16 %v3538
        %v5249 = vunpack.c.l.b16 %v3539
        %v5250 = vunpack.c.h.b16 %v3539
        %v5251 = vunpack.c.l.b16 %v3540
        %v5252 = vunpack.c.h.b16 %v3540
        %v5253 = vunpack.c.l.b16 %v3541
        %v5254 = vunpack.c.h.b16 %v3541
        %v5255 = vunpack.c.l.b16 %v3542
        %v5256 = vunpack.c.h.b16 %v3542
        %v5257 = vunpack.c.l.b16 %v3543
        %v5258 = vunpack.c.h.b16 %v3543
        %v5259 = vunpack.c.l.b16 %v3544
        %v5260 = vunpack.c.h.b16 %v3544
        %v5261 = vunpack.c.l.b16 %v3545
        %v5262 = vunpack.c.h.b16 %v3545
        %v5263 = vunpack.c.l.b16 %v3546
        %v5264 = vunpack.c.h.b16 %v3546
        %v5265 = vunpack.c.l.b16 %v3547
        %v5266 = vunpack.c.h.b16 %v3547
        %v5267 = vunpack.c.l.b16 %v3548
        %v5268 = vunpack.c.h.b16 %v3548
        %v5269 = vunpack.c.l.b16 %v3549
        %v5270 = vunpack.c.h.b16 %v3549
        %v5271 = vunpack.c.l.b16 %v3550
        %v5272 = vunpack.c.h.b16 %v3550
        %v5273 = vunpack.c.l.b16 %v3551
        %v5274 = vunpack.c.h.b16 %v3551
        %v5275 = vunpack.c.l.b16 %v3552
        %v5276 = vunpack.c.h.b16 %v3552
        %v5277 = vunpack.c.l.b16 %v3553
        %v5278 = vunpack.c.h.b16 %v3553
        %v5279 = vunpack.c.l.b16 %v3554
        %v5280 = vunpack.c.h.b16 %v3554
        %v5281 = vunpack.c.l.b16 %v3555
        %v5282 = vunpack.c.h.b16 %v3555
        %v5283 = vunpack.c.l.b16 %v3556
        %v5284 = vunpack.c.h.b16 %v3556
        %v5285 = vunpack.c.l.b16 %v3557
        %v5286 = vunpack.c.h.b16 %v3557
        %v5287 = vunpack.c.l.b16 %v3558
        %v5288 = vunpack.c.h.b16 %v3558
        %v5289 = vunpack.c.l.b16 %v3559
        %v5290 = vunpack.c.h.b16 %v3559
        %v5291 = vunpack.c.l.b16 %v3560
        %v5292 = vunpack.c.h.b16 %v3560
        %v5293 = vunpack.c.l.b16 %v3561
        %v5294 = vunpack.c.h.b16 %v3561
        %v5295 = vunpack.c.l.b16 %v3562
        %v5296 = vunpack.c.h.b16 %v3562
        %v5297 = vunpack.c.l.b16 %v3563
        %v5298 = vunpack.c.h.b16 %v3563
        %v5299 = vunpack.c.l.b16 %v3564
        %v5300 = vunpack.c.h.b16 %v3564
        %v5301 = vunpack.c.l.b16 %v3565
        %v5302 = vunpack.c.h.b16 %v3565
        %v5303 = vunpack.c.l.b16 %v3566
        %v5304 = vunpack.c.h.b16 %v3566
        %v5305 = vunpack.c.l.b16 %v3567
        %v5306 = vunpack.c.h.b16 %v3567
        %v5307 = vunpack.c.l.b16 %v3568
        %v5308 = vunpack.c.h.b16 %v3568
        %v5309 = vunpack.c.l.b16 %v3569
        %v5310 = vunpack.c.h.b16 %v3569
        %v5311 = vunpack.c.l.b16 %v3570
        %v5312 = vunpack.c.h.b16 %v3570
        %v5313 = vunpack.c.l.b16 %v3571
        %v5314 = vunpack.c.h.b16 %v3571
        %v5315 = vunpack.c.l.b16 %v3572
        %v5316 = vunpack.c.h.b16 %v3572
        %v5317 = vunpack.c.l.b16 %v3573
        %v5318 = vunpack.c.h.b16 %v3573
        %v5319 = vunpack.c.l.b16 %v3574
        %v5320 = vunpack.c.h.b16 %v3574
        %v5321 = vunpack.c.l.b16 %v3575
        %v5322 = vunpack.c.h.b16 %v3575
        %v5323 = vunpack.c.l.b16 %v3576
        %v5324 = vunpack.c.h.b16 %v3576
        %v5325 = vunpack.c.l.b16 %v3577
        %v5326 = vunpack.c.h.b16 %v3577
        %v5327 = vunpack.c.l.b16 %v3578
        %v5328 = vunpack.c.h.b16 %v3578
        %v5329 = vunpack.c.l.b16 %v3579
        %v5330 = vunpack.c.h.b16 %v3579
        %v5331 = vunpack.c.l.b16 %v3580
        %v5332 = vunpack.c.h.b16 %v3580
        %v5333 = vunpack.c.l.b16 %v3581
        %v5334 = vunpack.c.h.b16 %v3581
        %v5335 = vunpack.c.l.b16 %v3582
        %v5336 = vunpack.c.h.b16 %v3582
        %v5337 = vunpack.c.l.b16 %v3583
        %v5338 = vunpack.c.h.b16 %v3583
        %v5339 = vunpack.c.l.b16 %v3584
        %v5340 = vunpack.c.h.b16 %v3584
        %v5341 = vunpack.c.l.b16 %v3585
        %v5342 = vunpack.c.h.b16 %v3585
        %v5343 = vunpack.c.l.b16 %v3586
        %v5344 = vunpack.c.h.b16 %v3586
        %v5345 = vunpack.c.l.b16 %v3587
        %v5346 = vunpack.c.h.b16 %v3587
        %v5347 = vunpack.c.l.b16 %v3588
        %v5348 = vunpack.c.h.b16 %v3588
        %v5349 = vunpack.c.l.b16 %v3589
        %v5350 = vunpack.c.h.b16 %v3589
        %v5351 = vunpack.c.l.b16 %v3590
        %v5352 = vunpack.c.h.b16 %v3590
        %v5353 = vunpack.c.l.b16 %v3591
        %v5354 = vunpack.c.h.b16 %v3591
        %v5355 = vunpack.c.l.b16 %v3592
        %v5356 = vunpack.c.h.b16 %v3592
        %v5357 = vunpack.c.l.b16 %v3593
        %v5358 = vunpack.c.h.b16 %v3593
        %v5359 = vunpack.c.l.b16 %v3594
        %v5360 = vunpack.c.h.b16 %v3594
        %v5361 = vunpack.c.l.b16 %v3595
        %v5362 = vunpack.c.h.b16 %v3595
        %v5363 = vunpack.c.l.b16 %v3596
        %v5364 = vunpack.c.h.b16 %v3596
        %v5365 = vunpack.c.l.b16 %v3597
        %v5366 = vunpack.c.h.b16 %v3597
        %v5367 = vunpack.c.l.b16 %v3598
        %v5368 = vunpack.c.h.b16 %v3598
        %v5369 = vunpack.c.l.b16 %v3599
        %v5370 = vunpack.c.h.b16 %v3599
        %v5371 = vunpack.c.l.b16 %v3600
        %v5372 = vunpack.c.h.b16 %v3600
        %v5373 = vunpack.c.l.b16 %v3601
        %v5374 = vunpack.c.h.b16 %v3601
        %v5375 = vunpack.c.l.b16 %v3602
        %v5376 = vunpack.c.h.b16 %v3602
        %v5377 = vunpack.c.l.b16 %v3603
        %v5378 = vunpack.c.h.b16 %v3603
        %v5379 = vunpack.c.l.b16 %v3604
        %v5380 = vunpack.c.h.b16 %v3604
        %v5381 = vunpack.c.l.b16 %v3605
        %v5382 = vunpack.c.h.b16 %v3605
        %v5383 = vunpack.c.l.b16 %v3606
        %v5384 = vunpack.c.h.b16 %v3606
        %v5385 = vunpack.c.l.b16 %v3607
        %v5386 = vunpack.c.h.b16 %v3607
        %v5387 = vunpack.c.l.b16 %v3608
        %v5388 = vunpack.c.h.b16 %v3608
        %v5389 = vunpack.c.l.b16 %v3609
        %v5390 = vunpack.c.h.b16 %v3609
        %v5391 = vunpack.c.l.b16 %v3610
        %v5392 = vunpack.c.h.b16 %v3610
        %v5393 = vunpack.c.l.b16 %v3611
        %v5394 = vunpack.c.h.b16 %v3611
        %v5395 = vunpack.c.l.b16 %v3612
        %v5396 = vunpack.c.h.b16 %v3612
        %v5397 = vunpack.c.l.b16 %v3613
        %v5398 = vunpack.c.h.b16 %v3613
        %v5399 = vunpack.c.l.b16 %v3614
        %v5400 = vunpack.c.h.b16 %v3614
        %v5401 = vunpack.c.l.b16 %v3615
        %v5402 = vunpack.c.h.b16 %v3615
        %v5403 = vunpack.c.l.b16 %v3616
        %v5404 = vunpack.c.h.b16 %v3616
        %v5405 = vunpack.c.l.b16 %v3617
        %v5406 = vunpack.c.h.b16 %v3617
        %v5407 = vunpack.c.l.b16 %v3618
        %v5408 = vunpack.c.h.b16 %v3618
        %v5409 = vunpack.c.l.b16 %v3619
        %v5410 = vunpack.c.h.b16 %v3619
        %v5411 = vunpack.c.l.b16 %v3620
        %v5412 = vunpack.c.h.b16 %v3620
        %v5413 = vunpack.c.l.b16 %v3621
        %v5414 = vunpack.c.h.b16 %v3621
        %v5415 = vunpack.c.l.b16 %v3622
        %v5416 = vunpack.c.h.b16 %v3622
        %v5417 = vunpack.c.l.b16 %v3623
        %v5418 = vunpack.c.h.b16 %v3623
        %v5419 = vunpack.c.l.b16 %v3624
        %v5420 = vunpack.c.h.b16 %v3624
        %v5421 = vunpack.c.l.b16 %v3625
        %v5422 = vunpack.c.h.b16 %v3625
        %v5423 = vunpack.c.l.b16 %v3626
        %v5424 = vunpack.c.h.b16 %v3626
        %v5425 = vunpack.c.l.b16 %v3627
        %v5426 = vunpack.c.h.b16 %v3627
        %v5427 = vunpack.c.l.b16 %v3628
        %v5428 = vunpack.c.h.b16 %v3628
        %v5429 = vunpack.c.l.b16 %v3629
        %v5430 = vunpack.c.h.b16 %v3629
        %v5431 = vunpack.c.l.b16 %v3630
        %v5432 = vunpack.c.h.b16 %v3630
        %v5433 = vunpack.c.l.b16 %v3631
        %v5434 = vunpack.c.h.b16 %v3631
        %v5435 = vunpack.c.l.b16 %v3632
        %v5436 = vunpack.c.h.b16 %v3632
        %v5437 = vunpack.c.l.b16 %v3633
        %v5438 = vunpack.c.h.b16 %v3633
        %v5439 = vunpack.c.l.b16 %v3634
        %v5440 = vunpack.c.h.b16 %v3634
        %v5441 = vunpack.c.l.b16 %v3635
        %v5442 = vunpack.c.h.b16 %v3635
        %v5443 = vunpack.c.l.b16 %v3636
        %v5444 = vunpack.c.h.b16 %v3636
        %v5445 = vunpack.c.l.b16 %v3637
        %v5446 = vunpack.c.h.b16 %v3637
        %v5447 = vunpack.c.l.b16 %v3638
        %v5448 = vunpack.c.h.b16 %v3638
        %v5449 = vunpack.c.l.b16 %v3639
        %v5450 = vunpack.c.h.b16 %v3639
        %v5451 = vunpack.c.l.b16 %v3640
        %v5452 = vunpack.c.h.b16 %v3640
        %v5453 = vunpack.c.l.b16 %v3641
        %v5454 = vunpack.c.h.b16 %v3641
        %v5455 = vunpack.c.l.b16 %v3642
        %v5456 = vunpack.c.h.b16 %v3642
        %v5457 = vunpack.c.l.b16 %v3643
        %v5458 = vunpack.c.h.b16 %v3643
        %v5459 = vunpack.c.l.b16 %v3644
        %v5460 = vunpack.c.h.b16 %v3644
        %v5461 = vunpack.c.l.b16 %v3645
        %v5462 = vunpack.c.h.b16 %v3645
        %v5463 = vunpack.c.l.b16 %v3646
        %v5464 = vunpack.c.h.b16 %v3646
        %v5465 = vunpack.c.l.b16 %v3647
        %v5466 = vunpack.c.h.b16 %v3647
        %v5467 = vunpack.c.l.b16 %v3648
        %v5468 = vunpack.c.h.b16 %v3648
        %v5469 = vunpack.c.l.b16 %v3649
        %v5470 = vunpack.c.h.b16 %v3649
        %v5471 = vunpack.c.l.b16 %v3650
        %v5472 = vunpack.c.h.b16 %v3650
        %v5473 = vunpack.c.l.b16 %v3651
        %v5474 = vunpack.c.h.b16 %v3651
        %v5475 = vunpack.c.l.b16 %v3652
        %v5476 = vunpack.c.h.b16 %v3652
        %v5477 = vunpack.c.l.b16 %v3653
        %v5478 = vunpack.c.h.b16 %v3653
        %v5479 = vunpack.c.l.b16 %v3654
        %v5480 = vunpack.c.h.b16 %v3654
        %v5481 = vunpack.c.l.b16 %v3655
        %v5482 = vunpack.c.h.b16 %v3655
        %v5483 = vunpack.c.l.b16 %v3656
        %v5484 = vunpack.c.h.b16 %v3656
        %v5485 = vunpack.c.l.b16 %v3657
        %v5486 = vunpack.c.h.b16 %v3657
        %v5487 = vunpack.c.l.b16 %v3658
        %v5488 = vunpack.c.h.b16 %v3658
        %v5489 = vunpack.c.l.b16 %v3659
        %v5490 = vunpack.c.h.b16 %v3659
        %v5491 = vunpack.c.l.b16 %v3660
        %v5492 = vunpack.c.h.b16 %v3660
        %v5493 = vunpack.c.l.b16 %v3661
        %v5494 = vunpack.c.h.b16 %v3661
        %v5495 = vunpack.c.l.b16 %v3662
        %v5496 = vunpack.c.h.b16 %v3662
        %v5497 = vunpack.c.l.b16 %v3663
        %v5498 = vunpack.c.h.b16 %v3663
        %v5499 = vunpack.c.l.b16 %v3664
        %v5500 = vunpack.c.h.b16 %v3664
        %v5501 = vunpack.c.l.b16 %v3665
        %v5502 = vunpack.c.h.b16 %v3665
        %v5503 = vunpack.c.l.b16 %v3666
        %v5504 = vunpack.c.h.b16 %v3666
        %v5505 = vunpack.c.l.b16 %v3667
        %v5506 = vunpack.c.h.b16 %v3667
        %v5507 = vunpack.c.l.b16 %v3668
        %v5508 = vunpack.c.h.b16 %v3668
        %v5509 = vunpack.c.l.b16 %v3669
        %v5510 = vunpack.c.h.b16 %v3669
        %v5511 = vunpack.c.l.b16 %v3670
        %v5512 = vunpack.c.h.b16 %v3670
        %v5513 = vunpack.c.l.b16 %v3671
        %v5514 = vunpack.c.h.b16 %v3671
        %v5515 = vunpack.c.l.b16 %v3672
        %v5516 = vunpack.c.h.b16 %v3672
        %v5517 = vunpack.c.l.b16 %v3673
        %v5518 = vunpack.c.h.b16 %v3673
        %v5519 = vunpack.c.l.b16 %v3674
        %v5520 = vunpack.c.h.b16 %v3674
        %v5521 = vunpack.c.l.b16 %v3675
        %v5522 = vunpack.c.h.b16 %v3675
        %v5523 = vunpack.c.l.b16 %v3676
        %v5524 = vunpack.c.h.b16 %v3676
        %v5525 = vunpack.c.l.b16 %v3677
        %v5526 = vunpack.c.h.b16 %v3677
        %v5527 = vunpack.c.l.b16 %v3678
        %v5528 = vunpack.c.h.b16 %v3678
        %v5529 = vunpack.c.l.b16 %v3679
        %v5530 = vunpack.c.h.b16 %v3679
        %v5531 = vunpack.c.l.b16 %v3680
        %v5532 = vunpack.c.h.b16 %v3680
        %v5533 = vunpack.c.l.b16 %v3681
        %v5534 = vunpack.c.h.b16 %v3681
        %v5535 = vunpack.c.l.b16 %v3682
        %v5536 = vunpack.c.h.b16 %v3682
        %v5537 = vunpack.c.l.b16 %v3683
        %v5538 = vunpack.c.h.b16 %v3683
        %v5539 = vunpack.c.l.b16 %v3684
        %v5540 = vunpack.c.h.b16 %v3684
        %v5541 = vunpack.c.l.b16 %v3685
        %v5542 = vunpack.c.h.b16 %v3685
        %v5543 = vunpack.c.l.b16 %v3686
        %v5544 = vunpack.c.h.b16 %v3686
        %v5545 = vunpack.c.l.b16 %v3687
        %v5546 = vunpack.c.h.b16 %v3687
        %v5547 = vunpack.c.l.b16 %v3688
        %v5548 = vunpack.c.h.b16 %v3688
        %v5549 = vunpack.c.l.b16 %v3689
        %v5550 = vunpack.c.h.b16 %v3689
        %v5551 = vunpack.c.l.b16 %v3690
        %v5552 = vunpack.c.h.b16 %v3690
        %v5553 = vunpack.c.l.b16 %v3691
        %v5554 = vunpack.c.h.b16 %v3691
        %v5555 = vunpack.c.l.b16 %v3692
        %v5556 = vunpack.c.h.b16 %v3692
        %v5557 = vunpack.c.l.b16 %v3693
        %v5558 = vunpack.c.h.b16 %v3693
        %v5559 = vunpack.c.l.b16 %v3694
        %v5560 = vunpack.c.h.b16 %v3694
        %v5561 = vunpack.c.l.b16 %v3695
        %v5562 = vunpack.c.h.b16 %v3695
        %v5563 = vunpack.c.l.b16 %v3696
        %v5564 = vunpack.c.h.b16 %v3696
        %v5565 = vunpack.c.l.b16 %v3697
        %v5566 = vunpack.c.h.b16 %v3697
        %v5567 = vunpack.c.l.b16 %v3698
        %v5568 = vunpack.c.h.b16 %v3698
        %v5569 = vunpack.c.l.b16 %v3699
        %v5570 = vunpack.c.h.b16 %v3699
        %v5571 = vunpack.c.l.b16 %v3700
        %v5572 = vunpack.c.h.b16 %v3700
        %v5573 = vunpack.c.l.b16 %v3701
        %v5574 = vunpack.c.h.b16 %v3701
        %v5575 = vunpack.c.l.b16 %v3702
        %v5576 = vunpack.c.h.b16 %v3702
        %v5577 = vunpack.c.l.b16 %v3703
        %v5578 = vunpack.c.h.b16 %v3703
        %v5579 = vunpack.c.l.b16 %v3704
        %v5580 = vunpack.c.h.b16 %v3704
        %v5581 = vunpack.c.l.b16 %v3705
        %v5582 = vunpack.c.h.b16 %v3705
        %v5583 = vunpack.c.l.b16 %v3706
        %v5584 = vunpack.c.h.b16 %v3706
        %v5585 = vunpack.c.l.b16 %v3707
        %v5586 = vunpack.c.h.b16 %v3707
        %v5587 = vunpack.c.l.b16 %v3708
        %v5588 = vunpack.c.h.b16 %v3708
        %v5589 = vunpack.c.l.b16 %v3709
        %v5590 = vunpack.c.h.b16 %v3709
        %v5591 = vunpack.c.l.b16 %v3710
        %v5592 = vunpack.c.h.b16 %v3710
        %v5593 = vunpack.c.l.b16 %v3711
        %v5594 = vunpack.c.h.b16 %v3711
        %v5595 = vunpack.c.l.b16 %v3712
        %v5596 = vunpack.c.h.b16 %v3712
        %v5597 = vunpack.c.l.b16 %v3713
        %v5598 = vunpack.c.h.b16 %v3713
        %v5599 = vunpack.c.l.b16 %v3714
        %v5600 = vunpack.c.h.b16 %v3714
        %v5601 = vunpack.c.l.b16 %v3715
        %v5602 = vunpack.c.h.b16 %v3715
        %v5603 = vunpack.c.l.b16 %v3716
        %v5604 = vunpack.c.h.b16 %v3716
        %v5605 = vunpack.c.l.b16 %v3717
        %v5606 = vunpack.c.h.b16 %v3717
        %v5607 = vunpack.c.l.b16 %v3718
        %v5608 = vunpack.c.h.b16 %v3718
        %v5609 = vunpack.c.l.b16 %v3719
        %v5610 = vunpack.c.h.b16 %v3719
        %v5611 = vunpack.c.l.b16 %v3720
        %v5612 = vunpack.c.h.b16 %v3720
        %v5613 = vunpack.c.l.b16 %v3721
        %v5614 = vunpack.c.h.b16 %v3721
        %v5615 = vunpack.c.l.b16 %v3722
        %v5616 = vunpack.c.h.b16 %v3722
        %v5617 = vunpack.c.l.b16 %v3723
        %v5618 = vunpack.c.h.b16 %v3723
        %v5619 = vunpack.c.l.b16 %v3724
        %v5620 = vunpack.c.h.b16 %v3724
        %v5621 = vunpack.c.l.b16 %v3725
        %v5622 = vunpack.c.h.b16 %v3725
        %v5623 = vunpack.c.l.b16 %v3726
        %v5624 = vunpack.c.h.b16 %v3726
        %v5625 = vunpack.c.l.b16 %v3727
        %v5626 = vunpack.c.h.b16 %v3727
        %v5627 = vunpack.c.l.b16 %v3728
        %v5628 = vunpack.c.h.b16 %v3728
        %v5629 = vunpack.c.l.b16 %v3729
        %v5630 = vunpack.c.h.b16 %v3729
        %v5631 = vunpack.c.l.b16 %v3730
        %v5632 = vunpack.c.h.b16 %v3730
        %v5633 = vunpack.c.l.b16 %v3731
        %v5634 = vunpack.c.h.b16 %v3731
        %v5635 = vunpack.c.l.b16 %v3732
        %v5636 = vunpack.c.h.b16 %v3732
        %v5637 = vunpack.c.l.b16 %v3733
        %v5638 = vunpack.c.h.b16 %v3733
        %v5639 = vunpack.c.l.b16 %v3734
        %v5640 = vunpack.c.h.b16 %v3734
        %v5641 = vunpack.c.l.b16 %v3735
        %v5642 = vunpack.c.h.b16 %v3735
        %v5643 = vunpack.c.l.b16 %v3736
        %v5644 = vunpack.c.h.b16 %v3736
        %v5645 = vunpack.c.l.b16 %v3737
        %v5646 = vunpack.c.h.b16 %v3737
        %v5647 = vunpack.c.l.b16 %v3738
        %v5648 = vunpack.c.h.b16 %v3738
        %v5649 = vunpack.c.l.b16 %v3739
        %v5650 = vunpack.c.h.b16 %v3739
        %v5651 = vunpack.c.l.b16 %v3740
        %v5652 = vunpack.c.h.b16 %v3740
        %v5653 = vunpack.c.l.b16 %v3741
        %v5654 = vunpack.c.h.b16 %v3741
        %v5655 = vunpack.c.l.b16 %v3742
        %v5656 = vunpack.c.h.b16 %v3742
        %v5657 = vunpack.c.l.b16 %v3743
        %v5658 = vunpack.c.h.b16 %v3743
        %v5659 = vunpack.c.l.b16 %v3744
        %v5660 = vunpack.c.h.b16 %v3744
        %v5661 = vunpack.c.l.b16 %v3745
        %v5662 = vunpack.c.h.b16 %v3745
        %v5663 = vunpack.c.l.b16 %v3746
        %v5664 = vunpack.c.h.b16 %v3746
        %v5665 = vunpack.c.l.b16 %v3747
        %v5666 = vunpack.c.h.b16 %v3747
        %v5667 = vunpack.c.l.b16 %v3748
        %v5668 = vunpack.c.h.b16 %v3748
        %v5669 = vunpack.c.l.b16 %v3749
        %v5670 = vunpack.c.h.b16 %v3749
        %v5671 = vunpack.c.l.b16 %v3750
        %v5672 = vunpack.c.h.b16 %v3750
        %v5673 = vunpack.c.l.b16 %v3751
        %v5674 = vunpack.c.h.b16 %v3751
        %v5675 = vunpack.c.l.b16 %v3752
        %v5676 = vunpack.c.h.b16 %v3752
        %v5677 = vunpack.c.l.b16 %v3753
        %v5678 = vunpack.c.h.b16 %v3753
        %v5679 = vunpack.c.l.b16 %v3754
        %v5680 = vunpack.c.h.b16 %v3754
        %v5681 = vunpack.c.l.b16 %v3755
        %v5682 = vunpack.c.h.b16 %v3755
        %v5683 = vunpack.c.l.b16 %v3756
        %v5684 = vunpack.c.h.b16 %v3756
        %v5685 = vunpack.c.l.b16 %v3757
        %v5686 = vunpack.c.h.b16 %v3757
        %v5687 = vunpack.c.l.b16 %v3758
        %v5688 = vunpack.c.h.b16 %v3758
        %v5689 = vunpack.c.l.b16 %v3759
        %v5690 = vunpack.c.h.b16 %v3759
        %v5691 = vunpack.c.l.b16 %v3760
        %v5692 = vunpack.c.h.b16 %v3760
        %v5693 = vunpack.c.l.b16 %v3761
        %v5694 = vunpack.c.h.b16 %v3761
        %v5695 = vunpack.c.l.b16 %v3762
        %v5696 = vunpack.c.h.b16 %v3762
        %v5697 = vunpack.c.l.b16 %v3763
        %v5698 = vunpack.c.h.b16 %v3763
        %v5699 = vunpack.c.l.b16 %v3764
        %v5700 = vunpack.c.h.b16 %v3764
        %v5701 = vunpack.c.l.b16 %v3765
        %v5702 = vunpack.c.h.b16 %v3765
        %v5703 = vunpack.c.l.b16 %v3766
        %v5704 = vunpack.c.h.b16 %v3766
        %v5705 = vunpack.c.l.b16 %v3767
        %v5706 = vunpack.c.h.b16 %v3767
        %v5707 = vunpack.c.l.b16 %v3768
        %v5708 = vunpack.c.h.b16 %v3768
        %v5709 = vunpack.c.l.b16 %v3769
        %v5710 = vunpack.c.h.b16 %v3769
        %v5711 = vunpack.c.l.b16 %v3770
        %v5712 = vunpack.c.h.b16 %v3770
        %v5713 = vunpack.c.l.b16 %v3771
        %v5714 = vunpack.c.h.b16 %v3771
        %v5715 = vunpack.c.l.b16 %v3772
        %v5716 = vunpack.c.h.b16 %v3772
        %v5717 = vunpack.c.l.b16 %v3773
        %v5718 = vunpack.c.h.b16 %v3773
        %v5719 = vunpack.c.l.b16 %v3774
        %v5720 = vunpack.c.h.b16 %v3774
        %v5721 = vunpack.c.l.b16 %v3775
        %v5722 = vunpack.c.h.b16 %v3775
        %v5723 = vunpack.c.l.b16 %v3776
        %v5724 = vunpack.c.h.b16 %v3776
        %v5725 = vunpack.c.l.b16 %v3777
        %v5726 = vunpack.c.h.b16 %v3777
        %v5727 = vunpack.c.l.b16 %v3778
        %v5728 = vunpack.c.h.b16 %v3778
        %v5729 = vunpack.c.l.b16 %v3779
        %v5730 = vunpack.c.h.b16 %v3779
        %v5731 = vunpack.c.l.b16 %v3780
        %v5732 = vunpack.c.h.b16 %v3780
        %v5733 = vunpack.c.l.b16 %v3781
        %v5734 = vunpack.c.h.b16 %v3781
        %v5735 = vunpack.c.l.b16 %v3782
        %v5736 = vunpack.c.h.b16 %v3782
        %v5737 = vunpack.c.l.b16 %v3783
        %v5738 = vunpack.c.h.b16 %v3783
        %v5739 = vunpack.c.l.b16 %v3784
        %v5740 = vunpack.c.h.b16 %v3784
        %v5741 = vunpack.c.l.b16 %v3785
        %v5742 = vunpack.c.h.b16 %v3785
        %v5743 = vunpack.c.l.b16 %v3786
        %v5744 = vunpack.c.h.b16 %v3786
        %v5745 = vunpack.c.l.b16 %v3787
        %v5746 = vunpack.c.h.b16 %v3787
        %v5747 = vunpack.c.l.b16 %v3788
        %v5748 = vunpack.c.h.b16 %v3788
        %v5749 = vunpack.c.l.b16 %v3789
        %v5750 = vunpack.c.h.b16 %v3789
        %v5751 = vunpack.c.l.b16 %v3790
        %v5752 = vunpack.c.h.b16 %v3790
        %v5753 = vunpack.c.l.b16 %v3791
        %v5754 = vunpack.c.h.b16 %v3791
        %v5755 = vunpack.c.l.b16 %v3792
        %v5756 = vunpack.c.h.b16 %v3792
        %v5757 = vunpack.c.l.b16 %v3793
        %v5758 = vunpack.c.h.b16 %v3793
        %v5759 = vunpack.c.l.b16 %v3794
        %v5760 = vunpack.c.h.b16 %v3794
        %v5761 = vunpack.c.l.b16 %v3795
        %v5762 = vunpack.c.h.b16 %v3795
        %v5763 = vunpack.c.l.b16 %v3796
        %v5764 = vunpack.c.h.b16 %v3796
        %v5765 = vunpack.c.l.b16 %v3797
        %v5766 = vunpack.c.h.b16 %v3797
        %v5767 = vunpack.c.l.b16 %v3798
        %v5768 = vunpack.c.h.b16 %v3798
        %v5769 = vunpack.c.l.b16 %v3799
        %v5770 = vunpack.c.h.b16 %v3799
        %v5771 = vunpack.c.l.b16 %v3800
        %v5772 = vunpack.c.h.b16 %v3800
        %v5773 = vunpack.c.l.b16 %v3801
        %v5774 = vunpack.c.h.b16 %v3801
        %v5775 = vunpack.c.l.b16 %v3802
        %v5776 = vunpack.c.h.b16 %v3802
        %v5777 = vunpack.c.l.b16 %v3803
        %v5778 = vunpack.c.h.b16 %v3803
        %v5779 = vunpack.c.l.b16 %v3804
        %v5780 = vunpack.c.h.b16 %v3804
        %v5781 = vunpack.c.l.b16 %v3805
        %v5782 = vunpack.c.h.b16 %v3805
        %v5783 = vunpack.c.l.b16 %v3806
        %v5784 = vunpack.c.h.b16 %v3806
        %v5785 = vunpack.c.l.b16 %v3807
        %v5786 = vunpack.c.h.b16 %v3807
        %v5787 = vunpack.c.l.b16 %v3808
        %v5788 = vunpack.c.h.b16 %v3808
        %v5789 = vunpack.c.l.b16 %v3809
        %v5790 = vunpack.c.h.b16 %v3809
        %v5791 = vunpack.c.l.b16 %v3810
        %v5792 = vunpack.c.h.b16 %v3810
        %v5793 = vunpack.c.l.b16 %v3811
        %v5794 = vunpack.c.h.b16 %v3811
        %v5795 = vunpack.c.l.b16 %v3812
        %v5796 = vunpack.c.h.b16 %v3812
        %v5797 = vunpack.c.l.b16 %v3813
        %v5798 = vunpack.c.h.b16 %v3813
        %v5799 = vunpack.c.l.b16 %v3814
        %v5800 = vunpack.c.h.b16 %v3814
        %v5801 = vunpack.c.l.b16 %v3815
        %v5802 = vunpack.c.h.b16 %v3815
        %v5803 = vunpack.c.l.b16 %v3816
        %v5804 = vunpack.c.h.b16 %v3816
        %v5805 = vunpack.c.l.b16 %v3817
        %v5806 = vunpack.c.h.b16 %v3817
        %v5807 = vunpack.c.l.b16 %v3818
        %v5808 = vunpack.c.h.b16 %v3818
        %v5809 = vunpack.c.l.b16 %v3819
        %v5810 = vunpack.c.h.b16 %v3819
        %v5811 = vunpack.c.l.b16 %v3820
        %v5812 = vunpack.c.h.b16 %v3820
        %v5813 = vunpack.c.l.b16 %v3821
        %v5814 = vunpack.c.h.b16 %v3821
        %v5815 = vunpack.c.l.b16 %v3822
        %v5816 = vunpack.c.h.b16 %v3822
        %v5817 = vunpack.c.l.b16 %v3823
        %v5818 = vunpack.c.h.b16 %v3823
        %v5819 = vunpack.c.l.b16 %v3824
        %v5820 = vunpack.c.h.b16 %v3824
        %v5821 = vunpack.c.l.b16 %v3825
        %v5822 = vunpack.c.h.b16 %v3825
        %v5823 = vunpack.c.l.b16 %v3826
        %v5824 = vunpack.c.h.b16 %v3826
        %v5825 = vunpack.c.l.b16 %v3827
        %v5826 = vunpack.c.h.b16 %v3827
        %v5827 = vunpack.c.l.b16 %v3828
        %v5828 = vunpack.c.h.b16 %v3828
        %v5829 = vunpack.c.l.b16 %v3829
        %v5830 = vunpack.c.h.b16 %v3829
        %v5831 = vunpack.c.l.b16 %v3830
        %v5832 = vunpack.c.h.b16 %v3830
        %v5833 = vunpack.c.l.b16 %v3831
        %v5834 = vunpack.c.h.b16 %v3831
        %v5835 = vunpack.c.l.b16 %v3832
        %v5836 = vunpack.c.h.b16 %v3832
        %v5837 = vunpack.c.l.b16 %v3833
        %v5838 = vunpack.c.h.b16 %v3833
        %v5839 = vunpack.c.l.b16 %v3834
        %v5840 = vunpack.c.h.b16 %v3834
        %v5841 = vunpack.c.l.b16 %v3835
        %v5842 = vunpack.c.h.b16 %v3835
        %v5843 = vunpack.c.l.b16 %v3836
        %v5844 = vunpack.c.h.b16 %v3836
        %v5845 = vunpack.c.l.b16 %v3837
        %v5846 = vunpack.c.h.b16 %v3837
        %v5847 = vunpack.c.l.b16 %v3838
        %v5848 = vunpack.c.h.b16 %v3838
        %v5849 = vunpack.c.l.b16 %v3839
        %v5850 = vunpack.c.h.b16 %v3839
        %v5851 = vunpack.c.l.b16 %v3840
        %v5852 = vunpack.c.h.b16 %v3840
        %v5853 = vunpack.c.l.b16 %v3841
        %v5854 = vunpack.c.h.b16 %v3841
        %v5855 = vunpack.c.l.b16 %v3842
        %v5856 = vunpack.c.h.b16 %v3842
        %v5857 = vunpack.c.l.b16 %v3843
        %v5858 = vunpack.c.h.b16 %v3843
        %v5859 = vunpack.c.l.b16 %v3844
        %v5860 = vunpack.c.h.b16 %v3844
        %v5861 = vunpack.c.l.b16 %v3845
        %v5862 = vunpack.c.h.b16 %v3845
        %v5863 = vunpack.c.l.b16 %v3846
        %v5864 = vunpack.c.h.b16 %v3846
        %v5865 = vunpack.c.l.b16 %v3847
        %v5866 = vunpack.c.h.b16 %v3847
        %v5867 = vunpack.c.l.b16 %v3848
        %v5868 = vunpack.c.h.b16 %v3848
        %v5869 = vunpack.c.l.b16 %v3849
        %v5870 = vunpack.c.h.b16 %v3849
        %v5871 = vunpack.c.l.b16 %v3850
        %v5872 = vunpack.c.h.b16 %v3850
        %v5873 = vunpack.c.l.b16 %v3851
        %v5874 = vunpack.c.h.b16 %v3851
        %v5875 = vunpack.c.l.b16 %v3852
        %v5876 = vunpack.c.h.b16 %v3852
        %v5877 = vunpack.c.l.b16 %v3853
        %v5878 = vunpack.c.h.b16 %v3853
        %v5879 = vunpack.c.l.b16 %v3854
        %v5880 = vunpack.c.h.b16 %v3854
        %v5881 = vunpack.c.l.b16 %v3855
        %v5882 = vunpack.c.h.b16 %v3855
        %v5883 = vunpack.c.l.b16 %v3856
        %v5884 = vunpack.c.h.b16 %v3856
        %v5885 = vunpack.c.l.b16 %v3857
        %v5886 = vunpack.c.h.b16 %v3857
        %v5887 = vunpack.c.l.b16 %v3858
        %v5888 = vunpack.c.h.b16 %v3858
        %v5889 = vunpack.c.l.b16 %v3859
        %v5890 = vunpack.c.h.b16 %v3859
        %v5891 = vunpack.c.l.b16 %v3860
        %v5892 = vunpack.c.h.b16 %v3860
        %v5893 = vunpack.c.l.b16 %v3861
        %v5894 = vunpack.c.h.b16 %v3861
        %v5895 = vunpack.c.l.b16 %v3862
        %v5896 = vunpack.c.h.b16 %v3862
        %v5897 = vunpack.c.l.b16 %v3863
        %v5898 = vunpack.c.h.b16 %v3863
        %v5899 = vunpack.c.l.b16 %v3864
        %v5900 = vunpack.c.h.b16 %v3864
        %v5901 = vunpack.c.l.b16 %v3865
        %v5902 = vunpack.c.h.b16 %v3865
        %v5903 = vunpack.c.l.b16 %v3866
        %v5904 = vunpack.c.h.b16 %v3866
        %v5905 = vunpack.c.l.b16 %v3867
        %v5906 = vunpack.c.h.b16 %v3867
        %v5907 = vunpack.c.l.b16 %v3868
        %v5908 = vunpack.c.h.b16 %v3868
        %v5909 = vunpack.c.l.b16 %v3869
        %v5910 = vunpack.c.h.b16 %v3869
        %v5911 = vunpack.c.l.b16 %v3870
        %v5912 = vunpack.c.h.b16 %v3870
        %v5913 = vunpack.c.l.b16 %v3871
        %v5914 = vunpack.c.h.b16 %v3871
        %v5915 = vunpack.c.l.b16 %v3872
        %v5916 = vunpack.c.h.b16 %v3872
        %v5917 = vunpack.c.l.b16 %v3873
        %v5918 = vunpack.c.h.b16 %v3873
        %v5919 = vunpack.c.l.b16 %v3874
        %v5920 = vunpack.c.h.b16 %v3874
        %v5921 = vunpack.c.l.b16 %v3875
        %v5922 = vunpack.c.h.b16 %v3875
        %v5923 = vunpack.c.l.b16 %v3876
        %v5924 = vunpack.c.h.b16 %v3876
        %v5925 = vunpack.c.l.b16 %v3877
        %v5926 = vunpack.c.h.b16 %v3877
        %v5927 = vunpack.c.l.b16 %v3878
        %v5928 = vunpack.c.h.b16 %v3878
        %v5929 = vunpack.c.l.b16 %v3879
        %v5930 = vunpack.c.h.b16 %v3879
        %v5931 = vunpack.c.l.b16 %v3880
        %v5932 = vunpack.c.h.b16 %v3880
        %v5933 = vunpack.c.l.b16 %v3881
        %v5934 = vunpack.c.h.b16 %v3881
        %v5935 = vunpack.c.l.b16 %v3882
        %v5936 = vunpack.c.h.b16 %v3882
        %v5937 = vunpack.c.l.b16 %v3883
        %v5938 = vunpack.c.h.b16 %v3883
        %v5939 = vunpack.c.l.b16 %v3884
        %v5940 = vunpack.c.h.b16 %v3884
        %v5941 = vunpack.c.l.b16 %v3885
        %v5942 = vunpack.c.h.b16 %v3885
        %v5943 = vunpack.c.l.b16 %v3886
        %v5944 = vunpack.c.h.b16 %v3886
        %v5945 = vunpack.c.l.b16 %v3887
        %v5946 = vunpack.c.h.b16 %v3887
        %v5947 = vunpack.c.l.b16 %v3888
        %v5948 = vunpack.c.h.b16 %v3888
        %v5949 = vunpack.c.l.b16 %v3889
        %v5950 = vunpack.c.h.b16 %v3889
        %v5951 = vunpack.c.l.b16 %v3890
        %v5952 = vunpack.c.h.b16 %v3890
        %v5953 = vunpack.c.l.b16 %v3891
        %v5954 = vunpack.c.h.b16 %v3891
        %v5955 = vunpack.c.l.b16 %v3892
        %v5956 = vunpack.c.h.b16 %v3892
        %v5957 = vunpack.c.l.b16 %v3893
        %v5958 = vunpack.c.h.b16 %v3893
        %v5959 = vunpack.c.l.b16 %v3894
        %v5960 = vunpack.c.h.b16 %v3894
        %v5961 = vunpack.c.l.b16 %v3895
        %v5962 = vunpack.c.h.b16 %v3895
        %v5963 = vunpack.c.l.b16 %v3896
        %v5964 = vunpack.c.h.b16 %v3896
        %v5965 = vunpack.c.l.b16 %v3897
        %v5966 = vunpack.c.h.b16 %v3897
        %v5967 = vunpack.c.l.b16 %v3898
        %v5968 = vunpack.c.h.b16 %v3898
        %v5969 = vunpack.c.l.b16 %v3899
        %v5970 = vunpack.c.h.b16 %v3899
        %v5971 = vunpack.c.l.b16 %v3900
        %v5972 = vunpack.c.h.b16 %v3900
        %v5973 = vunpack.c.l.b16 %v3901
        %v5974 = vunpack.c.h.b16 %v3901
        %v5975 = vunpack.c.l.b16 %v3902
        %v5976 = vunpack.c.h.b16 %v3902
        %v5977 = vunpack.c.l.b16 %v3903
        %v5978 = vunpack.c.h.b16 %v3903
        %v5979 = vunpack.c.l.b16 %v3904
        %v5980 = vunpack.c.h.b16 %v3904
        %v5981 = vunpack.c.l.b16 %v3905
        %v5982 = vunpack.c.h.b16 %v3905
        %v5983 = vunpack.c.l.b16 %v3906
        %v5984 = vunpack.c.h.b16 %v3906
        %v5985 = vunpack.c.l.b16 %v3907
        %v5986 = vunpack.c.h.b16 %v3907
        %v5987 = vunpack.c.l.b16 %v3908
        %v5988 = vunpack.c.h.b16 %v3908
        %v5989 = vunpack.c.l.b16 %v3909
        %v5990 = vunpack.c.h.b16 %v3909
        %v5991 = vunpack.c.l.b16 %v3910
        %v5992 = vunpack.c.h.b16 %v3910
        %v5993 = vunpack.c.l.b16 %v3911
        %v5994 = vunpack.c.h.b16 %v3911
        %v5995 = vunpack.c.l.b16 %v3912
        %v5996 = vunpack.c.h.b16 %v3912
        %v5997 = vunpack.c.l.b16 %v3913
        %v5998 = vunpack.c.h.b16 %v3913
        %v5999 = vunpack.c.l.b16 %v3914
        %v6000 = vunpack.c.h.b16 %v3914
        %v6001 = vunpack.c.l.b16 %v3915
        %v6002 = vunpack.c.h.b16 %v3915
        %v6003 = vunpack.c.l.b16 %v3916
        %v6004 = vunpack.c.h.b16 %v3916
        %v6005 = vunpack.c.l.b16 %v3917
        %v6006 = vunpack.c.h.b16 %v3917
        %v6007 = vunpack.c.l.b16 %v3918
        %v6008 = vunpack.c.h.b16 %v3918
        %v6009 = vunpack.c.l.b16 %v3919
        %v6010 = vunpack.c.h.b16 %v3919
        %v6011 = vunpack.c.l.b16 %v3920
        %v6012 = vunpack.c.h.b16 %v3920
        %v6013 = vunpack.c.l.b16 %v3921
        %v6014 = vunpack.c.h.b16 %v3921
        %v6015 = vunpack.c.l.b16 %v3922
        %v6016 = vunpack.c.h.b16 %v3922
        %v6017 = vunpack.c.l.b16 %v3923
        %v6018 = vunpack.c.h.b16 %v3923
        %v6019 = vunpack.c.l.b16 %v3924
        %v6020 = vunpack.c.h.b16 %v3924
        %v6021 = vunpack.c.l.b16 %v3925
        %v6022 = vunpack.c.h.b16 %v3925
        %v6023 = vunpack.c.l.b16 %v3926
        %v6024 = vunpack.c.h.b16 %v3926
        %v6025 = vunpack.c.l.b16 %v3927
        %v6026 = vunpack.c.h.b16 %v3927
        %v6027 = vunpack.c.l.b16 %v3928
        %v6028 = vunpack.c.h.b16 %v3928
        %v6029 = vunpack.c.l.b16 %v3929
        %v6030 = vunpack.c.h.b16 %v3929
        %v6031 = vunpack.c.l.b16 %v3930
        %v6032 = vunpack.c.h.b16 %v3930
        %v6033 = vunpack.c.l.b16 %v3931
        %v6034 = vunpack.c.h.b16 %v3931
        %v6035 = vunpack.c.l.b16 %v3932
        %v6036 = vunpack.c.h.b16 %v3932
        %v6037 = vunpack.c.l.b16 %v3933
        %v6038 = vunpack.c.h.b16 %v3933
        %v6039 = vunpack.c.l.b16 %v3934
        %v6040 = vunpack.c.h.b16 %v3934
        %v6041 = vunpack.c.l.b16 %v3935
        %v6042 = vunpack.c.h.b16 %v3935
        %v6043 = vunpack.c.l.b16 %v3936
        %v6044 = vunpack.c.h.b16 %v3936
        %v6045 = vunpack.c.l.b16 %v3937
        %v6046 = vunpack.c.h.b16 %v3937
        %v6047 = vunpack.c.l.b16 %v3938
        %v6048 = vunpack.c.h.b16 %v3938
        %v6049 = vunpack.c.l.b16 %v3939
        %v6050 = vunpack.c.h.b16 %v3939
        %v6051 = vunpack.c.l.b16 %v3940
        %v6052 = vunpack.c.h.b16 %v3940
        %v6053 = vunpack.c.l.b16 %v3941
        %v6054 = vunpack.c.h.b16 %v3941
        %v6055 = vunpack.c.l.b16 %v3942
        %v6056 = vunpack.c.h.b16 %v3942
        %v6057 = vunpack.c.l.b16 %v3943
        %v6058 = vunpack.c.h.b16 %v3943
        %v6059 = vunpack.c.l.b16 %v3944
        %v6060 = vunpack.c.h.b16 %v3944
        %v6061 = vunpack.c.l.b16 %v3945
        %v6062 = vunpack.c.h.b16 %v3945
        %v6063 = vunpack.c.l.b16 %v3946
        %v6064 = vunpack.c.h.b16 %v3946
        %v6065 = vunpack.c.l.b16 %v3947
        %v6066 = vunpack.c.h.b16 %v3947
        %v6067 = vunpack.c.l.b16 %v3948
        %v6068 = vunpack.c.h.b16 %v3948
        %v6069 = vunpack.c.l.b16 %v3949
        %v6070 = vunpack.c.h.b16 %v3949
        %v6071 = vunpack.c.l.b16 %v3950
        %v6072 = vunpack.c.h.b16 %v3950
        %v6073 = vunpack.c.l.b16 %v3951
        %v6074 = vunpack.c.h.b16 %v3951
        %v6075 = vunpack.c.l.b16 %v3952
        %v6076 = vunpack.c.h.b16 %v3952
        %v6077 = vunpack.c.l.b16 %v3953
        %v6078 = vunpack.c.h.b16 %v3953
        %v6079 = vunpack.c.l.b16 %v3954
        %v6080 = vunpack.c.h.b16 %v3954
        %v6081 = vunpack.c.l.b16 %v3955
        %v6082 = vunpack.c.h.b16 %v3955
        %v6083 = vunpack.c.l.b16 %v3956
        %v6084 = vunpack.c.h.b16 %v3956
        %v6085 = vunpack.c.l.b16 %v3957
        %v6086 = vunpack.c.h.b16 %v3957
        %v6087 = vunpack.c.l.b16 %v3958
        %v6088 = vunpack.c.h.b16 %v3958
        %v6089 = vunpack.c.l.b16 %v3959
        %v6090 = vunpack.c.h.b16 %v3959
        %v6091 = vunpack.c.l.b16 %v3960
        %v6092 = vunpack.c.h.b16 %v3960
        %v6093 = vunpack.c.l.b16 %v3961
        %v6094 = vunpack.c.h.b16 %v3961
        %v6095 = vunpack.c.l.b16 %v3962
        %v6096 = vunpack.c.h.b16 %v3962
        %v6097 = vunpack.c.l.b16 %v3963
        %v6098 = vunpack.c.h.b16 %v3963
        %v6099 = vunpack.c.l.b16 %v3964
        %v6100 = vunpack.c.h.b16 %v3964
        %v6101 = vunpack.c.l.b16 %v3965
        %v6102 = vunpack.c.h.b16 %v3965
        %v6103 = vunpack.c.l.b16 %v3966
        %v6104 = vunpack.c.h.b16 %v3966
        %v6105 = vunpack.c.l.b16 %v3967
        %v6106 = vunpack.c.h.b16 %v3967
        %v6107 = vunpack.c.l.b16 %v3968
        %v6108 = vunpack.c.h.b16 %v3968
        %v6109 = vunpack.c.l.b16 %v3969
        %v6110 = vunpack.c.h.b16 %v3969
        %v6111 = vunpack.c.l.b16 %v3970
        %v6112 = vunpack.c.h.b16 %v3970
        %v6113 = vunpack.c.l.b16 %v3971
        %v6114 = vunpack.c.h.b16 %v3971
        %v6115 = vunpack.c.l.b16 %v3972
        %v6116 = vunpack.c.h.b16 %v3972
        %v6117 = vunpack.c.l.b16 %v3973
        %v6118 = vunpack.c.h.b16 %v3973
        %v6119 = vunpack.c.l.b16 %v3974
        %v6120 = vunpack.c.h.b16 %v3974
        %v6121 = vunpack.c.l.b16 %v3975
        %v6122 = vunpack.c.h.b16 %v3975
        %v6123 = vunpack.c.l.b16 %v3976
        %v6124 = vunpack.c.h.b16 %v3976
        %v6125 = vunpack.c.l.b16 %v3977
        %v6126 = vunpack.c.h.b16 %v3977
        %v6127 = vunpack.c.l.b16 %v3978
        %v6128 = vunpack.c.h.b16 %v3978
        %v6129 = vunpack.c.l.b16 %v3979
        %v6130 = vunpack.c.h.b16 %v3979
        %v6131 = vunpack.c.l.b16 %v3980
        %v6132 = vunpack.c.h.b16 %v3980
        %v6133 = vunpack.c.l.b16 %v3981
        %v6134 = vunpack.c.h.b16 %v3981
        %v6135 = vunpack.c.l.b16 %v3982
        %v6136 = vunpack.c.h.b16 %v3982
        %v6137 = vunpack.c.l.b16 %v3983
        %v6138 = vunpack.c.h.b16 %v3983
        %v6139 = vunpack.c.l.b16 %v3984
        %v6140 = vunpack.c.h.b16 %v3984
        %v6141 = vunpack.c.l.b16 %v3985
        %v6142 = vunpack.c.h.b16 %v3985
        %v6143 = vunpack.c.l.b16 %v3986
        %v6144 = vunpack.c.h.b16 %v3986
        %v6145 = vunpack.c.l.b16 %v3987
        %v6146 = vunpack.c.h.b16 %v3987
        %v6147 = vunpack.c.l.b16 %v3988
        %v6148 = vunpack.c.h.b16 %v3988
        %v6149 = vunpack.c.l.b16 %v3989
        %v6150 = vunpack.c.h.b16 %v3989
        %v6151 = vunpack.c.l.b16 %v3990
        %v6152 = vunpack.c.h.b16 %v3990
        %v6153 = vunpack.c.l.b16 %v3991
        %v6154 = vunpack.c.h.b16 %v3991
        %v6155 = vunpack.c.l.b16 %v3992
        %v6156 = vunpack.c.h.b16 %v3992
        %v6157 = vunpack.c.l.b16 %v3993
        %v6158 = vunpack.c.h.b16 %v3993
        %v6159 = vunpack.c.l.b16 %v3994
        %v6160 = vunpack.c.h.b16 %v3994
        %v6161 = vunpack.c.l.b16 %v3995
        %v6162 = vunpack.c.h.b16 %v3995
        %v6163 = vunpack.c.l.b16 %v3996
        %v6164 = vunpack.c.h.b16 %v3996
        %v6165 = vunpack.c.l.b16 %v3997
        %v6166 = vunpack.c.h.b16 %v3997
        %v6167 = vunpack.c.l.b16 %v3998
        %v6168 = vunpack.c.h.b16 %v3998
        %v6169 = vunpack.c.l.b16 %v3999
        %v6170 = vunpack.c.h.b16 %v3999
        %v6171 = vunpack.c.l.b16 %v4000
        %v6172 = vunpack.c.h.b16 %v4000
        %v6173 = vunpack.c.l.b16 %v4001
        %v6174 = vunpack.c.h.b16 %v4001
        %v6175 = vunpack.c.l.b16 %v4002
        %v6176 = vunpack.c.h.b16 %v4002
        %v6177 = vunpack.c.l.b16 %v4003
        %v6178 = vunpack.c.h.b16 %v4003
        %v6179 = vunpack.c.l.b16 %v4004
        %v6180 = vunpack.c.h.b16 %v4004
        %v6181 = vunpack.c.l.b16 %v4005
        %v6182 = vunpack.c.h.b16 %v4005
        %v6183 = vunpack.c.l.b16 %v4006
        %v6184 = vunpack.c.h.b16 %v4006
        %v6185 = vunpack.c.l.b16 %v4007
        %v6186 = vunpack.c.h.b16 %v4007
        %v6187 = vunpack.c.l.b16 %v4008
        %v6188 = vunpack.c.h.b16 %v4008
        %v6189 = vunpack.c.l.b16 %v4009
        %v6190 = vunpack.c.h.b16 %v4009
        %v6191 = vunpack.c.l.b16 %v4010
        %v6192 = vunpack.c.h.b16 %v4010
        %v6193 = vunpack.c.l.b16 %v4011
        %v6194 = vunpack.c.h.b16 %v4011
        %v6195 = vunpack.c.l.b16 %v4012
        %v6196 = vunpack.c.h.b16 %v4012
        %v6197 = vunpack.c.l.b16 %v4013
        %v6198 = vunpack.c.h.b16 %v4013
        %v6199 = vunpack.c.l.b16 %v4014
        %v6200 = vunpack.c.h.b16 %v4014
        %v6201 = vunpack.c.l.b16 %v4015
        %v6202 = vunpack.c.h.b16 %v4015
        %v6203 = vunpack.c.l.b16 %v4016
        %v6204 = vunpack.c.h.b16 %v4016
        %v6205 = vunpack.c.l.b16 %v4017
        %v6206 = vunpack.c.h.b16 %v4017
        %v6207 = vunpack.c.l.b16 %v4018
        %v6208 = vunpack.c.h.b16 %v4018
        %v6209 = vunpack.c.l.b16 %v4019
        %v6210 = vunpack.c.h.b16 %v4019
        %v6211 = vunpack.c.l.b16 %v4020
        %v6212 = vunpack.c.h.b16 %v4020
        %v6213 = vunpack.c.l.b16 %v4021
        %v6214 = vunpack.c.h.b16 %v4021
        %v6215 = vunpack.c.l.b16 %v4022
        %v6216 = vunpack.c.h.b16 %v4022
        %v6217 = vunpack.c.l.b16 %v4023
        %v6218 = vunpack.c.h.b16 %v4023
        %v6219 = vunpack.c.l.b16 %v4024
        %v6220 = vunpack.c.h.b16 %v4024
        %v6221 = vunpack.c.l.b16 %v4025
        %v6222 = vunpack.c.h.b16 %v4025
        %v6223 = vunpack.c.l.b16 %v4026
        %v6224 = vunpack.c.h.b16 %v4026
        %v6225 = vunpack.c.l.b16 %v4027
        %v6226 = vunpack.c.h.b16 %v4027
        %v6227 = vunpack.c.l.b16 %v4028
        %v6228 = vunpack.c.h.b16 %v4028
        %v6229 = vunpack.c.l.b16 %v4029
        %v6230 = vunpack.c.h.b16 %v4029
        %v6231 = vunpack.c.l.b16 %v4030
        %v6232 = vunpack.c.h.b16 %v4030
        %v6233 = vunpack.c.l.b16 %v4031
        %v6234 = vunpack.c.h.b16 %v4031
        %v6235 = vunpack.c.l.b16 %v4032
        %v6236 = vunpack.c.h.b16 %v4032
        %v6237 = vunpack.c.l.b16 %v4033
        %v6238 = vunpack.c.h.b16 %v4033
        %v6239 = vunpack.c.l.b16 %v4034
        %v6240 = vunpack.c.h.b16 %v4034
        %v6241 = vunpack.c.l.b16 %v4035
        %v6242 = vunpack.c.h.b16 %v4035
        %v6243 = vunpack.c.l.b16 %v4036
        %v6244 = vunpack.c.h.b16 %v4036
        %v6245 = vunpack.c.l.b16 %v4037
        %v6246 = vunpack.c.h.b16 %v4037
        %v6247 = vunpack.c.l.b16 %v4038
        %v6248 = vunpack.c.h.b16 %v4038
        %v6249 = vunpack.c.l.b16 %v4039
        %v6250 = vunpack.c.h.b16 %v4039
        %v6251 = vunpack.c.l.b16 %v4040
        %v6252 = vunpack.c.h.b16 %v4040
        %v6253 = vunpack.c.l.b16 %v4041
        %v6254 = vunpack.c.h.b16 %v4041
        %v6255 = vunpack.c.l.b16 %v4042
        %v6256 = vunpack.c.h.b16 %v4042
        %v6257 = vunpack.c.l.b16 %v4043
        %v6258 = vunpack.c.h.b16 %v4043
        %v6259 = vunpack.c.l.b16 %v4044
        %v6260 = vunpack.c.h.b16 %v4044
        %v6261 = vunpack.c.l.b16 %v4045
        %v6262 = vunpack.c.h.b16 %v4045
        %v6263 = vunpack.c.l.b16 %v4046
        %v6264 = vunpack.c.h.b16 %v4046
        %v6265 = vunpack.c.l.b16 %v4047
        %v6266 = vunpack.c.h.b16 %v4047
        %v6267 = vunpack.c.l.b16 %v4048
        %v6268 = vunpack.c.h.b16 %v4048
        %v6269 = vunpack.c.l.b16 %v4049
        %v6270 = vunpack.c.h.b16 %v4049
        %v6271 = vunpack.c.l.b16 %v4050
        %v6272 = vunpack.c.h.b16 %v4050
        %v6273 = vunpack.c.l.b16 %v4051
        %v6274 = vunpack.c.h.b16 %v4051
        %v6275 = vunpack.c.l.b16 %v4052
        %v6276 = vunpack.c.h.b16 %v4052
        %v6277 = vunpack.c.l.b16 %v4053
        %v6278 = vunpack.c.h.b16 %v4053
        %v6279 = vunpack.c.l.b16 %v4054
        %v6280 = vunpack.c.h.b16 %v4054
        %v6281 = vunpack.c.l.b16 %v4055
        %v6282 = vunpack.c.h.b16 %v4055
        %v6283 = vunpack.c.l.b16 %v4056
        %v6284 = vunpack.c.h.b16 %v4056
        %v6285 = vunpack.c.l.b16 %v4057
        %v6286 = vunpack.c.h.b16 %v4057
        %v6287 = vunpack.c.l.b16 %v4058
        %v6288 = vunpack.c.h.b16 %v4058
        %v6289 = vunpack.c.l.b16 %v4059
        %v6290 = vunpack.c.h.b16 %v4059
        %v6291 = vunpack.c.l.b16 %v4060
        %v6292 = vunpack.c.h.b16 %v4060
        %v6293 = vunpack.c.l.b16 %v4061
        %v6294 = vunpack.c.h.b16 %v4061
        %v6295 = vunpack.c.l.b16 %v4062
        %v6296 = vunpack.c.h.b16 %v4062
        %v6297 = vunpack.c.l.b16 %v4063
        %v6298 = vunpack.c.h.b16 %v4063
        %v6299 = vunpack.c.l.b16 %v4064
        %v6300 = vunpack.c.h.b16 %v4064
        %v6301 = vunpack.c.l.b16 %v4065
        %v6302 = vunpack.c.h.b16 %v4065
        %v6303 = vunpack.c.l.b16 %v4066
        %v6304 = vunpack.c.h.b16 %v4066
        %v6305 = vunpack.c.l.b16 %v4067
        %v6306 = vunpack.c.h.b16 %v4067
        %v6307 = vunpack.c.l.b16 %v4068
        %v6308 = vunpack.c.h.b16 %v4068
        %v6309 = vunpack.c.l.b16 %v4069
        %v6310 = vunpack.c.h.b16 %v4069
        %v6311 = vunpack.c.l.b16 %v4070
        %v6312 = vunpack.c.h.b16 %v4070
        %v6313 = vunpack.c.l.b16 %v4071
        %v6314 = vunpack.c.h.b16 %v4071
        %v6315 = vunpack.c.l.b16 %v4072
        %v6316 = vunpack.c.h.b16 %v4072
        %v6317 = vunpack.c.l.b16 %v4073
        %v6318 = vunpack.c.h.b16 %v4073
        %v6319 = vunpack.c.l.b16 %v4074
        %v6320 = vunpack.c.h.b16 %v4074
        %v6321 = vunpack.c.l.b16 %v4075
        %v6322 = vunpack.c.h.b16 %v4075
        %v6323 = vunpack.c.l.b16 %v4076
        %v6324 = vunpack.c.h.b16 %v4076
        %v6325 = vunpack.c.l.b16 %v4077
        %v6326 = vunpack.c.h.b16 %v4077
        %v6327 = vunpack.c.l.b16 %v4078
        %v6328 = vunpack.c.h.b16 %v4078
        %v6329 = vunpack.c.l.b16 %v4079
        %v6330 = vunpack.c.h.b16 %v4079
        %v6331 = vunpack.c.l.b16 %v4080
        %v6332 = vunpack.c.h.b16 %v4080
        %v6333 = vunpack.c.l.b16 %v4081
        %v6334 = vunpack.c.h.b16 %v4081
        %v6335 = vunpack.c.l.b16 %v4082
        %v6336 = vunpack.c.h.b16 %v4082
        %v6337 = vunpack.c.l.b16 %v4083
        %v6338 = vunpack.c.h.b16 %v4083
        %v6339 = vunpack.c.l.b16 %v4084
        %v6340 = vunpack.c.h.b16 %v4084
        %v6341 = vunpack.c.l.b16 %v4085
        %v6342 = vunpack.c.h.b16 %v4085
        %v6343 = vunpack.c.l.b16 %v4086
        %v6344 = vunpack.c.h.b16 %v4086
        %v6345 = vunpack.c.l.b16 %v4087
        %v6346 = vunpack.c.h.b16 %v4087
        %v6347 = vunpack.c.l.b16 %v4088
        %v6348 = vunpack.c.h.b16 %v4088
        %v6349 = vunpack.c.l.b16 %v4089
        %v6350 = vunpack.c.h.b16 %v4089
        %v6351 = vunpack.c.l.b16 %v4090
        %v6352 = vunpack.c.h.b16 %v4090
        %v6353 = vunpack.c.l.b16 %v4091
        %v6354 = vunpack.c.h.b16 %v4091
        %v6355 = vunpack.c.l.b16 %v4092
        %v6356 = vunpack.c.h.b16 %v4092
        %v6357 = vunpack.c.l.b16 %v4093
        %v6358 = vunpack.c.h.b16 %v4093
        %v6359 = vunpack.c.l.b16 %v4094
        %v6360 = vunpack.c.h.b16 %v4094
        %v6361 = vunpack.c.l.b16 %v4095
        %v6362 = vunpack.c.h.b16 %v4095
        %v6363 = vunpack.c.l.b16 %v4096
        %v6364 = vunpack.c.h.b16 %v4096
        %v6365 = vunpack.c.l.b16 %v4097
        %v6366 = vunpack.c.h.b16 %v4097
        %v6367 = vunpack.c.l.b16 %v4098
        %v6368 = vunpack.c.h.b16 %v4098
        %v6369 = vunpack.c.l.b16 %v4099
        %v6370 = vunpack.c.h.b16 %v4099
        %v6371 = vunpack.c.l.b16 %v4100
        %v6372 = vunpack.c.h.b16 %v4100
        %v6373 = vunpack.c.l.b16 %v4101
        %v6374 = vunpack.c.h.b16 %v4101
        %v6375 = vunpack.c.l.b16 %v4102
        %v6376 = vunpack.c.h.b16 %v4102
        %v6377 = vunpack.c.l.b16 %v4103
        %v6378 = vunpack.c.h.b16 %v4103
        %v6379 = vunpack.c.l.b16 %v4104
        %v6380 = vunpack.c.h.b16 %v4104
        %v6381 = vunpack.c.l.b16 %v4105
        %v6382 = vunpack.c.h.b16 %v4105
        %v6383 = vunpack.c.l.b16 %v4106
        %v6384 = vunpack.c.h.b16 %v4106
        %v6385 = vunpack.c.l.b16 %v4107
        %v6386 = vunpack.c.h.b16 %v4107
        %v6387 = vunpack.c.l.b16 %v4108
        %v6388 = vunpack.c.h.b16 %v4108
        %v6389 = vunpack.c.l.b16 %v4109
        %v6390 = vunpack.c.h.b16 %v4109
        %v6391 = vunpack.c.l.b16 %v4110
        %v6392 = vunpack.c.h.b16 %v4110
        %v6393 = vunpack.c.l.b16 %v4111
        %v6394 = vunpack.c.h.b16 %v4111
        %v6395 = vunpack.c.l.b16 %v4112
        %v6396 = vunpack.c.h.b16 %v4112
        %v6397 = vunpack.c.l.b16 %v4113
        %v6398 = vunpack.c.h.b16 %v4113
        %v6399 = vunpack.c.l.b16 %v4114
        %v6400 = vunpack.c.h.b16 %v4114
        %v6401 = vunpack.c.l.b16 %v4115
        %v6402 = vunpack.c.h.b16 %v4115
        %v6403 = vunpack.c.l.b16 %v4116
        %v6404 = vunpack.c.h.b16 %v4116
        %v6405 = vunpack.c.l.b16 %v4117
        %v6406 = vunpack.c.h.b16 %v4117
        %v6407 = vunpack.c.l.b16 %v4118
        %v6408 = vunpack.c.h.b16 %v4118
        %v6409 = vunpack.c.l.b16 %v4119
        %v6410 = vunpack.c.h.b16 %v4119
        %v6411 = vunpack.c.l.b16 %v4120
        %v6412 = vunpack.c.h.b16 %v4120
        %v6413 = vunpack.c.l.b16 %v4121
        %v6414 = vunpack.c.h.b16 %v4121
        %v6415 = vunpack.c.l.b16 %v4122
        %v6416 = vunpack.c.h.b16 %v4122
        %v6417 = vunpack.c.l.b16 %v4123
        %v6418 = vunpack.c.h.b16 %v4123
        %v6419 = vunpack.c.l.b16 %v4124
        %v6420 = vunpack.c.h.b16 %v4124
        %v6421 = vunpack.c.l.b16 %v4125
        %v6422 = vunpack.c.h.b16 %v4125
        %v6423 = vunpack.c.l.b16 %v4126
        %v6424 = vunpack.c.h.b16 %v4126
        %v6425 = vunpack.c.l.b16 %v4127
        %v6426 = vunpack.c.h.b16 %v4127
        %v6427 = vunpack.c.l.b16 %v4128
        %v6428 = vunpack.c.h.b16 %v4128
        %v6429 = vunpack.c.l.b16 %v4129
        %v6430 = vunpack.c.h.b16 %v4129
        %v6431 = vunpack.c.l.b16 %v4130
        %v6432 = vunpack.c.h.b16 %v4130
        %v6433 = vunpack.c.l.b16 %v4131
        %v6434 = vunpack.c.h.b16 %v4131
        %v6435 = vunpack.c.l.b16 %v4132
        %v6436 = vunpack.c.h.b16 %v4132
        %v6437 = vunpack.c.l.b16 %v4133
        %v6438 = vunpack.c.h.b16 %v4133
        %v6439 = vunpack.c.l.b16 %v4134
        %v6440 = vunpack.c.h.b16 %v4134
        %v6441 = vunpack.c.l.b16 %v4135
        %v6442 = vunpack.c.h.b16 %v4135
        %v6443 = vunpack.c.l.b16 %v4136
        %v6444 = vunpack.c.h.b16 %v4136
        %v6445 = vunpack.c.l.b16 %v4137
        %v6446 = vunpack.c.h.b16 %v4137
        %v6447 = vunpack.c.l.b16 %v4138
        %v6448 = vunpack.c.h.b16 %v4138
        %v6449 = vunpack.c.l.b16 %v4139
        %v6450 = vunpack.c.h.b16 %v4139
        %v6451 = vunpack.c.l.b16 %v4140
        %v6452 = vunpack.c.h.b16 %v4140
        %v6453 = vunpack.c.l.b16 %v4141
        %v6454 = vunpack.c.h.b16 %v4141
        %v6455 = vunpack.c.l.b16 %v4142
        %v6456 = vunpack.c.h.b16 %v4142
        %v6457 = vunpack.c.l.b16 %v4143
        %v6458 = vunpack.c.h.b16 %v4143
        %v6459 = vunpack.c.l.b16 %v4144
        %v6460 = vunpack.c.h.b16 %v4144
        %v6461 = vunpack.c.l.b16 %v4145
        %v6462 = vunpack.c.h.b16 %v4145
        %v6463 = vunpack.c.l.b16 %v4146
        %v6464 = vunpack.c.h.b16 %v4146
        %v6465 = vunpack.c.l.b16 %v4147
        %v6466 = vunpack.c.h.b16 %v4147
        %v6467 = vunpack.c.l.b16 %v4148
        %v6468 = vunpack.c.h.b16 %v4148
        %v6469 = vunpack.c.l.b16 %v4149
        %v6470 = vunpack.c.h.b16 %v4149
        %v6471 = vunpack.c.l.b16 %v4150
        %v6472 = vunpack.c.h.b16 %v4150
        %v6473 = vunpack.c.l.b16 %v4151
        %v6474 = vunpack.c.h.b16 %v4151
        %v6475 = vunpack.c.l.b16 %v4152
        %v6476 = vunpack.c.h.b16 %v4152
        %v6477 = vunpack.c.l.b16 %v4153
        %v6478 = vunpack.c.h.b16 %v4153
        %v6479 = vunpack.c.l.b16 %v4154
        %v6480 = vunpack.c.h.b16 %v4154
        %v6481 = vunpack.c.l.b16 %v4155
        %v6482 = vunpack.c.h.b16 %v4155
        %v6483 = vunpack.c.l.b16 %v4156
        %v6484 = vunpack.c.h.b16 %v4156
        %v6485 = vunpack.c.l.b16 %v4157
        %v6486 = vunpack.c.h.b16 %v4157
        %v6487 = vunpack.c.l.b16 %v4158
        %v6488 = vunpack.c.h.b16 %v4158
        %v6489 = vunpack.c.l.b16 %v4159
        %v6490 = vunpack.c.h.b16 %v4159
        %v6491 = vunpack.c.l.b16 %v4160
        %v6492 = vunpack.c.h.b16 %v4160
        %v6493 = vunpack.c.l.b16 %v4161
        %v6494 = vunpack.c.h.b16 %v4161
        %v6495 = vunpack.c.l.b16 %v4162
        %v6496 = vunpack.c.h.b16 %v4162
        %v6497 = vunpack.c.l.b16 %v4163
        %v6498 = vunpack.c.h.b16 %v4163
        %v6499 = vunpack.c.l.b16 %v4164
        %v6500 = vunpack.c.h.b16 %v4164
        %v6501 = vunpack.c.l.b16 %v4165
        %v6502 = vunpack.c.h.b16 %v4165
        %v6503 = vunpack.c.l.b16 %v4166
        %v6504 = vunpack.c.h.b16 %v4166
        %v6505 = vunpack.c.l.b16 %v4167
        %v6506 = vunpack.c.h.b16 %v4167
        %v6507 = vunpack.c.l.b16 %v4168
        %v6508 = vunpack.c.h.b16 %v4168
        %v6509 = vunpack.c.l.b16 %v4169
        %v6510 = vunpack.c.h.b16 %v4169
        %v6511 = vunpack.c.l.b16 %v4170
        %v6512 = vunpack.c.h.b16 %v4170
        %v6513 = vunpack.c.l.b16 %v4171
        %v6514 = vunpack.c.h.b16 %v4171
        %v6515 = vunpack.c.l.b16 %v4172
        %v6516 = vunpack.c.h.b16 %v4172
        %v6517 = vunpack.c.l.b16 %v4173
        %v6518 = vunpack.c.h.b16 %v4173
        %v6519 = vunpack.c.l.b16 %v4174
        %v6520 = vunpack.c.h.b16 %v4174
        %v6521 = vunpack.c.l.b16 %v4175
        %v6522 = vunpack.c.h.b16 %v4175
        %v6523 = vunpack.c.l.b16 %v4176
        %v6524 = vunpack.c.h.b16 %v4176
        %v6525 = vunpack.c.l.b16 %v4177
        %v6526 = vunpack.c.h.b16 %v4177
        %v6527 = vunpack.c.l.b16 %v4178
        %v6528 = vunpack.c.h.b16 %v4178
        %v6529 = vunpack.c.l.b16 %v4179
        %v6530 = vunpack.c.h.b16 %v4179
        %v6531 = vunpack.c.l.b16 %v4180
        %v6532 = vunpack.c.h.b16 %v4180
        %v6533 = vunpack.c.l.b16 %v4181
        %v6534 = vunpack.c.h.b16 %v4181
        %v6535 = vunpack.c.l.b16 %v4182
        %v6536 = vunpack.c.h.b16 %v4182
        %v6537 = vunpack.c.l.b16 %v4183
        %v6538 = vunpack.c.h.b16 %v4183
        %v6539 = vunpack.c.l.b16 %v4184
        %v6540 = vunpack.c.h.b16 %v4184
        %v6541 = vunpack.c.l.b16 %v4185
        %v6542 = vunpack.c.h.b16 %v4185
        %v6543 = vunpack.c.l.b16 %v4186
        %v6544 = vunpack.c.h.b16 %v4186
        %v6545 = vunpack.c.l.b16 %v4187
        %v6546 = vunpack.c.h.b16 %v4187
        %v6547 = vunpack.c.l.b16 %v4188
        %v6548 = vunpack.c.h.b16 %v4188
        %v6549 = vunpack.c.l.b16 %v4189
        %v6550 = vunpack.c.h.b16 %v4189
        %v6551 = vunpack.c.l.b16 %v4190
        %v6552 = vunpack.c.h.b16 %v4190
        %v6553 = vunpack.c.l.b16 %v4191
        %v6554 = vunpack.c.h.b16 %v4191
        %v6555 = vunpack.c.l.b16 %v4192
        %v6556 = vunpack.c.h.b16 %v4192
        %v6557 = vunpack.c.l.b16 %v4193
        %v6558 = vunpack.c.h.b16 %v4193
        %v6559 = vunpack.c.l.b16 %v4194
        %v6560 = vunpack.c.h.b16 %v4194
        %v6561 = vunpack.c.l.b16 %v4195
        %v6562 = vunpack.c.h.b16 %v4195
        %v6563 = vunpack.c.l.b16 %v4196
        %v6564 = vunpack.c.h.b16 %v4196
        %v6565 = vunpack.c.l.b16 %v4197
        %v6566 = vunpack.c.h.b16 %v4197
        %v6567 = vunpack.c.l.b16 %v4198
        %v6568 = vunpack.c.h.b16 %v4198
        %v6569 = vunpack.c.l.b16 %v4199
        %v6570 = vunpack.c.h.b16 %v4199
        %v6571 = vunpack.c.l.b16 %v4200
        %v6572 = vunpack.c.h.b16 %v4200
        %v6573 = vunpack.c.l.b16 %v4201
        %v6574 = vunpack.c.h.b16 %v4201
        %v6575 = vunpack.c.l.b16 %v4202
        %v6576 = vunpack.c.h.b16 %v4202
        %v6577 = vunpack.c.l.b16 %v4203
        %v6578 = vunpack.c.h.b16 %v4203
        %v6579 = vunpack.c.l.b16 %v4204
        %v6580 = vunpack.c.h.b16 %v4204
        %v6581 = vunpack.c.l.b16 %v4205
        %v6582 = vunpack.c.h.b16 %v4205
        %v6583 = vunpack.c.l.b16 %v4206
        %v6584 = vunpack.c.h.b16 %v4206
        %v6585 = vunpack.c.l.b16 %v4207
        %v6586 = vunpack.c.h.b16 %v4207
        %v6587 = vunpack.c.l.b16 %v4208
        %v6588 = vunpack.c.h.b16 %v4208
        %v6589 = vunpack.c.l.b16 %v4209
        %v6590 = vunpack.c.h.b16 %v4209
        %v6591 = vunpack.c.l.b16 %v4210
        %v6592 = vunpack.c.h.b16 %v4210
        %v6593 = vunpack.c.l.b16 %v4211
        %v6594 = vunpack.c.h.b16 %v4211
        %v6595 = vunpack.c.l.b16 %v4212
        %v6596 = vunpack.c.h.b16 %v4212
        %v6597 = vunpack.c.l.b16 %v4213
        %v6598 = vunpack.c.h.b16 %v4213
        %v6599 = vunpack.c.l.b16 %v4214
        %v6600 = vunpack.c.h.b16 %v4214
        %v6601 = vunpack.c.l.b16 %v4215
        %v6602 = vunpack.c.h.b16 %v4215
        %v6603 = vunpack.c.l.b16 %v4216
        %v6604 = vunpack.c.h.b16 %v4216
        %v6605 = vunpack.c.l.b16 %v4217
        %v6606 = vunpack.c.h.b16 %v4217
        %v6607 = vunpack.c.l.b16 %v4218
        %v6608 = vunpack.c.h.b16 %v4218
        %v6609 = vunpack.c.l.b16 %v4219
        %v6610 = vunpack.c.h.b16 %v4219
        %v6611 = vunpack.c.l.b16 %v4220
        %v6612 = vunpack.c.h.b16 %v4220
        %v6613 = vunpack.c.l.b16 %v4221
        %v6614 = vunpack.c.h.b16 %v4221
        %v6615 = vunpack.c.l.b16 %v4222
        %v6616 = vunpack.c.h.b16 %v4222
        %v6617 = vunpack.c.l.b16 %v4223
        %v6618 = vunpack.c.h.b16 %v4223
        %v6619 = vunpack.c.l.b16 %v4224
        %v6620 = vunpack.c.h.b16 %v4224
        %v6621 = vunpack.c.l.b16 %v4225
        %v6622 = vunpack.c.h.b16 %v4225
        %v6623 = vunpack.c.l.b16 %v4226
        %v6624 = vunpack.c.h.b16 %v4226
        %v6625 = vunpack.c.l.b16 %v4227
        %v6626 = vunpack.c.h.b16 %v4227
        %v6627 = vunpack.c.l.b16 %v4228
        %v6628 = vunpack.c.h.b16 %v4228
        %v6629 = vunpack.c.l.b16 %v4229
        %v6630 = vunpack.c.h.b16 %v4229
        %v6631 = vpack.c.b16 %v5035, %v5031
        %v6632 = vpack.c.b16 %v5036, %v5032
        %v6633 = vpack.c.b16 %v5037, %v5033
        %v6634 = vpack.c.b16 %v5038, %v5034
        %v6635 = vpack.c.b16 %v5043, %v5039
        %v6636 = vpack.c.b16 %v5044, %v5040
        %v6637 = vpack.c.b16 %v5045, %v5041
        %v6638 = vpack.c.b16 %v5046, %v5042
        %v6639 = vpack.c.b16 %v5051, %v5047
        %v6640 = vpack.c.b16 %v5052, %v5048
        %v6641 = vpack.c.b16 %v5053, %v5049
        %v6642 = vpack.c.b16 %v5054, %v5050
        %v6643 = vpack.c.b16 %v5059, %v5055
        %v6644 = vpack.c.b16 %v5060, %v5056
        %v6645 = vpack.c.b16 %v5061, %v5057
        %v6646 = vpack.c.b16 %v5062, %v5058
        %v6647 = vpack.c.b16 %v5067, %v5063
        %v6648 = vpack.c.b16 %v5068, %v5064
        %v6649 = vpack.c.b16 %v5069, %v5065
        %v6650 = vpack.c.b16 %v5070, %v5066
        %v6651 = vpack.c.b16 %v5075, %v5071
        %v6652 = vpack.c.b16 %v5076, %v5072
        %v6653 = vpack.c.b16 %v5077, %v5073
        %v6654 = vpack.c.b16 %v5078, %v5074
        %v6655 = vpack.c.b16 %v5083, %v5079
        %v6656 = vpack.c.b16 %v5084, %v5080
        %v6657 = vpack.c.b16 %v5085, %v5081
        %v6658 = vpack.c.b16 %v5086, %v5082
        %v6659 = vpack.c.b16 %v5091, %v5087
        %v6660 = vpack.c.b16 %v5092, %v5088
        %v6661 = vpack.c.b16 %v5093, %v5089
        %v6662 = vpack.c.b16 %v5094, %v5090
        %v6663 = vpack.c.b16 %v5099, %v5095
        %v6664 = vpack.c.b16 %v5100, %v5096
        %v6665 = vpack.c.b16 %v5101, %v5097
        %v6666 = vpack.c.b16 %v5102, %v5098
        %v6667 = vpack.c.b16 %v5107, %v5103
        %v6668 = vpack.c.b16 %v5108, %v5104
        %v6669 = vpack.c.b16 %v5109, %v5105
        %v6670 = vpack.c.b16 %v5110, %v5106
        %v6671 = vpack.c.b16 %v5115, %v5111
        %v6672 = vpack.c.b16 %v5116, %v5112
        %v6673 = vpack.c.b16 %v5117, %v5113
        %v6674 = vpack.c.b16 %v5118, %v5114
        %v6675 = vpack.c.b16 %v5123, %v5119
        %v6676 = vpack.c.b16 %v5124, %v5120
        %v6677 = vpack.c.b16 %v5125, %v5121
        %v6678 = vpack.c.b16 %v5126, %v5122
        %v6679 = vpack.c.b16 %v5131, %v5127
        %v6680 = vpack.c.b16 %v5132, %v5128
        %v6681 = vpack.c.b16 %v5133, %v5129
        %v6682 = vpack.c.b16 %v5134, %v5130
        %v6683 = vpack.c.b16 %v5139, %v5135
        %v6684 = vpack.c.b16 %v5140, %v5136
        %v6685 = vpack.c.b16 %v5141, %v5137
        %v6686 = vpack.c.b16 %v5142, %v5138
        %v6687 = vpack.c.b16 %v5147, %v5143
        %v6688 = vpack.c.b16 %v5148, %v5144
        %v6689 = vpack.c.b16 %v5149, %v5145
        %v6690 = vpack.c.b16 %v5150, %v5146
        %v6691 = vpack.c.b16 %v5155, %v5151
        %v6692 = vpack.c.b16 %v5156, %v5152
        %v6693 = vpack.c.b16 %v5157, %v5153
        %v6694 = vpack.c.b16 %v5158, %v5154
        %v6695 = vpack.c.b16 %v5163, %v5159
        %v6696 = vpack.c.b16 %v5164, %v5160
        %v6697 = vpack.c.b16 %v5165, %v5161
        %v6698 = vpack.c.b16 %v5166, %v5162
        %v6699 = vpack.c.b16 %v5171, %v5167
        %v6700 = vpack.c.b16 %v5172, %v5168
        %v6701 = vpack.c.b16 %v5173, %v5169
        %v6702 = vpack.c.b16 %v5174, %v5170
        %v6703 = vpack.c.b16 %v5179, %v5175
        %v6704 = vpack.c.b16 %v5180, %v5176
        %v6705 = vpack.c.b16 %v5181, %v5177
        %v6706 = vpack.c.b16 %v5182, %v5178
        %v6707 = vpack.c.b16 %v5187, %v5183
        %v6708 = vpack.c.b16 %v5188, %v5184
        %v6709 = vpack.c.b16 %v5189, %v5185
        %v6710 = vpack.c.b16 %v5190, %v5186
        %v6711 = vpack.c.b16 %v5195, %v5191
        %v6712 = vpack.c.b16 %v5196, %v5192
        %v6713 = vpack.c.b16 %v5197, %v5193
        %v6714 = vpack.c.b16 %v5198, %v5194
        %v6715 = vpack.c.b16 %v5203, %v5199
        %v6716 = vpack.c.b16 %v5204, %v5200
        %v6717 = vpack.c.b16 %v5205, %v5201
        %v6718 = vpack.c.b16 %v5206, %v5202
        %v6719 = vpack.c.b16 %v5211, %v5207
        %v6720 = vpack.c.b16 %v5212, %v5208
        %v6721 = vpack.c.b16 %v5213, %v5209
        %v6722 = vpack.c.b16 %v5214, %v5210
        %v6723 = vpack.c.b16 %v5219, %v5215
        %v6724 = vpack.c.b16 %v5220, %v5216
        %v6725 = vpack.c.b16 %v5221, %v5217
        %v6726 = vpack.c.b16 %v5222, %v5218
        %v6727 = vpack.c.b16 %v5227, %v5223
        %v6728 = vpack.c.b16 %v5228, %v5224
        %v6729 = vpack.c.b16 %v5229, %v5225
        %v6730 = vpack.c.b16 %v5230, %v5226
        %v6731 = vpack.c.b16 %v5235, %v5231
        %v6732 = vpack.c.b16 %v5236, %v5232
        %v6733 = vpack.c.b16 %v5237, %v5233
        %v6734 = vpack.c.b16 %v5238, %v5234
        %v6735 = vpack.c.b16 %v5243, %v5239
        %v6736 = vpack.c.b16 %v5244, %v5240
        %v6737 = vpack.c.b16 %v5245, %v5241
        %v6738 = vpack.c.b16 %v5246, %v5242
        %v6739 = vpack.c.b16 %v5251, %v5247
        %v6740 = vpack.c.b16 %v5252, %v5248
        %v6741 = vpack.c.b16 %v5253, %v5249
        %v6742 = vpack.c.b16 %v5254, %v5250
        %v6743 = vpack.c.b16 %v5259, %v5255
        %v6744 = vpack.c.b16 %v5260, %v5256
        %v6745 = vpack.c.b16 %v5261, %v5257
        %v6746 = vpack.c.b16 %v5262, %v5258
        %v6747 = vpack.c.b16 %v5267, %v5263
        %v6748 = vpack.c.b16 %v5268, %v5264
        %v6749 = vpack.c.b16 %v5269, %v5265
        %v6750 = vpack.c.b16 %v5270, %v5266
        %v6751 = vpack.c.b16 %v5275, %v5271
        %v6752 = vpack.c.b16 %v5276, %v5272
        %v6753 = vpack.c.b16 %v5277, %v5273
        %v6754 = vpack.c.b16 %v5278, %v5274
        %v6755 = vpack.c.b16 %v5283, %v5279
        %v6756 = vpack.c.b16 %v5284, %v5280
        %v6757 = vpack.c.b16 %v5285, %v5281
        %v6758 = vpack.c.b16 %v5286, %v5282
        %v6759 = vpack.c.b16 %v5291, %v5287
        %v6760 = vpack.c.b16 %v5292, %v5288
        %v6761 = vpack.c.b16 %v5293, %v5289
        %v6762 = vpack.c.b16 %v5294, %v5290
        %v6763 = vpack.c.b16 %v5299, %v5295
        %v6764 = vpack.c.b16 %v5300, %v5296
        %v6765 = vpack.c.b16 %v5301, %v5297
        %v6766 = vpack.c.b16 %v5302, %v5298
        %v6767 = vpack.c.b16 %v5307, %v5303
        %v6768 = vpack.c.b16 %v5308, %v5304
        %v6769 = vpack.c.b16 %v5309, %v5305
        %v6770 = vpack.c.b16 %v5310, %v5306
        %v6771 = vpack.c.b16 %v5315, %v5311
        %v6772 = vpack.c.b16 %v5316, %v5312
        %v6773 = vpack.c.b16 %v5317, %v5313
        %v6774 = vpack.c.b16 %v5318, %v5314
        %v6775 = vpack.c.b16 %v5323, %v5319
        %v6776 = vpack.c.b16 %v5324, %v5320
        %v6777 = vpack.c.b16 %v5325, %v5321
        %v6778 = vpack.c.b16 %v5326, %v5322
        %v6779 = vpack.c.b16 %v5331, %v5327
        %v6780 = vpack.c.b16 %v5332, %v5328
        %v6781 = vpack.c.b16 %v5333, %v5329
        %v6782 = vpack.c.b16 %v5334, %v5330
        %v6783 = vpack.c.b16 %v5339, %v5335
        %v6784 = vpack.c.b16 %v5340, %v5336
        %v6785 = vpack.c.b16 %v5341, %v5337
        %v6786 = vpack.c.b16 %v5342, %v5338
        %v6787 = vpack.c.b16 %v5347, %v5343
        %v6788 = vpack.c.b16 %v5348, %v5344
        %v6789 = vpack.c.b16 %v5349, %v5345
        %v6790 = vpack.c.b16 %v5350, %v5346
        %v6791 = vpack.c.b16 %v5355, %v5351
        %v6792 = vpack.c.b16 %v5356, %v5352
        %v6793 = vpack.c.b16 %v5357, %v5353
        %v6794 = vpack.c.b16 %v5358, %v5354
        %v6795 = vpack.c.b16 %v5363, %v5359
        %v6796 = vpack.c.b16 %v5364, %v5360
        %v6797 = vpack.c.b16 %v5365, %v5361
        %v6798 = vpack.c.b16 %v5366, %v5362
        %v6799 = vpack.c.b16 %v5371, %v5367
        %v6800 = vpack.c.b16 %v5372, %v5368
        %v6801 = vpack.c.b16 %v5373, %v5369
        %v6802 = vpack.c.b16 %v5374, %v5370
        %v6803 = vpack.c.b16 %v5379, %v5375
        %v6804 = vpack.c.b16 %v5380, %v5376
        %v6805 = vpack.c.b16 %v5381, %v5377
        %v6806 = vpack.c.b16 %v5382, %v5378
        %v6807 = vpack.c.b16 %v5387, %v5383
        %v6808 = vpack.c.b16 %v5388, %v5384
        %v6809 = vpack.c.b16 %v5389, %v5385
        %v6810 = vpack.c.b16 %v5390, %v5386
        %v6811 = vpack.c.b16 %v5395, %v5391
        %v6812 = vpack.c.b16 %v5396, %v5392
        %v6813 = vpack.c.b16 %v5397, %v5393
        %v6814 = vpack.c.b16 %v5398, %v5394
        %v6815 = vpack.c.b16 %v5403, %v5399
        %v6816 = vpack.c.b16 %v5404, %v5400
        %v6817 = vpack.c.b16 %v5405, %v5401
        %v6818 = vpack.c.b16 %v5406, %v5402
        %v6819 = vpack.c.b16 %v5411, %v5407
        %v6820 = vpack.c.b16 %v5412, %v5408
        %v6821 = vpack.c.b16 %v5413, %v5409
        %v6822 = vpack.c.b16 %v5414, %v5410
        %v6823 = vpack.c.b16 %v5419, %v5415
        %v6824 = vpack.c.b16 %v5420, %v5416
        %v6825 = vpack.c.b16 %v5421, %v5417
        %v6826 = vpack.c.b16 %v5422, %v5418
        %v6827 = vpack.c.b16 %v5427, %v5423
        %v6828 = vpack.c.b16 %v5428, %v5424
        %v6829 = vpack.c.b16 %v5429, %v5425
        %v6830 = vpack.c.b16 %v5430, %v5426
        %v6831 = vpack.c.b16 %v5435, %v5431
        %v6832 = vpack.c.b16 %v5436, %v5432
        %v6833 = vpack.c.b16 %v5437, %v5433
        %v6834 = vpack.c.b16 %v5438, %v5434
        %v6835 = vpack.c.b16 %v5443, %v5439
        %v6836 = vpack.c.b16 %v5444, %v5440
        %v6837 = vpack.c.b16 %v5445, %v5441
        %v6838 = vpack.c.b16 %v5446, %v5442
        %v6839 = vpack.c.b16 %v5451, %v5447
        %v6840 = vpack.c.b16 %v5452, %v5448
        %v6841 = vpack.c.b16 %v5453, %v5449
        %v6842 = vpack.c.b16 %v5454, %v5450
        %v6843 = vpack.c.b16 %v5459, %v5455
        %v6844 = vpack.c.b16 %v5460, %v5456
        %v6845 = vpack.c.b16 %v5461, %v5457
        %v6846 = vpack.c.b16 %v5462, %v5458
        %v6847 = vpack.c.b16 %v5467, %v5463
        %v6848 = vpack.c.b16 %v5468, %v5464
        %v6849 = vpack.c.b16 %v5469, %v5465
        %v6850 = vpack.c.b16 %v5470, %v5466
        %v6851 = vpack.c.b16 %v5475, %v5471
        %v6852 = vpack.c.b16 %v5476, %v5472
        %v6853 = vpack.c.b16 %v5477, %v5473
        %v6854 = vpack.c.b16 %v5478, %v5474
        %v6855 = vpack.c.b16 %v5483, %v5479
        %v6856 = vpack.c.b16 %v5484, %v5480
        %v6857 = vpack.c.b16 %v5485, %v5481
        %v6858 = vpack.c.b16 %v5486, %v5482
        %v6859 = vpack.c.b16 %v5491, %v5487
        %v6860 = vpack.c.b16 %v5492, %v5488
        %v6861 = vpack.c.b16 %v5493, %v5489
        %v6862 = vpack.c.b16 %v5494, %v5490
        %v6863 = vpack.c.b16 %v5499, %v5495
        %v6864 = vpack.c.b16 %v5500, %v5496
        %v6865 = vpack.c.b16 %v5501, %v5497
        %v6866 = vpack.c.b16 %v5502, %v5498
        %v6867 = vpack.c.b16 %v5507, %v5503
        %v6868 = vpack.c.b16 %v5508, %v5504
        %v6869 = vpack.c.b16 %v5509, %v5505
        %v6870 = vpack.c.b16 %v5510, %v5506
        %v6871 = vpack.c.b16 %v5515, %v5511
        %v6872 = vpack.c.b16 %v5516, %v5512
        %v6873 = vpack.c.b16 %v5517, %v5513
        %v6874 = vpack.c.b16 %v5518, %v5514
        %v6875 = vpack.c.b16 %v5523, %v5519
        %v6876 = vpack.c.b16 %v5524, %v5520
        %v6877 = vpack.c.b16 %v5525, %v5521
        %v6878 = vpack.c.b16 %v5526, %v5522
        %v6879 = vpack.c.b16 %v5531, %v5527
        %v6880 = vpack.c.b16 %v5532, %v5528
        %v6881 = vpack.c.b16 %v5533, %v5529
        %v6882 = vpack.c.b16 %v5534, %v5530
        %v6883 = vpack.c.b16 %v5539, %v5535
        %v6884 = vpack.c.b16 %v5540, %v5536
        %v6885 = vpack.c.b16 %v5541, %v5537
        %v6886 = vpack.c.b16 %v5542, %v5538
        %v6887 = vpack.c.b16 %v5547, %v5543
        %v6888 = vpack.c.b16 %v5548, %v5544
        %v6889 = vpack.c.b16 %v5549, %v5545
        %v6890 = vpack.c.b16 %v5550, %v5546
        %v6891 = vpack.c.b16 %v5555, %v5551
        %v6892 = vpack.c.b16 %v5556, %v5552
        %v6893 = vpack.c.b16 %v5557, %v5553
        %v6894 = vpack.c.b16 %v5558, %v5554
        %v6895 = vpack.c.b16 %v5563, %v5559
        %v6896 = vpack.c.b16 %v5564, %v5560
        %v6897 = vpack.c.b16 %v5565, %v5561
        %v6898 = vpack.c.b16 %v5566, %v5562
        %v6899 = vpack.c.b16 %v5571, %v5567
        %v6900 = vpack.c.b16 %v5572, %v5568
        %v6901 = vpack.c.b16 %v5573, %v5569
        %v6902 = vpack.c.b16 %v5574, %v5570
        %v6903 = vpack.c.b16 %v5579, %v5575
        %v6904 = vpack.c.b16 %v5580, %v5576
        %v6905 = vpack.c.b16 %v5581, %v5577
        %v6906 = vpack.c.b16 %v5582, %v5578
        %v6907 = vpack.c.b16 %v5587, %v5583
        %v6908 = vpack.c.b16 %v5588, %v5584
        %v6909 = vpack.c.b16 %v5589, %v5585
        %v6910 = vpack.c.b16 %v5590, %v5586
        %v6911 = vpack.c.b16 %v5595, %v5591
        %v6912 = vpack.c.b16 %v5596, %v5592
        %v6913 = vpack.c.b16 %v5597, %v5593
        %v6914 = vpack.c.b16 %v5598, %v5594
        %v6915 = vpack.c.b16 %v5603, %v5599
        %v6916 = vpack.c.b16 %v5604, %v5600
        %v6917 = vpack.c.b16 %v5605, %v5601
        %v6918 = vpack.c.b16 %v5606, %v5602
        %v6919 = vpack.c.b16 %v5611, %v5607
        %v6920 = vpack.c.b16 %v5612, %v5608
        %v6921 = vpack.c.b16 %v5613, %v5609
        %v6922 = vpack.c.b16 %v5614, %v5610
        %v6923 = vpack.c.b16 %v5619, %v5615
        %v6924 = vpack.c.b16 %v5620, %v5616
        %v6925 = vpack.c.b16 %v5621, %v5617
        %v6926 = vpack.c.b16 %v5622, %v5618
        %v6927 = vpack.c.b16 %v5627, %v5623
        %v6928 = vpack.c.b16 %v5628, %v5624
        %v6929 = vpack.c.b16 %v5629, %v5625
        %v6930 = vpack.c.b16 %v5630, %v5626
        %v6931 = vpack.c.b16 %v5635, %v5631
        %v6932 = vpack.c.b16 %v5636, %v5632
        %v6933 = vpack.c.b16 %v5637, %v5633
        %v6934 = vpack.c.b16 %v5638, %v5634
        %v6935 = vpack.c.b16 %v5643, %v5639
        %v6936 = vpack.c.b16 %v5644, %v5640
        %v6937 = vpack.c.b16 %v5645, %v5641
        %v6938 = vpack.c.b16 %v5646, %v5642
        %v6939 = vpack.c.b16 %v5651, %v5647
        %v6940 = vpack.c.b16 %v5652, %v5648
        %v6941 = vpack.c.b16 %v5653, %v5649
        %v6942 = vpack.c.b16 %v5654, %v5650
        %v6943 = vpack.c.b16 %v5659, %v5655
        %v6944 = vpack.c.b16 %v5660, %v5656
        %v6945 = vpack.c.b16 %v5661, %v5657
        %v6946 = vpack.c.b16 %v5662, %v5658
        %v6947 = vpack.c.b16 %v5667, %v5663
        %v6948 = vpack.c.b16 %v5668, %v5664
        %v6949 = vpack.c.b16 %v5669, %v5665
        %v6950 = vpack.c.b16 %v5670, %v5666
        %v6951 = vpack.c.b16 %v5675, %v5671
        %v6952 = vpack.c.b16 %v5676, %v5672
        %v6953 = vpack.c.b16 %v5677, %v5673
        %v6954 = vpack.c.b16 %v5678, %v5674
        %v6955 = vpack.c.b16 %v5683, %v5679
        %v6956 = vpack.c.b16 %v5684, %v5680
        %v6957 = vpack.c.b16 %v5685, %v5681
        %v6958 = vpack.c.b16 %v5686, %v5682
        %v6959 = vpack.c.b16 %v5691, %v5687
        %v6960 = vpack.c.b16 %v5692, %v5688
        %v6961 = vpack.c.b16 %v5693, %v5689
        %v6962 = vpack.c.b16 %v5694, %v5690
        %v6963 = vpack.c.b16 %v5699, %v5695
        %v6964 = vpack.c.b16 %v5700, %v5696
        %v6965 = vpack.c.b16 %v5701, %v5697
        %v6966 = vpack.c.b16 %v5702, %v5698
        %v6967 = vpack.c.b16 %v5707, %v5703
        %v6968 = vpack.c.b16 %v5708, %v5704
        %v6969 = vpack.c.b16 %v5709, %v5705
        %v6970 = vpack.c.b16 %v5710, %v5706
        %v6971 = vpack.c.b16 %v5715, %v5711
        %v6972 = vpack.c.b16 %v5716, %v5712
        %v6973 = vpack.c.b16 %v5717, %v5713
        %v6974 = vpack.c.b16 %v5718, %v5714
        %v6975 = vpack.c.b16 %v5723, %v5719
        %v6976 = vpack.c.b16 %v5724, %v5720
        %v6977 = vpack.c.b16 %v5725, %v5721
        %v6978 = vpack.c.b16 %v5726, %v5722
        %v6979 = vpack.c.b16 %v5731, %v5727
        %v6980 = vpack.c.b16 %v5732, %v5728
        %v6981 = vpack.c.b16 %v5733, %v5729
        %v6982 = vpack.c.b16 %v5734, %v5730
        %v6983 = vpack.c.b16 %v5739, %v5735
        %v6984 = vpack.c.b16 %v5740, %v5736
        %v6985 = vpack.c.b16 %v5741, %v5737
        %v6986 = vpack.c.b16 %v5742, %v5738
        %v6987 = vpack.c.b16 %v5747, %v5743
        %v6988 = vpack.c.b16 %v5748, %v5744
        %v6989 = vpack.c.b16 %v5749, %v5745
        %v6990 = vpack.c.b16 %v5750, %v5746
        %v6991 = vpack.c.b16 %v5755, %v5751
        %v6992 = vpack.c.b16 %v5756, %v5752
        %v6993 = vpack.c.b16 %v5757, %v5753
        %v6994 = vpack.c.b16 %v5758, %v5754
        %v6995 = vpack.c.b16 %v5763, %v5759
        %v6996 = vpack.c.b16 %v5764, %v5760
        %v6997 = vpack.c.b16 %v5765, %v5761
        %v6998 = vpack.c.b16 %v5766, %v5762
        %v6999 = vpack.c.b16 %v5771, %v5767
        %v7000 = vpack.c.b16 %v5772, %v5768
        %v7001 = vpack.c.b16 %v5773, %v5769
        %v7002 = vpack.c.b16 %v5774, %v5770
        %v7003 = vpack.c.b16 %v5779, %v5775
        %v7004 = vpack.c.b16 %v5780, %v5776
        %v7005 = vpack.c.b16 %v5781, %v5777
        %v7006 = vpack.c.b16 %v5782, %v5778
        %v7007 = vpack.c.b16 %v5787, %v5783
        %v7008 = vpack.c.b16 %v5788, %v5784
        %v7009 = vpack.c.b16 %v5789, %v5785
        %v7010 = vpack.c.b16 %v5790, %v5786
        %v7011 = vpack.c.b16 %v5795, %v5791
        %v7012 = vpack.c.b16 %v5796, %v5792
        %v7013 = vpack.c.b16 %v5797, %v5793
        %v7014 = vpack.c.b16 %v5798, %v5794
        %v7015 = vpack.c.b16 %v5803, %v5799
        %v7016 = vpack.c.b16 %v5804, %v5800
        %v7017 = vpack.c.b16 %v5805, %v5801
        %v7018 = vpack.c.b16 %v5806, %v5802
        %v7019 = vpack.c.b16 %v5811, %v5807
        %v7020 = vpack.c.b16 %v5812, %v5808
        %v7021 = vpack.c.b16 %v5813, %v5809
        %v7022 = vpack.c.b16 %v5814, %v5810
        %v7023 = vpack.c.b16 %v5819, %v5815
        %v7024 = vpack.c.b16 %v5820, %v5816
        %v7025 = vpack.c.b16 %v5821, %v5817
        %v7026 = vpack.c.b16 %v5822, %v5818
        %v7027 = vpack.c.b16 %v5827, %v5823
        %v7028 = vpack.c.b16 %v5828, %v5824
        %v7029 = vpack.c.b16 %v5829, %v5825
        %v7030 = vpack.c.b16 %v5830, %v5826
        %v7031 = vpack.c.b16 %v5835, %v5831
        %v7032 = vpack.c.b16 %v5836, %v5832
        %v7033 = vpack.c.b16 %v5837, %v5833
        %v7034 = vpack.c.b16 %v5838, %v5834
        %v7035 = vpack.c.b16 %v5843, %v5839
        %v7036 = vpack.c.b16 %v5844, %v5840
        %v7037 = vpack.c.b16 %v5845, %v5841
        %v7038 = vpack.c.b16 %v5846, %v5842
        %v7039 = vpack.c.b16 %v5851, %v5847
        %v7040 = vpack.c.b16 %v5852, %v5848
        %v7041 = vpack.c.b16 %v5853, %v5849
        %v7042 = vpack.c.b16 %v5854, %v5850
        %v7043 = vpack.c.b16 %v5859, %v5855
        %v7044 = vpack.c.b16 %v5860, %v5856
        %v7045 = vpack.c.b16 %v5861, %v5857
        %v7046 = vpack.c.b16 %v5862, %v5858
        %v7047 = vpack.c.b16 %v5867, %v5863
        %v7048 = vpack.c.b16 %v5868, %v5864
        %v7049 = vpack.c.b16 %v5869, %v5865
        %v7050 = vpack.c.b16 %v5870, %v5866
        %v7051 = vpack.c.b16 %v5875, %v5871
        %v7052 = vpack.c.b16 %v5876, %v5872
        %v7053 = vpack.c.b16 %v5877, %v5873
        %v7054 = vpack.c.b16 %v5878, %v5874
        %v7055 = vpack.c.b16 %v5883, %v5879
        %v7056 = vpack.c.b16 %v5884, %v5880
        %v7057 = vpack.c.b16 %v5885, %v5881
        %v7058 = vpack.c.b16 %v5886, %v5882
        %v7059 = vpack.c.b16 %v5891, %v5887
        %v7060 = vpack.c.b16 %v5892, %v5888
        %v7061 = vpack.c.b16 %v5893, %v5889
        %v7062 = vpack.c.b16 %v5894, %v5890
        %v7063 = vpack.c.b16 %v5899, %v5895
        %v7064 = vpack.c.b16 %v5900, %v5896
        %v7065 = vpack.c.b16 %v5901, %v5897
        %v7066 = vpack.c.b16 %v5902, %v5898
        %v7067 = vpack.c.b16 %v5907, %v5903
        %v7068 = vpack.c.b16 %v5908, %v5904
        %v7069 = vpack.c.b16 %v5909, %v5905
        %v7070 = vpack.c.b16 %v5910, %v5906
        %v7071 = vpack.c.b16 %v5915, %v5911
        %v7072 = vpack.c.b16 %v5916, %v5912
        %v7073 = vpack.c.b16 %v5917, %v5913
        %v7074 = vpack.c.b16 %v5918, %v5914
        %v7075 = vpack.c.b16 %v5923, %v5919
        %v7076 = vpack.c.b16 %v5924, %v5920
        %v7077 = vpack.c.b16 %v5925, %v5921
        %v7078 = vpack.c.b16 %v5926, %v5922
        %v7079 = vpack.c.b16 %v5931, %v5927
        %v7080 = vpack.c.b16 %v5932, %v5928
        %v7081 = vpack.c.b16 %v5933, %v5929
        %v7082 = vpack.c.b16 %v5934, %v5930
        %v7083 = vpack.c.b16 %v5939, %v5935
        %v7084 = vpack.c.b16 %v5940, %v5936
        %v7085 = vpack.c.b16 %v5941, %v5937
        %v7086 = vpack.c.b16 %v5942, %v5938
        %v7087 = vpack.c.b16 %v5947, %v5943
        %v7088 = vpack.c.b16 %v5948, %v5944
        %v7089 = vpack.c.b16 %v5949, %v5945
        %v7090 = vpack.c.b16 %v5950, %v5946
        %v7091 = vpack.c.b16 %v5955, %v5951
        %v7092 = vpack.c.b16 %v5956, %v5952
        %v7093 = vpack.c.b16 %v5957, %v5953
        %v7094 = vpack.c.b16 %v5958, %v5954
        %v7095 = vpack.c.b16 %v5963, %v5959
        %v7096 = vpack.c.b16 %v5964, %v5960
        %v7097 = vpack.c.b16 %v5965, %v5961
        %v7098 = vpack.c.b16 %v5966, %v5962
        %v7099 = vpack.c.b16 %v5971, %v5967
        %v7100 = vpack.c.b16 %v5972, %v5968
        %v7101 = vpack.c.b16 %v5973, %v5969
        %v7102 = vpack.c.b16 %v5974, %v5970
        %v7103 = vpack.c.b16 %v5979, %v5975
        %v7104 = vpack.c.b16 %v5980, %v5976
        %v7105 = vpack.c.b16 %v5981, %v5977
        %v7106 = vpack.c.b16 %v5982, %v5978
        %v7107 = vpack.c.b16 %v5987, %v5983
        %v7108 = vpack.c.b16 %v5988, %v5984
        %v7109 = vpack.c.b16 %v5989, %v5985
        %v7110 = vpack.c.b16 %v5990, %v5986
        %v7111 = vpack.c.b16 %v5995, %v5991
        %v7112 = vpack.c.b16 %v5996, %v5992
        %v7113 = vpack.c.b16 %v5997, %v5993
        %v7114 = vpack.c.b16 %v5998, %v5994
        %v7115 = vpack.c.b16 %v6003, %v5999
        %v7116 = vpack.c.b16 %v6004, %v6000
        %v7117 = vpack.c.b16 %v6005, %v6001
        %v7118 = vpack.c.b16 %v6006, %v6002
        %v7119 = vpack.c.b16 %v6011, %v6007
        %v7120 = vpack.c.b16 %v6012, %v6008
        %v7121 = vpack.c.b16 %v6013, %v6009
        %v7122 = vpack.c.b16 %v6014, %v6010
        %v7123 = vpack.c.b16 %v6019, %v6015
        %v7124 = vpack.c.b16 %v6020, %v6016
        %v7125 = vpack.c.b16 %v6021, %v6017
        %v7126 = vpack.c.b16 %v6022, %v6018
        %v7127 = vpack.c.b16 %v6027, %v6023
        %v7128 = vpack.c.b16 %v6028, %v6024
        %v7129 = vpack.c.b16 %v6029, %v6025
        %v7130 = vpack.c.b16 %v6030, %v6026
        %v7131 = vpack.c.b16 %v6035, %v6031
        %v7132 = vpack.c.b16 %v6036, %v6032
        %v7133 = vpack.c.b16 %v6037, %v6033
        %v7134 = vpack.c.b16 %v6038, %v6034
        %v7135 = vpack.c.b16 %v6043, %v6039
        %v7136 = vpack.c.b16 %v6044, %v6040
        %v7137 = vpack.c.b16 %v6045, %v6041
        %v7138 = vpack.c.b16 %v6046, %v6042
        %v7139 = vpack.c.b16 %v6051, %v6047
        %v7140 = vpack.c.b16 %v6052, %v6048
        %v7141 = vpack.c.b16 %v6053, %v6049
        %v7142 = vpack.c.b16 %v6054, %v6050
        %v7143 = vpack.c.b16 %v6059, %v6055
        %v7144 = vpack.c.b16 %v6060, %v6056
        %v7145 = vpack.c.b16 %v6061, %v6057
        %v7146 = vpack.c.b16 %v6062, %v6058
        %v7147 = vpack.c.b16 %v6067, %v6063
        %v7148 = vpack.c.b16 %v6068, %v6064
        %v7149 = vpack.c.b16 %v6069, %v6065
        %v7150 = vpack.c.b16 %v6070, %v6066
        %v7151 = vpack.c.b16 %v6075, %v6071
        %v7152 = vpack.c.b16 %v6076, %v6072
        %v7153 = vpack.c.b16 %v6077, %v6073
        %v7154 = vpack.c.b16 %v6078, %v6074
        %v7155 = vpack.c.b16 %v6083, %v6079
        %v7156 = vpack.c.b16 %v6084, %v6080
        %v7157 = vpack.c.b16 %v6085, %v6081
        %v7158 = vpack.c.b16 %v6086, %v6082
        %v7159 = vpack.c.b16 %v6091, %v6087
        %v7160 = vpack.c.b16 %v6092, %v6088
        %v7161 = vpack.c.b16 %v6093, %v6089
        %v7162 = vpack.c.b16 %v6094, %v6090
        %v7163 = vpack.c.b16 %v6099, %v6095
        %v7164 = vpack.c.b16 %v6100, %v6096
        %v7165 = vpack.c.b16 %v6101, %v6097
        %v7166 = vpack.c.b16 %v6102, %v6098
        %v7167 = vpack.c.b16 %v6107, %v6103
        %v7168 = vpack.c.b16 %v6108, %v6104
        %v7169 = vpack.c.b16 %v6109, %v6105
        %v7170 = vpack.c.b16 %v6110, %v6106
        %v7171 = vpack.c.b16 %v6115, %v6111
        %v7172 = vpack.c.b16 %v6116, %v6112
        %v7173 = vpack.c.b16 %v6117, %v6113
        %v7174 = vpack.c.b16 %v6118, %v6114
        %v7175 = vpack.c.b16 %v6123, %v6119
        %v7176 = vpack.c.b16 %v6124, %v6120
        %v7177 = vpack.c.b16 %v6125, %v6121
        %v7178 = vpack.c.b16 %v6126, %v6122
        %v7179 = vpack.c.b16 %v6131, %v6127
        %v7180 = vpack.c.b16 %v6132, %v6128
        %v7181 = vpack.c.b16 %v6133, %v6129
        %v7182 = vpack.c.b16 %v6134, %v6130
        %v7183 = vpack.c.b16 %v6139, %v6135
        %v7184 = vpack.c.b16 %v6140, %v6136
        %v7185 = vpack.c.b16 %v6141, %v6137
        %v7186 = vpack.c.b16 %v6142, %v6138
        %v7187 = vpack.c.b16 %v6147, %v6143
        %v7188 = vpack.c.b16 %v6148, %v6144
        %v7189 = vpack.c.b16 %v6149, %v6145
        %v7190 = vpack.c.b16 %v6150, %v6146
        %v7191 = vpack.c.b16 %v6155, %v6151
        %v7192 = vpack.c.b16 %v6156, %v6152
        %v7193 = vpack.c.b16 %v6157, %v6153
        %v7194 = vpack.c.b16 %v6158, %v6154
        %v7195 = vpack.c.b16 %v6163, %v6159
        %v7196 = vpack.c.b16 %v6164, %v6160
        %v7197 = vpack.c.b16 %v6165, %v6161
        %v7198 = vpack.c.b16 %v6166, %v6162
        %v7199 = vpack.c.b16 %v6171, %v6167
        %v7200 = vpack.c.b16 %v6172, %v6168
        %v7201 = vpack.c.b16 %v6173, %v6169
        %v7202 = vpack.c.b16 %v6174, %v6170
        %v7203 = vpack.c.b16 %v6179, %v6175
        %v7204 = vpack.c.b16 %v6180, %v6176
        %v7205 = vpack.c.b16 %v6181, %v6177
        %v7206 = vpack.c.b16 %v6182, %v6178
        %v7207 = vpack.c.b16 %v6187, %v6183
        %v7208 = vpack.c.b16 %v6188, %v6184
        %v7209 = vpack.c.b16 %v6189, %v6185
        %v7210 = vpack.c.b16 %v6190, %v6186
        %v7211 = vpack.c.b16 %v6195, %v6191
        %v7212 = vpack.c.b16 %v6196, %v6192
        %v7213 = vpack.c.b16 %v6197, %v6193
        %v7214 = vpack.c.b16 %v6198, %v6194
        %v7215 = vpack.c.b16 %v6203, %v6199
        %v7216 = vpack.c.b16 %v6204, %v6200
        %v7217 = vpack.c.b16 %v6205, %v6201
        %v7218 = vpack.c.b16 %v6206, %v6202
        %v7219 = vpack.c.b16 %v6211, %v6207
        %v7220 = vpack.c.b16 %v6212, %v6208
        %v7221 = vpack.c.b16 %v6213, %v6209
        %v7222 = vpack.c.b16 %v6214, %v6210
        %v7223 = vpack.c.b16 %v6219, %v6215
        %v7224 = vpack.c.b16 %v6220, %v6216
        %v7225 = vpack.c.b16 %v6221, %v6217
        %v7226 = vpack.c.b16 %v6222, %v6218
        %v7227 = vpack.c.b16 %v6227, %v6223
        %v7228 = vpack.c.b16 %v6228, %v6224
        %v7229 = vpack.c.b16 %v6229, %v6225
        %v7230 = vpack.c.b16 %v6230, %v6226
        %v7231 = vpack.c.b16 %v6235, %v6231
        %v7232 = vpack.c.b16 %v6236, %v6232
        %v7233 = vpack.c.b16 %v6237, %v6233
        %v7234 = vpack.c.b16 %v6238, %v6234
        %v7235 = vpack.c.b16 %v6243, %v6239
        %v7236 = vpack.c.b16 %v6244, %v6240
        %v7237 = vpack.c.b16 %v6245, %v6241
        %v7238 = vpack.c.b16 %v6246, %v6242
        %v7239 = vpack.c.b16 %v6251, %v6247
        %v7240 = vpack.c.b16 %v6252, %v6248
        %v7241 = vpack.c.b16 %v6253, %v6249
        %v7242 = vpack.c.b16 %v6254, %v6250
        %v7243 = vpack.c.b16 %v6259, %v6255
        %v7244 = vpack.c.b16 %v6260, %v6256
        %v7245 = vpack.c.b16 %v6261, %v6257
        %v7246 = vpack.c.b16 %v6262, %v6258
        %v7247 = vpack.c.b16 %v6267, %v6263
        %v7248 = vpack.c.b16 %v6268, %v6264
        %v7249 = vpack.c.b16 %v6269, %v6265
        %v7250 = vpack.c.b16 %v6270, %v6266
        %v7251 = vpack.c.b16 %v6275, %v6271
        %v7252 = vpack.c.b16 %v6276, %v6272
        %v7253 = vpack.c.b16 %v6277, %v6273
        %v7254 = vpack.c.b16 %v6278, %v6274
        %v7255 = vpack.c.b16 %v6283, %v6279
        %v7256 = vpack.c.b16 %v6284, %v6280
        %v7257 = vpack.c.b16 %v6285, %v6281
        %v7258 = vpack.c.b16 %v6286, %v6282
        %v7259 = vpack.c.b16 %v6291, %v6287
        %v7260 = vpack.c.b16 %v6292, %v6288
        %v7261 = vpack.c.b16 %v6293, %v6289
        %v7262 = vpack.c.b16 %v6294, %v6290
        %v7263 = vpack.c.b16 %v6299, %v6295
        %v7264 = vpack.c.b16 %v6300, %v6296
        %v7265 = vpack.c.b16 %v6301, %v6297
        %v7266 = vpack.c.b16 %v6302, %v6298
        %v7267 = vpack.c.b16 %v6307, %v6303
        %v7268 = vpack.c.b16 %v6308, %v6304
        %v7269 = vpack.c.b16 %v6309, %v6305
        %v7270 = vpack.c.b16 %v6310, %v6306
        %v7271 = vpack.c.b16 %v6315, %v6311
        %v7272 = vpack.c.b16 %v6316, %v6312
        %v7273 = vpack.c.b16 %v6317, %v6313
        %v7274 = vpack.c.b16 %v6318, %v6314
        %v7275 = vpack.c.b16 %v6323, %v6319
        %v7276 = vpack.c.b16 %v6324, %v6320
        %v7277 = vpack.c.b16 %v6325, %v6321
        %v7278 = vpack.c.b16 %v6326, %v6322
        %v7279 = vpack.c.b16 %v6331, %v6327
        %v7280 = vpack.c.b16 %v6332, %v6328
        %v7281 = vpack.c.b16 %v6333, %v6329
        %v7282 = vpack.c.b16 %v6334, %v6330
        %v7283 = vpack.c.b16 %v6339, %v6335
        %v7284 = vpack.c.b16 %v6340, %v6336
        %v7285 = vpack.c.b16 %v6341, %v6337
        %v7286 = vpack.c.b16 %v6342, %v6338
        %v7287 = vpack.c.b16 %v6347, %v6343
        %v7288 = vpack.c.b16 %v6348, %v6344
        %v7289 = vpack.c.b16 %v6349, %v6345
        %v7290 = vpack.c.b16 %v6350, %v6346
        %v7291 = vpack.c.b16 %v6355, %v6351
        %v7292 = vpack.c.b16 %v6356, %v6352
        %v7293 = vpack.c.b16 %v6357, %v6353
        %v7294 = vpack.c.b16 %v6358, %v6354
        %v7295 = vpack.c.b16 %v6363, %v6359
        %v7296 = vpack.c.b16 %v6364, %v6360
        %v7297 = vpack.c.b16 %v6365, %v6361
        %v7298 = vpack.c.b16 %v6366, %v6362
        %v7299 = vpack.c.b16 %v6371, %v6367
        %v7300 = vpack.c.b16 %v6372, %v6368
        %v7301 = vpack.c.b16 %v6373, %v6369
        %v7302 = vpack.c.b16 %v6374, %v6370
        %v7303 = vpack.c.b16 %v6379, %v6375
        %v7304 = vpack.c.b16 %v6380, %v6376
        %v7305 = vpack.c.b16 %v6381, %v6377
        %v7306 = vpack.c.b16 %v6382, %v6378
        %v7307 = vpack.c.b16 %v6387, %v6383
        %v7308 = vpack.c.b16 %v6388, %v6384
        %v7309 = vpack.c.b16 %v6389, %v6385
        %v7310 = vpack.c.b16 %v6390, %v6386
        %v7311 = vpack.c.b16 %v6395, %v6391
        %v7312 = vpack.c.b16 %v6396, %v6392
        %v7313 = vpack.c.b16 %v6397, %v6393
        %v7314 = vpack.c.b16 %v6398, %v6394
        %v7315 = vpack.c.b16 %v6403, %v6399
        %v7316 = vpack.c.b16 %v6404, %v6400
        %v7317 = vpack.c.b16 %v6405, %v6401
        %v7318 = vpack.c.b16 %v6406, %v6402
        %v7319 = vpack.c.b16 %v6411, %v6407
        %v7320 = vpack.c.b16 %v6412, %v6408
        %v7321 = vpack.c.b16 %v6413, %v6409
        %v7322 = vpack.c.b16 %v6414, %v6410
        %v7323 = vpack.c.b16 %v6419, %v6415
        %v7324 = vpack.c.b16 %v6420, %v6416
        %v7325 = vpack.c.b16 %v6421, %v6417
        %v7326 = vpack.c.b16 %v6422, %v6418
        %v7327 = vpack.c.b16 %v6427, %v6423
        %v7328 = vpack.c.b16 %v6428, %v6424
        %v7329 = vpack.c.b16 %v6429, %v6425
        %v7330 = vpack.c.b16 %v6430, %v6426
        %v7331 = vpack.c.b16 %v6435, %v6431
        %v7332 = vpack.c.b16 %v6436, %v6432
        %v7333 = vpack.c.b16 %v6437, %v6433
        %v7334 = vpack.c.b16 %v6438, %v6434
        %v7335 = vpack.c.b16 %v6443, %v6439
        %v7336 = vpack.c.b16 %v6444, %v6440
        %v7337 = vpack.c.b16 %v6445, %v6441
        %v7338 = vpack.c.b16 %v6446, %v6442
        %v7339 = vpack.c.b16 %v6451, %v6447
        %v7340 = vpack.c.b16 %v6452, %v6448
        %v7341 = vpack.c.b16 %v6453, %v6449
        %v7342 = vpack.c.b16 %v6454, %v6450
        %v7343 = vpack.c.b16 %v6459, %v6455
        %v7344 = vpack.c.b16 %v6460, %v6456
        %v7345 = vpack.c.b16 %v6461, %v6457
        %v7346 = vpack.c.b16 %v6462, %v6458
        %v7347 = vpack.c.b16 %v6467, %v6463
        %v7348 = vpack.c.b16 %v6468, %v6464
        %v7349 = vpack.c.b16 %v6469, %v6465
        %v7350 = vpack.c.b16 %v6470, %v6466
        %v7351 = vpack.c.b16 %v6475, %v6471
        %v7352 = vpack.c.b16 %v6476, %v6472
        %v7353 = vpack.c.b16 %v6477, %v6473
        %v7354 = vpack.c.b16 %v6478, %v6474
        %v7355 = vpack.c.b16 %v6483, %v6479
        %v7356 = vpack.c.b16 %v6484, %v6480
        %v7357 = vpack.c.b16 %v6485, %v6481
        %v7358 = vpack.c.b16 %v6486, %v6482
        %v7359 = vpack.c.b16 %v6491, %v6487
        %v7360 = vpack.c.b16 %v6492, %v6488
        %v7361 = vpack.c.b16 %v6493, %v6489
        %v7362 = vpack.c.b16 %v6494, %v6490
        %v7363 = vpack.c.b16 %v6499, %v6495
        %v7364 = vpack.c.b16 %v6500, %v6496
        %v7365 = vpack.c.b16 %v6501, %v6497
        %v7366 = vpack.c.b16 %v6502, %v6498
        %v7367 = vpack.c.b16 %v6507, %v6503
        %v7368 = vpack.c.b16 %v6508, %v6504
        %v7369 = vpack.c.b16 %v6509, %v6505
        %v7370 = vpack.c.b16 %v6510, %v6506
        %v7371 = vpack.c.b16 %v6515, %v6511
        %v7372 = vpack.c.b16 %v6516, %v6512
        %v7373 = vpack.c.b16 %v6517, %v6513
        %v7374 = vpack.c.b16 %v6518, %v6514
        %v7375 = vpack.c.b16 %v6523, %v6519
        %v7376 = vpack.c.b16 %v6524, %v6520
        %v7377 = vpack.c.b16 %v6525, %v6521
        %v7378 = vpack.c.b16 %v6526, %v6522
        %v7379 = vpack.c.b16 %v6531, %v6527
        %v7380 = vpack.c.b16 %v6532, %v6528
        %v7381 = vpack.c.b16 %v6533, %v6529
        %v7382 = vpack.c.b16 %v6534, %v6530
        %v7383 = vpack.c.b16 %v6539, %v6535
        %v7384 = vpack.c.b16 %v6540, %v6536
        %v7385 = vpack.c.b16 %v6541, %v6537
        %v7386 = vpack.c.b16 %v6542, %v6538
        %v7387 = vpack.c.b16 %v6547, %v6543
        %v7388 = vpack.c.b16 %v6548, %v6544
        %v7389 = vpack.c.b16 %v6549, %v6545
        %v7390 = vpack.c.b16 %v6550, %v6546
        %v7391 = vpack.c.b16 %v6555, %v6551
        %v7392 = vpack.c.b16 %v6556, %v6552
        %v7393 = vpack.c.b16 %v6557, %v6553
        %v7394 = vpack.c.b16 %v6558, %v6554
        %v7395 = vpack.c.b16 %v6563, %v6559
        %v7396 = vpack.c.b16 %v6564, %v6560
        %v7397 = vpack.c.b16 %v6565, %v6561
        %v7398 = vpack.c.b16 %v6566, %v6562
        %v7399 = vpack.c.b16 %v6571, %v6567
        %v7400 = vpack.c.b16 %v6572, %v6568
        %v7401 = vpack.c.b16 %v6573, %v6569
        %v7402 = vpack.c.b16 %v6574, %v6570
        %v7403 = vpack.c.b16 %v6579, %v6575
        %v7404 = vpack.c.b16 %v6580, %v6576
        %v7405 = vpack.c.b16 %v6581, %v6577
        %v7406 = vpack.c.b16 %v6582, %v6578
        %v7407 = vpack.c.b16 %v6587, %v6583
        %v7408 = vpack.c.b16 %v6588, %v6584
        %v7409 = vpack.c.b16 %v6589, %v6585
        %v7410 = vpack.c.b16 %v6590, %v6586
        %v7411 = vpack.c.b16 %v6595, %v6591
        %v7412 = vpack.c.b16 %v6596, %v6592
        %v7413 = vpack.c.b16 %v6597, %v6593
        %v7414 = vpack.c.b16 %v6598, %v6594
        %v7415 = vpack.c.b16 %v6603, %v6599
        %v7416 = vpack.c.b16 %v6604, %v6600
        %v7417 = vpack.c.b16 %v6605, %v6601
        %v7418 = vpack.c.b16 %v6606, %v6602
        %v7419 = vpack.c.b16 %v6611, %v6607
        %v7420 = vpack.c.b16 %v6612, %v6608
        %v7421 = vpack.c.b16 %v6613, %v6609
        %v7422 = vpack.c.b16 %v6614, %v6610
        %v7423 = vpack.c.b16 %v6619, %v6615
        %v7424 = vpack.c.b16 %v6620, %v6616
        %v7425 = vpack.c.b16 %v6621, %v6617
        %v7426 = vpack.c.b16 %v6622, %v6618
        %v7427 = vpack.c.b16 %v6627, %v6623
        %v7428 = vpack.c.b16 %v6628, %v6624
        %v7429 = vpack.c.b16 %v6629, %v6625
        %v7430 = vpack.c.b16 %v6630, %v6626
        %v8232 = vlaneseq
        %v8233 = vshrl.u32 %v8232, 7
        %v8234 = vsub.s32 0, %v8233
        %v8235 = vrot.slane %v4230, %v8234
        %v8236 = vlaneseq
        %v8237 = vshrl.u32 %v8236, 7
        %v8238 = vsub.s32 1, %v8237
        %v8239 = vrot.slane %v4230, %v8238
        %v8240 = vlaneseq
        %v8241 = vshrl.u32 %v8240, 7
        %v8242 = vsub.s32 2, %v8241
        %v8243 = vrot.slane %v4230, %v8242
        %v8244 = vlaneseq
        %v8245 = vshrl.u32 %v8244, 7
        %v8246 = vsub.s32 3, %v8245
        %v8247 = vrot.slane %v4230, %v8246
        %8252 = vmatprep.subr.bf16.mxu0 %v6632
        %8253 = vmatpush1.bf16.msra.mxu0 %v6631
        %8254 = vmatprep.subr.bf16.mxu0 %v6636
        %8255 = vmatpush1.bf16.msra.mxu0 %v6635
        %8256 = vmatprep.subr.bf16.mxu0 %v6640
        %8257 = vmatpush1.bf16.msra.mxu0 %v6639
        %8258 = vmatprep.subr.bf16.mxu0 %v6644
        %8259 = vmatpush1.bf16.msra.mxu0 %v6643
        %8260 = vmatprep.subr.bf16.mxu0 %v6648
        %8261 = vmatpush1.bf16.msra.mxu0 %v6647
        %8262 = vmatprep.subr.bf16.mxu0 %v6652
        %8263 = vmatpush1.bf16.msra.mxu0 %v6651
        %8264 = vmatprep.subr.bf16.mxu0 %v6656
        %8265 = vmatpush1.bf16.msra.mxu0 %v6655
        %8266 = vmatprep.subr.bf16.mxu0 %v6660
        %8267 = vmatpush1.bf16.msra.mxu0 %v6659
        %8268 = vmatprep.subr.bf16.mxu0 %v6664
        %8269 = vmatpush1.bf16.msra.mxu0 %v6663
        %8270 = vmatprep.subr.bf16.mxu0 %v6668
        %8271 = vmatpush1.bf16.msra.mxu0 %v6667
        %8272 = vmatprep.subr.bf16.mxu0 %v6672
        %8273 = vmatpush1.bf16.msra.mxu0 %v6671
        %8274 = vmatprep.subr.bf16.mxu0 %v6676
        %8275 = vmatpush1.bf16.msra.mxu0 %v6675
        %8276 = vmatprep.subr.bf16.mxu0 %v6680
        %8277 = vmatpush1.bf16.msra.mxu0 %v6679
        %8278 = vmatprep.subr.bf16.mxu0 %v6684
        %8279 = vmatpush1.bf16.msra.mxu0 %v6683
        %8280 = vmatprep.subr.bf16.mxu0 %v6688
        %8281 = vmatpush1.bf16.msra.mxu0 %v6687
        %8282 = vmatprep.subr.bf16.mxu0 %v6692
        %8283 = vmatpush1.bf16.msra.mxu0 %v6691
        %8284 = vmatprep.mubr.bf16.mxu0 %v3406
        %8285 = vmatmul.mubr.bf16.gmra.mrb[0].mxu0 %v3405
        %v8286 = vpop.f32.mrb[0].mxu0
        %v8287 = vadd.f32 %v8235, %v8286
        %v8288 = vpop.f32.mrb[0].mxu0
        %v8289 = vadd.f32 %v8239, %v8288
        %v8290 = vpop.f32.mrb[0].mxu0
        %v8291 = vpop.f32.mrb[0].mxu0
        %8292 = vdwg.mxu0
        %8293 = vmatprep.subr.bf16.mxu0 %v6696
        %8294 = vmatpush1.bf16.msra.mxu0 %v6695
        %8295 = vmatprep.subr.bf16.mxu0 %v6700
        %8296 = vmatpush1.bf16.msra.mxu0 %v6699
        %8297 = vmatprep.subr.bf16.mxu0 %v6704
        %8298 = vmatpush1.bf16.msra.mxu0 %v6703
        %8299 = vmatprep.subr.bf16.mxu0 %v6708
        %8300 = vmatpush1.bf16.msra.mxu0 %v6707
        %8301 = vmatprep.subr.bf16.mxu0 %v6712
        %8302 = vmatpush1.bf16.msra.mxu0 %v6711
        %8303 = vmatprep.subr.bf16.mxu0 %v6716
        %8304 = vmatpush1.bf16.msra.mxu0 %v6715
        %8305 = vmatprep.subr.bf16.mxu0 %v6720
        %8306 = vmatpush1.bf16.msra.mxu0 %v6719
        %8307 = vmatprep.subr.bf16.mxu0 %v6724
        %8308 = vmatpush1.bf16.msra.mxu0 %v6723
        %8309 = vmatprep.subr.bf16.mxu0 %v6728
        %8310 = vmatpush1.bf16.msra.mxu0 %v6727
        %8311 = vmatprep.subr.bf16.mxu0 %v6732
        %8312 = vmatpush1.bf16.msra.mxu0 %v6731
        %8313 = vmatprep.subr.bf16.mxu0 %v6736
        %8314 = vmatpush1.bf16.msra.mxu0 %v6735
        %8315 = vmatprep.subr.bf16.mxu0 %v6740
        %8316 = vmatpush1.bf16.msra.mxu0 %v6739
        %8317 = vmatprep.subr.bf16.mxu0 %v6744
        %8318 = vmatpush1.bf16.msra.mxu0 %v6743
        %8319 = vmatprep.subr.bf16.mxu0 %v6748
        %8320 = vmatpush1.bf16.msra.mxu0 %v6747
        %8321 = vmatprep.subr.bf16.mxu0 %v6752
        %8322 = vmatpush1.bf16.msra.mxu0 %v6751
        %8323 = vmatprep.subr.bf16.mxu0 %v6756
        %8324 = vmatpush1.bf16.msra.mxu0 %v6755
        %8325 = vmatprep.mubr.bf16.mxu0 %v3408
        %8326 = vmatmul.mubr.bf16.gmra.mrb[0].mxu0 %v3407
        %v8327 = vpop.f32.mrb[0].mxu0
        %v8328 = vadd.f32 %v8287, %v8327
        %v8329 = vpop.f32.mrb[0].mxu0
        %v8330 = vadd.f32 %v8289, %v8329
        %v8331 = vpop.f32.mrb[0].mxu0
        %v8332 = vpop.f32.mrb[0].mxu0
        %8333 = vdwg.mxu0
        %8334 = vmatprep.subr.bf16.mxu0 %v6760
        %8335 = vmatpush1.bf16.msra.mxu0 %v6759
        %8336 = vmatprep.subr.bf16.mxu0 %v6764
        %8337 = vmatpush1.bf16.msra.mxu0 %v6763
        %8338 = vmatprep.subr.bf16.mxu0 %v6768
        %8339 = vmatpush1.bf16.msra.mxu0 %v6767
        %8340 = vmatprep.subr.bf16.mxu0 %v6772
        %8341 = vmatpush1.bf16.msra.mxu0 %v6771
        %8342 = vmatprep.subr.bf16.mxu0 %v6776
        %8343 = vmatpush1.bf16.msra.mxu0 %v6775
        %8344 = vmatprep.subr.bf16.mxu0 %v6780
        %8345 = vmatpush1.bf16.msra.mxu0 %v6779
        %8346 = vmatprep.subr.bf16.mxu0 %v6784
        %8347 = vmatpush1.bf16.msra.mxu0 %v6783
        %8348 = vmatprep.subr.bf16.mxu0 %v6788
        %8349 = vmatpush1.bf16.msra.mxu0 %v6787
        %8350 = vmatprep.subr.bf16.mxu0 %v6792
        %8351 = vmatpush1.bf16.msra.mxu0 %v6791
        %8352 = vmatprep.subr.bf16.mxu0 %v6796
        %8353 = vmatpush1.bf16.msra.mxu0 %v6795
        %8354 = vmatprep.subr.bf16.mxu0 %v6800
        %8355 = vmatpush1.bf16.msra.mxu0 %v6799
        %8356 = vmatprep.subr.bf16.mxu0 %v6804
        %8357 = vmatpush1.bf16.msra.mxu0 %v6803
        %8358 = vmatprep.subr.bf16.mxu0 %v6808
        %8359 = vmatpush1.bf16.msra.mxu0 %v6807
        %8360 = vmatprep.subr.bf16.mxu0 %v6812
        %8361 = vmatpush1.bf16.msra.mxu0 %v6811
        %8362 = vmatprep.subr.bf16.mxu0 %v6816
        %8363 = vmatpush1.bf16.msra.mxu0 %v6815
        %8364 = vmatprep.subr.bf16.mxu0 %v6820
        %8365 = vmatpush1.bf16.msra.mxu0 %v6819
        %8366 = vmatprep.mubr.bf16.mxu0 %v3410
        %8367 = vmatmul.mubr.bf16.gmra.mrb[0].mxu0 %v3409
        %v8368 = vpop.f32.mrb[0].mxu0
        %v8369 = vadd.f32 %v8328, %v8368
        %v8370 = vpop.f32.mrb[0].mxu0
        %v8371 = vadd.f32 %v8330, %v8370
        %v8372 = vpop.f32.mrb[0].mxu0
        %v8373 = vpop.f32.mrb[0].mxu0
        %8374 = vdwg.mxu0
        %8375 = vmatprep.subr.bf16.mxu0 %v6824
        %8376 = vmatpush1.bf16.msra.mxu0 %v6823
        %8377 = vmatprep.subr.bf16.mxu0 %v6828
        %8378 = vmatpush1.bf16.msra.mxu0 %v6827
        %8379 = vmatprep.subr.bf16.mxu0 %v6832
        %8380 = vmatpush1.bf16.msra.mxu0 %v6831
        %8381 = vmatprep.subr.bf16.mxu0 %v6836
        %8382 = vmatpush1.bf16.msra.mxu0 %v6835
        %8383 = vmatprep.subr.bf16.mxu0 %v6840
        %8384 = vmatpush1.bf16.msra.mxu0 %v6839
        %8385 = vmatprep.subr.bf16.mxu0 %v6844
        %8386 = vmatpush1.bf16.msra.mxu0 %v6843
        %8387 = vmatprep.subr.bf16.mxu0 %v6848
        %8388 = vmatpush1.bf16.msra.mxu0 %v6847
        %8389 = vmatprep.subr.bf16.mxu0 %v6852
        %8390 = vmatpush1.bf16.msra.mxu0 %v6851
        %8391 = vmatprep.subr.bf16.mxu0 %v6856
        %8392 = vmatpush1.bf16.msra.mxu0 %v6855
        %8393 = vmatprep.subr.bf16.mxu0 %v6860
        %8394 = vmatpush1.bf16.msra.mxu0 %v6859
        %8395 = vmatprep.subr.bf16.mxu0 %v6864
        %8396 = vmatpush1.bf16.msra.mxu0 %v6863
        %8397 = vmatprep.subr.bf16.mxu0 %v6868
        %8398 = vmatpush1.bf16.msra.mxu0 %v6867
        %8399 = vmatprep.subr.bf16.mxu0 %v6872
        %8400 = vmatpush1.bf16.msra.mxu0 %v6871
        %8401 = vmatprep.subr.bf16.mxu0 %v6876
        %8402 = vmatpush1.bf16.msra.mxu0 %v6875
        %8403 = vmatprep.subr.bf16.mxu0 %v6880
        %8404 = vmatpush1.bf16.msra.mxu0 %v6879
        %8405 = vmatprep.subr.bf16.mxu0 %v6884
        %8406 = vmatpush1.bf16.msra.mxu0 %v6883
        %8407 = vmatprep.mubr.bf16.mxu0 %v3412
        %8408 = vmatmul.mubr.bf16.gmra.mrb[0].mxu0 %v3411
        %v8409 = vpop.f32.mrb[0].mxu0
        %v8410 = vadd.f32 %v8369, %v8409
        %v8411 = vpop.f32.mrb[0].mxu0
        %v8412 = vadd.f32 %v8371, %v8411
        %v8413 = vpop.f32.mrb[0].mxu0
        %v8414 = vpop.f32.mrb[0].mxu0
        %8415 = vdwg.mxu0
        %8416 = vmatprep.subr.bf16.mxu0 %v6888
        %8417 = vmatpush1.bf16.msra.mxu0 %v6887
        %8418 = vmatprep.subr.bf16.mxu0 %v6892
        %8419 = vmatpush1.bf16.msra.mxu0 %v6891
        %8420 = vmatprep.subr.bf16.mxu0 %v6896
        %8421 = vmatpush1.bf16.msra.mxu0 %v6895
        %8422 = vmatprep.subr.bf16.mxu0 %v6900
        %8423 = vmatpush1.bf16.msra.mxu0 %v6899
        %8424 = vmatprep.subr.bf16.mxu0 %v6904
        %8425 = vmatpush1.bf16.msra.mxu0 %v6903
        %8426 = vmatprep.subr.bf16.mxu0 %v6908
        %8427 = vmatpush1.bf16.msra.mxu0 %v6907
        %8428 = vmatprep.subr.bf16.mxu0 %v6912
        %8429 = vmatpush1.bf16.msra.mxu0 %v6911
        %8430 = vmatprep.subr.bf16.mxu0 %v6916
        %8431 = vmatpush1.bf16.msra.mxu0 %v6915
        %8432 = vmatprep.subr.bf16.mxu0 %v6920
        %8433 = vmatpush1.bf16.msra.mxu0 %v6919
        %8434 = vmatprep.subr.bf16.mxu0 %v6924
        %8435 = vmatpush1.bf16.msra.mxu0 %v6923
        %8436 = vmatprep.subr.bf16.mxu0 %v6928
        %8437 = vmatpush1.bf16.msra.mxu0 %v6927
        %8438 = vmatprep.subr.bf16.mxu0 %v6932
        %8439 = vmatpush1.bf16.msra.mxu0 %v6931
        %8440 = vmatprep.subr.bf16.mxu0 %v6936
        %8441 = vmatpush1.bf16.msra.mxu0 %v6935
        %8442 = vmatprep.subr.bf16.mxu0 %v6940
        %8443 = vmatpush1.bf16.msra.mxu0 %v6939
        %8444 = vmatprep.subr.bf16.mxu0 %v6944
        %8445 = vmatpush1.bf16.msra.mxu0 %v6943
        %8446 = vmatprep.subr.bf16.mxu0 %v6948
        %8447 = vmatpush1.bf16.msra.mxu0 %v6947
        %8448 = vmatprep.mubr.bf16.mxu0 %v3414
        %8449 = vmatmul.mubr.bf16.gmra.mrb[0].mxu0 %v3413
        %v8450 = vpop.f32.mrb[0].mxu0
        %v8451 = vadd.f32 %v8410, %v8450
        %v8452 = vpop.f32.mrb[0].mxu0
        %v8453 = vadd.f32 %v8412, %v8452
        %v8454 = vpop.f32.mrb[0].mxu0
        %v8455 = vpop.f32.mrb[0].mxu0
        %8456 = vdwg.mxu0
        %8457 = vmatprep.subr.bf16.mxu0 %v6952
        %8458 = vmatpush1.bf16.msra.mxu0 %v6951
        %8459 = vmatprep.subr.bf16.mxu0 %v6956
        %8460 = vmatpush1.bf16.msra.mxu0 %v6955
        %8461 = vmatprep.subr.bf16.mxu0 %v6960
        %8462 = vmatpush1.bf16.msra.mxu0 %v6959
        %8463 = vmatprep.subr.bf16.mxu0 %v6964
        %8464 = vmatpush1.bf16.msra.mxu0 %v6963
        %8465 = vmatprep.subr.bf16.mxu0 %v6968
        %8466 = vmatpush1.bf16.msra.mxu0 %v6967
        %8467 = vmatprep.subr.bf16.mxu0 %v6972
        %8468 = vmatpush1.bf16.msra.mxu0 %v6971
        %8469 = vmatprep.subr.bf16.mxu0 %v6976
        %8470 = vmatpush1.bf16.msra.mxu0 %v6975
        %8471 = vmatprep.subr.bf16.mxu0 %v6980
        %8472 = vmatpush1.bf16.msra.mxu0 %v6979
        %8473 = vmatprep.subr.bf16.mxu0 %v6984
        %8474 = vmatpush1.bf16.msra.mxu0 %v6983
        %8475 = vmatprep.subr.bf16.mxu0 %v6988
        %8476 = vmatpush1.bf16.msra.mxu0 %v6987
        %8477 = vmatprep.subr.bf16.mxu0 %v6992
        %8478 = vmatpush1.bf16.msra.mxu0 %v6991
        %8479 = vmatprep.subr.bf16.mxu0 %v6996
        %8480 = vmatpush1.bf16.msra.mxu0 %v6995
        %8481 = vmatprep.subr.bf16.mxu0 %v7000
        %8482 = vmatpush1.bf16.msra.mxu0 %v6999
        %8483 = vmatprep.subr.bf16.mxu0 %v7004
        %8484 = vmatpush1.bf16.msra.mxu0 %v7003
        %8485 = vmatprep.subr.bf16.mxu0 %v7008
        %8486 = vmatpush1.bf16.msra.mxu0 %v7007
        %8487 = vmatprep.subr.bf16.mxu0 %v7012
        %8488 = vmatpush1.bf16.msra.mxu0 %v7011
        %8489 = vmatprep.mubr.bf16.mxu0 %v3416
        %8490 = vmatmul.mubr.bf16.gmra.mrb[0].mxu0 %v3415
        %v8491 = vpop.f32.mrb[0].mxu0
        %v8492 = vadd.f32 %v8451, %v8491
        %v8493 = vpop.f32.mrb[0].mxu0
        %v8494 = vadd.f32 %v8453, %v8493
        %v8495 = vpop.f32.mrb[0].mxu0
        %v8496 = vpop.f32.mrb[0].mxu0
        %8497 = vdwg.mxu0
        %8498 = vmatprep.subr.bf16.mxu0 %v7016
        %8499 = vmatpush1.bf16.msra.mxu0 %v7015
        %8500 = vmatprep.subr.bf16.mxu0 %v7020
        %8501 = vmatpush1.bf16.msra.mxu0 %v7019
        %8502 = vmatprep.subr.bf16.mxu0 %v7024
        %8503 = vmatpush1.bf16.msra.mxu0 %v7023
        %8504 = vmatprep.subr.bf16.mxu0 %v7028
        %8505 = vmatpush1.bf16.msra.mxu0 %v7027
        %8506 = vmatprep.subr.bf16.mxu0 %v7032
        %8507 = vmatpush1.bf16.msra.mxu0 %v7031
        %8508 = vmatprep.subr.bf16.mxu0 %v7036
        %8509 = vmatpush1.bf16.msra.mxu0 %v7035
        %8510 = vmatprep.subr.bf16.mxu0 %v7040
        %8511 = vmatpush1.bf16.msra.mxu0 %v7039
        %8512 = vmatprep.subr.bf16.mxu0 %v7044
        %8513 = vmatpush1.bf16.msra.mxu0 %v7043
        %8514 = vmatprep.subr.bf16.mxu0 %v7048
        %8515 = vmatpush1.bf16.msra.mxu0 %v7047
        %8516 = vmatprep.subr.bf16.mxu0 %v7052
        %8517 = vmatpush1.bf16.msra.mxu0 %v7051
        %8518 = vmatprep.subr.bf16.mxu0 %v7056
        %8519 = vmatpush1.bf16.msra.mxu0 %v7055
        %8520 = vmatprep.subr.bf16.mxu0 %v7060
        %8521 = vmatpush1.bf16.msra.mxu0 %v7059
        %8522 = vmatprep.subr.bf16.mxu0 %v7064
        %8523 = vmatpush1.bf16.msra.mxu0 %v7063
        %8524 = vmatprep.subr.bf16.mxu0 %v7068
        %8525 = vmatpush1.bf16.msra.mxu0 %v7067
        %8526 = vmatprep.subr.bf16.mxu0 %v7072
        %8527 = vmatpush1.bf16.msra.mxu0 %v7071
        %8528 = vmatprep.subr.bf16.mxu0 %v7076
        %8529 = vmatpush1.bf16.msra.mxu0 %v7075
        %8530 = vmatprep.mubr.bf16.mxu0 %v3418
        %8531 = vmatmul.mubr.bf16.gmra.mrb[0].mxu0 %v3417
        %v8532 = vpop.f32.mrb[0].mxu0
        %v8533 = vadd.f32 %v8492, %v8532
        %v8534 = vpop.f32.mrb[0].mxu0
        %v8535 = vadd.f32 %v8494, %v8534
        %v8536 = vpop.f32.mrb[0].mxu0
        %v8537 = vpop.f32.mrb[0].mxu0
        %8538 = vdwg.mxu0
        %8539 = vmatprep.subr.bf16.mxu0 %v7080
        %8540 = vmatpush1.bf16.msra.mxu0 %v7079
        %8541 = vmatprep.subr.bf16.mxu0 %v7084
        %8542 = vmatpush1.bf16.msra.mxu0 %v7083
        %8543 = vmatprep.subr.bf16.mxu0 %v7088
        %8544 = vmatpush1.bf16.msra.mxu0 %v7087
        %8545 = vmatprep.subr.bf16.mxu0 %v7092
        %8546 = vmatpush1.bf16.msra.mxu0 %v7091
        %8547 = vmatprep.subr.bf16.mxu0 %v7096
        %8548 = vmatpush1.bf16.msra.mxu0 %v7095
        %8549 = vmatprep.subr.bf16.mxu0 %v7100
        %8550 = vmatpush1.bf16.msra.mxu0 %v7099
        %8551 = vmatprep.subr.bf16.mxu0 %v7104
        %8552 = vmatpush1.bf16.msra.mxu0 %v7103
        %8553 = vmatprep.subr.bf16.mxu0 %v7108
        %8554 = vmatpush1.bf16.msra.mxu0 %v7107
        %8555 = vmatprep.subr.bf16.mxu0 %v7112
        %8556 = vmatpush1.bf16.msra.mxu0 %v7111
        %8557 = vmatprep.subr.bf16.mxu0 %v7116
        %8558 = vmatpush1.bf16.msra.mxu0 %v7115
        %8559 = vmatprep.subr.bf16.mxu0 %v7120
        %8560 = vmatpush1.bf16.msra.mxu0 %v7119
        %8561 = vmatprep.subr.bf16.mxu0 %v7124
        %8562 = vmatpush1.bf16.msra.mxu0 %v7123
        %8563 = vmatprep.subr.bf16.mxu0 %v7128
        %8564 = vmatpush1.bf16.msra.mxu0 %v7127
        %8565 = vmatprep.subr.bf16.mxu0 %v7132
        %8566 = vmatpush1.bf16.msra.mxu0 %v7131
        %8567 = vmatprep.subr.bf16.mxu0 %v7136
        %8568 = vmatpush1.bf16.msra.mxu0 %v7135
        %8569 = vmatprep.subr.bf16.mxu0 %v7140
        %8570 = vmatpush1.bf16.msra.mxu0 %v7139
        %8571 = vmatprep.mubr.bf16.mxu0 %v3420
        %8572 = vmatmul.mubr.bf16.gmra.mrb[0].mxu0 %v3419
        %v8573 = vpop.f32.mrb[0].mxu0
        %v8574 = vadd.f32 %v8533, %v8573
        %v8575 = vpop.f32.mrb[0].mxu0
        %v8576 = vadd.f32 %v8535, %v8575
        %v8577 = vpop.f32.mrb[0].mxu0
        %v8578 = vpop.f32.mrb[0].mxu0
        %8579 = vdwg.mxu0
        %8580 = vmatprep.subr.bf16.mxu0 %v7144
        %8581 = vmatpush1.bf16.msra.mxu0 %v7143
        %8582 = vmatprep.subr.bf16.mxu0 %v7148
        %8583 = vmatpush1.bf16.msra.mxu0 %v7147
        %8584 = vmatprep.subr.bf16.mxu0 %v7152
        %8585 = vmatpush1.bf16.msra.mxu0 %v7151
        %8586 = vmatprep.subr.bf16.mxu0 %v7156
        %8587 = vmatpush1.bf16.msra.mxu0 %v7155
        %8588 = vmatprep.subr.bf16.mxu0 %v7160
        %8589 = vmatpush1.bf16.msra.mxu0 %v7159
        %8590 = vmatprep.subr.bf16.mxu0 %v7164
        %8591 = vmatpush1.bf16.msra.mxu0 %v7163
        %8592 = vmatprep.subr.bf16.mxu0 %v7168
        %8593 = vmatpush1.bf16.msra.mxu0 %v7167
        %8594 = vmatprep.subr.bf16.mxu0 %v7172
        %8595 = vmatpush1.bf16.msra.mxu0 %v7171
        %8596 = vmatprep.subr.bf16.mxu0 %v7176
        %8597 = vmatpush1.bf16.msra.mxu0 %v7175
        %8598 = vmatprep.subr.bf16.mxu0 %v7180
        %8599 = vmatpush1.bf16.msra.mxu0 %v7179
        %8600 = vmatprep.subr.bf16.mxu0 %v7184
        %8601 = vmatpush1.bf16.msra.mxu0 %v7183
        %8602 = vmatprep.subr.bf16.mxu0 %v7188
        %8603 = vmatpush1.bf16.msra.mxu0 %v7187
        %8604 = vmatprep.subr.bf16.mxu0 %v7192
        %8605 = vmatpush1.bf16.msra.mxu0 %v7191
        %8606 = vmatprep.subr.bf16.mxu0 %v7196
        %8607 = vmatpush1.bf16.msra.mxu0 %v7195
        %8608 = vmatprep.subr.bf16.mxu0 %v7200
        %8609 = vmatpush1.bf16.msra.mxu0 %v7199
        %8610 = vmatprep.subr.bf16.mxu0 %v7204
        %8611 = vmatpush1.bf16.msra.mxu0 %v7203
        %8612 = vmatprep.mubr.bf16.mxu0 %v3422
        %8613 = vmatmul.mubr.bf16.gmra.mrb[0].mxu0 %v3421
        %v8614 = vpop.f32.mrb[0].mxu0
        %v8615 = vadd.f32 %v8574, %v8614
        %v8616 = vpop.f32.mrb[0].mxu0
        %v8617 = vadd.f32 %v8576, %v8616
        %v8618 = vpop.f32.mrb[0].mxu0
        %v8619 = vpop.f32.mrb[0].mxu0
        %8620 = vdwg.mxu0
        %8621 = vmatprep.subr.bf16.mxu0 %v7208
        %8622 = vmatpush1.bf16.msra.mxu0 %v7207
        %8623 = vmatprep.subr.bf16.mxu0 %v7212
        %8624 = vmatpush1.bf16.msra.mxu0 %v7211
        %8625 = vmatprep.subr.bf16.mxu0 %v7216
        %8626 = vmatpush1.bf16.msra.mxu0 %v7215
        %8627 = vmatprep.subr.bf16.mxu0 %v7220
        %8628 = vmatpush1.bf16.msra.mxu0 %v7219
        %8629 = vmatprep.subr.bf16.mxu0 %v7224
        %8630 = vmatpush1.bf16.msra.mxu0 %v7223
        %8631 = vmatprep.subr.bf16.mxu0 %v7228
        %8632 = vmatpush1.bf16.msra.mxu0 %v7227
        %8633 = vmatprep.subr.bf16.mxu0 %v7232
        %8634 = vmatpush1.bf16.msra.mxu0 %v7231
        %8635 = vmatprep.subr.bf16.mxu0 %v7236
        %8636 = vmatpush1.bf16.msra.mxu0 %v7235
        %8637 = vmatprep.subr.bf16.mxu0 %v7240
        %8638 = vmatpush1.bf16.msra.mxu0 %v7239
        %8639 = vmatprep.subr.bf16.mxu0 %v7244
        %8640 = vmatpush1.bf16.msra.mxu0 %v7243
        %8641 = vmatprep.subr.bf16.mxu0 %v7248
        %8642 = vmatpush1.bf16.msra.mxu0 %v7247
        %8643 = vmatprep.subr.bf16.mxu0 %v7252
        %8644 = vmatpush1.bf16.msra.mxu0 %v7251
        %8645 = vmatprep.subr.bf16.mxu0 %v7256
        %8646 = vmatpush1.bf16.msra.mxu0 %v7255
        %8647 = vmatprep.subr.bf16.mxu0 %v7260
        %8648 = vmatpush1.bf16.msra.mxu0 %v7259
        %8649 = vmatprep.subr.bf16.mxu0 %v7264
        %8650 = vmatpush1.bf16.msra.mxu0 %v7263
        %8651 = vmatprep.subr.bf16.mxu0 %v7268
        %8652 = vmatpush1.bf16.msra.mxu0 %v7267
        %8653 = vmatprep.mubr.bf16.mxu0 %v3424
        %8654 = vmatmul.mubr.bf16.gmra.mrb[0].mxu0 %v3423
        %v8655 = vpop.f32.mrb[0].mxu0
        %v8656 = vadd.f32 %v8615, %v8655
        %v8657 = vpop.f32.mrb[0].mxu0
        %v8658 = vadd.f32 %v8617, %v8657
        %v8659 = vpop.f32.mrb[0].mxu0
        %v8660 = vpop.f32.mrb[0].mxu0
        %8661 = vdwg.mxu0
        %8662 = vmatprep.subr.bf16.mxu0 %v7272
        %8663 = vmatpush1.bf16.msra.mxu0 %v7271
        %8664 = vmatprep.subr.bf16.mxu0 %v7276
        %8665 = vmatpush1.bf16.msra.mxu0 %v7275
        %8666 = vmatprep.subr.bf16.mxu0 %v7280
        %8667 = vmatpush1.bf16.msra.mxu0 %v7279
        %8668 = vmatprep.subr.bf16.mxu0 %v7284
        %8669 = vmatpush1.bf16.msra.mxu0 %v7283
        %8670 = vmatprep.subr.bf16.mxu0 %v7288
        %8671 = vmatpush1.bf16.msra.mxu0 %v7287
        %8672 = vmatprep.subr.bf16.mxu0 %v7292
        %8673 = vmatpush1.bf16.msra.mxu0 %v7291
        %8674 = vmatprep.subr.bf16.mxu0 %v7296
        %8675 = vmatpush1.bf16.msra.mxu0 %v7295
        %8676 = vmatprep.subr.bf16.mxu0 %v7300
        %8677 = vmatpush1.bf16.msra.mxu0 %v7299
        %8678 = vmatprep.subr.bf16.mxu0 %v7304
        %8679 = vmatpush1.bf16.msra.mxu0 %v7303
        %8680 = vmatprep.subr.bf16.mxu0 %v7308
        %8681 = vmatpush1.bf16.msra.mxu0 %v7307
        %8682 = vmatprep.subr.bf16.mxu0 %v7312
        %8683 = vmatpush1.bf16.msra.mxu0 %v7311
        %8684 = vmatprep.subr.bf16.mxu0 %v7316
        %8685 = vmatpush1.bf16.msra.mxu0 %v7315
        %8686 = vmatprep.subr.bf16.mxu0 %v7320
        %8687 = vmatpush1.bf16.msra.mxu0 %v7319
        %8688 = vmatprep.subr.bf16.mxu0 %v7324
        %8689 = vmatpush1.bf16.msra.mxu0 %v7323
        %8690 = vmatprep.subr.bf16.mxu0 %v7328
        %8691 = vmatpush1.bf16.msra.mxu0 %v7327
        %8692 = vmatprep.subr.bf16.mxu0 %v7332
        %8693 = vmatpush1.bf16.msra.mxu0 %v7331
        %8694 = vmatprep.mubr.bf16.mxu0 %v3426
        %8695 = vmatmul.mubr.bf16.gmra.mrb[0].mxu0 %v3425
        %v8696 = vpop.f32.mrb[0].mxu0
        %v8697 = vadd.f32 %v8656, %v8696
        %v8698 = vpop.f32.mrb[0].mxu0
        %v8699 = vadd.f32 %v8658, %v8698
        %v8700 = vpop.f32.mrb[0].mxu0
        %v8701 = vpop.f32.mrb[0].mxu0
        %8702 = vdwg.mxu0
        %8703 = vmatprep.subr.bf16.mxu0 %v7336
        %8704 = vmatpush1.bf16.msra.mxu0 %v7335
        %8705 = vmatprep.subr.bf16.mxu0 %v7340
        %8706 = vmatpush1.bf16.msra.mxu0 %v7339
        %8707 = vmatprep.subr.bf16.mxu0 %v7344
        %8708 = vmatpush1.bf16.msra.mxu0 %v7343
        %8709 = vmatprep.subr.bf16.mxu0 %v7348
        %8710 = vmatpush1.bf16.msra.mxu0 %v7347
        %8711 = vmatprep.subr.bf16.mxu0 %v7352
        %8712 = vmatpush1.bf16.msra.mxu0 %v7351
        %8713 = vmatprep.subr.bf16.mxu0 %v7356
        %8714 = vmatpush1.bf16.msra.mxu0 %v7355
        %8715 = vmatprep.subr.bf16.mxu0 %v7360
        %8716 = vmatpush1.bf16.msra.mxu0 %v7359
        %8717 = vmatprep.subr.bf16.mxu0 %v7364
        %8718 = vmatpush1.bf16.msra.mxu0 %v7363
        %8719 = vmatprep.subr.bf16.mxu0 %v7368
        %8720 = vmatpush1.bf16.msra.mxu0 %v7367
        %8721 = vmatprep.subr.bf16.mxu0 %v7372
        %8722 = vmatpush1.bf16.msra.mxu0 %v7371
        %8723 = vmatprep.subr.bf16.mxu0 %v7376
        %8724 = vmatpush1.bf16.msra.mxu0 %v7375
        %8725 = vmatprep.subr.bf16.mxu0 %v7380
        %8726 = vmatpush1.bf16.msra.mxu0 %v7379
        %8727 = vmatprep.subr.bf16.mxu0 %v7384
        %8728 = vmatpush1.bf16.msra.mxu0 %v7383
        %8729 = vmatprep.subr.bf16.mxu0 %v7388
        %8730 = vmatpush1.bf16.msra.mxu0 %v7387
        %8731 = vmatprep.subr.bf16.mxu0 %v7392
        %8732 = vmatpush1.bf16.msra.mxu0 %v7391
        %8733 = vmatprep.subr.bf16.mxu0 %v7396
        %8734 = vmatpush1.bf16.msra.mxu0 %v7395
        %8735 = vmatprep.mubr.bf16.mxu0 %v3428
        %8736 = vmatmul.mubr.bf16.gmra.mrb[0].mxu0 %v3427
        %v8737 = vpop.f32.mrb[0].mxu0
        %v8738 = vadd.f32 %v8697, %v8737
        %v8739 = vpop.f32.mrb[0].mxu0
        %v8740 = vadd.f32 %v8699, %v8739
        %v8741 = vpop.f32.mrb[0].mxu0
        %v8742 = vpop.f32.mrb[0].mxu0
        %8743 = vdwg.mxu0
        %8744 = vmatprep.subr.bf16.mxu0 %v7400
        %8745 = vmatpush1.bf16.msra.mxu0 %v7399
        %8746 = vmatprep.subr.bf16.mxu0 %v7404
        %8747 = vmatpush1.bf16.msra.mxu0 %v7403
        %8748 = vmatprep.subr.bf16.mxu0 %v7408
        %8749 = vmatpush1.bf16.msra.mxu0 %v7407
        %8750 = vmatprep.subr.bf16.mxu0 %v7412
        %8751 = vmatpush1.bf16.msra.mxu0 %v7411
        %8752 = vmatprep.subr.bf16.mxu0 %v7416
        %8753 = vmatpush1.bf16.msra.mxu0 %v7415
        %8754 = vmatprep.subr.bf16.mxu0 %v7420
        %8755 = vmatpush1.bf16.msra.mxu0 %v7419
        %8756 = vmatprep.subr.bf16.mxu0 %v7424
        %8757 = vmatpush1.bf16.msra.mxu0 %v7423
        %8758 = vmatprep.subr.bf16.mxu0 %v7428
        %8759 = vmatpush1.bf16.msra.mxu0 %v7427
        %8760 = vmatprep.subr.bf16.mxu0 0
        %8761 = vmatpush1.bf16.msra.mxu0 0
        %8762 = vmatprep.subr.bf16.mxu0 0
        %8763 = vmatpush1.bf16.msra.mxu0 0
        %8764 = vmatprep.subr.bf16.mxu0 0
        %8765 = vmatpush1.bf16.msra.mxu0 0
        %8766 = vmatprep.subr.bf16.mxu0 0
        %8767 = vmatpush1.bf16.msra.mxu0 0
        %8768 = vmatprep.subr.bf16.mxu0 0
        %8769 = vmatpush1.bf16.msra.mxu0 0
        %8770 = vmatprep.subr.bf16.mxu0 0
        %8771 = vmatpush1.bf16.msra.mxu0 0
        %8772 = vmatprep.subr.bf16.mxu0 0
        %8773 = vmatpush1.bf16.msra.mxu0 0
        %8774 = vmatprep.subr.bf16.mxu0 0
        %8775 = vmatpush1.bf16.msra.mxu0 0
        %8776 = vmatprep.mubr.bf16.mxu0 0
        %8777 = vmatmul.mubr.bf16.gmra.mrb[0].mxu0 %v3429
        %v8778 = vpop.f32.mrb[0].mxu0
        %v8779 = vadd.f32 %v8738, %v8778
        %v8780 = vpop.f32.mrb[0].mxu0
        %v8781 = vadd.f32 %v8740, %v8780
        %v8782 = vpop.f32.mrb[0].mxu0
        %v8783 = vpop.f32.mrb[0].mxu0
        %8784 = vdwg.mxu0
        %8785 = vmatprep.subr.bf16.mxu0 %v6634
        %8786 = vmatpush1.bf16.msra.mxu0 %v6633
        %8787 = vmatprep.subr.bf16.mxu0 %v6638
        %8788 = vmatpush1.bf16.msra.mxu0 %v6637
        %8789 = vmatprep.subr.bf16.mxu0 %v6642
        %8790 = vmatpush1.bf16.msra.mxu0 %v6641
        %8791 = vmatprep.subr.bf16.mxu0 %v6646
        %8792 = vmatpush1.bf16.msra.mxu0 %v6645
        %8793 = vmatprep.subr.bf16.mxu0 %v6650
        %8794 = vmatpush1.bf16.msra.mxu0 %v6649
        %8795 = vmatprep.subr.bf16.mxu0 %v6654
        %8796 = vmatpush1.bf16.msra.mxu0 %v6653
        %8797 = vmatprep.subr.bf16.mxu0 %v6658
        %8798 = vmatpush1.bf16.msra.mxu0 %v6657
        %8799 = vmatprep.subr.bf16.mxu0 %v6662
        %8800 = vmatpush1.bf16.msra.mxu0 %v6661
        %8801 = vmatprep.subr.bf16.mxu0 %v6666
        %8802 = vmatpush1.bf16.msra.mxu0 %v6665
        %8803 = vmatprep.subr.bf16.mxu0 %v6670
        %8804 = vmatpush1.bf16.msra.mxu0 %v6669
        %8805 = vmatprep.subr.bf16.mxu0 %v6674
        %8806 = vmatpush1.bf16.msra.mxu0 %v6673
        %8807 = vmatprep.subr.bf16.mxu0 %v6678
        %8808 = vmatpush1.bf16.msra.mxu0 %v6677
        %8809 = vmatprep.subr.bf16.mxu0 %v6682
        %8810 = vmatpush1.bf16.msra.mxu0 %v6681
        %8811 = vmatprep.subr.bf16.mxu0 %v6686
        %8812 = vmatpush1.bf16.msra.mxu0 %v6685
        %8813 = vmatprep.subr.bf16.mxu0 %v6690
        %8814 = vmatpush1.bf16.msra.mxu0 %v6689
        %8815 = vmatprep.subr.bf16.mxu0 %v6694
        %8816 = vmatpush1.bf16.msra.mxu0 %v6693
        %8817 = vmatprep.mubr.bf16.mxu0 %v3406
        %8818 = vmatmul.mubr.bf16.gmra.mrb[0].mxu0 %v3405
        %v8819 = vpop.f32.mrb[0].mxu0
        %v8820 = vadd.f32 %v8243, %v8819
        %v8821 = vpop.f32.mrb[0].mxu0
        %v8822 = vadd.f32 %v8247, %v8821
        %v8823 = vpop.f32.mrb[0].mxu0
        %v8824 = vpop.f32.mrb[0].mxu0
        %8825 = vdwg.mxu0
        %8826 = vmatprep.subr.bf16.mxu0 %v6698
        %8827 = vmatpush1.bf16.msra.mxu0 %v6697
        %8828 = vmatprep.subr.bf16.mxu0 %v6702
        %8829 = vmatpush1.bf16.msra.mxu0 %v6701
        %8830 = vmatprep.subr.bf16.mxu0 %v6706
        %8831 = vmatpush1.bf16.msra.mxu0 %v6705
        %8832 = vmatprep.subr.bf16.mxu0 %v6710
        %8833 = vmatpush1.bf16.msra.mxu0 %v6709
        %8834 = vmatprep.subr.bf16.mxu0 %v6714
        %8835 = vmatpush1.bf16.msra.mxu0 %v6713
        %8836 = vmatprep.subr.bf16.mxu0 %v6718
        %8837 = vmatpush1.bf16.msra.mxu0 %v6717
        %8838 = vmatprep.subr.bf16.mxu0 %v6722
        %8839 = vmatpush1.bf16.msra.mxu0 %v6721
        %8840 = vmatprep.subr.bf16.mxu0 %v6726
        %8841 = vmatpush1.bf16.msra.mxu0 %v6725
        %8842 = vmatprep.subr.bf16.mxu0 %v6730
        %8843 = vmatpush1.bf16.msra.mxu0 %v6729
        %8844 = vmatprep.subr.bf16.mxu0 %v6734
        %8845 = vmatpush1.bf16.msra.mxu0 %v6733
        %8846 = vmatprep.subr.bf16.mxu0 %v6738
        %8847 = vmatpush1.bf16.msra.mxu0 %v6737
        %8848 = vmatprep.subr.bf16.mxu0 %v6742
        %8849 = vmatpush1.bf16.msra.mxu0 %v6741
        %8850 = vmatprep.subr.bf16.mxu0 %v6746
        %8851 = vmatpush1.bf16.msra.mxu0 %v6745
        %8852 = vmatprep.subr.bf16.mxu0 %v6750
        %8853 = vmatpush1.bf16.msra.mxu0 %v6749
        %8854 = vmatprep.subr.bf16.mxu0 %v6754
        %8855 = vmatpush1.bf16.msra.mxu0 %v6753
        %8856 = vmatprep.subr.bf16.mxu0 %v6758
        %8857 = vmatpush1.bf16.msra.mxu0 %v6757
        %8858 = vmatprep.mubr.bf16.mxu0 %v3408
        %8859 = vmatmul.mubr.bf16.gmra.mrb[0].mxu0 %v3407
        %v8860 = vpop.f32.mrb[0].mxu0
        %v8861 = vadd.f32 %v8820, %v8860
        %v8862 = vpop.f32.mrb[0].mxu0
        %v8863 = vadd.f32 %v8822, %v8862
        %v8864 = vpop.f32.mrb[0].mxu0
        %v8865 = vpop.f32.mrb[0].mxu0
        %8866 = vdwg.mxu0
        %8867 = vmatprep.subr.bf16.mxu0 %v6762
        %8868 = vmatpush1.bf16.msra.mxu0 %v6761
        %8869 = vmatprep.subr.bf16.mxu0 %v6766
        %8870 = vmatpush1.bf16.msra.mxu0 %v6765
        %8871 = vmatprep.subr.bf16.mxu0 %v6770
        %8872 = vmatpush1.bf16.msra.mxu0 %v6769
        %8873 = vmatprep.subr.bf16.mxu0 %v6774
        %8874 = vmatpush1.bf16.msra.mxu0 %v6773
        %8875 = vmatprep.subr.bf16.mxu0 %v6778
        %8876 = vmatpush1.bf16.msra.mxu0 %v6777
        %8877 = vmatprep.subr.bf16.mxu0 %v6782
        %8878 = vmatpush1.bf16.msra.mxu0 %v6781
        %8879 = vmatprep.subr.bf16.mxu0 %v6786
        %8880 = vmatpush1.bf16.msra.mxu0 %v6785
        %8881 = vmatprep.subr.bf16.mxu0 %v6790
        %8882 = vmatpush1.bf16.msra.mxu0 %v6789
        %8883 = vmatprep.subr.bf16.mxu0 %v6794
        %8884 = vmatpush1.bf16.msra.mxu0 %v6793
        %8885 = vmatprep.subr.bf16.mxu0 %v6798
        %8886 = vmatpush1.bf16.msra.mxu0 %v6797
        %8887 = vmatprep.subr.bf16.mxu0 %v6802
        %8888 = vmatpush1.bf16.msra.mxu0 %v6801
        %8889 = vmatprep.subr.bf16.mxu0 %v6806
        %8890 = vmatpush1.bf16.msra.mxu0 %v6805
        %8891 = vmatprep.subr.bf16.mxu0 %v6810
        %8892 = vmatpush1.bf16.msra.mxu0 %v6809
        %8893 = vmatprep.subr.bf16.mxu0 %v6814
        %8894 = vmatpush1.bf16.msra.mxu0 %v6813
        %8895 = vmatprep.subr.bf16.mxu0 %v6818
        %8896 = vmatpush1.bf16.msra.mxu0 %v6817
        %8897 = vmatprep.subr.bf16.mxu0 %v6822
        %8898 = vmatpush1.bf16.msra.mxu0 %v6821
        %8899 = vmatprep.mubr.bf16.mxu0 %v3410
        %8900 = vmatmul.mubr.bf16.gmra.mrb[0].mxu0 %v3409
        %v8901 = vpop.f32.mrb[0].mxu0
        %v8902 = vadd.f32 %v8861, %v8901
        %v8903 = vpop.f32.mrb[0].mxu0
        %v8904 = vadd.f32 %v8863, %v8903
        %v8905 = vpop.f32.mrb[0].mxu0
        %v8906 = vpop.f32.mrb[0].mxu0
        %8907 = vdwg.mxu0
        %8908 = vmatprep.subr.bf16.mxu0 %v6826
        %8909 = vmatpush1.bf16.msra.mxu0 %v6825
        %8910 = vmatprep.subr.bf16.mxu0 %v6830
        %8911 = vmatpush1.bf16.msra.mxu0 %v6829
        %8912 = vmatprep.subr.bf16.mxu0 %v6834
        %8913 = vmatpush1.bf16.msra.mxu0 %v6833
        %8914 = vmatprep.subr.bf16.mxu0 %v6838
        %8915 = vmatpush1.bf16.msra.mxu0 %v6837
        %8916 = vmatprep.subr.bf16.mxu0 %v6842
        %8917 = vmatpush1.bf16.msra.mxu0 %v6841
        %8918 = vmatprep.subr.bf16.mxu0 %v6846
        %8919 = vmatpush1.bf16.msra.mxu0 %v6845
        %8920 = vmatprep.subr.bf16.mxu0 %v6850
        %8921 = vmatpush1.bf16.msra.mxu0 %v6849
        %8922 = vmatprep.subr.bf16.mxu0 %v6854
        %8923 = vmatpush1.bf16.msra.mxu0 %v6853
        %8924 = vmatprep.subr.bf16.mxu0 %v6858
        %8925 = vmatpush1.bf16.msra.mxu0 %v6857
        %8926 = vmatprep.subr.bf16.mxu0 %v6862
        %8927 = vmatpush1.bf16.msra.mxu0 %v6861
        %8928 = vmatprep.subr.bf16.mxu0 %v6866
        %8929 = vmatpush1.bf16.msra.mxu0 %v6865
        %8930 = vmatprep.subr.bf16.mxu0 %v6870
        %8931 = vmatpush1.bf16.msra.mxu0 %v6869
        %8932 = vmatprep.subr.bf16.mxu0 %v6874
        %8933 = vmatpush1.bf16.msra.mxu0 %v6873
        %8934 = vmatprep.subr.bf16.mxu0 %v6878
        %8935 = vmatpush1.bf16.msra.mxu0 %v6877
        %8936 = vmatprep.subr.bf16.mxu0 %v6882
        %8937 = vmatpush1.bf16.msra.mxu0 %v6881
        %8938 = vmatprep.subr.bf16.mxu0 %v6886
        %8939 = vmatpush1.bf16.msra.mxu0 %v6885
        %8940 = vmatprep.mubr.bf16.mxu0 %v3412
        %8941 = vmatmul.mubr.bf16.gmra.mrb[0].mxu0 %v3411
        %v8942 = vpop.f32.mrb[0].mxu0
        %v8943 = vadd.f32 %v8902, %v8942
        %v8944 = vpop.f32.mrb[0].mxu0
        %v8945 = vadd.f32 %v8904, %v8944
        %v8946 = vpop.f32.mrb[0].mxu0
        %v8947 = vpop.f32.mrb[0].mxu0
        %8948 = vdwg.mxu0
        %8949 = vmatprep.subr.bf16.mxu0 %v6890
        %8950 = vmatpush1.bf16.msra.mxu0 %v6889
        %8951 = vmatprep.subr.bf16.mxu0 %v6894
        %8952 = vmatpush1.bf16.msra.mxu0 %v6893
        %8953 = vmatprep.subr.bf16.mxu0 %v6898
        %8954 = vmatpush1.bf16.msra.mxu0 %v6897
        %8955 = vmatprep.subr.bf16.mxu0 %v6902
        %8956 = vmatpush1.bf16.msra.mxu0 %v6901
        %8957 = vmatprep.subr.bf16.mxu0 %v6906
        %8958 = vmatpush1.bf16.msra.mxu0 %v6905
        %8959 = vmatprep.subr.bf16.mxu0 %v6910
        %8960 = vmatpush1.bf16.msra.mxu0 %v6909
        %8961 = vmatprep.subr.bf16.mxu0 %v6914
        %8962 = vmatpush1.bf16.msra.mxu0 %v6913
        %8963 = vmatprep.subr.bf16.mxu0 %v6918
        %8964 = vmatpush1.bf16.msra.mxu0 %v6917
        %8965 = vmatprep.subr.bf16.mxu0 %v6922
        %8966 = vmatpush1.bf16.msra.mxu0 %v6921
        %8967 = vmatprep.subr.bf16.mxu0 %v6926
        %8968 = vmatpush1.bf16.msra.mxu0 %v6925
        %8969 = vmatprep.subr.bf16.mxu0 %v6930
        %8970 = vmatpush1.bf16.msra.mxu0 %v6929
        %8971 = vmatprep.subr.bf16.mxu0 %v6934
        %8972 = vmatpush1.bf16.msra.mxu0 %v6933
        %8973 = vmatprep.subr.bf16.mxu0 %v6938
        %8974 = vmatpush1.bf16.msra.mxu0 %v6937
        %8975 = vmatprep.subr.bf16.mxu0 %v6942
        %8976 = vmatpush1.bf16.msra.mxu0 %v6941
        %8977 = vmatprep.subr.bf16.mxu0 %v6946
        %8978 = vmatpush1.bf16.msra.mxu0 %v6945
        %8979 = vmatprep.subr.bf16.mxu0 %v6950
        %8980 = vmatpush1.bf16.msra.mxu0 %v6949
        %8981 = vmatprep.mubr.bf16.mxu0 %v3414
        %8982 = vmatmul.mubr.bf16.gmra.mrb[0].mxu0 %v3413
        %v8983 = vpop.f32.mrb[0].mxu0
        %v8984 = vadd.f32 %v8943, %v8983
        %v8985 = vpop.f32.mrb[0].mxu0
        %v8986 = vadd.f32 %v8945, %v8985
        %v8987 = vpop.f32.mrb[0].mxu0
        %v8988 = vpop.f32.mrb[0].mxu0
        %8989 = vdwg.mxu0
        %8990 = vmatprep.subr.bf16.mxu0 %v6954
        %8991 = vmatpush1.bf16.msra.mxu0 %v6953
        %8992 = vmatprep.subr.bf16.mxu0 %v6958
        %8993 = vmatpush1.bf16.msra.mxu0 %v6957
        %8994 = vmatprep.subr.bf16.mxu0 %v6962
        %8995 = vmatpush1.bf16.msra.mxu0 %v6961
        %8996 = vmatprep.subr.bf16.mxu0 %v6966
        %8997 = vmatpush1.bf16.msra.mxu0 %v6965
        %8998 = vmatprep.subr.bf16.mxu0 %v6970
        %8999 = vmatpush1.bf16.msra.mxu0 %v6969
        %9000 = vmatprep.subr.bf16.mxu0 %v6974
        %9001 = vmatpush1.bf16.msra.mxu0 %v6973
        %9002 = vmatprep.subr.bf16.mxu0 %v6978
        %9003 = vmatpush1.bf16.msra.mxu0 %v6977
        %9004 = vmatprep.subr.bf16.mxu0 %v6982
        %9005 = vmatpush1.bf16.msra.mxu0 %v6981
        %9006 = vmatprep.subr.bf16.mxu0 %v6986
        %9007 = vmatpush1.bf16.msra.mxu0 %v6985
        %9008 = vmatprep.subr.bf16.mxu0 %v6990
        %9009 = vmatpush1.bf16.msra.mxu0 %v6989
        %9010 = vmatprep.subr.bf16.mxu0 %v6994
        %9011 = vmatpush1.bf16.msra.mxu0 %v6993
        %9012 = vmatprep.subr.bf16.mxu0 %v6998
        %9013 = vmatpush1.bf16.msra.mxu0 %v6997
        %9014 = vmatprep.subr.bf16.mxu0 %v7002
        %9015 = vmatpush1.bf16.msra.mxu0 %v7001
        %9016 = vmatprep.subr.bf16.mxu0 %v7006
        %9017 = vmatpush1.bf16.msra.mxu0 %v7005
        %9018 = vmatprep.subr.bf16.mxu0 %v7010
        %9019 = vmatpush1.bf16.msra.mxu0 %v7009
        %9020 = vmatprep.subr.bf16.mxu0 %v7014
        %9021 = vmatpush1.bf16.msra.mxu0 %v7013
        %9022 = vmatprep.mubr.bf16.mxu0 %v3416
        %9023 = vmatmul.mubr.bf16.gmra.mrb[0].mxu0 %v3415
        %v9024 = vpop.f32.mrb[0].mxu0
        %v9025 = vadd.f32 %v8984, %v9024
        %v9026 = vpop.f32.mrb[0].mxu0
        %v9027 = vadd.f32 %v8986, %v9026
        %v9028 = vpop.f32.mrb[0].mxu0
        %v9029 = vpop.f32.mrb[0].mxu0
        %9030 = vdwg.mxu0
        %9031 = vmatprep.subr.bf16.mxu0 %v7018
        %9032 = vmatpush1.bf16.msra.mxu0 %v7017
        %9033 = vmatprep.subr.bf16.mxu0 %v7022
        %9034 = vmatpush1.bf16.msra.mxu0 %v7021
        %9035 = vmatprep.subr.bf16.mxu0 %v7026
        %9036 = vmatpush1.bf16.msra.mxu0 %v7025
        %9037 = vmatprep.subr.bf16.mxu0 %v7030
        %9038 = vmatpush1.bf16.msra.mxu0 %v7029
        %9039 = vmatprep.subr.bf16.mxu0 %v7034
        %9040 = vmatpush1.bf16.msra.mxu0 %v7033
        %9041 = vmatprep.subr.bf16.mxu0 %v7038
        %9042 = vmatpush1.bf16.msra.mxu0 %v7037
        %9043 = vmatprep.subr.bf16.mxu0 %v7042
        %9044 = vmatpush1.bf16.msra.mxu0 %v7041
        %9045 = vmatprep.subr.bf16.mxu0 %v7046
        %9046 = vmatpush1.bf16.msra.mxu0 %v7045
        %9047 = vmatprep.subr.bf16.mxu0 %v7050
        %9048 = vmatpush1.bf16.msra.mxu0 %v7049
        %9049 = vmatprep.subr.bf16.mxu0 %v7054
        %9050 = vmatpush1.bf16.msra.mxu0 %v7053
        %9051 = vmatprep.subr.bf16.mxu0 %v7058
        %9052 = vmatpush1.bf16.msra.mxu0 %v7057
        %9053 = vmatprep.subr.bf16.mxu0 %v7062
        %9054 = vmatpush1.bf16.msra.mxu0 %v7061
        %9055 = vmatprep.subr.bf16.mxu0 %v7066
        %9056 = vmatpush1.bf16.msra.mxu0 %v7065
        %9057 = vmatprep.subr.bf16.mxu0 %v7070
        %9058 = vmatpush1.bf16.msra.mxu0 %v7069
        %9059 = vmatprep.subr.bf16.mxu0 %v7074
        %9060 = vmatpush1.bf16.msra.mxu0 %v7073
        %9061 = vmatprep.subr.bf16.mxu0 %v7078
        %9062 = vmatpush1.bf16.msra.mxu0 %v7077
        %9063 = vmatprep.mubr.bf16.mxu0 %v3418
        %9064 = vmatmul.mubr.bf16.gmra.mrb[0].mxu0 %v3417
        %v9065 = vpop.f32.mrb[0].mxu0
        %v9066 = vadd.f32 %v9025, %v9065
        %v9067 = vpop.f32.mrb[0].mxu0
        %v9068 = vadd.f32 %v9027, %v9067
        %v9069 = vpop.f32.mrb[0].mxu0
        %v9070 = vpop.f32.mrb[0].mxu0
        %9071 = vdwg.mxu0
        %9072 = vmatprep.subr.bf16.mxu0 %v7082
        %9073 = vmatpush1.bf16.msra.mxu0 %v7081
        %9074 = vmatprep.subr.bf16.mxu0 %v7086
        %9075 = vmatpush1.bf16.msra.mxu0 %v7085
        %9076 = vmatprep.subr.bf16.mxu0 %v7090
        %9077 = vmatpush1.bf16.msra.mxu0 %v7089
        %9078 = vmatprep.subr.bf16.mxu0 %v7094
        %9079 = vmatpush1.bf16.msra.mxu0 %v7093
        %9080 = vmatprep.subr.bf16.mxu0 %v7098
        %9081 = vmatpush1.bf16.msra.mxu0 %v7097
        %9082 = vmatprep.subr.bf16.mxu0 %v7102
        %9083 = vmatpush1.bf16.msra.mxu0 %v7101
        %9084 = vmatprep.subr.bf16.mxu0 %v7106
        %9085 = vmatpush1.bf16.msra.mxu0 %v7105
        %9086 = vmatprep.subr.bf16.mxu0 %v7110
        %9087 = vmatpush1.bf16.msra.mxu0 %v7109
        %9088 = vmatprep.subr.bf16.mxu0 %v7114
        %9089 = vmatpush1.bf16.msra.mxu0 %v7113
        %9090 = vmatprep.subr.bf16.mxu0 %v7118
        %9091 = vmatpush1.bf16.msra.mxu0 %v7117
        %9092 = vmatprep.subr.bf16.mxu0 %v7122
        %9093 = vmatpush1.bf16.msra.mxu0 %v7121
        %9094 = vmatprep.subr.bf16.mxu0 %v7126
        %9095 = vmatpush1.bf16.msra.mxu0 %v7125
        %9096 = vmatprep.subr.bf16.mxu0 %v7130
        %9097 = vmatpush1.bf16.msra.mxu0 %v7129
        %9098 = vmatprep.subr.bf16.mxu0 %v7134
        %9099 = vmatpush1.bf16.msra.mxu0 %v7133
        %9100 = vmatprep.subr.bf16.mxu0 %v7138
        %9101 = vmatpush1.bf16.msra.mxu0 %v7137
        %9102 = vmatprep.subr.bf16.mxu0 %v7142
        %9103 = vmatpush1.bf16.msra.mxu0 %v7141
        %9104 = vmatprep.mubr.bf16.mxu0 %v3420
        %9105 = vmatmul.mubr.bf16.gmra.mrb[0].mxu0 %v3419
        %v9106 = vpop.f32.mrb[0].mxu0
        %v9107 = vadd.f32 %v9066, %v9106
        %v9108 = vpop.f32.mrb[0].mxu0
        %v9109 = vadd.f32 %v9068, %v9108
        %v9110 = vpop.f32.mrb[0].mxu0
        %v9111 = vpop.f32.mrb[0].mxu0
        %9112 = vdwg.mxu0
        %9113 = vmatprep.subr.bf16.mxu0 %v7146
        %9114 = vmatpush1.bf16.msra.mxu0 %v7145
        %9115 = vmatprep.subr.bf16.mxu0 %v7150
        %9116 = vmatpush1.bf16.msra.mxu0 %v7149
        %9117 = vmatprep.subr.bf16.mxu0 %v7154
        %9118 = vmatpush1.bf16.msra.mxu0 %v7153
        %9119 = vmatprep.subr.bf16.mxu0 %v7158
        %9120 = vmatpush1.bf16.msra.mxu0 %v7157
        %9121 = vmatprep.subr.bf16.mxu0 %v7162
        %9122 = vmatpush1.bf16.msra.mxu0 %v7161
        %9123 = vmatprep.subr.bf16.mxu0 %v7166
        %9124 = vmatpush1.bf16.msra.mxu0 %v7165
        %9125 = vmatprep.subr.bf16.mxu0 %v7170
        %9126 = vmatpush1.bf16.msra.mxu0 %v7169
        %9127 = vmatprep.subr.bf16.mxu0 %v7174
        %9128 = vmatpush1.bf16.msra.mxu0 %v7173
        %9129 = vmatprep.subr.bf16.mxu0 %v7178
        %9130 = vmatpush1.bf16.msra.mxu0 %v7177
        %9131 = vmatprep.subr.bf16.mxu0 %v7182
        %9132 = vmatpush1.bf16.msra.mxu0 %v7181
        %9133 = vmatprep.subr.bf16.mxu0 %v7186
        %9134 = vmatpush1.bf16.msra.mxu0 %v7185
        %9135 = vmatprep.subr.bf16.mxu0 %v7190
        %9136 = vmatpush1.bf16.msra.mxu0 %v7189
        %9137 = vmatprep.subr.bf16.mxu0 %v7194
        %9138 = vmatpush1.bf16.msra.mxu0 %v7193
        %9139 = vmatprep.subr.bf16.mxu0 %v7198
        %9140 = vmatpush1.bf16.msra.mxu0 %v7197
        %9141 = vmatprep.subr.bf16.mxu0 %v7202
        %9142 = vmatpush1.bf16.msra.mxu0 %v7201
        %9143 = vmatprep.subr.bf16.mxu0 %v7206
        %9144 = vmatpush1.bf16.msra.mxu0 %v7205
        %9145 = vmatprep.mubr.bf16.mxu0 %v3422
        %9146 = vmatmul.mubr.bf16.gmra.mrb[0].mxu0 %v3421
        %v9147 = vpop.f32.mrb[0].mxu0
        %v9148 = vadd.f32 %v9107, %v9147
        %v9149 = vpop.f32.mrb[0].mxu0
        %v9150 = vadd.f32 %v9109, %v9149
        %v9151 = vpop.f32.mrb[0].mxu0
        %v9152 = vpop.f32.mrb[0].mxu0
        %9153 = vdwg.mxu0
        %9154 = vmatprep.subr.bf16.mxu0 %v7210
        %9155 = vmatpush1.bf16.msra.mxu0 %v7209
        %9156 = vmatprep.subr.bf16.mxu0 %v7214
        %9157 = vmatpush1.bf16.msra.mxu0 %v7213
        %9158 = vmatprep.subr.bf16.mxu0 %v7218
        %9159 = vmatpush1.bf16.msra.mxu0 %v7217
        %9160 = vmatprep.subr.bf16.mxu0 %v7222
        %9161 = vmatpush1.bf16.msra.mxu0 %v7221
        %9162 = vmatprep.subr.bf16.mxu0 %v7226
        %9163 = vmatpush1.bf16.msra.mxu0 %v7225
        %9164 = vmatprep.subr.bf16.mxu0 %v7230
        %9165 = vmatpush1.bf16.msra.mxu0 %v7229
        %9166 = vmatprep.subr.bf16.mxu0 %v7234
        %9167 = vmatpush1.bf16.msra.mxu0 %v7233
        %9168 = vmatprep.subr.bf16.mxu0 %v7238
        %9169 = vmatpush1.bf16.msra.mxu0 %v7237
        %9170 = vmatprep.subr.bf16.mxu0 %v7242
        %9171 = vmatpush1.bf16.msra.mxu0 %v7241
        %9172 = vmatprep.subr.bf16.mxu0 %v7246
        %9173 = vmatpush1.bf16.msra.mxu0 %v7245
        %9174 = vmatprep.subr.bf16.mxu0 %v7250
        %9175 = vmatpush1.bf16.msra.mxu0 %v7249
        %9176 = vmatprep.subr.bf16.mxu0 %v7254
        %9177 = vmatpush1.bf16.msra.mxu0 %v7253
        %9178 = vmatprep.subr.bf16.mxu0 %v7258
        %9179 = vmatpush1.bf16.msra.mxu0 %v7257
        %9180 = vmatprep.subr.bf16.mxu0 %v7262
        %9181 = vmatpush1.bf16.msra.mxu0 %v7261
        %9182 = vmatprep.subr.bf16.mxu0 %v7266
        %9183 = vmatpush1.bf16.msra.mxu0 %v7265
        %9184 = vmatprep.subr.bf16.mxu0 %v7270
        %9185 = vmatpush1.bf16.msra.mxu0 %v7269
        %9186 = vmatprep.mubr.bf16.mxu0 %v3424
        %9187 = vmatmul.mubr.bf16.gmra.mrb[0].mxu0 %v3423
        %v9188 = vpop.f32.mrb[0].mxu0
        %v9189 = vadd.f32 %v9148, %v9188
        %v9190 = vpop.f32.mrb[0].mxu0
        %v9191 = vadd.f32 %v9150, %v9190
        %v9192 = vpop.f32.mrb[0].mxu0
        %v9193 = vpop.f32.mrb[0].mxu0
        %9194 = vdwg.mxu0
        %9195 = vmatprep.subr.bf16.mxu0 %v7274
        %9196 = vmatpush1.bf16.msra.mxu0 %v7273
        %9197 = vmatprep.subr.bf16.mxu0 %v7278
        %9198 = vmatpush1.bf16.msra.mxu0 %v7277
        %9199 = vmatprep.subr.bf16.mxu0 %v7282
        %9200 = vmatpush1.bf16.msra.mxu0 %v7281
        %9201 = vmatprep.subr.bf16.mxu0 %v7286
        %9202 = vmatpush1.bf16.msra.mxu0 %v7285
        %9203 = vmatprep.subr.bf16.mxu0 %v7290
        %9204 = vmatpush1.bf16.msra.mxu0 %v7289
        %9205 = vmatprep.subr.bf16.mxu0 %v7294
        %9206 = vmatpush1.bf16.msra.mxu0 %v7293
        %9207 = vmatprep.subr.bf16.mxu0 %v7298
        %9208 = vmatpush1.bf16.msra.mxu0 %v7297
        %9209 = vmatprep.subr.bf16.mxu0 %v7302
        %9210 = vmatpush1.bf16.msra.mxu0 %v7301
        %9211 = vmatprep.subr.bf16.mxu0 %v7306
        %9212 = vmatpush1.bf16.msra.mxu0 %v7305
        %9213 = vmatprep.subr.bf16.mxu0 %v7310
        %9214 = vmatpush1.bf16.msra.mxu0 %v7309
        %9215 = vmatprep.subr.bf16.mxu0 %v7314
        %9216 = vmatpush1.bf16.msra.mxu0 %v7313
        %9217 = vmatprep.subr.bf16.mxu0 %v7318
        %9218 = vmatpush1.bf16.msra.mxu0 %v7317
        %9219 = vmatprep.subr.bf16.mxu0 %v7322
        %9220 = vmatpush1.bf16.msra.mxu0 %v7321
        %9221 = vmatprep.subr.bf16.mxu0 %v7326
        %9222 = vmatpush1.bf16.msra.mxu0 %v7325
        %9223 = vmatprep.subr.bf16.mxu0 %v7330
        %9224 = vmatpush1.bf16.msra.mxu0 %v7329
        %9225 = vmatprep.subr.bf16.mxu0 %v7334
        %9226 = vmatpush1.bf16.msra.mxu0 %v7333
        %9227 = vmatprep.mubr.bf16.mxu0 %v3426
        %9228 = vmatmul.mubr.bf16.gmra.mrb[0].mxu0 %v3425
        %v9229 = vpop.f32.mrb[0].mxu0
        %v9230 = vadd.f32 %v9189, %v9229
        %v9231 = vpop.f32.mrb[0].mxu0
        %v9232 = vadd.f32 %v9191, %v9231
        %v9233 = vpop.f32.mrb[0].mxu0
        %v9234 = vpop.f32.mrb[0].mxu0
        %9235 = vdwg.mxu0
        %9236 = vmatprep.subr.bf16.mxu0 %v7338
        %9237 = vmatpush1.bf16.msra.mxu0 %v7337
        %9238 = vmatprep.subr.bf16.mxu0 %v7342
        %9239 = vmatpush1.bf16.msra.mxu0 %v7341
        %9240 = vmatprep.subr.bf16.mxu0 %v7346
        %9241 = vmatpush1.bf16.msra.mxu0 %v7345
        %9242 = vmatprep.subr.bf16.mxu0 %v7350
        %9243 = vmatpush1.bf16.msra.mxu0 %v7349
        %9244 = vmatprep.subr.bf16.mxu0 %v7354
        %9245 = vmatpush1.bf16.msra.mxu0 %v7353
        %9246 = vmatprep.subr.bf16.mxu0 %v7358
        %9247 = vmatpush1.bf16.msra.mxu0 %v7357
        %9248 = vmatprep.subr.bf16.mxu0 %v7362
        %9249 = vmatpush1.bf16.msra.mxu0 %v7361
        %9250 = vmatprep.subr.bf16.mxu0 %v7366
        %9251 = vmatpush1.bf16.msra.mxu0 %v7365
        %9252 = vmatprep.subr.bf16.mxu0 %v7370
        %9253 = vmatpush1.bf16.msra.mxu0 %v7369
        %9254 = vmatprep.subr.bf16.mxu0 %v7374
        %9255 = vmatpush1.bf16.msra.mxu0 %v7373
        %9256 = vmatprep.subr.bf16.mxu0 %v7378
        %9257 = vmatpush1.bf16.msra.mxu0 %v7377
        %9258 = vmatprep.subr.bf16.mxu0 %v7382
        %9259 = vmatpush1.bf16.msra.mxu0 %v7381
        %9260 = vmatprep.subr.bf16.mxu0 %v7386
        %9261 = vmatpush1.bf16.msra.mxu0 %v7385
        %9262 = vmatprep.subr.bf16.mxu0 %v7390
        %9263 = vmatpush1.bf16.msra.mxu0 %v7389
        %9264 = vmatprep.subr.bf16.mxu0 %v7394
        %9265 = vmatpush1.bf16.msra.mxu0 %v7393
        %9266 = vmatprep.subr.bf16.mxu0 %v7398
        %9267 = vmatpush1.bf16.msra.mxu0 %v7397
        %9268 = vmatprep.mubr.bf16.mxu0 %v3428
        %9269 = vmatmul.mubr.bf16.gmra.mrb[0].mxu0 %v3427
        %v9270 = vpop.f32.mrb[0].mxu0
        %v9271 = vadd.f32 %v9230, %v9270
        %v9272 = vpop.f32.mrb[0].mxu0
        %v9273 = vadd.f32 %v9232, %v9272
        %v9274 = vpop.f32.mrb[0].mxu0
        %v9275 = vpop.f32.mrb[0].mxu0
        %9276 = vdwg.mxu0
        %9277 = vmatprep.subr.bf16.mxu0 %v7402
        %9278 = vmatpush1.bf16.msra.mxu0 %v7401
        %9279 = vmatprep.subr.bf16.mxu0 %v7406
        %9280 = vmatpush1.bf16.msra.mxu0 %v7405
        %9281 = vmatprep.subr.bf16.mxu0 %v7410
        %9282 = vmatpush1.bf16.msra.mxu0 %v7409
        %9283 = vmatprep.subr.bf16.mxu0 %v7414
        %9284 = vmatpush1.bf16.msra.mxu0 %v7413
        %9285 = vmatprep.subr.bf16.mxu0 %v7418
        %9286 = vmatpush1.bf16.msra.mxu0 %v7417
        %9287 = vmatprep.subr.bf16.mxu0 %v7422
        %9288 = vmatpush1.bf16.msra.mxu0 %v7421
        %9289 = vmatprep.subr.bf16.mxu0 %v7426
        %9290 = vmatpush1.bf16.msra.mxu0 %v7425
        %9291 = vmatprep.subr.bf16.mxu0 %v7430
        %9292 = vmatpush1.bf16.msra.mxu0 %v7429
        %9293 = vmatprep.subr.bf16.mxu0 0
        %9294 = vmatpush1.bf16.msra.mxu0 0
        %9295 = vmatprep.subr.bf16.mxu0 0
        %9296 = vmatpush1.bf16.msra.mxu0 0
        %9297 = vmatprep.subr.bf16.mxu0 0
        %9298 = vmatpush1.bf16.msra.mxu0 0
        %9299 = vmatprep.subr.bf16.mxu0 0
        %9300 = vmatpush1.bf16.msra.mxu0 0
        %9301 = vmatprep.subr.bf16.mxu0 0
        %9302 = vmatpush1.bf16.msra.mxu0 0
        %9303 = vmatprep.subr.bf16.mxu0 0
        %9304 = vmatpush1.bf16.msra.mxu0 0
        %9305 = vmatprep.subr.bf16.mxu0 0
        %9306 = vmatpush1.bf16.msra.mxu0 0
        %9307 = vmatprep.subr.bf16.mxu0 0
        %9308 = vmatpush1.bf16.msra.mxu0 0
        %9309 = vmatprep.mubr.bf16.mxu0 0
        %9310 = vmatmul.mubr.bf16.gmra.mrb[0].mxu0 %v3429
        %v9311 = vpop.f32.mrb[0].mxu0
        %v9312 = vadd.f32 %v9271, %v9311
        %v9313 = vpop.f32.mrb[0].mxu0
        %v9314 = vadd.f32 %v9273, %v9313
        %v9315 = vpop.f32.mrb[0].mxu0
        %v9316 = vpop.f32.mrb[0].mxu0
        %9317 = vdwg.mxu0
        %v9318 = vmax.f32 %v8779, 0.0
        %v9319 = vmax.f32 %v8781, 0.0
        %v9320 = vmax.f32 %v9312, 0.0
        %v9321 = vmax.f32 %v9314, 0.0
        %v9322 = vpack.c.bf16 %v9318, %v9318
        %v9323 = vpack.c.bf16 %v9319, %v9319
        %v9324 = vpack.c.bf16 %v9320, %v9320
        %v9325 = vpack.c.bf16 %v9321, %v9321
        %v9326 = vld [vmem:[#allocation15] sm:$0xf]
        %v9327 = vld [vmem:[#allocation15 + $0x4] sm:$0xf]
        %v9328 = vld [vmem:[#allocation15 + $0x8] sm:$0xf]
        %v9329 = vld [vmem:[#allocation15 + $0xc] sm:$0xf]
        %v9330 = vld [vmem:[#allocation15 + $0x10] sm:$0xf]
        %v9331 = vld [vmem:[#allocation15 + $0x14] sm:$0xf]
        %v9332 = vld [vmem:[#allocation15 + $0x18] sm:$0xf]
        %v9333 = vld [vmem:[#allocation15 + $0x1c] sm:$0xf]
        %v9334 = vld [vmem:[#allocation15 + $0x20] sm:$0xf]
        %v9335 = vld [vmem:[#allocation15 + $0x24] sm:$0xf]
        %v9336 = vld [vmem:[#allocation15 + $0x28] sm:$0xf]
        %v9337 = vld [vmem:[#allocation15 + $0x2c] sm:$0xf]
        %v9338 = vld [vmem:[#allocation15 + $0x30] sm:$0xf]
        %v9339 = vld [vmem:[#allocation15 + $0x34] sm:$0xf]
        %v9340 = vld [vmem:[#allocation15 + $0x38] sm:$0xf]
        %v9341 = vld [vmem:[#allocation15 + $0x3c] sm:$0xf]
        %v9342 = vld [vmem:[#allocation15 + $0x40] sm:$0xf]
        %v9343 = vld [vmem:[#allocation15 + $0x44] sm:$0xf]
        %v9344 = vld [vmem:[#allocation15 + $0x48] sm:$0xf]
        %v9345 = vld [vmem:[#allocation15 + $0x4c] sm:$0xf]
        %v9346 = vld [vmem:[#allocation15 + $0x50] sm:$0xf]
        %v9347 = vld [vmem:[#allocation15 + $0x54] sm:$0xf]
        %v9348 = vld [vmem:[#allocation15 + $0x58] sm:$0xf]
        %v9349 = vld [vmem:[#allocation15 + $0x5c] sm:$0xf]
        %v9350 = vld [vmem:[#allocation15 + $0x60] sm:$0xf]
        %v9351 = vld [vmem:[#allocation15 + $0x64] sm:$0xf]
        %v9352 = vld [vmem:[#allocation15 + $0x68] sm:$0xf]
        %v9353 = vld [vmem:[#allocation15 + $0x6c] sm:$0xf]
        %v9354 = vld [vmem:[#allocation15 + $0x70] sm:$0xf]
        %v9355 = vld [vmem:[#allocation15 + $0x74] sm:$0xf]
        %v9356 = vld [vmem:[#allocation15 + $0x78] sm:$0xf]
        %v9357 = vld [vmem:[#allocation15 + $0x7c] sm:$0xf]
        %v9358 = vld [vmem:[#allocation15 + $0x80] sm:$0xf]
        %v9359 = vld [vmem:[#allocation15 + $0x84] sm:$0xf]
        %v9360 = vld [vmem:[#allocation15 + $0x88] sm:$0xf]
        %v9361 = vld [vmem:[#allocation15 + $0x8c] sm:$0xf]
        %v9362 = vld [vmem:[#allocation15 + $0x90] sm:$0xf]
        %v9363 = vld [vmem:[#allocation15 + $0x94] sm:$0xf]
        %v9364 = vld [vmem:[#allocation15 + $0x98] sm:$0xf]
        %v9365 = vld [vmem:[#allocation15 + $0x9c] sm:$0xf]
        %v9366 = vld [vmem:[#allocation15 + $0xa0] sm:$0xf]
        %v9367 = vld [vmem:[#allocation15 + $0xa4] sm:$0xf]
        %v9368 = vld [vmem:[#allocation15 + $0xa8] sm:$0xf]
        %v9369 = vld [vmem:[#allocation15 + $0xac] sm:$0xf]
        %v9370 = vld [vmem:[#allocation15 + $0xb0] sm:$0xf]
        %v9371 = vld [vmem:[#allocation15 + $0xb4] sm:$0xf]
        %v9372 = vld [vmem:[#allocation15 + $0xb8] sm:$0xf]
        %v9373 = vld [vmem:[#allocation15 + $0xbc] sm:$0xf]
        %v9374 = vld [vmem:[#allocation15 + $0xc0] sm:$0xf]
        %v9375 = vld [vmem:[#allocation15 + $0xc4] sm:$0xf]
        %v9376 = vld [vmem:[#allocation15 + $0xc8] sm:$0xf]
        %v9377 = vld [vmem:[#allocation15 + $0xcc] sm:$0xf]
        %v9378 = vld [vmem:[#allocation15 + $0xd0] sm:$0xf]
        %v9379 = vld [vmem:[#allocation15 + $0xd4] sm:$0xf]
        %v9380 = vld [vmem:[#allocation15 + $0xd8] sm:$0xf]
        %v9381 = vld [vmem:[#allocation15 + $0xdc] sm:$0xf]
        %v9382 = vld [vmem:[#allocation15 + $0xe0] sm:$0xf]
        %v9383 = vld [vmem:[#allocation15 + $0xe4] sm:$0xf]
        %v9384 = vld [vmem:[#allocation15 + $0xe8] sm:$0xf]
        %v9385 = vld [vmem:[#allocation15 + $0xec] sm:$0xf]
        %v9386 = vld [vmem:[#allocation15 + $0xf0] sm:$0xf]
        %v9387 = vld [vmem:[#allocation15 + $0xf4] sm:$0xf]
        %v9388 = vld [vmem:[#allocation15 + $0xf8] sm:$0xf]
        %v9389 = vld [vmem:[#allocation15 + $0xfc] sm:$0xf]
        %v9390 = vld [vmem:[#allocation16] sm:$0x1]
        %v9455 = vunpack.c.l.b16 %v9326
        %v9456 = vunpack.c.l.b16 %v9327
        %v9457 = vunpack.c.l.b16 %v9328
        %v9458 = vunpack.c.l.b16 %v9329
        %v9459 = vunpack.c.l.b16 %v9330
        %v9460 = vunpack.c.l.b16 %v9331
        %v9461 = vunpack.c.l.b16 %v9332
        %v9462 = vunpack.c.l.b16 %v9333
        %v9463 = vunpack.c.l.b16 %v9334
        %v9464 = vunpack.c.l.b16 %v9335
        %v9465 = vunpack.c.l.b16 %v9336
        %v9466 = vunpack.c.l.b16 %v9337
        %v9467 = vunpack.c.l.b16 %v9338
        %v9468 = vunpack.c.l.b16 %v9339
        %v9469 = vunpack.c.l.b16 %v9340
        %v9470 = vunpack.c.l.b16 %v9341
        %v9471 = vunpack.c.l.b16 %v9342
        %v9472 = vunpack.c.l.b16 %v9343
        %v9473 = vunpack.c.l.b16 %v9344
        %v9474 = vunpack.c.l.b16 %v9345
        %v9475 = vunpack.c.l.b16 %v9346
        %v9476 = vunpack.c.l.b16 %v9347
        %v9477 = vunpack.c.l.b16 %v9348
        %v9478 = vunpack.c.l.b16 %v9349
        %v9479 = vunpack.c.l.b16 %v9350
        %v9480 = vunpack.c.l.b16 %v9351
        %v9481 = vunpack.c.l.b16 %v9352
        %v9482 = vunpack.c.l.b16 %v9353
        %v9483 = vunpack.c.l.b16 %v9354
        %v9484 = vunpack.c.l.b16 %v9355
        %v9485 = vunpack.c.l.b16 %v9356
        %v9486 = vunpack.c.l.b16 %v9357
        %v9487 = vunpack.c.l.b16 %v9358
        %v9488 = vunpack.c.l.b16 %v9359
        %v9489 = vunpack.c.l.b16 %v9360
        %v9490 = vunpack.c.l.b16 %v9361
        %v9491 = vunpack.c.l.b16 %v9362
        %v9492 = vunpack.c.l.b16 %v9363
        %v9493 = vunpack.c.l.b16 %v9364
        %v9494 = vunpack.c.l.b16 %v9365
        %v9495 = vunpack.c.l.b16 %v9366
        %v9496 = vunpack.c.l.b16 %v9367
        %v9497 = vunpack.c.l.b16 %v9368
        %v9498 = vunpack.c.l.b16 %v9369
        %v9499 = vunpack.c.l.b16 %v9370
        %v9500 = vunpack.c.l.b16 %v9371
        %v9501 = vunpack.c.l.b16 %v9372
        %v9502 = vunpack.c.l.b16 %v9373
        %v9503 = vunpack.c.l.b16 %v9374
        %v9504 = vunpack.c.l.b16 %v9375
        %v9505 = vunpack.c.l.b16 %v9376
        %v9506 = vunpack.c.l.b16 %v9377
        %v9507 = vunpack.c.l.b16 %v9378
        %v9508 = vunpack.c.l.b16 %v9379
        %v9509 = vunpack.c.l.b16 %v9380
        %v9510 = vunpack.c.l.b16 %v9381
        %v9511 = vunpack.c.l.b16 %v9382
        %v9512 = vunpack.c.l.b16 %v9383
        %v9513 = vunpack.c.l.b16 %v9384
        %v9514 = vunpack.c.l.b16 %v9385
        %v9515 = vunpack.c.l.b16 %v9386
        %v9516 = vunpack.c.l.b16 %v9387
        %v9517 = vunpack.c.l.b16 %v9388
        %v9518 = vunpack.c.l.b16 %v9389
        %v9519 = vpack.c.b16 %v9456, %v9455
        %v9520 = vpack.c.b16 %v9458, %v9457
        %v9521 = vpack.c.b16 %v9460, %v9459
        %v9522 = vpack.c.b16 %v9462, %v9461
        %v9523 = vpack.c.b16 %v9464, %v9463
        %v9524 = vpack.c.b16 %v9466, %v9465
        %v9525 = vpack.c.b16 %v9468, %v9467
        %v9526 = vpack.c.b16 %v9470, %v9469
        %v9527 = vpack.c.b16 %v9472, %v9471
        %v9528 = vpack.c.b16 %v9474, %v9473
        %v9529 = vpack.c.b16 %v9476, %v9475
        %v9530 = vpack.c.b16 %v9478, %v9477
        %v9531 = vpack.c.b16 %v9480, %v9479
        %v9532 = vpack.c.b16 %v9482, %v9481
        %v9533 = vpack.c.b16 %v9484, %v9483
        %v9534 = vpack.c.b16 %v9486, %v9485
        %v9535 = vpack.c.b16 %v9488, %v9487
        %v9536 = vpack.c.b16 %v9490, %v9489
        %v9537 = vpack.c.b16 %v9492, %v9491
        %v9538 = vpack.c.b16 %v9494, %v9493
        %v9539 = vpack.c.b16 %v9496, %v9495
        %v9540 = vpack.c.b16 %v9498, %v9497
        %v9541 = vpack.c.b16 %v9500, %v9499
        %v9542 = vpack.c.b16 %v9502, %v9501
        %v9543 = vpack.c.b16 %v9504, %v9503
        %v9544 = vpack.c.b16 %v9506, %v9505
        %v9545 = vpack.c.b16 %v9508, %v9507
        %v9546 = vpack.c.b16 %v9510, %v9509
        %v9547 = vpack.c.b16 %v9512, %v9511
        %v9548 = vpack.c.b16 %v9514, %v9513
        %v9549 = vpack.c.b16 %v9516, %v9515
        %v9550 = vpack.c.b16 %v9518, %v9517
        %9583 = vmatprep.subr.bf16.mxu0 0
        %9584 = vmatpush1.bf16.msra.mxu0 %v9519
        %9585 = vmatprep.subr.bf16.mxu0 0
        %9586 = vmatpush1.bf16.msra.mxu0 %v9520
        %9587 = vmatprep.subr.bf16.mxu0 0
        %9588 = vmatpush1.bf16.msra.mxu0 %v9521
        %9589 = vmatprep.subr.bf16.mxu0 0
        %9590 = vmatpush1.bf16.msra.mxu0 %v9522
        %9591 = vmatprep.subr.bf16.mxu0 0
        %9592 = vmatpush1.bf16.msra.mxu0 %v9523
        %9593 = vmatprep.subr.bf16.mxu0 0
        %9594 = vmatpush1.bf16.msra.mxu0 %v9524
        %9595 = vmatprep.subr.bf16.mxu0 0
        %9596 = vmatpush1.bf16.msra.mxu0 %v9525
        %9597 = vmatprep.subr.bf16.mxu0 0
        %9598 = vmatpush1.bf16.msra.mxu0 %v9526
        %9599 = vmatprep.subr.bf16.mxu0 0
        %9600 = vmatpush1.bf16.msra.mxu0 %v9527
        %9601 = vmatprep.subr.bf16.mxu0 0
        %9602 = vmatpush1.bf16.msra.mxu0 %v9528
        %9603 = vmatprep.subr.bf16.mxu0 0
        %9604 = vmatpush1.bf16.msra.mxu0 %v9529
        %9605 = vmatprep.subr.bf16.mxu0 0
        %9606 = vmatpush1.bf16.msra.mxu0 %v9530
        %9607 = vmatprep.subr.bf16.mxu0 0
        %9608 = vmatpush1.bf16.msra.mxu0 %v9531
        %9609 = vmatprep.subr.bf16.mxu0 0
        %9610 = vmatpush1.bf16.msra.mxu0 %v9532
        %9611 = vmatprep.subr.bf16.mxu0 0
        %9612 = vmatpush1.bf16.msra.mxu0 %v9533
        %9613 = vmatprep.subr.bf16.mxu0 0
        %9614 = vmatpush1.bf16.msra.mxu0 %v9534
        %9615 = vmatprep.mubr.bf16.mxu0 %v9323
        %9616 = vmatmul.mubr.bf16.gmra.mrb[0].mxu0 %v9322
        %v9617 = vpop.f32.mrb[0].mxu0
        %v9618 = vadd.f32 %v9390, %v9617
        %v9619 = vpop.f32.mrb[0].mxu0
        %v9620 = vpop.f32.mrb[0].mxu0
        %v9621 = vpop.f32.mrb[0].mxu0
        %9622 = vdwg.mxu0
        %9623 = vmatprep.subr.bf16.mxu0 0
        %9624 = vmatpush1.bf16.msra.mxu0 %v9535
        %9625 = vmatprep.subr.bf16.mxu0 0
        %9626 = vmatpush1.bf16.msra.mxu0 %v9536
        %9627 = vmatprep.subr.bf16.mxu0 0
        %9628 = vmatpush1.bf16.msra.mxu0 %v9537
        %9629 = vmatprep.subr.bf16.mxu0 0
        %9630 = vmatpush1.bf16.msra.mxu0 %v9538
        %9631 = vmatprep.subr.bf16.mxu0 0
        %9632 = vmatpush1.bf16.msra.mxu0 %v9539
        %9633 = vmatprep.subr.bf16.mxu0 0
        %9634 = vmatpush1.bf16.msra.mxu0 %v9540
        %9635 = vmatprep.subr.bf16.mxu0 0
        %9636 = vmatpush1.bf16.msra.mxu0 %v9541
        %9637 = vmatprep.subr.bf16.mxu0 0
        %9638 = vmatpush1.bf16.msra.mxu0 %v9542
        %9639 = vmatprep.subr.bf16.mxu0 0
        %9640 = vmatpush1.bf16.msra.mxu0 %v9543
        %9641 = vmatprep.subr.bf16.mxu0 0
        %9642 = vmatpush1.bf16.msra.mxu0 %v9544
        %9643 = vmatprep.subr.bf16.mxu0 0
        %9644 = vmatpush1.bf16.msra.mxu0 %v9545
        %9645 = vmatprep.subr.bf16.mxu0 0
        %9646 = vmatpush1.bf16.msra.mxu0 %v9546
        %9647 = vmatprep.subr.bf16.mxu0 0
        %9648 = vmatpush1.bf16.msra.mxu0 %v9547
        %9649 = vmatprep.subr.bf16.mxu0 0
        %9650 = vmatpush1.bf16.msra.mxu0 %v9548
        %9651 = vmatprep.subr.bf16.mxu0 0
        %9652 = vmatpush1.bf16.msra.mxu0 %v9549
        %9653 = vmatprep.subr.bf16.mxu0 0
        %9654 = vmatpush1.bf16.msra.mxu0 %v9550
        %9655 = vmatprep.mubr.bf16.mxu0 %v9325
        %9656 = vmatmul.mubr.bf16.gmra.mrb[0].mxu0 %v9324
        %v9657 = vpop.f32.mrb[0].mxu0
        %v9658 = vadd.f32 %v9618, %v9657
        %v9659 = vpop.f32.mrb[0].mxu0
        %v9660 = vpop.f32.mrb[0].mxu0
        %v9661 = vpop.f32.mrb[0].mxu0
        %9662 = vdwg.mxu0
        %vm9663 = vcmask 1040384
        %v9664 = vsel %vm9663, %v9658, -inf
        %9665 = vmax.xlane.f32.xlu0 %v9664
        %v9666 = vpop.xlane.xlu0 %9665
        %v9667 = vsub.f32 %v9658, %v9666
        %v9668 = vmul.f32 %v9667, 1.442695
        %v9669 = vpow.pop %v9668
        %v9670 = vsel %vm9663, %v9669, 0.0
        %9671 = vadd.xlane.f32.xlu0 %v9670
        %v9672 = vpop.xlane.xlu0 %9671
        %v9673 = vlog2.pop %v9672
        %v9674 = vmul.f32 %v9673, 0.6931472
        %v9675 = vsub.f32 %v9667, %v9674
        %9676 = vst [vmem:[%s434] sm:$0x1] %v9675
        %s9677 = sand.u32 %s230, 1
        %s9678 = scalar_lea.sflag [#allocation6], %s9677
        %s9679 = sand.u32 %s230, 1
        %s9680 = scalar_lea.vmem [#allocation18], %s9679
        // Predicated region
        $region89: #{forward.1} parent=55 // pred_check
          %p9681 = pneg %p240
        $region90: #{forward.1} parent=55 // pred_check_branch
          %9683 = sbr.rel (%p9681) target = $region92
        $region91: #{forward.1} parent=55 // pred_region
          %s9685 = ssub.s32 16, 16
          %9686 = vsyncadd %s9678, %s9685
          %s9687 = smul.addr %s28, 16
          %s9688 = scalar_lea.hbm %s9, %s9687
          %s9690 = sshll.u32 %s9680, 4
          %s9691 = int_to_ptr.vmem [resolvable:$true] %s9690
          %9693 = dma.vmem_to_hbm [thread:$0]  %s9691, 16, %s9688, %s9678
        $region92: #{forward.1} parent=55 // pred_fallthru
          _
      $region56: #{forward.1} parent=5 // pred_fallthru
        _
      %p9694 = scmp.le.s32.totalorder 2, %s23
      // Predicated region
      $region93: #{forward.1} parent=5 // pred_check
        %p9695 = pneg %p9694
      $region94: #{forward.1} parent=5 // pred_check_branch
        %9697 = sbr.rel (%p9695) target = $region96
      $region95: #{forward.1} parent=5 // pred_region
        %s9698 = ssub.s32 %s23, 2
        // Predicated region
        $region97: #{forward.1} parent=95 // pred_check
          %p9699 = pneg %p246
        $region98: #{forward.1} parent=95 // pred_check_branch
          %9701 = sbr.rel (%p9699) target = $region100
        $region99: #{forward.1} parent=95 // pred_region
          %s9702 = sand.u32 %s231, 1
          %s9703 = scalar_lea.sflag [#allocation6], %s9702
          %s9704 = sand.u32 %s231, 1
          %s9705 = scalar_lea.vmem [#allocation18], %s9704
          %9706 = dma.done %s9703, 16
        $region100: #{forward.1} parent=95 // pred_fallthru
          _
      $region96: #{forward.1} parent=5 // pred_fallthru
        _
    $region6: #{forward.1} parent=1 // loop_footer
      %s27 = sadd.s32 1, %s23
    $region7: #{forward.1} parent=1 // loop_footer_branch
      %22 = sbr.rel target = $region3
    $region8: #{forward.1} parent=1 // loop_exit
      _
    %9707 = vsyncpa [#allocation5], 1
    %s9708 = scalar_lea.sflag [#allocation5], 1
    %9709 = vsyncpa %s9708, 1
    %9710 = vsyncpa [#allocation8], 1
    %9711 = vsyncpa [#allocation11], 1
    %9712 = vsyncpa [#allocation14], 1
    %9713 = vsyncpa [#allocation17], 1
    %9714 = vsyncpa [#allocation6], 1
    %s9715 = scalar_lea.sflag [#allocation6], 1
    %9716 = vsyncpa %s9715, 1

</llo_original>
